<compile_context>
chip_gen: v7x
topology: tpu7x:2x2x1
jax: 0.10.0
libtpu: 0.0.40
codegen_flags: <defaults>
</compile_context>

<pallas_src>
import jax
import jax.numpy as jnp
import numpy as np
from jax.experimental import pallas as pl
from jax.experimental.pallas import tpu as pltpu


def _round_up(x, m):
    return (x + m - 1) // m * m


_COMPILER_PARAMS = pltpu.CompilerParams(
    dimension_semantics=("parallel",),      # image tiles are independent
    vmem_limit_bytes=32 * 1024 * 1024,      # ~10 MiB actually used; safe on v5e/v6e/v7x
)

# Slab geometry (32x32 images, 5x5 valid convs, 2x2 pools).
_H = 32       # rows per image in every activation slab (row m = n*32 + h)
_XL = 128     # input slab lanes : (c in [0,4))*32 + w    (3 real channels)
_L1 = 256     # conv1 slab lanes : (oc in [0,8))*32 + w   (6 real channels)
_L2 = 256     # conv2 slab lanes : (oc in [0,16))*16 + w  (10 real columns)
_LF = 128     # fc lanes (120 / 84 / 10 real values, zero padded)


# ------------------------------ Pallas kernel --------------------------------

def _net_kernel(x_ref, b1_ref, c1b_ref, b2_ref, c2b_ref,
                w1_ref, f1b_ref, w2_ref, f2b_ref, w3_ref, f3b_ref, o_ref):
    """Whole forward pass for one tile of images, everything VMEM resident.

    Valid data lives on a progressively sparser (dilated) subset of rows and
    lanes; the garbage positions are never read for real outputs (the banded
    weight rows addressing them are zero) and never written to HBM.
    """
    R = x_ref.shape[0]                  # tb * 32 rows in this tile
    tb = o_ref.shape[0]                 # images in this tile
    f32 = jnp.float32

    def shift_rows(v, k):               # s[m, :] = v[m + k, :] (wrap -> garbage rows)
        return v if k == 0 else pltpu.roll(v, (R - k) % R, 0)

    def shift_lanes(v, k):              # s[:, l] = v[:, l + k]
        L = v.shape[1]
        return v if k == 0 else pltpu.roll(v, (L - k) % L, 1)

    x = x_ref[...]                                                   # (R, 128)

    # conv1 (5x5, 3->6) + bias + relu: 5 row-shifted banded matmuls.
    acc = jnp.dot(x, b1_ref[0], preferred_element_type=f32)
    for ki in range(1, 5):
        acc = acc + jnp.dot(shift_rows(x, ki), b1_ref[ki],
                            preferred_element_type=f32)
    a1 = jnp.maximum(acc + c1b_ref[...], 0.0)                        # (R, 256)

    # maxpool 2x2 in place (valid results at even rows / even-w lanes).
    a1 = jnp.maximum(a1, shift_lanes(a1, 1))
    a1 = jnp.maximum(a1, shift_rows(a1, 1))

    # conv2 (5x5, 6->16) + bias + relu on the dilated layout (row stride 2).
    acc = jnp.dot(a1, b2_ref[0], preferred_element_type=f32)
    for ki in range(1, 5):
        acc = acc + jnp.dot(shift_rows(a1, 2 * ki), b2_ref[ki],
                            preferred_element_type=f32)
    a2 = jnp.maximum(acc + c2b_ref[...], 0.0)                        # (R, 256)

    # maxpool 2x2 in place (row stride 2, lane stride 1 inside channel blocks).
    a2 = jnp.maximum(a2, shift_lanes(a2, 1))
    a2 = jnp.maximum(a2, shift_rows(a2, 2))

    # fc1 (400->120) + relu: 5 row-shifted matmuls over the dilated layout.
    h = jnp.dot(a2, w1_ref[0], preferred_element_type=f32)
    for ai in range(1, 5):
        h = h + jnp.dot(shift_rows(a2, 4 * ai), w1_ref[ai],
                        preferred_element_type=f32)
    h = jnp.maximum(h + f1b_ref[...], 0.0)                           # (R, 128); real rows n*32

    # Compact one row per image with a 0/1 selection matmul (lane-dense output).
    pos = jax.lax.broadcasted_iota(jnp.int32, (tb, R), 1)
    img = jax.lax.broadcasted_iota(jnp.int32, (tb, R), 0)
    sel = (pos == _H * img).astype(f32)                              # (tb, R)
    hc = jnp.dot(sel, h, preferred_element_type=f32)                 # (tb, 128)

    # fc2 (120->84) + relu, fc3 (84->10).
    hc = jnp.maximum(jnp.dot(hc, w2_ref[...], preferred_element_type=f32)
                     + f2b_ref[...], 0.0)
    o_ref[...] = (jnp.dot(hc, w3_ref[...], preferred_element_type=f32)
                  + f3b_ref[...])


# ---------------------- banded / padded weight building ----------------------

def _conv1_banded(w):
    """(6, 3, 5, 5) -> (5, 128, 256): B[ki][c*32 + w_in, oc*32 + ow] = w[oc,c,ki,w_in-ow]."""
    e = np.zeros((5, 32, 32), np.float32)
    for kj in range(5):
        for ow in range(28):
            e[kj, ow + kj, ow] = 1.0
    b = jnp.einsum("ockj,jiw->kciow", w, jnp.asarray(e))     # (5, 3, 32, 6, 32)
    b = b.reshape(5, 96, 192)
    return jnp.pad(b, ((0, 0), (0, _XL - 96), (0, _L1 - 192)))


def _conv2_banded(w):
    """(16, 6, 5, 5) -> (5, 256, 256): reads pooled conv1 at dilated (even) lanes."""
    e = np.zeros((5, 32, 16), np.float32)
    for kj in range(5):
        for ow in range(10):
            e[kj, 2 * (ow + kj), ow] = 1.0
    b = jnp.einsum("ockj,jiw->kciow", w, jnp.asarray(e))     # (5, 6, 32, 16, 16)
    b = b.reshape(5, 192, 256)
    return jnp.pad(b, ((0, 0), (0, _L1 - 192), (0, 0)))


def _fc1_blocks(w):
    """(400, 120) -> (5, 256, 128): row oc*16 + 2*b of block a holds fc1_w[oc*25+a*5+b]."""
    w = w.reshape(16, 5, 5, 120).transpose(1, 0, 2, 3)       # (a, oc, b, j)
    blk = jnp.zeros((5, 16, 16, 120), w.dtype)
    blk = blk.at[:, :, 0:10:2, :].set(w)                     # pooled column b lives at lane 2*b
    blk = blk.reshape(5, 256, 120)
    return jnp.pad(blk, ((0, 0), (0, 0), (0, _LF - 120)))


# ------------------------------ forward wrapper -------------------------------

def net_forward_pallas(params, x):
    n = x.shape[0]
    n_pad = _round_up(n, 8)
    tb = 16 if (n_pad % 16 == 0 and n_pad >= 32) else 8      # >=2 grid steps when batch >= 16
    rows = tb * _H

    # Raw NCHW input -> slab: row (n, h), lane (c*32 + w); lanes zero-padded 96 -> 128.
    xp = jnp.pad(x.astype(jnp.float32),
                 ((0, n_pad - n), (0, 0), (0, 0), (0, 0)))
    slab = xp.transpose(0, 2, 1, 3).reshape(n_pad * _H, 96)
    slab = jnp.pad(slab, ((0, 0), (0, _XL - 96)))

    b1 = _conv1_banded(params["conv1_w"])
    c1b = jnp.pad(jnp.repeat(params["conv1_b"], 32), (0, _L1 - 192)).reshape(1, _L1)
    b2 = _conv2_banded(params["conv2_w"])
    c2b = jnp.repeat(params["conv2_b"], 16).reshape(1, _L2)
    w1 = _fc1_blocks(params["fc1_w"])
    f1b = jnp.pad(params["fc1_b"], (0, _LF - 120)).reshape(1, _LF)
    w2 = jnp.pad(params["fc2_w"], ((0, _LF - 120), (0, _LF - 84)))
    f2b = jnp.pad(params["fc2_b"], (0, _LF - 84)).reshape(1, _LF)
    w3 = jnp.pad(params["fc3_w"], ((0, _LF - 84), (0, _LF - 10)))
    f3b = jnp.pad(params["fc3_b"], (0, _LF - 10)).reshape(1, _LF)

    def resident(shape):
        zeros = (0,) * len(shape)
        return pl.BlockSpec(shape, lambda i: zeros)

    out = pl.pallas_call(
        _net_kernel,
        out_shape=jax.ShapeDtypeStruct((n_pad, _LF), jnp.float32),
        grid=(n_pad // tb,),
        in_specs=[
            pl.BlockSpec((rows, _XL), lambda i: (i, 0)),     # image tile (pipelined)
            resident(b1.shape), resident(c1b.shape),
            resident(b2.shape), resident(c2b.shape),
            resident(w1.shape), resident(f1b.shape),
            resident(w2.shape), resident(f2b.shape),
            resident(w3.shape), resident(f3b.shape),
        ],
        out_specs=pl.BlockSpec((tb, _LF), lambda i: (i, 0)),
        compiler_params=_COMPILER_PARAMS,
    )(slab, b1, c1b, b2, c2b, w1, f1b, w2, f2b, w3, f3b)

    return out[:n, :10]


# ------------------------------ params & driver -------------------------------

def init_params(key):
    """Deterministic PyTorch-style uniform(-1/sqrt(fan_in), +1/sqrt(fan_in))."""
    def uni(k, shape, fan_in):
        bound = 1.0 / (fan_in ** 0.5)
        return jax.random.uniform(k, shape, jnp.float32, -bound, bound)

    ks = jax.random.split(key, 10)
    return {
        "conv1_w": uni(ks[0], (6, 3, 5, 5), 3 * 25),
        "conv1_b": uni(ks[1], (6,), 3 * 25),
        "conv2_w": uni(ks[2], (16, 6, 5, 5), 6 * 25),
        "conv2_b": uni(ks[3], (16,), 6 * 25),
        "fc1_w": uni(ks[4], (400, 120), 400),      # (in, out); transpose real torch ckpts
        "fc1_b": uni(ks[5], (120,), 400),
        "fc2_w": uni(ks[6], (120, 84), 120),
        "fc2_b": uni(ks[7], (84,), 120),
        "fc3_w": uni(ks[8], (84, 10), 84),
        "fc3_b": uni(ks[9], (10,), 84),
    }


@jax.jit
def net_forward(params, x):
    # x: (N, 3, 32, 32) NCHW float32 -> (N, 10) logits
    return net_forward_pallas(params, x)


if __name__ == "__main__":
    key = jax.random.PRNGKey(0)
    kp, kx = jax.random.split(key)
    params = init_params(kp)
    x = jax.random.normal(kx, (2, 3, 32, 32), jnp.float32)   # NCHW, like PyTorch
    out = net_forward(params, x)
    jax.block_until_ready(out)
    assert out.shape == (2, 10) and out.dtype == jnp.float32
    print("KERNEL_OK")
</pallas_src>

<mosaic_0001>
module attributes {stable_mosaic.version = 11 : i64} {
  func.func @_net_kernel(%arg0: i32, %arg1: memref<256x128xf32, #tpu.memory_space<vmem>>, %arg2: memref<5x128x256xf32, #tpu.memory_space<vmem>>, %arg3: memref<1x256xf32, #tpu.memory_space<vmem>>, %arg4: memref<5x256x256xf32, #tpu.memory_space<vmem>>, %arg5: memref<1x256xf32, #tpu.memory_space<vmem>>, %arg6: memref<5x256x128xf32, #tpu.memory_space<vmem>>, %arg7: memref<1x128xf32, #tpu.memory_space<vmem>>, %arg8: memref<128x128xf32, #tpu.memory_space<vmem>>, %arg9: memref<1x128xf32, #tpu.memory_space<vmem>>, %arg10: memref<128x128xf32, #tpu.memory_space<vmem>>, %arg11: memref<1x128xf32, #tpu.memory_space<vmem>>, %arg12: memref<8x128xf32, #tpu.memory_space<vmem>>) attributes {dimension_semantics = [#tpu.dimension_semantics<parallel>], iteration_bounds = array<i64: 1>, scalar_prefetch = 0 : i64, scratch_operands = 0 : i64, tpu.core_type = #tpu.core_type<tc>, window_params = [{transform_indices = @transform_0, window_bounds = array<i64: 256, 128>}, {pipeline_mode = #tpu.pipeline_mode<synchronous>, transform_indices = @transform_1, window_bounds = array<i64: 5, 128, 256>}, {pipeline_mode = #tpu.pipeline_mode<synchronous>, transform_indices = @transform_2, window_bounds = array<i64: 1, 256>}, {pipeline_mode = #tpu.pipeline_mode<synchronous>, transform_indices = @transform_3, window_bounds = array<i64: 5, 256, 256>}, {pipeline_mode = #tpu.pipeline_mode<synchronous>, transform_indices = @transform_4, window_bounds = array<i64: 1, 256>}, {pipeline_mode = #tpu.pipeline_mode<synchronous>, transform_indices = @transform_5, window_bounds = array<i64: 5, 256, 128>}, {pipeline_mode = #tpu.pipeline_mode<synchronous>, transform_indices = @transform_6, window_bounds = array<i64: 1, 128>}, {pipeline_mode = #tpu.pipeline_mode<synchronous>, transform_indices = @transform_7, window_bounds = array<i64: 128, 128>}, {pipeline_mode = #tpu.pipeline_mode<synchronous>, transform_indices = @transform_8, window_bounds = array<i64: 1, 128>}, {pipeline_mode = #tpu.pipeline_mode<synchronous>, transform_indices = @transform_9, window_bounds = array<i64: 128, 128>}, {pipeline_mode = #tpu.pipeline_mode<synchronous>, transform_indices = @transform_10, window_bounds = array<i64: 1, 128>}, {transform_indices = @transform_11, window_bounds = array<i64: 8, 128>}]} {
    %c0 = arith.constant 0 : index
    %c0_0 = arith.constant 0 : index
    %0 = vector.load %arg1[%c0, %c0_0] : memref<256x128xf32, #tpu.memory_space<vmem>>, vector<256x128xf32>
    %c0_1 = arith.constant 0 : index
    %c0_2 = arith.constant 0 : index
    %c0_3 = arith.constant 0 : index
    %1 = vector.load %arg2[%c0_1, %c0_2, %c0_3] : memref<5x128x256xf32, #tpu.memory_space<vmem>>, vector<1x128x256xf32>
    %2 = vector.shape_cast %1 : vector<1x128x256xf32> to vector<128x256xf32>
    %cst = arith.constant dense<0.000000e+00> : vector<256x256xf32>
    %3 = tpu.matmul %0, %2, %cst {dimension_numbers = #tpu.dot_dimension_numbers<[1], [0], [0], [1], [0, 0, 1, 1], [], []>} : vector<256x128xf32>, vector<128x256xf32>, vector<256x256xf32> -> vector<256x256xf32>
    %c255_i32 = arith.constant 255 : i32
    %4 = tpu.dynamic_rotate %0 by %c255_i32 dim 0 : vector<256x128xf32>, i32 -> vector<256x128xf32>
    %c1 = arith.constant 1 : index
    %c0_4 = arith.constant 0 : index
    %c0_5 = arith.constant 0 : index
    %5 = vector.load %arg2[%c1, %c0_4, %c0_5] : memref<5x128x256xf32, #tpu.memory_space<vmem>>, vector<1x128x256xf32>
    %6 = vector.shape_cast %5 : vector<1x128x256xf32> to vector<128x256xf32>
    %cst_6 = arith.constant dense<0.000000e+00> : vector<256x256xf32>
    %7 = tpu.matmul %4, %6, %cst_6 {dimension_numbers = #tpu.dot_dimension_numbers<[1], [0], [0], [1], [0, 0, 1, 1], [], []>} : vector<256x128xf32>, vector<128x256xf32>, vector<256x256xf32> -> vector<256x256xf32>
    %8 = arith.addf %3, %7 : vector<256x256xf32>
    %c254_i32 = arith.constant 254 : i32
    %9 = tpu.dynamic_rotate %0 by %c254_i32 dim 0 : vector<256x128xf32>, i32 -> vector<256x128xf32>
    %c2 = arith.constant 2 : index
    %c0_7 = arith.constant 0 : index
    %c0_8 = arith.constant 0 : index
    %10 = vector.load %arg2[%c2, %c0_7, %c0_8] : memref<5x128x256xf32, #tpu.memory_space<vmem>>, vector<1x128x256xf32>
    %11 = vector.shape_cast %10 : vector<1x128x256xf32> to vector<128x256xf32>
    %cst_9 = arith.constant dense<0.000000e+00> : vector<256x256xf32>
    %12 = tpu.matmul %9, %11, %cst_9 {dimension_numbers = #tpu.dot_dimension_numbers<[1], [0], [0], [1], [0, 0, 1, 1], [], []>} : vector<256x128xf32>, vector<128x256xf32>, vector<256x256xf32> -> vector<256x256xf32>
    %13 = arith.addf %8, %12 : vector<256x256xf32>
    %c253_i32 = arith.constant 253 : i32
    %14 = tpu.dynamic_rotate %0 by %c253_i32 dim 0 : vector<256x128xf32>, i32 -> vector<256x128xf32>
    %c3 = arith.constant 3 : index
    %c0_10 = arith.constant 0 : index
    %c0_11 = arith.constant 0 : index
    %15 = vector.load %arg2[%c3, %c0_10, %c0_11] : memref<5x128x256xf32, #tpu.memory_space<vmem>>, vector<1x128x256xf32>
    %16 = vector.shape_cast %15 : vector<1x128x256xf32> to vector<128x256xf32>
    %cst_12 = arith.constant dense<0.000000e+00> : vector<256x256xf32>
    %17 = tpu.matmul %14, %16, %cst_12 {dimension_numbers = #tpu.dot_dimension_numbers<[1], [0], [0], [1], [0, 0, 1, 1], [], []>} : vector<256x128xf32>, vector<128x256xf32>, vector<256x256xf32> -> vector<256x256xf32>
    %18 = arith.addf %13, %17 : vector<256x256xf32>
    %c252_i32 = arith.constant 252 : i32
    %19 = tpu.dynamic_rotate %0 by %c252_i32 dim 0 : vector<256x128xf32>, i32 -> vector<256x128xf32>
    %c4 = arith.constant 4 : index
    %c0_13 = arith.constant 0 : index
    %c0_14 = arith.constant 0 : index
    %20 = vector.load %arg2[%c4, %c0_13, %c0_14] : memref<5x128x256xf32, #tpu.memory_space<vmem>>, vector<1x128x256xf32>
    %21 = vector.shape_cast %20 : vector<1x128x256xf32> to vector<128x256xf32>
    %cst_15 = arith.constant dense<0.000000e+00> : vector<256x256xf32>
    %22 = tpu.matmul %19, %21, %cst_15 {dimension_numbers = #tpu.dot_dimension_numbers<[1], [0], [0], [1], [0, 0, 1, 1], [], []>} : vector<256x128xf32>, vector<128x256xf32>, vector<256x256xf32> -> vector<256x256xf32>
    %23 = arith.addf %18, %22 : vector<256x256xf32>
    %c0_16 = arith.constant 0 : index
    %c0_17 = arith.constant 0 : index
    %24 = vector.load %arg3[%c0_16, %c0_17] : memref<1x256xf32, #tpu.memory_space<vmem>>, vector<1x256xf32>
    %25 = vector.broadcast %24 : vector<1x256xf32> to vector<256x256xf32>
    %26 = arith.addf %23, %25 : vector<256x256xf32>
    %cst_18 = arith.constant 0.000000e+00 : f32
    %27 = vector.broadcast %cst_18 : f32 to vector<256x256xf32>
    %28 = arith.maximumf %26, %27 : vector<256x256xf32>
    %c255_i32_19 = arith.constant 255 : i32
    %29 = tpu.dynamic_rotate %28 by %c255_i32_19 dim 1 : vector<256x256xf32>, i32 -> vector<256x256xf32>
    %30 = arith.maximumf %28, %29 : vector<256x256xf32>
    %c255_i32_20 = arith.constant 255 : i32
    %31 = tpu.dynamic_rotate %30 by %c255_i32_20 dim 0 : vector<256x256xf32>, i32 -> vector<256x256xf32>
    %32 = arith.maximumf %30, %31 : vector<256x256xf32>
    %c0_21 = arith.constant 0 : index
    %c0_22 = arith.constant 0 : index
    %c0_23 = arith.constant 0 : index
    %33 = vector.load %arg4[%c0_21, %c0_22, %c0_23] : memref<5x256x256xf32, #tpu.memory_space<vmem>>, vector<1x256x256xf32>
    %34 = vector.shape_cast %33 : vector<1x256x256xf32> to vector<256x256xf32>
    %cst_24 = arith.constant dense<0.000000e+00> : vector<256x256xf32>
    %35 = tpu.matmul %32, %34, %cst_24 {dimension_numbers = #tpu.dot_dimension_numbers<[1], [0], [0], [1], [0, 0, 1, 1], [], []>} : vector<256x256xf32>, vector<256x256xf32>, vector<256x256xf32> -> vector<256x256xf32>
    %c254_i32_25 = arith.constant 254 : i32
    %36 = tpu.dynamic_rotate %32 by %c254_i32_25 dim 0 : vector<256x256xf32>, i32 -> vector<256x256xf32>
    %c1_26 = arith.constant 1 : index
    %c0_27 = arith.constant 0 : index
    %c0_28 = arith.constant 0 : index
    %37 = vector.load %arg4[%c1_26, %c0_27, %c0_28] : memref<5x256x256xf32, #tpu.memory_space<vmem>>, vector<1x256x256xf32>
    %38 = vector.shape_cast %37 : vector<1x256x256xf32> to vector<256x256xf32>
    %cst_29 = arith.constant dense<0.000000e+00> : vector<256x256xf32>
    %39 = tpu.matmul %36, %38, %cst_29 {dimension_numbers = #tpu.dot_dimension_numbers<[1], [0], [0], [1], [0, 0, 1, 1], [], []>} : vector<256x256xf32>, vector<256x256xf32>, vector<256x256xf32> -> vector<256x256xf32>
    %40 = arith.addf %35, %39 : vector<256x256xf32>
    %c252_i32_30 = arith.constant 252 : i32
    %41 = tpu.dynamic_rotate %32 by %c252_i32_30 dim 0 : vector<256x256xf32>, i32 -> vector<256x256xf32>
    %c2_31 = arith.constant 2 : index
    %c0_32 = arith.constant 0 : index
    %c0_33 = arith.constant 0 : index
    %42 = vector.load %arg4[%c2_31, %c0_32, %c0_33] : memref<5x256x256xf32, #tpu.memory_space<vmem>>, vector<1x256x256xf32>
    %43 = vector.shape_cast %42 : vector<1x256x256xf32> to vector<256x256xf32>
    %cst_34 = arith.constant dense<0.000000e+00> : vector<256x256xf32>
    %44 = tpu.matmul %41, %43, %cst_34 {dimension_numbers = #tpu.dot_dimension_numbers<[1], [0], [0], [1], [0, 0, 1, 1], [], []>} : vector<256x256xf32>, vector<256x256xf32>, vector<256x256xf32> -> vector<256x256xf32>
    %45 = arith.addf %40, %44 : vector<256x256xf32>
    %c250_i32 = arith.constant 250 : i32
    %46 = tpu.dynamic_rotate %32 by %c250_i32 dim 0 : vector<256x256xf32>, i32 -> vector<256x256xf32>
    %c3_35 = arith.constant 3 : index
    %c0_36 = arith.constant 0 : index
    %c0_37 = arith.constant 0 : index
    %47 = vector.load %arg4[%c3_35, %c0_36, %c0_37] : memref<5x256x256xf32, #tpu.memory_space<vmem>>, vector<1x256x256xf32>
    %48 = vector.shape_cast %47 : vector<1x256x256xf32> to vector<256x256xf32>
    %cst_38 = arith.constant dense<0.000000e+00> : vector<256x256xf32>
    %49 = tpu.matmul %46, %48, %cst_38 {dimension_numbers = #tpu.dot_dimension_numbers<[1], [0], [0], [1], [0, 0, 1, 1], [], []>} : vector<256x256xf32>, vector<256x256xf32>, vector<256x256xf32> -> vector<256x256xf32>
    %50 = arith.addf %45, %49 : vector<256x256xf32>
    %c248_i32 = arith.constant 248 : i32
    %51 = tpu.dynamic_rotate %32 by %c248_i32 dim 0 : vector<256x256xf32>, i32 -> vector<256x256xf32>
    %c4_39 = arith.constant 4 : index
    %c0_40 = arith.constant 0 : index
    %c0_41 = arith.constant 0 : index
    %52 = vector.load %arg4[%c4_39, %c0_40, %c0_41] : memref<5x256x256xf32, #tpu.memory_space<vmem>>, vector<1x256x256xf32>
    %53 = vector.shape_cast %52 : vector<1x256x256xf32> to vector<256x256xf32>
    %cst_42 = arith.constant dense<0.000000e+00> : vector<256x256xf32>
    %54 = tpu.matmul %51, %53, %cst_42 {dimension_numbers = #tpu.dot_dimension_numbers<[1], [0], [0], [1], [0, 0, 1, 1], [], []>} : vector<256x256xf32>, vector<256x256xf32>, vector<256x256xf32> -> vector<256x256xf32>
    %55 = arith.addf %50, %54 : vector<256x256xf32>
    %c0_43 = arith.constant 0 : index
    %c0_44 = arith.constant 0 : index
    %56 = vector.load %arg5[%c0_43, %c0_44] : memref<1x256xf32, #tpu.memory_space<vmem>>, vector<1x256xf32>
    %57 = vector.broadcast %56 : vector<1x256xf32> to vector<256x256xf32>
    %58 = arith.addf %55, %57 : vector<256x256xf32>
    %cst_45 = arith.constant 0.000000e+00 : f32
    %59 = vector.broadcast %cst_45 : f32 to vector<256x256xf32>
    %60 = arith.maximumf %58, %59 : vector<256x256xf32>
    %c255_i32_46 = arith.constant 255 : i32
    %61 = tpu.dynamic_rotate %60 by %c255_i32_46 dim 1 : vector<256x256xf32>, i32 -> vector<256x256xf32>
    %62 = arith.maximumf %60, %61 : vector<256x256xf32>
    %c254_i32_47 = arith.constant 254 : i32
    %63 = tpu.dynamic_rotate %62 by %c254_i32_47 dim 0 : vector<256x256xf32>, i32 -> vector<256x256xf32>
    %64 = arith.maximumf %62, %63 : vector<256x256xf32>
    %c0_48 = arith.constant 0 : index
    %c0_49 = arith.constant 0 : index
    %c0_50 = arith.constant 0 : index
    %65 = vector.load %arg6[%c0_48, %c0_49, %c0_50] : memref<5x256x128xf32, #tpu.memory_space<vmem>>, vector<1x256x128xf32>
    %66 = vector.shape_cast %65 : vector<1x256x128xf32> to vector<256x128xf32>
    %cst_51 = arith.constant dense<0.000000e+00> : vector<256x128xf32>
    %67 = tpu.matmul %64, %66, %cst_51 {dimension_numbers = #tpu.dot_dimension_numbers<[1], [0], [0], [1], [0, 0, 1, 1], [], []>} : vector<256x256xf32>, vector<256x128xf32>, vector<256x128xf32> -> vector<256x128xf32>
    %c252_i32_52 = arith.constant 252 : i32
    %68 = tpu.dynamic_rotate %64 by %c252_i32_52 dim 0 : vector<256x256xf32>, i32 -> vector<256x256xf32>
    %c1_53 = arith.constant 1 : index
    %c0_54 = arith.constant 0 : index
    %c0_55 = arith.constant 0 : index
    %69 = vector.load %arg6[%c1_53, %c0_54, %c0_55] : memref<5x256x128xf32, #tpu.memory_space<vmem>>, vector<1x256x128xf32>
    %70 = vector.shape_cast %69 : vector<1x256x128xf32> to vector<256x128xf32>
    %cst_56 = arith.constant dense<0.000000e+00> : vector<256x128xf32>
    %71 = tpu.matmul %68, %70, %cst_56 {dimension_numbers = #tpu.dot_dimension_numbers<[1], [0], [0], [1], [0, 0, 1, 1], [], []>} : vector<256x256xf32>, vector<256x128xf32>, vector<256x128xf32> -> vector<256x128xf32>
    %72 = arith.addf %67, %71 : vector<256x128xf32>
    %c248_i32_57 = arith.constant 248 : i32
    %73 = tpu.dynamic_rotate %64 by %c248_i32_57 dim 0 : vector<256x256xf32>, i32 -> vector<256x256xf32>
    %c2_58 = arith.constant 2 : index
    %c0_59 = arith.constant 0 : index
    %c0_60 = arith.constant 0 : index
    %74 = vector.load %arg6[%c2_58, %c0_59, %c0_60] : memref<5x256x128xf32, #tpu.memory_space<vmem>>, vector<1x256x128xf32>
    %75 = vector.shape_cast %74 : vector<1x256x128xf32> to vector<256x128xf32>
    %cst_61 = arith.constant dense<0.000000e+00> : vector<256x128xf32>
    %76 = tpu.matmul %73, %75, %cst_61 {dimension_numbers = #tpu.dot_dimension_numbers<[1], [0], [0], [1], [0, 0, 1, 1], [], []>} : vector<256x256xf32>, vector<256x128xf32>, vector<256x128xf32> -> vector<256x128xf32>
    %77 = arith.addf %72, %76 : vector<256x128xf32>
    %c244_i32 = arith.constant 244 : i32
    %78 = tpu.dynamic_rotate %64 by %c244_i32 dim 0 : vector<256x256xf32>, i32 -> vector<256x256xf32>
    %c3_62 = arith.constant 3 : index
    %c0_63 = arith.constant 0 : index
    %c0_64 = arith.constant 0 : index
    %79 = vector.load %arg6[%c3_62, %c0_63, %c0_64] : memref<5x256x128xf32, #tpu.memory_space<vmem>>, vector<1x256x128xf32>
    %80 = vector.shape_cast %79 : vector<1x256x128xf32> to vector<256x128xf32>
    %cst_65 = arith.constant dense<0.000000e+00> : vector<256x128xf32>
    %81 = tpu.matmul %78, %80, %cst_65 {dimension_numbers = #tpu.dot_dimension_numbers<[1], [0], [0], [1], [0, 0, 1, 1], [], []>} : vector<256x256xf32>, vector<256x128xf32>, vector<256x128xf32> -> vector<256x128xf32>
    %82 = arith.addf %77, %81 : vector<256x128xf32>
    %c240_i32 = arith.constant 240 : i32
    %83 = tpu.dynamic_rotate %64 by %c240_i32 dim 0 : vector<256x256xf32>, i32 -> vector<256x256xf32>
    %c4_66 = arith.constant 4 : index
    %c0_67 = arith.constant 0 : index
    %c0_68 = arith.constant 0 : index
    %84 = vector.load %arg6[%c4_66, %c0_67, %c0_68] : memref<5x256x128xf32, #tpu.memory_space<vmem>>, vector<1x256x128xf32>
    %85 = vector.shape_cast %84 : vector<1x256x128xf32> to vector<256x128xf32>
    %cst_69 = arith.constant dense<0.000000e+00> : vector<256x128xf32>
    %86 = tpu.matmul %83, %85, %cst_69 {dimension_numbers = #tpu.dot_dimension_numbers<[1], [0], [0], [1], [0, 0, 1, 1], [], []>} : vector<256x256xf32>, vector<256x128xf32>, vector<256x128xf32> -> vector<256x128xf32>
    %87 = arith.addf %82, %86 : vector<256x128xf32>
    %c0_70 = arith.constant 0 : index
    %c0_71 = arith.constant 0 : index
    %88 = vector.load %arg7[%c0_70, %c0_71] : memref<1x128xf32, #tpu.memory_space<vmem>>, vector<1x128xf32>
    %89 = vector.broadcast %88 : vector<1x128xf32> to vector<256x128xf32>
    %90 = arith.addf %87, %89 : vector<256x128xf32>
    %cst_72 = arith.constant 0.000000e+00 : f32
    %91 = vector.broadcast %cst_72 : f32 to vector<256x128xf32>
    %92 = arith.maximumf %90, %91 : vector<256x128xf32>
    %93 = tpu.iota {dimensions = array<i32: 1>} : vector<8x256xi32>
    %94 = tpu.iota {dimensions = array<i32: 0>} : vector<8x256xi32>
    %c32_i32 = arith.constant 32 : i32
    %95 = vector.broadcast %c32_i32 : i32 to vector<8x256xi32>
    %96 = arith.muli %95, %94 : vector<8x256xi32>
    %97 = arith.cmpi eq, %93, %96 : vector<8x256xi32>
    %98 = arith.extui %97 : vector<8x256xi1> to vector<8x256xi32>
    %99 = arith.sitofp %98 : vector<8x256xi32> to vector<8x256xf32>
    %cst_73 = arith.constant dense<0.000000e+00> : vector<8x128xf32>
    %100 = tpu.matmul %99, %92, %cst_73 {dimension_numbers = #tpu.dot_dimension_numbers<[1], [0], [0], [1], [0, 0, 1, 1], [], []>} : vector<8x256xf32>, vector<256x128xf32>, vector<8x128xf32> -> vector<8x128xf32>
    %c0_74 = arith.constant 0 : index
    %c0_75 = arith.constant 0 : index
    %101 = vector.load %arg8[%c0_74, %c0_75] : memref<128x128xf32, #tpu.memory_space<vmem>>, vector<128x128xf32>
    %cst_76 = arith.constant dense<0.000000e+00> : vector<8x128xf32>
    %102 = tpu.matmul %100, %101, %cst_76 {dimension_numbers = #tpu.dot_dimension_numbers<[1], [0], [0], [1], [0, 0, 1, 1], [], []>} : vector<8x128xf32>, vector<128x128xf32>, vector<8x128xf32> -> vector<8x128xf32>
    %c0_77 = arith.constant 0 : index
    %c0_78 = arith.constant 0 : index
    %103 = vector.load %arg9[%c0_77, %c0_78] : memref<1x128xf32, #tpu.memory_space<vmem>>, vector<1x128xf32>
    %104 = vector.broadcast %103 : vector<1x128xf32> to vector<8x128xf32>
    %105 = arith.addf %102, %104 : vector<8x128xf32>
    %cst_79 = arith.constant 0.000000e+00 : f32
    %106 = vector.broadcast %cst_79 : f32 to vector<8x128xf32>
    %107 = arith.maximumf %105, %106 : vector<8x128xf32>
    %c0_80 = arith.constant 0 : index
    %c0_81 = arith.constant 0 : index
    %108 = vector.load %arg10[%c0_80, %c0_81] : memref<128x128xf32, #tpu.memory_space<vmem>>, vector<128x128xf32>
    %cst_82 = arith.constant dense<0.000000e+00> : vector<8x128xf32>
    %109 = tpu.matmul %107, %108, %cst_82 {dimension_numbers = #tpu.dot_dimension_numbers<[1], [0], [0], [1], [0, 0, 1, 1], [], []>} : vector<8x128xf32>, vector<128x128xf32>, vector<8x128xf32> -> vector<8x128xf32>
    %c0_83 = arith.constant 0 : index
    %c0_84 = arith.constant 0 : index
    %110 = vector.load %arg11[%c0_83, %c0_84] : memref<1x128xf32, #tpu.memory_space<vmem>>, vector<1x128xf32>
    %111 = vector.broadcast %110 : vector<1x128xf32> to vector<8x128xf32>
    %112 = arith.addf %109, %111 : vector<8x128xf32>
    %c0_85 = arith.constant 0 : index
    %c0_86 = arith.constant 0 : index
    %113 = vector.load %arg12[%c0_85, %c0_86] : memref<8x128xf32, #tpu.memory_space<vmem>>, vector<8x128xf32>
    tpu.vector_store %arg12[%c0_85, %c0_86], %112 {strides = array<i32>} : memref<8x128xf32, #tpu.memory_space<vmem>>, vector<8x128xf32>,
    return
  }
  func.func @transform_0(%arg0: i32) -> (i32, i32) {
    %c0_i32 = arith.constant 0 : i32
    %c0_i32_0 = arith.constant 0 : i32
    return %arg0, %c0_i32 : i32, i32
  }
  func.func @transform_1(%arg0: i32) -> (i32, i32, i32) {
    %c0_i32 = arith.constant 0 : i32
    %c0_i32_0 = arith.constant 0 : i32
    %c0_i32_1 = arith.constant 0 : i32
    %c0_i32_2 = arith.constant 0 : i32
    return %c0_i32, %c0_i32_0, %c0_i32_1 : i32, i32, i32
  }
  func.func @transform_2(%arg0: i32) -> (i32, i32) {
    %c0_i32 = arith.constant 0 : i32
    %c0_i32_0 = arith.constant 0 : i32
    %c0_i32_1 = arith.constant 0 : i32
    return %c0_i32, %c0_i32_0 : i32, i32
  }
  func.func @transform_3(%arg0: i32) -> (i32, i32, i32) {
    %c0_i32 = arith.constant 0 : i32
    %c0_i32_0 = arith.constant 0 : i32
    %c0_i32_1 = arith.constant 0 : i32
    %c0_i32_2 = arith.constant 0 : i32
    return %c0_i32, %c0_i32_0, %c0_i32_1 : i32, i32, i32
  }
  func.func @transform_4(%arg0: i32) -> (i32, i32) {
    %c0_i32 = arith.constant 0 : i32
    %c0_i32_0 = arith.constant 0 : i32
    %c0_i32_1 = arith.constant 0 : i32
    return %c0_i32, %c0_i32_0 : i32, i32
  }
  func.func @transform_5(%arg0: i32) -> (i32, i32, i32) {
    %c0_i32 = arith.constant 0 : i32
    %c0_i32_0 = arith.constant 0 : i32
    %c0_i32_1 = arith.constant 0 : i32
    %c0_i32_2 = arith.constant 0 : i32
    return %c0_i32, %c0_i32_0, %c0_i32_1 : i32, i32, i32
  }
  func.func @transform_6(%arg0: i32) -> (i32, i32) {
    %c0_i32 = arith.constant 0 : i32
    %c0_i32_0 = arith.constant 0 : i32
    %c0_i32_1 = arith.constant 0 : i32
    return %c0_i32, %c0_i32_0 : i32, i32
  }
  func.func @transform_7(%arg0: i32) -> (i32, i32) {
    %c0_i32 = arith.constant 0 : i32
    %c0_i32_0 = arith.constant 0 : i32
    %c0_i32_1 = arith.constant 0 : i32
    return %c0_i32, %c0_i32_0 : i32, i32
  }
  func.func @transform_8(%arg0: i32) -> (i32, i32) {
    %c0_i32 = arith.constant 0 : i32
    %c0_i32_0 = arith.constant 0 : i32
    %c0_i32_1 = arith.constant 0 : i32
    return %c0_i32, %c0_i32_0 : i32, i32
  }
  func.func @transform_9(%arg0: i32) -> (i32, i32) {
    %c0_i32 = arith.constant 0 : i32
    %c0_i32_0 = arith.constant 0 : i32
    %c0_i32_1 = arith.constant 0 : i32
    return %c0_i32, %c0_i32_0 : i32, i32
  }
  func.func @transform_10(%arg0: i32) -> (i32, i32) {
    %c0_i32 = arith.constant 0 : i32
    %c0_i32_0 = arith.constant 0 : i32
    %c0_i32_1 = arith.constant 0 : i32
    return %c0_i32, %c0_i32_0 : i32, i32
  }
  func.func @transform_11(%arg0: i32) -> (i32, i32) {
    %c0_i32 = arith.constant 0 : i32
    %c0_i32_0 = arith.constant 0 : i32
    return %arg0, %c0_i32 : i32, i32
  }
}

</mosaic_0001>

<llo_original>
// kernel: net_forward.1
$region0: #{net_forward.1}
  #allocation0 [shape = 'u32[]', space=smem, size = 0x4, offset = 0x4, fixed_abs, tag = 'smem constant byte address 0x4 - core index']
  #allocation1 [shape = 'u32[144,128]{1,0:T(1,128)}', space=vmem, size = 0x12000, scoped, tag = 'internal scratch']
  %s0 = inlined_call_operand.vmem [shape: f32[256,128], index: 0, kind: input, shape index: {}]
  %s1 = inlined_call_operand.vmem [shape: f32[5,128,256], index: 1, kind: input, shape index: {}]
  %s2 = inlined_call_operand.vmem [shape: f32[1,256], index: 2, kind: input, shape index: {}]
  %s3 = inlined_call_operand.vmem [shape: f32[5,256,256], index: 3, kind: input, shape index: {}]
  %s4 = inlined_call_operand.vmem [shape: f32[1,256], index: 4, kind: input, shape index: {}]
  %s5 = inlined_call_operand.vmem [shape: f32[5,256,128], index: 5, kind: input, shape index: {}]
  %s6 = inlined_call_operand.vmem [shape: f32[1,128], index: 6, kind: input, shape index: {}]
  %s7 = inlined_call_operand.vmem [shape: f32[128,128], index: 7, kind: input, shape index: {}]
  %s8 = inlined_call_operand.vmem [shape: f32[1,128], index: 8, kind: input, shape index: {}]
  %s9 = inlined_call_operand.vmem [shape: f32[128,128], index: 9, kind: input, shape index: {}]
  %s10 = inlined_call_operand.vmem [shape: f32[1,128], index: 10, kind: input, shape index: {}]
  %s11 = inlined_call_operand.vmem [shape: f32[8,128], index: 11, kind: output, shape index: {}]
  %s12 = sld [smem:[#allocation0]]
  $region54: #{net_forward.1} parent=0
    _
  %s14 = ssub.s32 1, %s12
  %s15 = scalar_select 0, %s14, %s12
  // Predicated region
  $region2: #{net_forward.1} parent=0 // pred_check
    _
  $region3: #{net_forward.1} parent=0 // pred_check_branch
    %17 = sbr.rel (0) target = $region5
  $region4: #{net_forward.1} parent=0 // pred_region
    _
  $region5: #{net_forward.1} parent=0 // pred_fallthru
    _
  // Predicated region
  $region6: #{net_forward.1} parent=0 // pred_check
    _
  $region7: #{net_forward.1} parent=0 // pred_check_branch
    %19 = sbr.rel (0) target = $region9
  $region8: #{net_forward.1} parent=0 // pred_region
    _
  $region9: #{net_forward.1} parent=0 // pred_fallthru
    _
  // Predicated region
  $region10: #{net_forward.1} parent=0 // pred_check
    _
  $region11: #{net_forward.1} parent=0 // pred_check_branch
    %21 = sbr.rel (0) target = $region13
  $region12: #{net_forward.1} parent=0 // pred_region
    _
  $region13: #{net_forward.1} parent=0 // pred_fallthru
    _
  // Predicated region
  $region14: #{net_forward.1} parent=0 // pred_check
    _
  $region15: #{net_forward.1} parent=0 // pred_check_branch
    %23 = sbr.rel (0) target = $region17
  $region16: #{net_forward.1} parent=0 // pred_region
    _
  $region17: #{net_forward.1} parent=0 // pred_fallthru
    _
  // Predicated region
  $region18: #{net_forward.1} parent=0 // pred_check
    _
  $region19: #{net_forward.1} parent=0 // pred_check_branch
    %25 = sbr.rel (0) target = $region21
  $region20: #{net_forward.1} parent=0 // pred_region
    _
  $region21: #{net_forward.1} parent=0 // pred_fallthru
    _
  // Predicated region
  $region22: #{net_forward.1} parent=0 // pred_check
    _
  $region23: #{net_forward.1} parent=0 // pred_check_branch
    %27 = sbr.rel (0) target = $region25
  $region24: #{net_forward.1} parent=0 // pred_region
    _
  $region25: #{net_forward.1} parent=0 // pred_fallthru
    _
  // Predicated region
  $region26: #{net_forward.1} parent=0 // pred_check
    _
  $region27: #{net_forward.1} parent=0 // pred_check_branch
    %29 = sbr.rel (0) target = $region29
  $region28: #{net_forward.1} parent=0 // pred_region
    _
  $region29: #{net_forward.1} parent=0 // pred_fallthru
    _
  // Predicated region
  $region30: #{net_forward.1} parent=0 // pred_check
    _
  $region31: #{net_forward.1} parent=0 // pred_check_branch
    %31 = sbr.rel (0) target = $region33
  $region32: #{net_forward.1} parent=0 // pred_region
    _
  $region33: #{net_forward.1} parent=0 // pred_fallthru
    _
  // Predicated region
  $region34: #{net_forward.1} parent=0 // pred_check
    _
  $region35: #{net_forward.1} parent=0 // pred_check_branch
    %33 = sbr.rel (0) target = $region37
  $region36: #{net_forward.1} parent=0 // pred_region
    _
  $region37: #{net_forward.1} parent=0 // pred_fallthru
    _
  // Predicated region
  $region38: #{net_forward.1} parent=0 // pred_check
    _
  $region39: #{net_forward.1} parent=0 // pred_check_branch
    %35 = sbr.rel (0) target = $region41
  $region40: #{net_forward.1} parent=0 // pred_region
    _
  $region41: #{net_forward.1} parent=0 // pred_fallthru
    _
  // Predicated region
  $region42: #{net_forward.1} parent=0 // pred_check
    _
  $region43: #{net_forward.1} parent=0 // pred_check_branch
    %37 = sbr.rel (0) target = $region45
  $region44: #{net_forward.1} parent=0 // pred_region
    _
  $region45: #{net_forward.1} parent=0 // pred_fallthru
    _
  %v38 = vld [vmem:[%s0] sm:$0xff]
  %v39 = vld [vmem:[%s0 + $0x8] sm:$0xff]
  %v40 = vld [vmem:[%s0 + $0x10] sm:$0xff]
  %v41 = vld [vmem:[%s0 + $0x18] sm:$0xff]
  %v42 = vld [vmem:[%s0 + $0x20] sm:$0xff]
  %v43 = vld [vmem:[%s0 + $0x28] sm:$0xff]
  %v44 = vld [vmem:[%s0 + $0x30] sm:$0xff]
  %v45 = vld [vmem:[%s0 + $0x38] sm:$0xff]
  %v46 = vld [vmem:[%s0 + $0x40] sm:$0xff]
  %v47 = vld [vmem:[%s0 + $0x48] sm:$0xff]
  %v48 = vld [vmem:[%s0 + $0x50] sm:$0xff]
  %v49 = vld [vmem:[%s0 + $0x58] sm:$0xff]
  %v50 = vld [vmem:[%s0 + $0x60] sm:$0xff]
  %v51 = vld [vmem:[%s0 + $0x68] sm:$0xff]
  %v52 = vld [vmem:[%s0 + $0x70] sm:$0xff]
  %v53 = vld [vmem:[%s0 + $0x78] sm:$0xff]
  %v54 = vld [vmem:[%s0 + $0x80] sm:$0xff]
  %v55 = vld [vmem:[%s0 + $0x88] sm:$0xff]
  %v56 = vld [vmem:[%s0 + $0x90] sm:$0xff]
  %v57 = vld [vmem:[%s0 + $0x98] sm:$0xff]
  %v58 = vld [vmem:[%s0 + $0xa0] sm:$0xff]
  %v59 = vld [vmem:[%s0 + $0xa8] sm:$0xff]
  %v60 = vld [vmem:[%s0 + $0xb0] sm:$0xff]
  %v61 = vld [vmem:[%s0 + $0xb8] sm:$0xff]
  %v62 = vld [vmem:[%s0 + $0xc0] sm:$0xff]
  %v63 = vld [vmem:[%s0 + $0xc8] sm:$0xff]
  %v64 = vld [vmem:[%s0 + $0xd0] sm:$0xff]
  %v65 = vld [vmem:[%s0 + $0xd8] sm:$0xff]
  %v66 = vld [vmem:[%s0 + $0xe0] sm:$0xff]
  %v67 = vld [vmem:[%s0 + $0xe8] sm:$0xff]
  %v68 = vld [vmem:[%s0 + $0xf0] sm:$0xff]
  %v69 = vld [vmem:[%s0 + $0xf8] sm:$0xff]
  %v70 = vld [vmem:[%s1] sm:$0xff]
  %v71 = vld [vmem:[%s1 + $0x8] sm:$0xff]
  %v72 = vld [vmem:[%s1 + $0x10] sm:$0xff]
  %v73 = vld [vmem:[%s1 + $0x18] sm:$0xff]
  %v74 = vld [vmem:[%s1 + $0x20] sm:$0xff]
  %v75 = vld [vmem:[%s1 + $0x28] sm:$0xff]
  %v76 = vld [vmem:[%s1 + $0x30] sm:$0xff]
  %v77 = vld [vmem:[%s1 + $0x38] sm:$0xff]
  %v78 = vld [vmem:[%s1 + $0x40] sm:$0xff]
  %v79 = vld [vmem:[%s1 + $0x48] sm:$0xff]
  %v80 = vld [vmem:[%s1 + $0x50] sm:$0xff]
  %v81 = vld [vmem:[%s1 + $0x58] sm:$0xff]
  %v82 = vld [vmem:[%s1 + $0x60] sm:$0xff]
  %v83 = vld [vmem:[%s1 + $0x68] sm:$0xff]
  %v84 = vld [vmem:[%s1 + $0x70] sm:$0xff]
  %v85 = vld [vmem:[%s1 + $0x78] sm:$0xff]
  %v86 = vld [vmem:[%s1 + $0x80] sm:$0xff]
  %v87 = vld [vmem:[%s1 + $0x88] sm:$0xff]
  %v88 = vld [vmem:[%s1 + $0x90] sm:$0xff]
  %v89 = vld [vmem:[%s1 + $0x98] sm:$0xff]
  %v90 = vld [vmem:[%s1 + $0xa0] sm:$0xff]
  %v91 = vld [vmem:[%s1 + $0xa8] sm:$0xff]
  %v92 = vld [vmem:[%s1 + $0xb0] sm:$0xff]
  %v93 = vld [vmem:[%s1 + $0xb8] sm:$0xff]
  %v94 = vld [vmem:[%s1 + $0xc0] sm:$0xff]
  %v95 = vld [vmem:[%s1 + $0xc8] sm:$0xff]
  %v96 = vld [vmem:[%s1 + $0xd0] sm:$0xff]
  %v97 = vld [vmem:[%s1 + $0xd8] sm:$0xff]
  %v98 = vld [vmem:[%s1 + $0xe0] sm:$0xff]
  %v99 = vld [vmem:[%s1 + $0xe8] sm:$0xff]
  %v100 = vld [vmem:[%s1 + $0xf0] sm:$0xff]
  %v101 = vld [vmem:[%s1 + $0xf8] sm:$0xff]
  %v102 = vrot.slane %v38, 1
  %v103 = vrot.slane %v39, 1
  %v104 = vrot.slane %v40, 1
  %v105 = vrot.slane %v41, 1
  %v106 = vrot.slane %v42, 1
  %v107 = vrot.slane %v43, 1
  %v108 = vrot.slane %v44, 1
  %v109 = vrot.slane %v45, 1
  %v110 = vrot.slane %v46, 1
  %v111 = vrot.slane %v47, 1
  %v112 = vrot.slane %v48, 1
  %v113 = vrot.slane %v49, 1
  %v114 = vrot.slane %v50, 1
  %v115 = vrot.slane %v51, 1
  %v116 = vrot.slane %v52, 1
  %v117 = vrot.slane %v53, 1
  %v118 = vrot.slane %v54, 1
  %v119 = vrot.slane %v55, 1
  %v120 = vrot.slane %v56, 1
  %v121 = vrot.slane %v57, 1
  %v122 = vrot.slane %v58, 1
  %v123 = vrot.slane %v59, 1
  %v124 = vrot.slane %v60, 1
  %v125 = vrot.slane %v61, 1
  %v126 = vrot.slane %v62, 1
  %v127 = vrot.slane %v63, 1
  %v128 = vrot.slane %v64, 1
  %v129 = vrot.slane %v65, 1
  %v130 = vrot.slane %v66, 1
  %v131 = vrot.slane %v67, 1
  %v132 = vrot.slane %v68, 1
  %v133 = vrot.slane %v69, 1
  %v134 = vlaneseq
  %v135 = vshrl.u32 %v134, 7
  %vm136 = vcmp.lt.s32.totalorder %v135, 7
  %v137 = vsel %vm136, %v132, %v133
  %v138 = vsel %vm136, %v131, %v132
  %v139 = vsel %vm136, %v130, %v131
  %v140 = vsel %vm136, %v129, %v130
  %v141 = vsel %vm136, %v128, %v129
  %v142 = vsel %vm136, %v127, %v128
  %v143 = vsel %vm136, %v126, %v127
  %v144 = vsel %vm136, %v125, %v126
  %v145 = vsel %vm136, %v124, %v125
  %v146 = vsel %vm136, %v123, %v124
  %v147 = vsel %vm136, %v122, %v123
  %v148 = vsel %vm136, %v121, %v122
  %v149 = vsel %vm136, %v120, %v121
  %v150 = vsel %vm136, %v119, %v120
  %v151 = vsel %vm136, %v118, %v119
  %v152 = vsel %vm136, %v117, %v118
  %v153 = vsel %vm136, %v116, %v117
  %v154 = vsel %vm136, %v115, %v116
  %v155 = vsel %vm136, %v114, %v115
  %v156 = vsel %vm136, %v113, %v114
  %v157 = vsel %vm136, %v112, %v113
  %v158 = vsel %vm136, %v111, %v112
  %v159 = vsel %vm136, %v110, %v111
  %v160 = vsel %vm136, %v109, %v110
  %v161 = vsel %vm136, %v108, %v109
  %v162 = vsel %vm136, %v107, %v108
  %v163 = vsel %vm136, %v106, %v107
  %v164 = vsel %vm136, %v105, %v106
  %v165 = vsel %vm136, %v104, %v105
  %v166 = vsel %vm136, %v103, %v104
  %v167 = vsel %vm136, %v102, %v103
  %v168 = vsel %vm136, %v133, %v102
  %s169 = scalar_lea.vmem %s1, 256
  %v170 = vld [vmem:[%s169] sm:$0xff]
  %v171 = vld [vmem:[%s169 + $0x8] sm:$0xff]
  %v172 = vld [vmem:[%s169 + $0x10] sm:$0xff]
  %v173 = vld [vmem:[%s169 + $0x18] sm:$0xff]
  %v174 = vld [vmem:[%s169 + $0x20] sm:$0xff]
  %v175 = vld [vmem:[%s169 + $0x28] sm:$0xff]
  %v176 = vld [vmem:[%s169 + $0x30] sm:$0xff]
  %v177 = vld [vmem:[%s169 + $0x38] sm:$0xff]
  %v178 = vld [vmem:[%s169 + $0x40] sm:$0xff]
  %v179 = vld [vmem:[%s169 + $0x48] sm:$0xff]
  %v180 = vld [vmem:[%s169 + $0x50] sm:$0xff]
  %v181 = vld [vmem:[%s169 + $0x58] sm:$0xff]
  %v182 = vld [vmem:[%s169 + $0x60] sm:$0xff]
  %v183 = vld [vmem:[%s169 + $0x68] sm:$0xff]
  %v184 = vld [vmem:[%s169 + $0x70] sm:$0xff]
  %v185 = vld [vmem:[%s169 + $0x78] sm:$0xff]
  %v186 = vld [vmem:[%s169 + $0x80] sm:$0xff]
  %v187 = vld [vmem:[%s169 + $0x88] sm:$0xff]
  %v188 = vld [vmem:[%s169 + $0x90] sm:$0xff]
  %v189 = vld [vmem:[%s169 + $0x98] sm:$0xff]
  %v190 = vld [vmem:[%s169 + $0xa0] sm:$0xff]
  %v191 = vld [vmem:[%s169 + $0xa8] sm:$0xff]
  %v192 = vld [vmem:[%s169 + $0xb0] sm:$0xff]
  %v193 = vld [vmem:[%s169 + $0xb8] sm:$0xff]
  %v194 = vld [vmem:[%s169 + $0xc0] sm:$0xff]
  %v195 = vld [vmem:[%s169 + $0xc8] sm:$0xff]
  %v196 = vld [vmem:[%s169 + $0xd0] sm:$0xff]
  %v197 = vld [vmem:[%s169 + $0xd8] sm:$0xff]
  %v198 = vld [vmem:[%s169 + $0xe0] sm:$0xff]
  %v199 = vld [vmem:[%s169 + $0xe8] sm:$0xff]
  %v200 = vld [vmem:[%s169 + $0xf0] sm:$0xff]
  %v201 = vld [vmem:[%s169 + $0xf8] sm:$0xff]
  %202 = vmatprep.subr.mxu0 %v171
  %203 = vmatpush1.msra.mxu0 %v170
  %204 = vmatprep.subr.mxu0 %v173
  %205 = vmatpush1.msra.mxu0 %v172
  %206 = vmatprep.subr.mxu0 %v175
  %207 = vmatpush1.msra.mxu0 %v174
  %208 = vmatprep.subr.mxu0 %v177
  %209 = vmatpush1.msra.mxu0 %v176
  %210 = vmatprep.subr.mxu0 %v179
  %211 = vmatpush1.msra.mxu0 %v178
  %212 = vmatprep.subr.mxu0 %v181
  %213 = vmatpush1.msra.mxu0 %v180
  %214 = vmatprep.subr.mxu0 %v183
  %215 = vmatpush1.msra.mxu0 %v182
  %216 = vmatprep.subr.mxu0 %v185
  %217 = vmatpush1.msra.mxu0 %v184
  %218 = vmatprep.subr.mxu0 %v187
  %219 = vmatpush1.msra.mxu0 %v186
  %220 = vmatprep.subr.mxu0 %v189
  %221 = vmatpush1.msra.mxu0 %v188
  %222 = vmatprep.subr.mxu0 %v191
  %223 = vmatpush1.msra.mxu0 %v190
  %224 = vmatprep.subr.mxu0 %v193
  %225 = vmatpush1.msra.mxu0 %v192
  %226 = vmatprep.subr.mxu0 %v195
  %227 = vmatpush1.msra.mxu0 %v194
  %228 = vmatprep.subr.mxu0 %v197
  %229 = vmatpush1.msra.mxu0 %v196
  %230 = vmatprep.subr.mxu0 %v199
  %231 = vmatpush1.msra.mxu0 %v198
  %232 = vmatprep.subr.mxu0 %v201
  %233 = vmatpush1.msra.mxu0 %v200
  %234 = vmatprep.subr.mxu0 0.0
  %235 = vmatpush1.msra.mxu0 0.0
  %236 = vmatprep.subr.mxu0 0.0
  %237 = vmatpush1.msra.mxu0 0.0
  %238 = vmatprep.subr.mxu0 0.0
  %239 = vmatpush1.msra.mxu0 0.0
  %240 = vmatprep.subr.mxu0 0.0
  %241 = vmatpush1.msra.mxu0 0.0
  %242 = vmatprep.subr.mxu0 0.0
  %243 = vmatpush1.msra.mxu0 0.0
  %244 = vmatprep.subr.mxu0 0.0
  %245 = vmatpush1.msra.mxu0 0.0
  %246 = vmatprep.subr.mxu0 0.0
  %247 = vmatpush1.msra.mxu0 0.0
  %248 = vmatprep.subr.mxu0 0.0
  %249 = vmatpush1.msra.mxu0 0.0
  %250 = vmatprep.subr.mxu0 0.0
  %251 = vmatpush1.msra.mxu0 0.0
  %252 = vmatprep.subr.mxu0 0.0
  %253 = vmatpush1.msra.mxu0 0.0
  %254 = vmatprep.subr.mxu0 0.0
  %255 = vmatpush1.msra.mxu0 0.0
  %256 = vmatprep.subr.mxu0 0.0
  %257 = vmatpush1.msra.mxu0 0.0
  %258 = vmatprep.subr.mxu0 0.0
  %259 = vmatpush1.msra.mxu0 0.0
  %260 = vmatprep.subr.mxu0 0.0
  %261 = vmatpush1.msra.mxu0 0.0
  %262 = vmatprep.subr.mxu0 0.0
  %263 = vmatpush1.msra.mxu0 0.0
  %264 = vmatprep.subr.mxu0 0.0
  %265 = vmatpush1.msra.mxu0 0.0
  %266 = vmatprep.mubr.f32.mxu0 0.0
  %267 = vmatmul.mubr.f32.gmra.mrb[0].mxu0 %v167
  %v268 = vpop.f32.mrb[0].mxu0
  %v269 = vadd.f32 0.0, %v268
  %v270 = vpop.f32.mrb[0].mxu0
  %v271 = vadd.f32 0.0, %v270
  %272 = vmatprep.mubr.f32.mxu0 0.0
  %273 = vmatmul.mubr.f32.gmra.mrb[0].mxu0 %v166
  %v274 = vpop.f32.mrb[0].mxu0
  %v275 = vadd.f32 0.0, %v274
  %v276 = vpop.f32.mrb[0].mxu0
  %v277 = vadd.f32 0.0, %v276
  %278 = vmatprep.mubr.f32.mxu0 0.0
  %279 = vmatmul.mubr.f32.gmra.mrb[0].mxu0 %v165
  %v280 = vpop.f32.mrb[0].mxu0
  %v281 = vadd.f32 0.0, %v280
  %v282 = vpop.f32.mrb[0].mxu0
  %v283 = vadd.f32 0.0, %v282
  %284 = vmatprep.mubr.f32.mxu0 0.0
  %285 = vmatmul.mubr.f32.gmra.mrb[0].mxu0 %v164
  %v286 = vpop.f32.mrb[0].mxu0
  %v287 = vadd.f32 0.0, %v286
  %v288 = vpop.f32.mrb[0].mxu0
  %v289 = vadd.f32 0.0, %v288
  %290 = vmatprep.mubr.f32.mxu0 0.0
  %291 = vmatmul.mubr.f32.gmra.mrb[0].mxu0 %v163
  %v292 = vpop.f32.mrb[0].mxu0
  %v293 = vadd.f32 0.0, %v292
  %v294 = vpop.f32.mrb[0].mxu0
  %v295 = vadd.f32 0.0, %v294
  %296 = vmatprep.mubr.f32.mxu0 0.0
  %297 = vmatmul.mubr.f32.gmra.mrb[0].mxu0 %v162
  %v298 = vpop.f32.mrb[0].mxu0
  %v299 = vadd.f32 0.0, %v298
  %v300 = vpop.f32.mrb[0].mxu0
  %v301 = vadd.f32 0.0, %v300
  %302 = vmatprep.mubr.f32.mxu0 0.0
  %303 = vmatmul.mubr.f32.gmra.mrb[0].mxu0 %v161
  %v304 = vpop.f32.mrb[0].mxu0
  %v305 = vadd.f32 0.0, %v304
  %v306 = vpop.f32.mrb[0].mxu0
  %v307 = vadd.f32 0.0, %v306
  %308 = vmatprep.mubr.f32.mxu0 0.0
  %309 = vmatmul.mubr.f32.gmra.mrb[0].mxu0 %v160
  %v310 = vpop.f32.mrb[0].mxu0
  %v311 = vadd.f32 0.0, %v310
  %v312 = vpop.f32.mrb[0].mxu0
  %v313 = vadd.f32 0.0, %v312
  %314 = vmatprep.mubr.f32.mxu0 0.0
  %315 = vmatmul.mubr.f32.gmra.mrb[0].mxu0 %v159
  %v316 = vpop.f32.mrb[0].mxu0
  %v317 = vadd.f32 0.0, %v316
  %v318 = vpop.f32.mrb[0].mxu0
  %v319 = vadd.f32 0.0, %v318
  %320 = vmatprep.mubr.f32.mxu0 0.0
  %321 = vmatmul.mubr.f32.gmra.mrb[0].mxu0 %v158
  %v322 = vpop.f32.mrb[0].mxu0
  %v323 = vadd.f32 0.0, %v322
  %v324 = vpop.f32.mrb[0].mxu0
  %v325 = vadd.f32 0.0, %v324
  %326 = vmatprep.mubr.f32.mxu0 0.0
  %327 = vmatmul.mubr.f32.gmra.mrb[0].mxu0 %v157
  %v328 = vpop.f32.mrb[0].mxu0
  %v329 = vadd.f32 0.0, %v328
  %v330 = vpop.f32.mrb[0].mxu0
  %v331 = vadd.f32 0.0, %v330
  %332 = vmatprep.mubr.f32.mxu0 0.0
  %333 = vmatmul.mubr.f32.gmra.mrb[0].mxu0 %v156
  %v334 = vpop.f32.mrb[0].mxu0
  %v335 = vadd.f32 0.0, %v334
  %v336 = vpop.f32.mrb[0].mxu0
  %v337 = vadd.f32 0.0, %v336
  %338 = vmatprep.mubr.f32.mxu0 0.0
  %339 = vmatmul.mubr.f32.gmra.mrb[0].mxu0 %v155
  %v340 = vpop.f32.mrb[0].mxu0
  %v341 = vadd.f32 0.0, %v340
  %v342 = vpop.f32.mrb[0].mxu0
  %v343 = vadd.f32 0.0, %v342
  %344 = vmatprep.mubr.f32.mxu0 0.0
  %345 = vmatmul.mubr.f32.gmra.mrb[0].mxu0 %v154
  %v346 = vpop.f32.mrb[0].mxu0
  %v347 = vadd.f32 0.0, %v346
  %v348 = vpop.f32.mrb[0].mxu0
  %v349 = vadd.f32 0.0, %v348
  %350 = vmatprep.mubr.f32.mxu0 0.0
  %351 = vmatmul.mubr.f32.gmra.mrb[0].mxu0 %v153
  %v352 = vpop.f32.mrb[0].mxu0
  %v353 = vadd.f32 0.0, %v352
  %v354 = vpop.f32.mrb[0].mxu0
  %v355 = vadd.f32 0.0, %v354
  %356 = vmatprep.mubr.f32.mxu0 0.0
  %357 = vmatmul.mubr.f32.gmra.mrb[0].mxu0 %v152
  %v358 = vpop.f32.mrb[0].mxu0
  %v359 = vadd.f32 0.0, %v358
  %v360 = vpop.f32.mrb[0].mxu0
  %v361 = vadd.f32 0.0, %v360
  %362 = vmatprep.mubr.f32.mxu0 0.0
  %363 = vmatmul.mubr.f32.gmra.mrb[0].mxu0 %v151
  %v364 = vpop.f32.mrb[0].mxu0
  %v365 = vadd.f32 0.0, %v364
  %v366 = vpop.f32.mrb[0].mxu0
  %v367 = vadd.f32 0.0, %v366
  %368 = vmatprep.mubr.f32.mxu0 0.0
  %369 = vmatmul.mubr.f32.gmra.mrb[0].mxu0 %v150
  %v370 = vpop.f32.mrb[0].mxu0
  %v371 = vadd.f32 0.0, %v370
  %v372 = vpop.f32.mrb[0].mxu0
  %v373 = vadd.f32 0.0, %v372
  %374 = vmatprep.mubr.f32.mxu0 0.0
  %375 = vmatmul.mubr.f32.gmra.mrb[0].mxu0 %v149
  %v376 = vpop.f32.mrb[0].mxu0
  %v377 = vadd.f32 0.0, %v376
  %v378 = vpop.f32.mrb[0].mxu0
  %v379 = vadd.f32 0.0, %v378
  %380 = vmatprep.mubr.f32.mxu0 0.0
  %381 = vmatmul.mubr.f32.gmra.mrb[0].mxu0 %v148
  %v382 = vpop.f32.mrb[0].mxu0
  %v383 = vadd.f32 0.0, %v382
  %v384 = vpop.f32.mrb[0].mxu0
  %v385 = vadd.f32 0.0, %v384
  %386 = vmatprep.mubr.f32.mxu0 0.0
  %387 = vmatmul.mubr.f32.gmra.mrb[0].mxu0 %v147
  %v388 = vpop.f32.mrb[0].mxu0
  %v389 = vadd.f32 0.0, %v388
  %v390 = vpop.f32.mrb[0].mxu0
  %v391 = vadd.f32 0.0, %v390
  %392 = vmatprep.mubr.f32.mxu0 0.0
  %393 = vmatmul.mubr.f32.gmra.mrb[0].mxu0 %v146
  %v394 = vpop.f32.mrb[0].mxu0
  %v395 = vadd.f32 0.0, %v394
  %v396 = vpop.f32.mrb[0].mxu0
  %v397 = vadd.f32 0.0, %v396
  %398 = vmatprep.mubr.f32.mxu0 0.0
  %399 = vmatmul.mubr.f32.gmra.mrb[0].mxu0 %v145
  %v400 = vpop.f32.mrb[0].mxu0
  %v401 = vadd.f32 0.0, %v400
  %v402 = vpop.f32.mrb[0].mxu0
  %v403 = vadd.f32 0.0, %v402
  %404 = vmatprep.mubr.f32.mxu0 0.0
  %405 = vmatmul.mubr.f32.gmra.mrb[0].mxu0 %v144
  %v406 = vpop.f32.mrb[0].mxu0
  %v407 = vadd.f32 0.0, %v406
  %v408 = vpop.f32.mrb[0].mxu0
  %v409 = vadd.f32 0.0, %v408
  %410 = vmatprep.mubr.f32.mxu0 0.0
  %411 = vmatmul.mubr.f32.gmra.mrb[0].mxu0 %v143
  %v412 = vpop.f32.mrb[0].mxu0
  %v413 = vadd.f32 0.0, %v412
  %v414 = vpop.f32.mrb[0].mxu0
  %v415 = vadd.f32 0.0, %v414
  %416 = vmatprep.mubr.f32.mxu0 0.0
  %417 = vmatmul.mubr.f32.gmra.mrb[0].mxu0 %v142
  %v418 = vpop.f32.mrb[0].mxu0
  %v419 = vadd.f32 0.0, %v418
  %v420 = vpop.f32.mrb[0].mxu0
  %v421 = vadd.f32 0.0, %v420
  %422 = vmatprep.mubr.f32.mxu0 0.0
  %423 = vmatmul.mubr.f32.gmra.mrb[0].mxu0 %v141
  %v424 = vpop.f32.mrb[0].mxu0
  %v425 = vadd.f32 0.0, %v424
  %v426 = vpop.f32.mrb[0].mxu0
  %v427 = vadd.f32 0.0, %v426
  %428 = vmatprep.mubr.f32.mxu0 0.0
  %429 = vmatmul.mubr.f32.gmra.mrb[0].mxu0 %v140
  %v430 = vpop.f32.mrb[0].mxu0
  %v431 = vadd.f32 0.0, %v430
  %v432 = vpop.f32.mrb[0].mxu0
  %v433 = vadd.f32 0.0, %v432
  %434 = vmatprep.mubr.f32.mxu0 0.0
  %435 = vmatmul.mubr.f32.gmra.mrb[0].mxu0 %v139
  %v436 = vpop.f32.mrb[0].mxu0
  %v437 = vadd.f32 0.0, %v436
  %v438 = vpop.f32.mrb[0].mxu0
  %v439 = vadd.f32 0.0, %v438
  %440 = vmatprep.mubr.f32.mxu0 0.0
  %441 = vmatmul.mubr.f32.gmra.mrb[0].mxu0 %v138
  %v442 = vpop.f32.mrb[0].mxu0
  %v443 = vadd.f32 0.0, %v442
  %v444 = vpop.f32.mrb[0].mxu0
  %v445 = vadd.f32 0.0, %v444
  %446 = vmatprep.mubr.f32.mxu0 0.0
  %447 = vmatmul.mubr.f32.gmra.mrb[0].mxu0 %v137
  %v448 = vpop.f32.mrb[0].mxu0
  %v449 = vadd.f32 0.0, %v448
  %v450 = vpop.f32.mrb[0].mxu0
  %v451 = vadd.f32 0.0, %v450
  %452 = vmatprep.mubr.f32.mxu0 0.0
  %453 = vmatmul.mubr.f32.gmra.mrb[0].mxu0 %v168
  %v454 = vpop.f32.mrb[0].mxu0
  %v455 = vadd.f32 0.0, %v454
  %v456 = vpop.f32.mrb[0].mxu0
  %v457 = vadd.f32 0.0, %v456
  %458 = vdwg.mxu0
  %459 = vmatprep.subr.mxu0 %v71
  %460 = vmatpush1.msra.mxu0 %v70
  %461 = vmatprep.subr.mxu0 %v73
  %462 = vmatpush1.msra.mxu0 %v72
  %463 = vmatprep.subr.mxu0 %v75
  %464 = vmatpush1.msra.mxu0 %v74
  %465 = vmatprep.subr.mxu0 %v77
  %466 = vmatpush1.msra.mxu0 %v76
  %467 = vmatprep.subr.mxu0 %v79
  %468 = vmatpush1.msra.mxu0 %v78
  %469 = vmatprep.subr.mxu0 %v81
  %470 = vmatpush1.msra.mxu0 %v80
  %471 = vmatprep.subr.mxu0 %v83
  %472 = vmatpush1.msra.mxu0 %v82
  %473 = vmatprep.subr.mxu0 %v85
  %474 = vmatpush1.msra.mxu0 %v84
  %475 = vmatprep.subr.mxu0 %v87
  %476 = vmatpush1.msra.mxu0 %v86
  %477 = vmatprep.subr.mxu0 %v89
  %478 = vmatpush1.msra.mxu0 %v88
  %479 = vmatprep.subr.mxu0 %v91
  %480 = vmatpush1.msra.mxu0 %v90
  %481 = vmatprep.subr.mxu0 %v93
  %482 = vmatpush1.msra.mxu0 %v92
  %483 = vmatprep.subr.mxu0 %v95
  %484 = vmatpush1.msra.mxu0 %v94
  %485 = vmatprep.subr.mxu0 %v97
  %486 = vmatpush1.msra.mxu0 %v96
  %487 = vmatprep.subr.mxu0 %v99
  %488 = vmatpush1.msra.mxu0 %v98
  %489 = vmatprep.subr.mxu0 %v101
  %490 = vmatpush1.msra.mxu0 %v100
  %491 = vmatprep.subr.mxu0 0.0
  %492 = vmatpush1.msra.mxu0 0.0
  %493 = vmatprep.subr.mxu0 0.0
  %494 = vmatpush1.msra.mxu0 0.0
  %495 = vmatprep.subr.mxu0 0.0
  %496 = vmatpush1.msra.mxu0 0.0
  %497 = vmatprep.subr.mxu0 0.0
  %498 = vmatpush1.msra.mxu0 0.0
  %499 = vmatprep.subr.mxu0 0.0
  %500 = vmatpush1.msra.mxu0 0.0
  %501 = vmatprep.subr.mxu0 0.0
  %502 = vmatpush1.msra.mxu0 0.0
  %503 = vmatprep.subr.mxu0 0.0
  %504 = vmatpush1.msra.mxu0 0.0
  %505 = vmatprep.subr.mxu0 0.0
  %506 = vmatpush1.msra.mxu0 0.0
  %507 = vmatprep.subr.mxu0 0.0
  %508 = vmatpush1.msra.mxu0 0.0
  %509 = vmatprep.subr.mxu0 0.0
  %510 = vmatpush1.msra.mxu0 0.0
  %511 = vmatprep.subr.mxu0 0.0
  %512 = vmatpush1.msra.mxu0 0.0
  %513 = vmatprep.subr.mxu0 0.0
  %514 = vmatpush1.msra.mxu0 0.0
  %515 = vmatprep.subr.mxu0 0.0
  %516 = vmatpush1.msra.mxu0 0.0
  %517 = vmatprep.subr.mxu0 0.0
  %518 = vmatpush1.msra.mxu0 0.0
  %519 = vmatprep.subr.mxu0 0.0
  %520 = vmatpush1.msra.mxu0 0.0
  %521 = vmatprep.subr.mxu0 0.0
  %522 = vmatpush1.msra.mxu0 0.0
  %523 = vmatprep.mubr.f32.mxu0 0.0
  %524 = vmatmul.mubr.f32.gmra.mrb[0].mxu0 %v38
  %v525 = vpop.f32.mrb[0].mxu0
  %v526 = vadd.f32 %v269, %v525
  %v527 = vpop.f32.mrb[0].mxu0
  %v528 = vadd.f32 %v271, %v527
  %529 = vmatprep.mubr.f32.mxu0 0.0
  %530 = vmatmul.mubr.f32.gmra.mrb[0].mxu0 %v39
  %v531 = vpop.f32.mrb[0].mxu0
  %v532 = vadd.f32 %v275, %v531
  %v533 = vpop.f32.mrb[0].mxu0
  %v534 = vadd.f32 %v277, %v533
  %535 = vmatprep.mubr.f32.mxu0 0.0
  %536 = vmatmul.mubr.f32.gmra.mrb[0].mxu0 %v40
  %v537 = vpop.f32.mrb[0].mxu0
  %v538 = vadd.f32 %v281, %v537
  %v539 = vpop.f32.mrb[0].mxu0
  %v540 = vadd.f32 %v283, %v539
  %541 = vmatprep.mubr.f32.mxu0 0.0
  %542 = vmatmul.mubr.f32.gmra.mrb[0].mxu0 %v41
  %v543 = vpop.f32.mrb[0].mxu0
  %v544 = vadd.f32 %v287, %v543
  %v545 = vpop.f32.mrb[0].mxu0
  %v546 = vadd.f32 %v289, %v545
  %547 = vmatprep.mubr.f32.mxu0 0.0
  %548 = vmatmul.mubr.f32.gmra.mrb[0].mxu0 %v42
  %v549 = vpop.f32.mrb[0].mxu0
  %v550 = vadd.f32 %v293, %v549
  %v551 = vpop.f32.mrb[0].mxu0
  %v552 = vadd.f32 %v295, %v551
  %553 = vmatprep.mubr.f32.mxu0 0.0
  %554 = vmatmul.mubr.f32.gmra.mrb[0].mxu0 %v43
  %v555 = vpop.f32.mrb[0].mxu0
  %v556 = vadd.f32 %v299, %v555
  %v557 = vpop.f32.mrb[0].mxu0
  %v558 = vadd.f32 %v301, %v557
  %559 = vmatprep.mubr.f32.mxu0 0.0
  %560 = vmatmul.mubr.f32.gmra.mrb[0].mxu0 %v44
  %v561 = vpop.f32.mrb[0].mxu0
  %v562 = vadd.f32 %v305, %v561
  %v563 = vpop.f32.mrb[0].mxu0
  %v564 = vadd.f32 %v307, %v563
  %565 = vmatprep.mubr.f32.mxu0 0.0
  %566 = vmatmul.mubr.f32.gmra.mrb[0].mxu0 %v45
  %v567 = vpop.f32.mrb[0].mxu0
  %v568 = vadd.f32 %v311, %v567
  %v569 = vpop.f32.mrb[0].mxu0
  %v570 = vadd.f32 %v313, %v569
  %571 = vmatprep.mubr.f32.mxu0 0.0
  %572 = vmatmul.mubr.f32.gmra.mrb[0].mxu0 %v46
  %v573 = vpop.f32.mrb[0].mxu0
  %v574 = vadd.f32 %v317, %v573
  %v575 = vpop.f32.mrb[0].mxu0
  %v576 = vadd.f32 %v319, %v575
  %577 = vmatprep.mubr.f32.mxu0 0.0
  %578 = vmatmul.mubr.f32.gmra.mrb[0].mxu0 %v47
  %v579 = vpop.f32.mrb[0].mxu0
  %v580 = vadd.f32 %v323, %v579
  %v581 = vpop.f32.mrb[0].mxu0
  %v582 = vadd.f32 %v325, %v581
  %583 = vmatprep.mubr.f32.mxu0 0.0
  %584 = vmatmul.mubr.f32.gmra.mrb[0].mxu0 %v48
  %v585 = vpop.f32.mrb[0].mxu0
  %v586 = vadd.f32 %v329, %v585
  %v587 = vpop.f32.mrb[0].mxu0
  %v588 = vadd.f32 %v331, %v587
  %589 = vmatprep.mubr.f32.mxu0 0.0
  %590 = vmatmul.mubr.f32.gmra.mrb[0].mxu0 %v49
  %v591 = vpop.f32.mrb[0].mxu0
  %v592 = vadd.f32 %v335, %v591
  %v593 = vpop.f32.mrb[0].mxu0
  %v594 = vadd.f32 %v337, %v593
  %595 = vmatprep.mubr.f32.mxu0 0.0
  %596 = vmatmul.mubr.f32.gmra.mrb[0].mxu0 %v50
  %v597 = vpop.f32.mrb[0].mxu0
  %v598 = vadd.f32 %v341, %v597
  %v599 = vpop.f32.mrb[0].mxu0
  %v600 = vadd.f32 %v343, %v599
  %601 = vmatprep.mubr.f32.mxu0 0.0
  %602 = vmatmul.mubr.f32.gmra.mrb[0].mxu0 %v51
  %v603 = vpop.f32.mrb[0].mxu0
  %v604 = vadd.f32 %v347, %v603
  %v605 = vpop.f32.mrb[0].mxu0
  %v606 = vadd.f32 %v349, %v605
  %607 = vmatprep.mubr.f32.mxu0 0.0
  %608 = vmatmul.mubr.f32.gmra.mrb[0].mxu0 %v52
  %v609 = vpop.f32.mrb[0].mxu0
  %v610 = vadd.f32 %v353, %v609
  %v611 = vpop.f32.mrb[0].mxu0
  %v612 = vadd.f32 %v355, %v611
  %613 = vmatprep.mubr.f32.mxu0 0.0
  %614 = vmatmul.mubr.f32.gmra.mrb[0].mxu0 %v53
  %v615 = vpop.f32.mrb[0].mxu0
  %v616 = vadd.f32 %v359, %v615
  %v617 = vpop.f32.mrb[0].mxu0
  %v618 = vadd.f32 %v361, %v617
  %619 = vmatprep.mubr.f32.mxu0 0.0
  %620 = vmatmul.mubr.f32.gmra.mrb[0].mxu0 %v54
  %v621 = vpop.f32.mrb[0].mxu0
  %v622 = vadd.f32 %v365, %v621
  %v623 = vpop.f32.mrb[0].mxu0
  %v624 = vadd.f32 %v367, %v623
  %625 = vmatprep.mubr.f32.mxu0 0.0
  %626 = vmatmul.mubr.f32.gmra.mrb[0].mxu0 %v55
  %v627 = vpop.f32.mrb[0].mxu0
  %v628 = vadd.f32 %v371, %v627
  %v629 = vpop.f32.mrb[0].mxu0
  %v630 = vadd.f32 %v373, %v629
  %631 = vmatprep.mubr.f32.mxu0 0.0
  %632 = vmatmul.mubr.f32.gmra.mrb[0].mxu0 %v56
  %v633 = vpop.f32.mrb[0].mxu0
  %v634 = vadd.f32 %v377, %v633
  %v635 = vpop.f32.mrb[0].mxu0
  %v636 = vadd.f32 %v379, %v635
  %637 = vmatprep.mubr.f32.mxu0 0.0
  %638 = vmatmul.mubr.f32.gmra.mrb[0].mxu0 %v57
  %v639 = vpop.f32.mrb[0].mxu0
  %v640 = vadd.f32 %v383, %v639
  %v641 = vpop.f32.mrb[0].mxu0
  %v642 = vadd.f32 %v385, %v641
  %643 = vmatprep.mubr.f32.mxu0 0.0
  %644 = vmatmul.mubr.f32.gmra.mrb[0].mxu0 %v58
  %v645 = vpop.f32.mrb[0].mxu0
  %v646 = vadd.f32 %v389, %v645
  %v647 = vpop.f32.mrb[0].mxu0
  %v648 = vadd.f32 %v391, %v647
  %649 = vmatprep.mubr.f32.mxu0 0.0
  %650 = vmatmul.mubr.f32.gmra.mrb[0].mxu0 %v59
  %v651 = vpop.f32.mrb[0].mxu0
  %v652 = vadd.f32 %v395, %v651
  %v653 = vpop.f32.mrb[0].mxu0
  %v654 = vadd.f32 %v397, %v653
  %655 = vmatprep.mubr.f32.mxu0 0.0
  %656 = vmatmul.mubr.f32.gmra.mrb[0].mxu0 %v60
  %v657 = vpop.f32.mrb[0].mxu0
  %v658 = vadd.f32 %v401, %v657
  %v659 = vpop.f32.mrb[0].mxu0
  %v660 = vadd.f32 %v403, %v659
  %661 = vmatprep.mubr.f32.mxu0 0.0
  %662 = vmatmul.mubr.f32.gmra.mrb[0].mxu0 %v61
  %v663 = vpop.f32.mrb[0].mxu0
  %v664 = vadd.f32 %v407, %v663
  %v665 = vpop.f32.mrb[0].mxu0
  %v666 = vadd.f32 %v409, %v665
  %667 = vmatprep.mubr.f32.mxu0 0.0
  %668 = vmatmul.mubr.f32.gmra.mrb[0].mxu0 %v62
  %v669 = vpop.f32.mrb[0].mxu0
  %v670 = vadd.f32 %v413, %v669
  %v671 = vpop.f32.mrb[0].mxu0
  %v672 = vadd.f32 %v415, %v671
  %673 = vmatprep.mubr.f32.mxu0 0.0
  %674 = vmatmul.mubr.f32.gmra.mrb[0].mxu0 %v63
  %v675 = vpop.f32.mrb[0].mxu0
  %v676 = vadd.f32 %v419, %v675
  %v677 = vpop.f32.mrb[0].mxu0
  %v678 = vadd.f32 %v421, %v677
  %679 = vmatprep.mubr.f32.mxu0 0.0
  %680 = vmatmul.mubr.f32.gmra.mrb[0].mxu0 %v64
  %v681 = vpop.f32.mrb[0].mxu0
  %v682 = vadd.f32 %v425, %v681
  %v683 = vpop.f32.mrb[0].mxu0
  %v684 = vadd.f32 %v427, %v683
  %685 = vmatprep.mubr.f32.mxu0 0.0
  %686 = vmatmul.mubr.f32.gmra.mrb[0].mxu0 %v65
  %v687 = vpop.f32.mrb[0].mxu0
  %v688 = vadd.f32 %v431, %v687
  %v689 = vpop.f32.mrb[0].mxu0
  %v690 = vadd.f32 %v433, %v689
  %691 = vmatprep.mubr.f32.mxu0 0.0
  %692 = vmatmul.mubr.f32.gmra.mrb[0].mxu0 %v66
  %v693 = vpop.f32.mrb[0].mxu0
  %v694 = vadd.f32 %v437, %v693
  %v695 = vpop.f32.mrb[0].mxu0
  %v696 = vadd.f32 %v439, %v695
  %697 = vmatprep.mubr.f32.mxu0 0.0
  %698 = vmatmul.mubr.f32.gmra.mrb[0].mxu0 %v67
  %v699 = vpop.f32.mrb[0].mxu0
  %v700 = vadd.f32 %v443, %v699
  %v701 = vpop.f32.mrb[0].mxu0
  %v702 = vadd.f32 %v445, %v701
  %703 = vmatprep.mubr.f32.mxu0 0.0
  %704 = vmatmul.mubr.f32.gmra.mrb[0].mxu0 %v68
  %v705 = vpop.f32.mrb[0].mxu0
  %v706 = vadd.f32 %v449, %v705
  %v707 = vpop.f32.mrb[0].mxu0
  %v708 = vadd.f32 %v451, %v707
  %709 = vmatprep.mubr.f32.mxu0 0.0
  %710 = vmatmul.mubr.f32.gmra.mrb[0].mxu0 %v69
  %v711 = vpop.f32.mrb[0].mxu0
  %v712 = vadd.f32 %v455, %v711
  %v713 = vpop.f32.mrb[0].mxu0
  %v714 = vadd.f32 %v457, %v713
  %715 = vdwg.mxu0
  %v716 = vrot.slane %v38, 2
  %v717 = vrot.slane %v39, 2
  %v718 = vrot.slane %v40, 2
  %v719 = vrot.slane %v41, 2
  %v720 = vrot.slane %v42, 2
  %v721 = vrot.slane %v43, 2
  %v722 = vrot.slane %v44, 2
  %v723 = vrot.slane %v45, 2
  %v724 = vrot.slane %v46, 2
  %v725 = vrot.slane %v47, 2
  %v726 = vrot.slane %v48, 2
  %v727 = vrot.slane %v49, 2
  %v728 = vrot.slane %v50, 2
  %v729 = vrot.slane %v51, 2
  %v730 = vrot.slane %v52, 2
  %v731 = vrot.slane %v53, 2
  %v732 = vrot.slane %v54, 2
  %v733 = vrot.slane %v55, 2
  %v734 = vrot.slane %v56, 2
  %v735 = vrot.slane %v57, 2
  %v736 = vrot.slane %v58, 2
  %v737 = vrot.slane %v59, 2
  %v738 = vrot.slane %v60, 2
  %v739 = vrot.slane %v61, 2
  %v740 = vrot.slane %v62, 2
  %v741 = vrot.slane %v63, 2
  %v742 = vrot.slane %v64, 2
  %v743 = vrot.slane %v65, 2
  %v744 = vrot.slane %v66, 2
  %v745 = vrot.slane %v67, 2
  %v746 = vrot.slane %v68, 2
  %v747 = vrot.slane %v69, 2
  %vm748 = vcmp.lt.s32.totalorder %v135, 6
  %v749 = vsel %vm748, %v746, %v747
  %v750 = vsel %vm748, %v745, %v746
  %v751 = vsel %vm748, %v744, %v745
  %v752 = vsel %vm748, %v743, %v744
  %v753 = vsel %vm748, %v742, %v743
  %v754 = vsel %vm748, %v741, %v742
  %v755 = vsel %vm748, %v740, %v741
  %v756 = vsel %vm748, %v739, %v740
  %v757 = vsel %vm748, %v738, %v739
  %v758 = vsel %vm748, %v737, %v738
  %v759 = vsel %vm748, %v736, %v737
  %v760 = vsel %vm748, %v735, %v736
  %v761 = vsel %vm748, %v734, %v735
  %v762 = vsel %vm748, %v733, %v734
  %v763 = vsel %vm748, %v732, %v733
  %v764 = vsel %vm748, %v731, %v732
  %v765 = vsel %vm748, %v730, %v731
  %v766 = vsel %vm748, %v729, %v730
  %v767 = vsel %vm748, %v728, %v729
  %v768 = vsel %vm748, %v727, %v728
  %v769 = vsel %vm748, %v726, %v727
  %v770 = vsel %vm748, %v725, %v726
  %v771 = vsel %vm748, %v724, %v725
  %v772 = vsel %vm748, %v723, %v724
  %v773 = vsel %vm748, %v722, %v723
  %v774 = vsel %vm748, %v721, %v722
  %v775 = vsel %vm748, %v720, %v721
  %v776 = vsel %vm748, %v719, %v720
  %v777 = vsel %vm748, %v718, %v719
  %v778 = vsel %vm748, %v717, %v718
  %v779 = vsel %vm748, %v716, %v717
  %v780 = vsel %vm748, %v747, %v716
  %s781 = scalar_lea.vmem %s1, 512
  %v782 = vld [vmem:[%s781] sm:$0xff]
  %v783 = vld [vmem:[%s781 + $0x8] sm:$0xff]
  %v784 = vld [vmem:[%s781 + $0x10] sm:$0xff]
  %v785 = vld [vmem:[%s781 + $0x18] sm:$0xff]
  %v786 = vld [vmem:[%s781 + $0x20] sm:$0xff]
  %v787 = vld [vmem:[%s781 + $0x28] sm:$0xff]
  %v788 = vld [vmem:[%s781 + $0x30] sm:$0xff]
  %v789 = vld [vmem:[%s781 + $0x38] sm:$0xff]
  %v790 = vld [vmem:[%s781 + $0x40] sm:$0xff]
  %v791 = vld [vmem:[%s781 + $0x48] sm:$0xff]
  %v792 = vld [vmem:[%s781 + $0x50] sm:$0xff]
  %v793 = vld [vmem:[%s781 + $0x58] sm:$0xff]
  %v794 = vld [vmem:[%s781 + $0x60] sm:$0xff]
  %v795 = vld [vmem:[%s781 + $0x68] sm:$0xff]
  %v796 = vld [vmem:[%s781 + $0x70] sm:$0xff]
  %v797 = vld [vmem:[%s781 + $0x78] sm:$0xff]
  %v798 = vld [vmem:[%s781 + $0x80] sm:$0xff]
  %v799 = vld [vmem:[%s781 + $0x88] sm:$0xff]
  %v800 = vld [vmem:[%s781 + $0x90] sm:$0xff]
  %v801 = vld [vmem:[%s781 + $0x98] sm:$0xff]
  %v802 = vld [vmem:[%s781 + $0xa0] sm:$0xff]
  %v803 = vld [vmem:[%s781 + $0xa8] sm:$0xff]
  %v804 = vld [vmem:[%s781 + $0xb0] sm:$0xff]
  %v805 = vld [vmem:[%s781 + $0xb8] sm:$0xff]
  %v806 = vld [vmem:[%s781 + $0xc0] sm:$0xff]
  %v807 = vld [vmem:[%s781 + $0xc8] sm:$0xff]
  %v808 = vld [vmem:[%s781 + $0xd0] sm:$0xff]
  %v809 = vld [vmem:[%s781 + $0xd8] sm:$0xff]
  %v810 = vld [vmem:[%s781 + $0xe0] sm:$0xff]
  %v811 = vld [vmem:[%s781 + $0xe8] sm:$0xff]
  %v812 = vld [vmem:[%s781 + $0xf0] sm:$0xff]
  %v813 = vld [vmem:[%s781 + $0xf8] sm:$0xff]
  %814 = vmatprep.subr.mxu0 %v783
  %815 = vmatpush1.msra.mxu0 %v782
  %816 = vmatprep.subr.mxu0 %v785
  %817 = vmatpush1.msra.mxu0 %v784
  %818 = vmatprep.subr.mxu0 %v787
  %819 = vmatpush1.msra.mxu0 %v786
  %820 = vmatprep.subr.mxu0 %v789
  %821 = vmatpush1.msra.mxu0 %v788
  %822 = vmatprep.subr.mxu0 %v791
  %823 = vmatpush1.msra.mxu0 %v790
  %824 = vmatprep.subr.mxu0 %v793
  %825 = vmatpush1.msra.mxu0 %v792
  %826 = vmatprep.subr.mxu0 %v795
  %827 = vmatpush1.msra.mxu0 %v794
  %828 = vmatprep.subr.mxu0 %v797
  %829 = vmatpush1.msra.mxu0 %v796
  %830 = vmatprep.subr.mxu0 %v799
  %831 = vmatpush1.msra.mxu0 %v798
  %832 = vmatprep.subr.mxu0 %v801
  %833 = vmatpush1.msra.mxu0 %v800
  %834 = vmatprep.subr.mxu0 %v803
  %835 = vmatpush1.msra.mxu0 %v802
  %836 = vmatprep.subr.mxu0 %v805
  %837 = vmatpush1.msra.mxu0 %v804
  %838 = vmatprep.subr.mxu0 %v807
  %839 = vmatpush1.msra.mxu0 %v806
  %840 = vmatprep.subr.mxu0 %v809
  %841 = vmatpush1.msra.mxu0 %v808
  %842 = vmatprep.subr.mxu0 %v811
  %843 = vmatpush1.msra.mxu0 %v810
  %844 = vmatprep.subr.mxu0 %v813
  %845 = vmatpush1.msra.mxu0 %v812
  %846 = vmatprep.subr.mxu0 0.0
  %847 = vmatpush1.msra.mxu0 0.0
  %848 = vmatprep.subr.mxu0 0.0
  %849 = vmatpush1.msra.mxu0 0.0
  %850 = vmatprep.subr.mxu0 0.0
  %851 = vmatpush1.msra.mxu0 0.0
  %852 = vmatprep.subr.mxu0 0.0
  %853 = vmatpush1.msra.mxu0 0.0
  %854 = vmatprep.subr.mxu0 0.0
  %855 = vmatpush1.msra.mxu0 0.0
  %856 = vmatprep.subr.mxu0 0.0
  %857 = vmatpush1.msra.mxu0 0.0
  %858 = vmatprep.subr.mxu0 0.0
  %859 = vmatpush1.msra.mxu0 0.0
  %860 = vmatprep.subr.mxu0 0.0
  %861 = vmatpush1.msra.mxu0 0.0
  %862 = vmatprep.subr.mxu0 0.0
  %863 = vmatpush1.msra.mxu0 0.0
  %864 = vmatprep.subr.mxu0 0.0
  %865 = vmatpush1.msra.mxu0 0.0
  %866 = vmatprep.subr.mxu0 0.0
  %867 = vmatpush1.msra.mxu0 0.0
  %868 = vmatprep.subr.mxu0 0.0
  %869 = vmatpush1.msra.mxu0 0.0
  %870 = vmatprep.subr.mxu0 0.0
  %871 = vmatpush1.msra.mxu0 0.0
  %872 = vmatprep.subr.mxu0 0.0
  %873 = vmatpush1.msra.mxu0 0.0
  %874 = vmatprep.subr.mxu0 0.0
  %875 = vmatpush1.msra.mxu0 0.0
  %876 = vmatprep.subr.mxu0 0.0
  %877 = vmatpush1.msra.mxu0 0.0
  %878 = vmatprep.mubr.f32.mxu0 0.0
  %879 = vmatmul.mubr.f32.gmra.mrb[0].mxu0 %v779
  %v880 = vpop.f32.mrb[0].mxu0
  %v881 = vadd.f32 0.0, %v880
  %v882 = vpop.f32.mrb[0].mxu0
  %v883 = vadd.f32 0.0, %v882
  %884 = vmatprep.mubr.f32.mxu0 0.0
  %885 = vmatmul.mubr.f32.gmra.mrb[0].mxu0 %v778
  %v886 = vpop.f32.mrb[0].mxu0
  %v887 = vadd.f32 0.0, %v886
  %v888 = vpop.f32.mrb[0].mxu0
  %v889 = vadd.f32 0.0, %v888
  %890 = vmatprep.mubr.f32.mxu0 0.0
  %891 = vmatmul.mubr.f32.gmra.mrb[0].mxu0 %v777
  %v892 = vpop.f32.mrb[0].mxu0
  %v893 = vadd.f32 0.0, %v892
  %v894 = vpop.f32.mrb[0].mxu0
  %v895 = vadd.f32 0.0, %v894
  %896 = vmatprep.mubr.f32.mxu0 0.0
  %897 = vmatmul.mubr.f32.gmra.mrb[0].mxu0 %v776
  %v898 = vpop.f32.mrb[0].mxu0
  %v899 = vadd.f32 0.0, %v898
  %v900 = vpop.f32.mrb[0].mxu0
  %v901 = vadd.f32 0.0, %v900
  %902 = vmatprep.mubr.f32.mxu0 0.0
  %903 = vmatmul.mubr.f32.gmra.mrb[0].mxu0 %v775
  %v904 = vpop.f32.mrb[0].mxu0
  %v905 = vadd.f32 0.0, %v904
  %v906 = vpop.f32.mrb[0].mxu0
  %v907 = vadd.f32 0.0, %v906
  %908 = vmatprep.mubr.f32.mxu0 0.0
  %909 = vmatmul.mubr.f32.gmra.mrb[0].mxu0 %v774
  %v910 = vpop.f32.mrb[0].mxu0
  %v911 = vadd.f32 0.0, %v910
  %v912 = vpop.f32.mrb[0].mxu0
  %v913 = vadd.f32 0.0, %v912
  %914 = vmatprep.mubr.f32.mxu0 0.0
  %915 = vmatmul.mubr.f32.gmra.mrb[0].mxu0 %v773
  %v916 = vpop.f32.mrb[0].mxu0
  %v917 = vadd.f32 0.0, %v916
  %v918 = vpop.f32.mrb[0].mxu0
  %v919 = vadd.f32 0.0, %v918
  %920 = vmatprep.mubr.f32.mxu0 0.0
  %921 = vmatmul.mubr.f32.gmra.mrb[0].mxu0 %v772
  %v922 = vpop.f32.mrb[0].mxu0
  %v923 = vadd.f32 0.0, %v922
  %v924 = vpop.f32.mrb[0].mxu0
  %v925 = vadd.f32 0.0, %v924
  %926 = vmatprep.mubr.f32.mxu0 0.0
  %927 = vmatmul.mubr.f32.gmra.mrb[0].mxu0 %v771
  %v928 = vpop.f32.mrb[0].mxu0
  %v929 = vadd.f32 0.0, %v928
  %v930 = vpop.f32.mrb[0].mxu0
  %v931 = vadd.f32 0.0, %v930
  %932 = vmatprep.mubr.f32.mxu0 0.0
  %933 = vmatmul.mubr.f32.gmra.mrb[0].mxu0 %v770
  %v934 = vpop.f32.mrb[0].mxu0
  %v935 = vadd.f32 0.0, %v934
  %v936 = vpop.f32.mrb[0].mxu0
  %v937 = vadd.f32 0.0, %v936
  %938 = vmatprep.mubr.f32.mxu0 0.0
  %939 = vmatmul.mubr.f32.gmra.mrb[0].mxu0 %v769
  %v940 = vpop.f32.mrb[0].mxu0
  %v941 = vadd.f32 0.0, %v940
  %v942 = vpop.f32.mrb[0].mxu0
  %v943 = vadd.f32 0.0, %v942
  %944 = vmatprep.mubr.f32.mxu0 0.0
  %945 = vmatmul.mubr.f32.gmra.mrb[0].mxu0 %v768
  %v946 = vpop.f32.mrb[0].mxu0
  %v947 = vadd.f32 0.0, %v946
  %v948 = vpop.f32.mrb[0].mxu0
  %v949 = vadd.f32 0.0, %v948
  %950 = vmatprep.mubr.f32.mxu0 0.0
  %951 = vmatmul.mubr.f32.gmra.mrb[0].mxu0 %v767
  %v952 = vpop.f32.mrb[0].mxu0
  %v953 = vadd.f32 0.0, %v952
  %v954 = vpop.f32.mrb[0].mxu0
  %v955 = vadd.f32 0.0, %v954
  %956 = vmatprep.mubr.f32.mxu0 0.0
  %957 = vmatmul.mubr.f32.gmra.mrb[0].mxu0 %v766
  %v958 = vpop.f32.mrb[0].mxu0
  %v959 = vadd.f32 0.0, %v958
  %v960 = vpop.f32.mrb[0].mxu0
  %v961 = vadd.f32 0.0, %v960
  %962 = vmatprep.mubr.f32.mxu0 0.0
  %963 = vmatmul.mubr.f32.gmra.mrb[0].mxu0 %v765
  %v964 = vpop.f32.mrb[0].mxu0
  %v965 = vadd.f32 0.0, %v964
  %v966 = vpop.f32.mrb[0].mxu0
  %v967 = vadd.f32 0.0, %v966
  %968 = vmatprep.mubr.f32.mxu0 0.0
  %969 = vmatmul.mubr.f32.gmra.mrb[0].mxu0 %v764
  %v970 = vpop.f32.mrb[0].mxu0
  %v971 = vadd.f32 0.0, %v970
  %v972 = vpop.f32.mrb[0].mxu0
  %v973 = vadd.f32 0.0, %v972
  %974 = vmatprep.mubr.f32.mxu0 0.0
  %975 = vmatmul.mubr.f32.gmra.mrb[0].mxu0 %v763
  %v976 = vpop.f32.mrb[0].mxu0
  %v977 = vadd.f32 0.0, %v976
  %v978 = vpop.f32.mrb[0].mxu0
  %v979 = vadd.f32 0.0, %v978
  %980 = vmatprep.mubr.f32.mxu0 0.0
  %981 = vmatmul.mubr.f32.gmra.mrb[0].mxu0 %v762
  %v982 = vpop.f32.mrb[0].mxu0
  %v983 = vadd.f32 0.0, %v982
  %v984 = vpop.f32.mrb[0].mxu0
  %v985 = vadd.f32 0.0, %v984
  %986 = vmatprep.mubr.f32.mxu0 0.0
  %987 = vmatmul.mubr.f32.gmra.mrb[0].mxu0 %v761
  %v988 = vpop.f32.mrb[0].mxu0
  %v989 = vadd.f32 0.0, %v988
  %v990 = vpop.f32.mrb[0].mxu0
  %v991 = vadd.f32 0.0, %v990
  %992 = vmatprep.mubr.f32.mxu0 0.0
  %993 = vmatmul.mubr.f32.gmra.mrb[0].mxu0 %v760
  %v994 = vpop.f32.mrb[0].mxu0
  %v995 = vadd.f32 0.0, %v994
  %v996 = vpop.f32.mrb[0].mxu0
  %v997 = vadd.f32 0.0, %v996
  %998 = vmatprep.mubr.f32.mxu0 0.0
  %999 = vmatmul.mubr.f32.gmra.mrb[0].mxu0 %v759
  %v1000 = vpop.f32.mrb[0].mxu0
  %v1001 = vadd.f32 0.0, %v1000
  %v1002 = vpop.f32.mrb[0].mxu0
  %v1003 = vadd.f32 0.0, %v1002
  %1004 = vmatprep.mubr.f32.mxu0 0.0
  %1005 = vmatmul.mubr.f32.gmra.mrb[0].mxu0 %v758
  %v1006 = vpop.f32.mrb[0].mxu0
  %v1007 = vadd.f32 0.0, %v1006
  %v1008 = vpop.f32.mrb[0].mxu0
  %v1009 = vadd.f32 0.0, %v1008
  %1010 = vmatprep.mubr.f32.mxu0 0.0
  %1011 = vmatmul.mubr.f32.gmra.mrb[0].mxu0 %v757
  %v1012 = vpop.f32.mrb[0].mxu0
  %v1013 = vadd.f32 0.0, %v1012
  %v1014 = vpop.f32.mrb[0].mxu0
  %v1015 = vadd.f32 0.0, %v1014
  %1016 = vmatprep.mubr.f32.mxu0 0.0
  %1017 = vmatmul.mubr.f32.gmra.mrb[0].mxu0 %v756
  %v1018 = vpop.f32.mrb[0].mxu0
  %v1019 = vadd.f32 0.0, %v1018
  %v1020 = vpop.f32.mrb[0].mxu0
  %v1021 = vadd.f32 0.0, %v1020
  %1022 = vmatprep.mubr.f32.mxu0 0.0
  %1023 = vmatmul.mubr.f32.gmra.mrb[0].mxu0 %v755
  %v1024 = vpop.f32.mrb[0].mxu0
  %v1025 = vadd.f32 0.0, %v1024
  %v1026 = vpop.f32.mrb[0].mxu0
  %v1027 = vadd.f32 0.0, %v1026
  %1028 = vmatprep.mubr.f32.mxu0 0.0
  %1029 = vmatmul.mubr.f32.gmra.mrb[0].mxu0 %v754
  %v1030 = vpop.f32.mrb[0].mxu0
  %v1031 = vadd.f32 0.0, %v1030
  %v1032 = vpop.f32.mrb[0].mxu0
  %v1033 = vadd.f32 0.0, %v1032
  %1034 = vmatprep.mubr.f32.mxu0 0.0
  %1035 = vmatmul.mubr.f32.gmra.mrb[0].mxu0 %v753
  %v1036 = vpop.f32.mrb[0].mxu0
  %v1037 = vadd.f32 0.0, %v1036
  %v1038 = vpop.f32.mrb[0].mxu0
  %v1039 = vadd.f32 0.0, %v1038
  %1040 = vmatprep.mubr.f32.mxu0 0.0
  %1041 = vmatmul.mubr.f32.gmra.mrb[0].mxu0 %v752
  %v1042 = vpop.f32.mrb[0].mxu0
  %v1043 = vadd.f32 0.0, %v1042
  %v1044 = vpop.f32.mrb[0].mxu0
  %v1045 = vadd.f32 0.0, %v1044
  %1046 = vmatprep.mubr.f32.mxu0 0.0
  %1047 = vmatmul.mubr.f32.gmra.mrb[0].mxu0 %v751
  %v1048 = vpop.f32.mrb[0].mxu0
  %v1049 = vadd.f32 0.0, %v1048
  %v1050 = vpop.f32.mrb[0].mxu0
  %v1051 = vadd.f32 0.0, %v1050
  %1052 = vmatprep.mubr.f32.mxu0 0.0
  %1053 = vmatmul.mubr.f32.gmra.mrb[0].mxu0 %v750
  %v1054 = vpop.f32.mrb[0].mxu0
  %v1055 = vadd.f32 0.0, %v1054
  %v1056 = vpop.f32.mrb[0].mxu0
  %v1057 = vadd.f32 0.0, %v1056
  %1058 = vmatprep.mubr.f32.mxu0 0.0
  %1059 = vmatmul.mubr.f32.gmra.mrb[0].mxu0 %v749
  %v1060 = vpop.f32.mrb[0].mxu0
  %v1061 = vadd.f32 0.0, %v1060
  %v1062 = vpop.f32.mrb[0].mxu0
  %v1063 = vadd.f32 0.0, %v1062
  %1064 = vmatprep.mubr.f32.mxu0 0.0
  %1065 = vmatmul.mubr.f32.gmra.mrb[0].mxu0 %v780
  %v1066 = vpop.f32.mrb[0].mxu0
  %v1067 = vadd.f32 0.0, %v1066
  %v1068 = vpop.f32.mrb[0].mxu0
  %v1069 = vadd.f32 0.0, %v1068
  %1070 = vdwg.mxu0
  %v1071 = vadd.f32 %v526, %v881
  %v1072 = vadd.f32 %v528, %v883
  %v1073 = vadd.f32 %v532, %v887
  %v1074 = vadd.f32 %v534, %v889
  %v1075 = vadd.f32 %v538, %v893
  %v1076 = vadd.f32 %v540, %v895
  %v1077 = vadd.f32 %v544, %v899
  %v1078 = vadd.f32 %v546, %v901
  %v1079 = vadd.f32 %v550, %v905
  %v1080 = vadd.f32 %v552, %v907
  %v1081 = vadd.f32 %v556, %v911
  %v1082 = vadd.f32 %v558, %v913
  %v1083 = vadd.f32 %v562, %v917
  %v1084 = vadd.f32 %v564, %v919
  %v1085 = vadd.f32 %v568, %v923
  %v1086 = vadd.f32 %v570, %v925
  %v1087 = vadd.f32 %v574, %v929
  %v1088 = vadd.f32 %v576, %v931
  %v1089 = vadd.f32 %v580, %v935
  %v1090 = vadd.f32 %v582, %v937
  %v1091 = vadd.f32 %v586, %v941
  %v1092 = vadd.f32 %v588, %v943
  %v1093 = vadd.f32 %v592, %v947
  %v1094 = vadd.f32 %v594, %v949
  %v1095 = vadd.f32 %v598, %v953
  %v1096 = vadd.f32 %v600, %v955
  %v1097 = vadd.f32 %v604, %v959
  %v1098 = vadd.f32 %v606, %v961
  %v1099 = vadd.f32 %v610, %v965
  %v1100 = vadd.f32 %v612, %v967
  %v1101 = vadd.f32 %v616, %v971
  %v1102 = vadd.f32 %v618, %v973
  %v1103 = vadd.f32 %v622, %v977
  %v1104 = vadd.f32 %v624, %v979
  %v1105 = vadd.f32 %v628, %v983
  %v1106 = vadd.f32 %v630, %v985
  %v1107 = vadd.f32 %v634, %v989
  %v1108 = vadd.f32 %v636, %v991
  %v1109 = vadd.f32 %v640, %v995
  %v1110 = vadd.f32 %v642, %v997
  %v1111 = vadd.f32 %v646, %v1001
  %v1112 = vadd.f32 %v648, %v1003
  %v1113 = vadd.f32 %v652, %v1007
  %v1114 = vadd.f32 %v654, %v1009
  %v1115 = vadd.f32 %v658, %v1013
  %v1116 = vadd.f32 %v660, %v1015
  %v1117 = vadd.f32 %v664, %v1019
  %v1118 = vadd.f32 %v666, %v1021
  %v1119 = vadd.f32 %v670, %v1025
  %v1120 = vadd.f32 %v672, %v1027
  %v1121 = vadd.f32 %v676, %v1031
  %v1122 = vadd.f32 %v678, %v1033
  %v1123 = vadd.f32 %v682, %v1037
  %v1124 = vadd.f32 %v684, %v1039
  %v1125 = vadd.f32 %v688, %v1043
  %v1126 = vadd.f32 %v690, %v1045
  %v1127 = vadd.f32 %v694, %v1049
  %v1128 = vadd.f32 %v696, %v1051
  %v1129 = vadd.f32 %v700, %v1055
  %v1130 = vadd.f32 %v702, %v1057
  %v1131 = vadd.f32 %v706, %v1061
  %v1132 = vadd.f32 %v708, %v1063
  %v1133 = vadd.f32 %v712, %v1067
  %v1134 = vadd.f32 %v714, %v1069
  %v1135 = vrot.slane %v38, 3
  %v1136 = vrot.slane %v39, 3
  %v1137 = vrot.slane %v40, 3
  %v1138 = vrot.slane %v41, 3
  %v1139 = vrot.slane %v42, 3
  %v1140 = vrot.slane %v43, 3
  %v1141 = vrot.slane %v44, 3
  %v1142 = vrot.slane %v45, 3
  %v1143 = vrot.slane %v46, 3
  %v1144 = vrot.slane %v47, 3
  %v1145 = vrot.slane %v48, 3
  %v1146 = vrot.slane %v49, 3
  %v1147 = vrot.slane %v50, 3
  %v1148 = vrot.slane %v51, 3
  %v1149 = vrot.slane %v52, 3
  %v1150 = vrot.slane %v53, 3
  %v1151 = vrot.slane %v54, 3
  %v1152 = vrot.slane %v55, 3
  %v1153 = vrot.slane %v56, 3
  %v1154 = vrot.slane %v57, 3
  %v1155 = vrot.slane %v58, 3
  %v1156 = vrot.slane %v59, 3
  %v1157 = vrot.slane %v60, 3
  %v1158 = vrot.slane %v61, 3
  %v1159 = vrot.slane %v62, 3
  %v1160 = vrot.slane %v63, 3
  %v1161 = vrot.slane %v64, 3
  %v1162 = vrot.slane %v65, 3
  %v1163 = vrot.slane %v66, 3
  %v1164 = vrot.slane %v67, 3
  %v1165 = vrot.slane %v68, 3
  %v1166 = vrot.slane %v69, 3
  %vm1167 = vcmp.lt.s32.totalorder %v135, 5
  %v1168 = vsel %vm1167, %v1165, %v1166
  %v1169 = vsel %vm1167, %v1164, %v1165
  %v1170 = vsel %vm1167, %v1163, %v1164
  %v1171 = vsel %vm1167, %v1162, %v1163
  %v1172 = vsel %vm1167, %v1161, %v1162
  %v1173 = vsel %vm1167, %v1160, %v1161
  %v1174 = vsel %vm1167, %v1159, %v1160
  %v1175 = vsel %vm1167, %v1158, %v1159
  %v1176 = vsel %vm1167, %v1157, %v1158
  %v1177 = vsel %vm1167, %v1156, %v1157
  %v1178 = vsel %vm1167, %v1155, %v1156
  %v1179 = vsel %vm1167, %v1154, %v1155
  %v1180 = vsel %vm1167, %v1153, %v1154
  %v1181 = vsel %vm1167, %v1152, %v1153
  %v1182 = vsel %vm1167, %v1151, %v1152
  %v1183 = vsel %vm1167, %v1150, %v1151
  %v1184 = vsel %vm1167, %v1149, %v1150
  %v1185 = vsel %vm1167, %v1148, %v1149
  %v1186 = vsel %vm1167, %v1147, %v1148
  %v1187 = vsel %vm1167, %v1146, %v1147
  %v1188 = vsel %vm1167, %v1145, %v1146
  %v1189 = vsel %vm1167, %v1144, %v1145
  %v1190 = vsel %vm1167, %v1143, %v1144
  %v1191 = vsel %vm1167, %v1142, %v1143
  %v1192 = vsel %vm1167, %v1141, %v1142
  %v1193 = vsel %vm1167, %v1140, %v1141
  %v1194 = vsel %vm1167, %v1139, %v1140
  %v1195 = vsel %vm1167, %v1138, %v1139
  %v1196 = vsel %vm1167, %v1137, %v1138
  %v1197 = vsel %vm1167, %v1136, %v1137
  %v1198 = vsel %vm1167, %v1135, %v1136
  %v1199 = vsel %vm1167, %v1166, %v1135
  %s1200 = scalar_lea.vmem %s1, 768
  %v1201 = vld [vmem:[%s1200] sm:$0xff]
  %v1202 = vld [vmem:[%s1200 + $0x8] sm:$0xff]
  %v1203 = vld [vmem:[%s1200 + $0x10] sm:$0xff]
  %v1204 = vld [vmem:[%s1200 + $0x18] sm:$0xff]
  %v1205 = vld [vmem:[%s1200 + $0x20] sm:$0xff]
  %v1206 = vld [vmem:[%s1200 + $0x28] sm:$0xff]
  %v1207 = vld [vmem:[%s1200 + $0x30] sm:$0xff]
  %v1208 = vld [vmem:[%s1200 + $0x38] sm:$0xff]
  %v1209 = vld [vmem:[%s1200 + $0x40] sm:$0xff]
  %v1210 = vld [vmem:[%s1200 + $0x48] sm:$0xff]
  %v1211 = vld [vmem:[%s1200 + $0x50] sm:$0xff]
  %v1212 = vld [vmem:[%s1200 + $0x58] sm:$0xff]
  %v1213 = vld [vmem:[%s1200 + $0x60] sm:$0xff]
  %v1214 = vld [vmem:[%s1200 + $0x68] sm:$0xff]
  %v1215 = vld [vmem:[%s1200 + $0x70] sm:$0xff]
  %v1216 = vld [vmem:[%s1200 + $0x78] sm:$0xff]
  %v1217 = vld [vmem:[%s1200 + $0x80] sm:$0xff]
  %v1218 = vld [vmem:[%s1200 + $0x88] sm:$0xff]
  %v1219 = vld [vmem:[%s1200 + $0x90] sm:$0xff]
  %v1220 = vld [vmem:[%s1200 + $0x98] sm:$0xff]
  %v1221 = vld [vmem:[%s1200 + $0xa0] sm:$0xff]
  %v1222 = vld [vmem:[%s1200 + $0xa8] sm:$0xff]
  %v1223 = vld [vmem:[%s1200 + $0xb0] sm:$0xff]
  %v1224 = vld [vmem:[%s1200 + $0xb8] sm:$0xff]
  %v1225 = vld [vmem:[%s1200 + $0xc0] sm:$0xff]
  %v1226 = vld [vmem:[%s1200 + $0xc8] sm:$0xff]
  %v1227 = vld [vmem:[%s1200 + $0xd0] sm:$0xff]
  %v1228 = vld [vmem:[%s1200 + $0xd8] sm:$0xff]
  %v1229 = vld [vmem:[%s1200 + $0xe0] sm:$0xff]
  %v1230 = vld [vmem:[%s1200 + $0xe8] sm:$0xff]
  %v1231 = vld [vmem:[%s1200 + $0xf0] sm:$0xff]
  %v1232 = vld [vmem:[%s1200 + $0xf8] sm:$0xff]
  %1233 = vmatprep.subr.mxu0 %v1202
  %1234 = vmatpush1.msra.mxu0 %v1201
  %1235 = vmatprep.subr.mxu0 %v1204
  %1236 = vmatpush1.msra.mxu0 %v1203
  %1237 = vmatprep.subr.mxu0 %v1206
  %1238 = vmatpush1.msra.mxu0 %v1205
  %1239 = vmatprep.subr.mxu0 %v1208
  %1240 = vmatpush1.msra.mxu0 %v1207
  %1241 = vmatprep.subr.mxu0 %v1210
  %1242 = vmatpush1.msra.mxu0 %v1209
  %1243 = vmatprep.subr.mxu0 %v1212
  %1244 = vmatpush1.msra.mxu0 %v1211
  %1245 = vmatprep.subr.mxu0 %v1214
  %1246 = vmatpush1.msra.mxu0 %v1213
  %1247 = vmatprep.subr.mxu0 %v1216
  %1248 = vmatpush1.msra.mxu0 %v1215
  %1249 = vmatprep.subr.mxu0 %v1218
  %1250 = vmatpush1.msra.mxu0 %v1217
  %1251 = vmatprep.subr.mxu0 %v1220
  %1252 = vmatpush1.msra.mxu0 %v1219
  %1253 = vmatprep.subr.mxu0 %v1222
  %1254 = vmatpush1.msra.mxu0 %v1221
  %1255 = vmatprep.subr.mxu0 %v1224
  %1256 = vmatpush1.msra.mxu0 %v1223
  %1257 = vmatprep.subr.mxu0 %v1226
  %1258 = vmatpush1.msra.mxu0 %v1225
  %1259 = vmatprep.subr.mxu0 %v1228
  %1260 = vmatpush1.msra.mxu0 %v1227
  %1261 = vmatprep.subr.mxu0 %v1230
  %1262 = vmatpush1.msra.mxu0 %v1229
  %1263 = vmatprep.subr.mxu0 %v1232
  %1264 = vmatpush1.msra.mxu0 %v1231
  %1265 = vmatprep.subr.mxu0 0.0
  %1266 = vmatpush1.msra.mxu0 0.0
  %1267 = vmatprep.subr.mxu0 0.0
  %1268 = vmatpush1.msra.mxu0 0.0
  %1269 = vmatprep.subr.mxu0 0.0
  %1270 = vmatpush1.msra.mxu0 0.0
  %1271 = vmatprep.subr.mxu0 0.0
  %1272 = vmatpush1.msra.mxu0 0.0
  %1273 = vmatprep.subr.mxu0 0.0
  %1274 = vmatpush1.msra.mxu0 0.0
  %1275 = vmatprep.subr.mxu0 0.0
  %1276 = vmatpush1.msra.mxu0 0.0
  %1277 = vmatprep.subr.mxu0 0.0
  %1278 = vmatpush1.msra.mxu0 0.0
  %1279 = vmatprep.subr.mxu0 0.0
  %1280 = vmatpush1.msra.mxu0 0.0
  %1281 = vmatprep.subr.mxu0 0.0
  %1282 = vmatpush1.msra.mxu0 0.0
  %1283 = vmatprep.subr.mxu0 0.0
  %1284 = vmatpush1.msra.mxu0 0.0
  %1285 = vmatprep.subr.mxu0 0.0
  %1286 = vmatpush1.msra.mxu0 0.0
  %1287 = vmatprep.subr.mxu0 0.0
  %1288 = vmatpush1.msra.mxu0 0.0
  %1289 = vmatprep.subr.mxu0 0.0
  %1290 = vmatpush1.msra.mxu0 0.0
  %1291 = vmatprep.subr.mxu0 0.0
  %1292 = vmatpush1.msra.mxu0 0.0
  %1293 = vmatprep.subr.mxu0 0.0
  %1294 = vmatpush1.msra.mxu0 0.0
  %1295 = vmatprep.subr.mxu0 0.0
  %1296 = vmatpush1.msra.mxu0 0.0
  %1297 = vmatprep.mubr.f32.mxu0 0.0
  %1298 = vmatmul.mubr.f32.gmra.mrb[0].mxu0 %v1198
  %v1299 = vpop.f32.mrb[0].mxu0
  %v1300 = vadd.f32 0.0, %v1299
  %v1301 = vpop.f32.mrb[0].mxu0
  %v1302 = vadd.f32 0.0, %v1301
  %1303 = vmatprep.mubr.f32.mxu0 0.0
  %1304 = vmatmul.mubr.f32.gmra.mrb[0].mxu0 %v1197
  %v1305 = vpop.f32.mrb[0].mxu0
  %v1306 = vadd.f32 0.0, %v1305
  %v1307 = vpop.f32.mrb[0].mxu0
  %v1308 = vadd.f32 0.0, %v1307
  %1309 = vmatprep.mubr.f32.mxu0 0.0
  %1310 = vmatmul.mubr.f32.gmra.mrb[0].mxu0 %v1196
  %v1311 = vpop.f32.mrb[0].mxu0
  %v1312 = vadd.f32 0.0, %v1311
  %v1313 = vpop.f32.mrb[0].mxu0
  %v1314 = vadd.f32 0.0, %v1313
  %1315 = vmatprep.mubr.f32.mxu0 0.0
  %1316 = vmatmul.mubr.f32.gmra.mrb[0].mxu0 %v1195
  %v1317 = vpop.f32.mrb[0].mxu0
  %v1318 = vadd.f32 0.0, %v1317
  %v1319 = vpop.f32.mrb[0].mxu0
  %v1320 = vadd.f32 0.0, %v1319
  %1321 = vmatprep.mubr.f32.mxu0 0.0
  %1322 = vmatmul.mubr.f32.gmra.mrb[0].mxu0 %v1194
  %v1323 = vpop.f32.mrb[0].mxu0
  %v1324 = vadd.f32 0.0, %v1323
  %v1325 = vpop.f32.mrb[0].mxu0
  %v1326 = vadd.f32 0.0, %v1325
  %1327 = vmatprep.mubr.f32.mxu0 0.0
  %1328 = vmatmul.mubr.f32.gmra.mrb[0].mxu0 %v1193
  %v1329 = vpop.f32.mrb[0].mxu0
  %v1330 = vadd.f32 0.0, %v1329
  %v1331 = vpop.f32.mrb[0].mxu0
  %v1332 = vadd.f32 0.0, %v1331
  %1333 = vmatprep.mubr.f32.mxu0 0.0
  %1334 = vmatmul.mubr.f32.gmra.mrb[0].mxu0 %v1192
  %v1335 = vpop.f32.mrb[0].mxu0
  %v1336 = vadd.f32 0.0, %v1335
  %v1337 = vpop.f32.mrb[0].mxu0
  %v1338 = vadd.f32 0.0, %v1337
  %1339 = vmatprep.mubr.f32.mxu0 0.0
  %1340 = vmatmul.mubr.f32.gmra.mrb[0].mxu0 %v1191
  %v1341 = vpop.f32.mrb[0].mxu0
  %v1342 = vadd.f32 0.0, %v1341
  %v1343 = vpop.f32.mrb[0].mxu0
  %v1344 = vadd.f32 0.0, %v1343
  %1345 = vmatprep.mubr.f32.mxu0 0.0
  %1346 = vmatmul.mubr.f32.gmra.mrb[0].mxu0 %v1190
  %v1347 = vpop.f32.mrb[0].mxu0
  %v1348 = vadd.f32 0.0, %v1347
  %v1349 = vpop.f32.mrb[0].mxu0
  %v1350 = vadd.f32 0.0, %v1349
  %1351 = vmatprep.mubr.f32.mxu0 0.0
  %1352 = vmatmul.mubr.f32.gmra.mrb[0].mxu0 %v1189
  %v1353 = vpop.f32.mrb[0].mxu0
  %v1354 = vadd.f32 0.0, %v1353
  %v1355 = vpop.f32.mrb[0].mxu0
  %v1356 = vadd.f32 0.0, %v1355
  %1357 = vmatprep.mubr.f32.mxu0 0.0
  %1358 = vmatmul.mubr.f32.gmra.mrb[0].mxu0 %v1188
  %v1359 = vpop.f32.mrb[0].mxu0
  %v1360 = vadd.f32 0.0, %v1359
  %v1361 = vpop.f32.mrb[0].mxu0
  %v1362 = vadd.f32 0.0, %v1361
  %1363 = vmatprep.mubr.f32.mxu0 0.0
  %1364 = vmatmul.mubr.f32.gmra.mrb[0].mxu0 %v1187
  %v1365 = vpop.f32.mrb[0].mxu0
  %v1366 = vadd.f32 0.0, %v1365
  %v1367 = vpop.f32.mrb[0].mxu0
  %v1368 = vadd.f32 0.0, %v1367
  %1369 = vmatprep.mubr.f32.mxu0 0.0
  %1370 = vmatmul.mubr.f32.gmra.mrb[0].mxu0 %v1186
  %v1371 = vpop.f32.mrb[0].mxu0
  %v1372 = vadd.f32 0.0, %v1371
  %v1373 = vpop.f32.mrb[0].mxu0
  %v1374 = vadd.f32 0.0, %v1373
  %1375 = vmatprep.mubr.f32.mxu0 0.0
  %1376 = vmatmul.mubr.f32.gmra.mrb[0].mxu0 %v1185
  %v1377 = vpop.f32.mrb[0].mxu0
  %v1378 = vadd.f32 0.0, %v1377
  %v1379 = vpop.f32.mrb[0].mxu0
  %v1380 = vadd.f32 0.0, %v1379
  %1381 = vmatprep.mubr.f32.mxu0 0.0
  %1382 = vmatmul.mubr.f32.gmra.mrb[0].mxu0 %v1184
  %v1383 = vpop.f32.mrb[0].mxu0
  %v1384 = vadd.f32 0.0, %v1383
  %v1385 = vpop.f32.mrb[0].mxu0
  %v1386 = vadd.f32 0.0, %v1385
  %1387 = vmatprep.mubr.f32.mxu0 0.0
  %1388 = vmatmul.mubr.f32.gmra.mrb[0].mxu0 %v1183
  %v1389 = vpop.f32.mrb[0].mxu0
  %v1390 = vadd.f32 0.0, %v1389
  %v1391 = vpop.f32.mrb[0].mxu0
  %v1392 = vadd.f32 0.0, %v1391
  %1393 = vmatprep.mubr.f32.mxu0 0.0
  %1394 = vmatmul.mubr.f32.gmra.mrb[0].mxu0 %v1182
  %v1395 = vpop.f32.mrb[0].mxu0
  %v1396 = vadd.f32 0.0, %v1395
  %v1397 = vpop.f32.mrb[0].mxu0
  %v1398 = vadd.f32 0.0, %v1397
  %1399 = vmatprep.mubr.f32.mxu0 0.0
  %1400 = vmatmul.mubr.f32.gmra.mrb[0].mxu0 %v1181
  %v1401 = vpop.f32.mrb[0].mxu0
  %v1402 = vadd.f32 0.0, %v1401
  %v1403 = vpop.f32.mrb[0].mxu0
  %v1404 = vadd.f32 0.0, %v1403
  %1405 = vmatprep.mubr.f32.mxu0 0.0
  %1406 = vmatmul.mubr.f32.gmra.mrb[0].mxu0 %v1180
  %v1407 = vpop.f32.mrb[0].mxu0
  %v1408 = vadd.f32 0.0, %v1407
  %v1409 = vpop.f32.mrb[0].mxu0
  %v1410 = vadd.f32 0.0, %v1409
  %1411 = vmatprep.mubr.f32.mxu0 0.0
  %1412 = vmatmul.mubr.f32.gmra.mrb[0].mxu0 %v1179
  %v1413 = vpop.f32.mrb[0].mxu0
  %v1414 = vadd.f32 0.0, %v1413
  %v1415 = vpop.f32.mrb[0].mxu0
  %v1416 = vadd.f32 0.0, %v1415
  %1417 = vmatprep.mubr.f32.mxu0 0.0
  %1418 = vmatmul.mubr.f32.gmra.mrb[0].mxu0 %v1178
  %v1419 = vpop.f32.mrb[0].mxu0
  %v1420 = vadd.f32 0.0, %v1419
  %v1421 = vpop.f32.mrb[0].mxu0
  %v1422 = vadd.f32 0.0, %v1421
  %1423 = vmatprep.mubr.f32.mxu0 0.0
  %1424 = vmatmul.mubr.f32.gmra.mrb[0].mxu0 %v1177
  %v1425 = vpop.f32.mrb[0].mxu0
  %v1426 = vadd.f32 0.0, %v1425
  %v1427 = vpop.f32.mrb[0].mxu0
  %v1428 = vadd.f32 0.0, %v1427
  %1429 = vmatprep.mubr.f32.mxu0 0.0
  %1430 = vmatmul.mubr.f32.gmra.mrb[0].mxu0 %v1176
  %v1431 = vpop.f32.mrb[0].mxu0
  %v1432 = vadd.f32 0.0, %v1431
  %v1433 = vpop.f32.mrb[0].mxu0
  %v1434 = vadd.f32 0.0, %v1433
  %1435 = vmatprep.mubr.f32.mxu0 0.0
  %1436 = vmatmul.mubr.f32.gmra.mrb[0].mxu0 %v1175
  %v1437 = vpop.f32.mrb[0].mxu0
  %v1438 = vadd.f32 0.0, %v1437
  %v1439 = vpop.f32.mrb[0].mxu0
  %v1440 = vadd.f32 0.0, %v1439
  %1441 = vmatprep.mubr.f32.mxu0 0.0
  %1442 = vmatmul.mubr.f32.gmra.mrb[0].mxu0 %v1174
  %v1443 = vpop.f32.mrb[0].mxu0
  %v1444 = vadd.f32 0.0, %v1443
  %v1445 = vpop.f32.mrb[0].mxu0
  %v1446 = vadd.f32 0.0, %v1445
  %1447 = vmatprep.mubr.f32.mxu0 0.0
  %1448 = vmatmul.mubr.f32.gmra.mrb[0].mxu0 %v1173
  %v1449 = vpop.f32.mrb[0].mxu0
  %v1450 = vadd.f32 0.0, %v1449
  %v1451 = vpop.f32.mrb[0].mxu0
  %v1452 = vadd.f32 0.0, %v1451
  %1453 = vmatprep.mubr.f32.mxu0 0.0
  %1454 = vmatmul.mubr.f32.gmra.mrb[0].mxu0 %v1172
  %v1455 = vpop.f32.mrb[0].mxu0
  %v1456 = vadd.f32 0.0, %v1455
  %v1457 = vpop.f32.mrb[0].mxu0
  %v1458 = vadd.f32 0.0, %v1457
  %1459 = vmatprep.mubr.f32.mxu0 0.0
  %1460 = vmatmul.mubr.f32.gmra.mrb[0].mxu0 %v1171
  %v1461 = vpop.f32.mrb[0].mxu0
  %v1462 = vadd.f32 0.0, %v1461
  %v1463 = vpop.f32.mrb[0].mxu0
  %v1464 = vadd.f32 0.0, %v1463
  %1465 = vmatprep.mubr.f32.mxu0 0.0
  %1466 = vmatmul.mubr.f32.gmra.mrb[0].mxu0 %v1170
  %v1467 = vpop.f32.mrb[0].mxu0
  %v1468 = vadd.f32 0.0, %v1467
  %v1469 = vpop.f32.mrb[0].mxu0
  %v1470 = vadd.f32 0.0, %v1469
  %1471 = vmatprep.mubr.f32.mxu0 0.0
  %1472 = vmatmul.mubr.f32.gmra.mrb[0].mxu0 %v1169
  %v1473 = vpop.f32.mrb[0].mxu0
  %v1474 = vadd.f32 0.0, %v1473
  %v1475 = vpop.f32.mrb[0].mxu0
  %v1476 = vadd.f32 0.0, %v1475
  %1477 = vmatprep.mubr.f32.mxu0 0.0
  %1478 = vmatmul.mubr.f32.gmra.mrb[0].mxu0 %v1168
  %v1479 = vpop.f32.mrb[0].mxu0
  %v1480 = vadd.f32 0.0, %v1479
  %v1481 = vpop.f32.mrb[0].mxu0
  %v1482 = vadd.f32 0.0, %v1481
  %1483 = vmatprep.mubr.f32.mxu0 0.0
  %1484 = vmatmul.mubr.f32.gmra.mrb[0].mxu0 %v1199
  %v1485 = vpop.f32.mrb[0].mxu0
  %v1486 = vadd.f32 0.0, %v1485
  %v1487 = vpop.f32.mrb[0].mxu0
  %v1488 = vadd.f32 0.0, %v1487
  %1489 = vdwg.mxu0
  %v1490 = vadd.f32 %v1071, %v1300
  %v1491 = vadd.f32 %v1072, %v1302
  %v1492 = vadd.f32 %v1073, %v1306
  %v1493 = vadd.f32 %v1074, %v1308
  %v1494 = vadd.f32 %v1075, %v1312
  %v1495 = vadd.f32 %v1076, %v1314
  %v1496 = vadd.f32 %v1077, %v1318
  %v1497 = vadd.f32 %v1078, %v1320
  %v1498 = vadd.f32 %v1079, %v1324
  %v1499 = vadd.f32 %v1080, %v1326
  %v1500 = vadd.f32 %v1081, %v1330
  %v1501 = vadd.f32 %v1082, %v1332
  %v1502 = vadd.f32 %v1083, %v1336
  %v1503 = vadd.f32 %v1084, %v1338
  %v1504 = vadd.f32 %v1085, %v1342
  %v1505 = vadd.f32 %v1086, %v1344
  %v1506 = vadd.f32 %v1087, %v1348
  %v1507 = vadd.f32 %v1088, %v1350
  %v1508 = vadd.f32 %v1089, %v1354
  %v1509 = vadd.f32 %v1090, %v1356
  %v1510 = vadd.f32 %v1091, %v1360
  %v1511 = vadd.f32 %v1092, %v1362
  %v1512 = vadd.f32 %v1093, %v1366
  %v1513 = vadd.f32 %v1094, %v1368
  %v1514 = vadd.f32 %v1095, %v1372
  %v1515 = vadd.f32 %v1096, %v1374
  %v1516 = vadd.f32 %v1097, %v1378
  %v1517 = vadd.f32 %v1098, %v1380
  %v1518 = vadd.f32 %v1099, %v1384
  %v1519 = vadd.f32 %v1100, %v1386
  %v1520 = vadd.f32 %v1101, %v1390
  %v1521 = vadd.f32 %v1102, %v1392
  %v1522 = vadd.f32 %v1103, %v1396
  %v1523 = vadd.f32 %v1104, %v1398
  %v1524 = vadd.f32 %v1105, %v1402
  %v1525 = vadd.f32 %v1106, %v1404
  %v1526 = vadd.f32 %v1107, %v1408
  %v1527 = vadd.f32 %v1108, %v1410
  %v1528 = vadd.f32 %v1109, %v1414
  %v1529 = vadd.f32 %v1110, %v1416
  %v1530 = vadd.f32 %v1111, %v1420
  %v1531 = vadd.f32 %v1112, %v1422
  %v1532 = vadd.f32 %v1113, %v1426
  %v1533 = vadd.f32 %v1114, %v1428
  %v1534 = vadd.f32 %v1115, %v1432
  %v1535 = vadd.f32 %v1116, %v1434
  %v1536 = vadd.f32 %v1117, %v1438
  %v1537 = vadd.f32 %v1118, %v1440
  %v1538 = vadd.f32 %v1119, %v1444
  %v1539 = vadd.f32 %v1120, %v1446
  %v1540 = vadd.f32 %v1121, %v1450
  %v1541 = vadd.f32 %v1122, %v1452
  %v1542 = vadd.f32 %v1123, %v1456
  %v1543 = vadd.f32 %v1124, %v1458
  %v1544 = vadd.f32 %v1125, %v1462
  %v1545 = vadd.f32 %v1126, %v1464
  %v1546 = vadd.f32 %v1127, %v1468
  %v1547 = vadd.f32 %v1128, %v1470
  %v1548 = vadd.f32 %v1129, %v1474
  %v1549 = vadd.f32 %v1130, %v1476
  %v1550 = vadd.f32 %v1131, %v1480
  %v1551 = vadd.f32 %v1132, %v1482
  %v1552 = vadd.f32 %v1133, %v1486
  %v1553 = vadd.f32 %v1134, %v1488
  %v1554 = vrot.slane %v38, 4
  %v1555 = vrot.slane %v39, 4
  %v1556 = vrot.slane %v40, 4
  %v1557 = vrot.slane %v41, 4
  %v1558 = vrot.slane %v42, 4
  %v1559 = vrot.slane %v43, 4
  %v1560 = vrot.slane %v44, 4
  %v1561 = vrot.slane %v45, 4
  %v1562 = vrot.slane %v46, 4
  %v1563 = vrot.slane %v47, 4
  %v1564 = vrot.slane %v48, 4
  %v1565 = vrot.slane %v49, 4
  %v1566 = vrot.slane %v50, 4
  %v1567 = vrot.slane %v51, 4
  %v1568 = vrot.slane %v52, 4
  %v1569 = vrot.slane %v53, 4
  %v1570 = vrot.slane %v54, 4
  %v1571 = vrot.slane %v55, 4
  %v1572 = vrot.slane %v56, 4
  %v1573 = vrot.slane %v57, 4
  %v1574 = vrot.slane %v58, 4
  %v1575 = vrot.slane %v59, 4
  %v1576 = vrot.slane %v60, 4
  %v1577 = vrot.slane %v61, 4
  %v1578 = vrot.slane %v62, 4
  %v1579 = vrot.slane %v63, 4
  %v1580 = vrot.slane %v64, 4
  %v1581 = vrot.slane %v65, 4
  %v1582 = vrot.slane %v66, 4
  %v1583 = vrot.slane %v67, 4
  %v1584 = vrot.slane %v68, 4
  %v1585 = vrot.slane %v69, 4
  %vm1586 = vcmp.lt.s32.totalorder %v135, 4
  %v1587 = vsel %vm1586, %v1584, %v1585
  %v1588 = vsel %vm1586, %v1583, %v1584
  %v1589 = vsel %vm1586, %v1582, %v1583
  %v1590 = vsel %vm1586, %v1581, %v1582
  %v1591 = vsel %vm1586, %v1580, %v1581
  %v1592 = vsel %vm1586, %v1579, %v1580
  %v1593 = vsel %vm1586, %v1578, %v1579
  %v1594 = vsel %vm1586, %v1577, %v1578
  %v1595 = vsel %vm1586, %v1576, %v1577
  %v1596 = vsel %vm1586, %v1575, %v1576
  %v1597 = vsel %vm1586, %v1574, %v1575
  %v1598 = vsel %vm1586, %v1573, %v1574
  %v1599 = vsel %vm1586, %v1572, %v1573
  %v1600 = vsel %vm1586, %v1571, %v1572
  %v1601 = vsel %vm1586, %v1570, %v1571
  %v1602 = vsel %vm1586, %v1569, %v1570
  %v1603 = vsel %vm1586, %v1568, %v1569
  %v1604 = vsel %vm1586, %v1567, %v1568
  %v1605 = vsel %vm1586, %v1566, %v1567
  %v1606 = vsel %vm1586, %v1565, %v1566
  %v1607 = vsel %vm1586, %v1564, %v1565
  %v1608 = vsel %vm1586, %v1563, %v1564
  %v1609 = vsel %vm1586, %v1562, %v1563
  %v1610 = vsel %vm1586, %v1561, %v1562
  %v1611 = vsel %vm1586, %v1560, %v1561
  %v1612 = vsel %vm1586, %v1559, %v1560
  %v1613 = vsel %vm1586, %v1558, %v1559
  %v1614 = vsel %vm1586, %v1557, %v1558
  %v1615 = vsel %vm1586, %v1556, %v1557
  %v1616 = vsel %vm1586, %v1555, %v1556
  %v1617 = vsel %vm1586, %v1554, %v1555
  %v1618 = vsel %vm1586, %v1585, %v1554
  %s1619 = scalar_lea.vmem %s1, 1024
  %v1620 = vld [vmem:[%s1619] sm:$0xff]
  %v1621 = vld [vmem:[%s1619 + $0x8] sm:$0xff]
  %v1622 = vld [vmem:[%s1619 + $0x10] sm:$0xff]
  %v1623 = vld [vmem:[%s1619 + $0x18] sm:$0xff]
  %v1624 = vld [vmem:[%s1619 + $0x20] sm:$0xff]
  %v1625 = vld [vmem:[%s1619 + $0x28] sm:$0xff]
  %v1626 = vld [vmem:[%s1619 + $0x30] sm:$0xff]
  %v1627 = vld [vmem:[%s1619 + $0x38] sm:$0xff]
  %v1628 = vld [vmem:[%s1619 + $0x40] sm:$0xff]
  %v1629 = vld [vmem:[%s1619 + $0x48] sm:$0xff]
  %v1630 = vld [vmem:[%s1619 + $0x50] sm:$0xff]
  %v1631 = vld [vmem:[%s1619 + $0x58] sm:$0xff]
  %v1632 = vld [vmem:[%s1619 + $0x60] sm:$0xff]
  %v1633 = vld [vmem:[%s1619 + $0x68] sm:$0xff]
  %v1634 = vld [vmem:[%s1619 + $0x70] sm:$0xff]
  %v1635 = vld [vmem:[%s1619 + $0x78] sm:$0xff]
  %v1636 = vld [vmem:[%s1619 + $0x80] sm:$0xff]
  %v1637 = vld [vmem:[%s1619 + $0x88] sm:$0xff]
  %v1638 = vld [vmem:[%s1619 + $0x90] sm:$0xff]
  %v1639 = vld [vmem:[%s1619 + $0x98] sm:$0xff]
  %v1640 = vld [vmem:[%s1619 + $0xa0] sm:$0xff]
  %v1641 = vld [vmem:[%s1619 + $0xa8] sm:$0xff]
  %v1642 = vld [vmem:[%s1619 + $0xb0] sm:$0xff]
  %v1643 = vld [vmem:[%s1619 + $0xb8] sm:$0xff]
  %v1644 = vld [vmem:[%s1619 + $0xc0] sm:$0xff]
  %v1645 = vld [vmem:[%s1619 + $0xc8] sm:$0xff]
  %v1646 = vld [vmem:[%s1619 + $0xd0] sm:$0xff]
  %v1647 = vld [vmem:[%s1619 + $0xd8] sm:$0xff]
  %v1648 = vld [vmem:[%s1619 + $0xe0] sm:$0xff]
  %v1649 = vld [vmem:[%s1619 + $0xe8] sm:$0xff]
  %v1650 = vld [vmem:[%s1619 + $0xf0] sm:$0xff]
  %v1651 = vld [vmem:[%s1619 + $0xf8] sm:$0xff]
  %1652 = vmatprep.subr.mxu0 %v1621
  %1653 = vmatpush1.msra.mxu0 %v1620
  %1654 = vmatprep.subr.mxu0 %v1623
  %1655 = vmatpush1.msra.mxu0 %v1622
  %1656 = vmatprep.subr.mxu0 %v1625
  %1657 = vmatpush1.msra.mxu0 %v1624
  %1658 = vmatprep.subr.mxu0 %v1627
  %1659 = vmatpush1.msra.mxu0 %v1626
  %1660 = vmatprep.subr.mxu0 %v1629
  %1661 = vmatpush1.msra.mxu0 %v1628
  %1662 = vmatprep.subr.mxu0 %v1631
  %1663 = vmatpush1.msra.mxu0 %v1630
  %1664 = vmatprep.subr.mxu0 %v1633
  %1665 = vmatpush1.msra.mxu0 %v1632
  %1666 = vmatprep.subr.mxu0 %v1635
  %1667 = vmatpush1.msra.mxu0 %v1634
  %1668 = vmatprep.subr.mxu0 %v1637
  %1669 = vmatpush1.msra.mxu0 %v1636
  %1670 = vmatprep.subr.mxu0 %v1639
  %1671 = vmatpush1.msra.mxu0 %v1638
  %1672 = vmatprep.subr.mxu0 %v1641
  %1673 = vmatpush1.msra.mxu0 %v1640
  %1674 = vmatprep.subr.mxu0 %v1643
  %1675 = vmatpush1.msra.mxu0 %v1642
  %1676 = vmatprep.subr.mxu0 %v1645
  %1677 = vmatpush1.msra.mxu0 %v1644
  %1678 = vmatprep.subr.mxu0 %v1647
  %1679 = vmatpush1.msra.mxu0 %v1646
  %1680 = vmatprep.subr.mxu0 %v1649
  %1681 = vmatpush1.msra.mxu0 %v1648
  %1682 = vmatprep.subr.mxu0 %v1651
  %1683 = vmatpush1.msra.mxu0 %v1650
  %1684 = vmatprep.subr.mxu0 0.0
  %1685 = vmatpush1.msra.mxu0 0.0
  %1686 = vmatprep.subr.mxu0 0.0
  %1687 = vmatpush1.msra.mxu0 0.0
  %1688 = vmatprep.subr.mxu0 0.0
  %1689 = vmatpush1.msra.mxu0 0.0
  %1690 = vmatprep.subr.mxu0 0.0
  %1691 = vmatpush1.msra.mxu0 0.0
  %1692 = vmatprep.subr.mxu0 0.0
  %1693 = vmatpush1.msra.mxu0 0.0
  %1694 = vmatprep.subr.mxu0 0.0
  %1695 = vmatpush1.msra.mxu0 0.0
  %1696 = vmatprep.subr.mxu0 0.0
  %1697 = vmatpush1.msra.mxu0 0.0
  %1698 = vmatprep.subr.mxu0 0.0
  %1699 = vmatpush1.msra.mxu0 0.0
  %1700 = vmatprep.subr.mxu0 0.0
  %1701 = vmatpush1.msra.mxu0 0.0
  %1702 = vmatprep.subr.mxu0 0.0
  %1703 = vmatpush1.msra.mxu0 0.0
  %1704 = vmatprep.subr.mxu0 0.0
  %1705 = vmatpush1.msra.mxu0 0.0
  %1706 = vmatprep.subr.mxu0 0.0
  %1707 = vmatpush1.msra.mxu0 0.0
  %1708 = vmatprep.subr.mxu0 0.0
  %1709 = vmatpush1.msra.mxu0 0.0
  %1710 = vmatprep.subr.mxu0 0.0
  %1711 = vmatpush1.msra.mxu0 0.0
  %1712 = vmatprep.subr.mxu0 0.0
  %1713 = vmatpush1.msra.mxu0 0.0
  %1714 = vmatprep.subr.mxu0 0.0
  %1715 = vmatpush1.msra.mxu0 0.0
  %1716 = vmatprep.mubr.f32.mxu0 0.0
  %1717 = vmatmul.mubr.f32.gmra.mrb[0].mxu0 %v1617
  %v1718 = vpop.f32.mrb[0].mxu0
  %v1719 = vadd.f32 0.0, %v1718
  %v1720 = vpop.f32.mrb[0].mxu0
  %v1721 = vadd.f32 0.0, %v1720
  %1722 = vmatprep.mubr.f32.mxu0 0.0
  %1723 = vmatmul.mubr.f32.gmra.mrb[0].mxu0 %v1616
  %v1724 = vpop.f32.mrb[0].mxu0
  %v1725 = vadd.f32 0.0, %v1724
  %v1726 = vpop.f32.mrb[0].mxu0
  %v1727 = vadd.f32 0.0, %v1726
  %1728 = vmatprep.mubr.f32.mxu0 0.0
  %1729 = vmatmul.mubr.f32.gmra.mrb[0].mxu0 %v1615
  %v1730 = vpop.f32.mrb[0].mxu0
  %v1731 = vadd.f32 0.0, %v1730
  %v1732 = vpop.f32.mrb[0].mxu0
  %v1733 = vadd.f32 0.0, %v1732
  %1734 = vmatprep.mubr.f32.mxu0 0.0
  %1735 = vmatmul.mubr.f32.gmra.mrb[0].mxu0 %v1614
  %v1736 = vpop.f32.mrb[0].mxu0
  %v1737 = vadd.f32 0.0, %v1736
  %v1738 = vpop.f32.mrb[0].mxu0
  %v1739 = vadd.f32 0.0, %v1738
  %1740 = vmatprep.mubr.f32.mxu0 0.0
  %1741 = vmatmul.mubr.f32.gmra.mrb[0].mxu0 %v1613
  %v1742 = vpop.f32.mrb[0].mxu0
  %v1743 = vadd.f32 0.0, %v1742
  %v1744 = vpop.f32.mrb[0].mxu0
  %v1745 = vadd.f32 0.0, %v1744
  %1746 = vmatprep.mubr.f32.mxu0 0.0
  %1747 = vmatmul.mubr.f32.gmra.mrb[0].mxu0 %v1612
  %v1748 = vpop.f32.mrb[0].mxu0
  %v1749 = vadd.f32 0.0, %v1748
  %v1750 = vpop.f32.mrb[0].mxu0
  %v1751 = vadd.f32 0.0, %v1750
  %1752 = vmatprep.mubr.f32.mxu0 0.0
  %1753 = vmatmul.mubr.f32.gmra.mrb[0].mxu0 %v1611
  %v1754 = vpop.f32.mrb[0].mxu0
  %v1755 = vadd.f32 0.0, %v1754
  %v1756 = vpop.f32.mrb[0].mxu0
  %v1757 = vadd.f32 0.0, %v1756
  %1758 = vmatprep.mubr.f32.mxu0 0.0
  %1759 = vmatmul.mubr.f32.gmra.mrb[0].mxu0 %v1610
  %v1760 = vpop.f32.mrb[0].mxu0
  %v1761 = vadd.f32 0.0, %v1760
  %v1762 = vpop.f32.mrb[0].mxu0
  %v1763 = vadd.f32 0.0, %v1762
  %1764 = vmatprep.mubr.f32.mxu0 0.0
  %1765 = vmatmul.mubr.f32.gmra.mrb[0].mxu0 %v1609
  %v1766 = vpop.f32.mrb[0].mxu0
  %v1767 = vadd.f32 0.0, %v1766
  %v1768 = vpop.f32.mrb[0].mxu0
  %v1769 = vadd.f32 0.0, %v1768
  %1770 = vmatprep.mubr.f32.mxu0 0.0
  %1771 = vmatmul.mubr.f32.gmra.mrb[0].mxu0 %v1608
  %v1772 = vpop.f32.mrb[0].mxu0
  %v1773 = vadd.f32 0.0, %v1772
  %v1774 = vpop.f32.mrb[0].mxu0
  %v1775 = vadd.f32 0.0, %v1774
  %1776 = vmatprep.mubr.f32.mxu0 0.0
  %1777 = vmatmul.mubr.f32.gmra.mrb[0].mxu0 %v1607
  %v1778 = vpop.f32.mrb[0].mxu0
  %v1779 = vadd.f32 0.0, %v1778
  %v1780 = vpop.f32.mrb[0].mxu0
  %v1781 = vadd.f32 0.0, %v1780
  %1782 = vmatprep.mubr.f32.mxu0 0.0
  %1783 = vmatmul.mubr.f32.gmra.mrb[0].mxu0 %v1606
  %v1784 = vpop.f32.mrb[0].mxu0
  %v1785 = vadd.f32 0.0, %v1784
  %v1786 = vpop.f32.mrb[0].mxu0
  %v1787 = vadd.f32 0.0, %v1786
  %1788 = vmatprep.mubr.f32.mxu0 0.0
  %1789 = vmatmul.mubr.f32.gmra.mrb[0].mxu0 %v1605
  %v1790 = vpop.f32.mrb[0].mxu0
  %v1791 = vadd.f32 0.0, %v1790
  %v1792 = vpop.f32.mrb[0].mxu0
  %v1793 = vadd.f32 0.0, %v1792
  %1794 = vmatprep.mubr.f32.mxu0 0.0
  %1795 = vmatmul.mubr.f32.gmra.mrb[0].mxu0 %v1604
  %v1796 = vpop.f32.mrb[0].mxu0
  %v1797 = vadd.f32 0.0, %v1796
  %v1798 = vpop.f32.mrb[0].mxu0
  %v1799 = vadd.f32 0.0, %v1798
  %1800 = vmatprep.mubr.f32.mxu0 0.0
  %1801 = vmatmul.mubr.f32.gmra.mrb[0].mxu0 %v1603
  %v1802 = vpop.f32.mrb[0].mxu0
  %v1803 = vadd.f32 0.0, %v1802
  %v1804 = vpop.f32.mrb[0].mxu0
  %v1805 = vadd.f32 0.0, %v1804
  %1806 = vmatprep.mubr.f32.mxu0 0.0
  %1807 = vmatmul.mubr.f32.gmra.mrb[0].mxu0 %v1602
  %v1808 = vpop.f32.mrb[0].mxu0
  %v1809 = vadd.f32 0.0, %v1808
  %v1810 = vpop.f32.mrb[0].mxu0
  %v1811 = vadd.f32 0.0, %v1810
  %1812 = vmatprep.mubr.f32.mxu0 0.0
  %1813 = vmatmul.mubr.f32.gmra.mrb[0].mxu0 %v1601
  %v1814 = vpop.f32.mrb[0].mxu0
  %v1815 = vadd.f32 0.0, %v1814
  %v1816 = vpop.f32.mrb[0].mxu0
  %v1817 = vadd.f32 0.0, %v1816
  %1818 = vmatprep.mubr.f32.mxu0 0.0
  %1819 = vmatmul.mubr.f32.gmra.mrb[0].mxu0 %v1600
  %v1820 = vpop.f32.mrb[0].mxu0
  %v1821 = vadd.f32 0.0, %v1820
  %v1822 = vpop.f32.mrb[0].mxu0
  %v1823 = vadd.f32 0.0, %v1822
  %1824 = vmatprep.mubr.f32.mxu0 0.0
  %1825 = vmatmul.mubr.f32.gmra.mrb[0].mxu0 %v1599
  %v1826 = vpop.f32.mrb[0].mxu0
  %v1827 = vadd.f32 0.0, %v1826
  %v1828 = vpop.f32.mrb[0].mxu0
  %v1829 = vadd.f32 0.0, %v1828
  %1830 = vmatprep.mubr.f32.mxu0 0.0
  %1831 = vmatmul.mubr.f32.gmra.mrb[0].mxu0 %v1598
  %v1832 = vpop.f32.mrb[0].mxu0
  %v1833 = vadd.f32 0.0, %v1832
  %v1834 = vpop.f32.mrb[0].mxu0
  %v1835 = vadd.f32 0.0, %v1834
  %1836 = vmatprep.mubr.f32.mxu0 0.0
  %1837 = vmatmul.mubr.f32.gmra.mrb[0].mxu0 %v1597
  %v1838 = vpop.f32.mrb[0].mxu0
  %v1839 = vadd.f32 0.0, %v1838
  %v1840 = vpop.f32.mrb[0].mxu0
  %v1841 = vadd.f32 0.0, %v1840
  %1842 = vmatprep.mubr.f32.mxu0 0.0
  %1843 = vmatmul.mubr.f32.gmra.mrb[0].mxu0 %v1596
  %v1844 = vpop.f32.mrb[0].mxu0
  %v1845 = vadd.f32 0.0, %v1844
  %v1846 = vpop.f32.mrb[0].mxu0
  %v1847 = vadd.f32 0.0, %v1846
  %1848 = vmatprep.mubr.f32.mxu0 0.0
  %1849 = vmatmul.mubr.f32.gmra.mrb[0].mxu0 %v1595
  %v1850 = vpop.f32.mrb[0].mxu0
  %v1851 = vadd.f32 0.0, %v1850
  %v1852 = vpop.f32.mrb[0].mxu0
  %v1853 = vadd.f32 0.0, %v1852
  %1854 = vmatprep.mubr.f32.mxu0 0.0
  %1855 = vmatmul.mubr.f32.gmra.mrb[0].mxu0 %v1594
  %v1856 = vpop.f32.mrb[0].mxu0
  %v1857 = vadd.f32 0.0, %v1856
  %v1858 = vpop.f32.mrb[0].mxu0
  %v1859 = vadd.f32 0.0, %v1858
  %1860 = vmatprep.mubr.f32.mxu0 0.0
  %1861 = vmatmul.mubr.f32.gmra.mrb[0].mxu0 %v1593
  %v1862 = vpop.f32.mrb[0].mxu0
  %v1863 = vadd.f32 0.0, %v1862
  %v1864 = vpop.f32.mrb[0].mxu0
  %v1865 = vadd.f32 0.0, %v1864
  %1866 = vmatprep.mubr.f32.mxu0 0.0
  %1867 = vmatmul.mubr.f32.gmra.mrb[0].mxu0 %v1592
  %v1868 = vpop.f32.mrb[0].mxu0
  %v1869 = vadd.f32 0.0, %v1868
  %v1870 = vpop.f32.mrb[0].mxu0
  %v1871 = vadd.f32 0.0, %v1870
  %1872 = vmatprep.mubr.f32.mxu0 0.0
  %1873 = vmatmul.mubr.f32.gmra.mrb[0].mxu0 %v1591
  %v1874 = vpop.f32.mrb[0].mxu0
  %v1875 = vadd.f32 0.0, %v1874
  %v1876 = vpop.f32.mrb[0].mxu0
  %v1877 = vadd.f32 0.0, %v1876
  %1878 = vmatprep.mubr.f32.mxu0 0.0
  %1879 = vmatmul.mubr.f32.gmra.mrb[0].mxu0 %v1590
  %v1880 = vpop.f32.mrb[0].mxu0
  %v1881 = vadd.f32 0.0, %v1880
  %v1882 = vpop.f32.mrb[0].mxu0
  %v1883 = vadd.f32 0.0, %v1882
  %1884 = vmatprep.mubr.f32.mxu0 0.0
  %1885 = vmatmul.mubr.f32.gmra.mrb[0].mxu0 %v1589
  %v1886 = vpop.f32.mrb[0].mxu0
  %v1887 = vadd.f32 0.0, %v1886
  %v1888 = vpop.f32.mrb[0].mxu0
  %v1889 = vadd.f32 0.0, %v1888
  %1890 = vmatprep.mubr.f32.mxu0 0.0
  %1891 = vmatmul.mubr.f32.gmra.mrb[0].mxu0 %v1588
  %v1892 = vpop.f32.mrb[0].mxu0
  %v1893 = vadd.f32 0.0, %v1892
  %v1894 = vpop.f32.mrb[0].mxu0
  %v1895 = vadd.f32 0.0, %v1894
  %1896 = vmatprep.mubr.f32.mxu0 0.0
  %1897 = vmatmul.mubr.f32.gmra.mrb[0].mxu0 %v1587
  %v1898 = vpop.f32.mrb[0].mxu0
  %v1899 = vadd.f32 0.0, %v1898
  %v1900 = vpop.f32.mrb[0].mxu0
  %v1901 = vadd.f32 0.0, %v1900
  %1902 = vmatprep.mubr.f32.mxu0 0.0
  %1903 = vmatmul.mubr.f32.gmra.mrb[0].mxu0 %v1618
  %v1904 = vpop.f32.mrb[0].mxu0
  %v1905 = vadd.f32 0.0, %v1904
  %v1906 = vpop.f32.mrb[0].mxu0
  %v1907 = vadd.f32 0.0, %v1906
  %1908 = vdwg.mxu0
  %v1909 = vadd.f32 %v1490, %v1719
  %v1910 = vadd.f32 %v1491, %v1721
  %v1911 = vadd.f32 %v1492, %v1725
  %v1912 = vadd.f32 %v1493, %v1727
  %v1913 = vadd.f32 %v1494, %v1731
  %v1914 = vadd.f32 %v1495, %v1733
  %v1915 = vadd.f32 %v1496, %v1737
  %v1916 = vadd.f32 %v1497, %v1739
  %v1917 = vadd.f32 %v1498, %v1743
  %v1918 = vadd.f32 %v1499, %v1745
  %v1919 = vadd.f32 %v1500, %v1749
  %v1920 = vadd.f32 %v1501, %v1751
  %v1921 = vadd.f32 %v1502, %v1755
  %v1922 = vadd.f32 %v1503, %v1757
  %v1923 = vadd.f32 %v1504, %v1761
  %v1924 = vadd.f32 %v1505, %v1763
  %v1925 = vadd.f32 %v1506, %v1767
  %v1926 = vadd.f32 %v1507, %v1769
  %v1927 = vadd.f32 %v1508, %v1773
  %v1928 = vadd.f32 %v1509, %v1775
  %v1929 = vadd.f32 %v1510, %v1779
  %v1930 = vadd.f32 %v1511, %v1781
  %v1931 = vadd.f32 %v1512, %v1785
  %v1932 = vadd.f32 %v1513, %v1787
  %v1933 = vadd.f32 %v1514, %v1791
  %v1934 = vadd.f32 %v1515, %v1793
  %v1935 = vadd.f32 %v1516, %v1797
  %v1936 = vadd.f32 %v1517, %v1799
  %v1937 = vadd.f32 %v1518, %v1803
  %v1938 = vadd.f32 %v1519, %v1805
  %v1939 = vadd.f32 %v1520, %v1809
  %v1940 = vadd.f32 %v1521, %v1811
  %v1941 = vadd.f32 %v1522, %v1815
  %v1942 = vadd.f32 %v1523, %v1817
  %v1943 = vadd.f32 %v1524, %v1821
  %v1944 = vadd.f32 %v1525, %v1823
  %v1945 = vadd.f32 %v1526, %v1827
  %v1946 = vadd.f32 %v1527, %v1829
  %v1947 = vadd.f32 %v1528, %v1833
  %v1948 = vadd.f32 %v1529, %v1835
  %v1949 = vadd.f32 %v1530, %v1839
  %v1950 = vadd.f32 %v1531, %v1841
  %v1951 = vadd.f32 %v1532, %v1845
  %v1952 = vadd.f32 %v1533, %v1847
  %v1953 = vadd.f32 %v1534, %v1851
  %v1954 = vadd.f32 %v1535, %v1853
  %v1955 = vadd.f32 %v1536, %v1857
  %v1956 = vadd.f32 %v1537, %v1859
  %v1957 = vadd.f32 %v1538, %v1863
  %v1958 = vadd.f32 %v1539, %v1865
  %v1959 = vadd.f32 %v1540, %v1869
  %v1960 = vadd.f32 %v1541, %v1871
  %v1961 = vadd.f32 %v1542, %v1875
  %v1962 = vadd.f32 %v1543, %v1877
  %v1963 = vadd.f32 %v1544, %v1881
  %v1964 = vadd.f32 %v1545, %v1883
  %v1965 = vadd.f32 %v1546, %v1887
  %v1966 = vadd.f32 %v1547, %v1889
  %v1967 = vadd.f32 %v1548, %v1893
  %v1968 = vadd.f32 %v1549, %v1895
  %v1969 = vadd.f32 %v1550, %v1899
  %v1970 = vadd.f32 %v1551, %v1901
  %v1971 = vadd.f32 %v1552, %v1905
  %v1972 = vadd.f32 %v1553, %v1907
  %v1973 = vld [vmem:[%s2] sm:$0x3]
  %v1975 = vlaneseq
  %v1976 = vshrl.u32 %v1975, 7
  %v1977 = vsub.s32 0, %v1976
  %v1978 = vrot.slane %v1973, %v1977
  %v1979 = vlaneseq
  %v1980 = vshrl.u32 %v1979, 7
  %v1981 = vsub.s32 1, %v1980
  %v1982 = vrot.slane %v1973, %v1981
  %v1985 = vadd.f32 %v1909, %v1978
  %v1986 = vadd.f32 %v1910, %v1982
  %v1987 = vadd.f32 %v1911, %v1978
  %v1988 = vadd.f32 %v1912, %v1982
  %v1989 = vadd.f32 %v1913, %v1978
  %v1990 = vadd.f32 %v1914, %v1982
  %v1991 = vadd.f32 %v1915, %v1978
  %v1992 = vadd.f32 %v1916, %v1982
  %v1993 = vadd.f32 %v1917, %v1978
  %v1994 = vadd.f32 %v1918, %v1982
  %v1995 = vadd.f32 %v1919, %v1978
  %v1996 = vadd.f32 %v1920, %v1982
  %v1997 = vadd.f32 %v1921, %v1978
  %v1998 = vadd.f32 %v1922, %v1982
  %v1999 = vadd.f32 %v1923, %v1978
  %v2000 = vadd.f32 %v1924, %v1982
  %v2001 = vadd.f32 %v1925, %v1978
  %v2002 = vadd.f32 %v1926, %v1982
  %v2003 = vadd.f32 %v1927, %v1978
  %v2004 = vadd.f32 %v1928, %v1982
  %v2005 = vadd.f32 %v1929, %v1978
  %v2006 = vadd.f32 %v1930, %v1982
  %v2007 = vadd.f32 %v1931, %v1978
  %v2008 = vadd.f32 %v1932, %v1982
  %v2009 = vadd.f32 %v1933, %v1978
  %v2010 = vadd.f32 %v1934, %v1982
  %v2011 = vadd.f32 %v1935, %v1978
  %v2012 = vadd.f32 %v1936, %v1982
  %v2013 = vadd.f32 %v1937, %v1978
  %v2014 = vadd.f32 %v1938, %v1982
  %v2015 = vadd.f32 %v1939, %v1978
  %v2016 = vadd.f32 %v1940, %v1982
  %v2017 = vadd.f32 %v1941, %v1978
  %v2018 = vadd.f32 %v1942, %v1982
  %v2019 = vadd.f32 %v1943, %v1978
  %v2020 = vadd.f32 %v1944, %v1982
  %v2021 = vadd.f32 %v1945, %v1978
  %v2022 = vadd.f32 %v1946, %v1982
  %v2023 = vadd.f32 %v1947, %v1978
  %v2024 = vadd.f32 %v1948, %v1982
  %v2025 = vadd.f32 %v1949, %v1978
  %v2026 = vadd.f32 %v1950, %v1982
  %v2027 = vadd.f32 %v1951, %v1978
  %v2028 = vadd.f32 %v1952, %v1982
  %v2029 = vadd.f32 %v1953, %v1978
  %v2030 = vadd.f32 %v1954, %v1982
  %v2031 = vadd.f32 %v1955, %v1978
  %v2032 = vadd.f32 %v1956, %v1982
  %v2033 = vadd.f32 %v1957, %v1978
  %v2034 = vadd.f32 %v1958, %v1982
  %v2035 = vadd.f32 %v1959, %v1978
  %v2036 = vadd.f32 %v1960, %v1982
  %v2037 = vadd.f32 %v1961, %v1978
  %v2038 = vadd.f32 %v1962, %v1982
  %v2039 = vadd.f32 %v1963, %v1978
  %v2040 = vadd.f32 %v1964, %v1982
  %v2041 = vadd.f32 %v1965, %v1978
  %v2042 = vadd.f32 %v1966, %v1982
  %v2043 = vadd.f32 %v1967, %v1978
  %v2044 = vadd.f32 %v1968, %v1982
  %v2045 = vadd.f32 %v1969, %v1978
  %v2046 = vadd.f32 %v1970, %v1982
  %v2047 = vadd.f32 %v1971, %v1978
  %v2048 = vadd.f32 %v1972, %v1982
  %v2049 = vmax.f32 %v1985, 0.0
  %v2050 = vmax.f32 %v1986, 0.0
  %v2051 = vmax.f32 %v1987, 0.0
  %v2052 = vmax.f32 %v1988, 0.0
  %v2053 = vmax.f32 %v1989, 0.0
  %v2054 = vmax.f32 %v1990, 0.0
  %v2055 = vmax.f32 %v1991, 0.0
  %v2056 = vmax.f32 %v1992, 0.0
  %v2057 = vmax.f32 %v1993, 0.0
  %v2058 = vmax.f32 %v1994, 0.0
  %v2059 = vmax.f32 %v1995, 0.0
  %v2060 = vmax.f32 %v1996, 0.0
  %v2061 = vmax.f32 %v1997, 0.0
  %v2062 = vmax.f32 %v1998, 0.0
  %v2063 = vmax.f32 %v1999, 0.0
  %v2064 = vmax.f32 %v2000, 0.0
  %v2065 = vmax.f32 %v2001, 0.0
  %v2066 = vmax.f32 %v2002, 0.0
  %v2067 = vmax.f32 %v2003, 0.0
  %v2068 = vmax.f32 %v2004, 0.0
  %v2069 = vmax.f32 %v2005, 0.0
  %v2070 = vmax.f32 %v2006, 0.0
  %v2071 = vmax.f32 %v2007, 0.0
  %v2072 = vmax.f32 %v2008, 0.0
  %v2073 = vmax.f32 %v2009, 0.0
  %v2074 = vmax.f32 %v2010, 0.0
  %v2075 = vmax.f32 %v2011, 0.0
  %v2076 = vmax.f32 %v2012, 0.0
  %v2077 = vmax.f32 %v2013, 0.0
  %v2078 = vmax.f32 %v2014, 0.0
  %v2079 = vmax.f32 %v2015, 0.0
  %v2080 = vmax.f32 %v2016, 0.0
  %v2081 = vmax.f32 %v2017, 0.0
  %v2082 = vmax.f32 %v2018, 0.0
  %v2083 = vmax.f32 %v2019, 0.0
  %v2084 = vmax.f32 %v2020, 0.0
  %v2085 = vmax.f32 %v2021, 0.0
  %v2086 = vmax.f32 %v2022, 0.0
  %v2087 = vmax.f32 %v2023, 0.0
  %v2088 = vmax.f32 %v2024, 0.0
  %v2089 = vmax.f32 %v2025, 0.0
  %v2090 = vmax.f32 %v2026, 0.0
  %v2091 = vmax.f32 %v2027, 0.0
  %v2092 = vmax.f32 %v2028, 0.0
  %v2093 = vmax.f32 %v2029, 0.0
  %v2094 = vmax.f32 %v2030, 0.0
  %v2095 = vmax.f32 %v2031, 0.0
  %v2096 = vmax.f32 %v2032, 0.0
  %v2097 = vmax.f32 %v2033, 0.0
  %v2098 = vmax.f32 %v2034, 0.0
  %v2099 = vmax.f32 %v2035, 0.0
  %v2100 = vmax.f32 %v2036, 0.0
  %v2101 = vmax.f32 %v2037, 0.0
  %v2102 = vmax.f32 %v2038, 0.0
  %v2103 = vmax.f32 %v2039, 0.0
  %v2104 = vmax.f32 %v2040, 0.0
  %v2105 = vmax.f32 %v2041, 0.0
  %v2106 = vmax.f32 %v2042, 0.0
  %v2107 = vmax.f32 %v2043, 0.0
  %v2108 = vmax.f32 %v2044, 0.0
  %v2109 = vmax.f32 %v2045, 0.0
  %v2110 = vmax.f32 %v2046, 0.0
  %v2111 = vmax.f32 %v2047, 0.0
  %v2112 = vmax.f32 %v2048, 0.0
  %2113 = vrot.lane.b32.xlu0 %v2049, 127
  %v2114 = vpop.permute.xlu0 %2113
  %2115 = vrot.lane.b32.xlu0 %v2051, 127
  %v2116 = vpop.permute.xlu0 %2115
  %2117 = vrot.lane.b32.xlu0 %v2053, 127
  %v2118 = vpop.permute.xlu0 %2117
  %2119 = vrot.lane.b32.xlu0 %v2055, 127
  %v2120 = vpop.permute.xlu0 %2119
  %2121 = vrot.lane.b32.xlu0 %v2057, 127
  %v2122 = vpop.permute.xlu0 %2121
  %2123 = vrot.lane.b32.xlu0 %v2059, 127
  %v2124 = vpop.permute.xlu0 %2123
  %2125 = vrot.lane.b32.xlu0 %v2061, 127
  %v2126 = vpop.permute.xlu0 %2125
  %2127 = vrot.lane.b32.xlu0 %v2063, 127
  %v2128 = vpop.permute.xlu0 %2127
  %2129 = vrot.lane.b32.xlu0 %v2065, 127
  %v2130 = vpop.permute.xlu0 %2129
  %2131 = vrot.lane.b32.xlu0 %v2067, 127
  %v2132 = vpop.permute.xlu0 %2131
  %2133 = vrot.lane.b32.xlu0 %v2069, 127
  %v2134 = vpop.permute.xlu0 %2133
  %2135 = vrot.lane.b32.xlu0 %v2071, 127
  %v2136 = vpop.permute.xlu0 %2135
  %2137 = vrot.lane.b32.xlu0 %v2073, 127
  %v2138 = vpop.permute.xlu0 %2137
  %2139 = vrot.lane.b32.xlu0 %v2075, 127
  %v2140 = vpop.permute.xlu0 %2139
  %2141 = vrot.lane.b32.xlu0 %v2077, 127
  %v2142 = vpop.permute.xlu0 %2141
  %2143 = vrot.lane.b32.xlu0 %v2079, 127
  %v2144 = vpop.permute.xlu0 %2143
  %2145 = vrot.lane.b32.xlu0 %v2081, 127
  %v2146 = vpop.permute.xlu0 %2145
  %2147 = vrot.lane.b32.xlu0 %v2083, 127
  %v2148 = vpop.permute.xlu0 %2147
  %2149 = vrot.lane.b32.xlu0 %v2085, 127
  %v2150 = vpop.permute.xlu0 %2149
  %2151 = vrot.lane.b32.xlu0 %v2087, 127
  %v2152 = vpop.permute.xlu0 %2151
  %2153 = vrot.lane.b32.xlu0 %v2089, 127
  %v2154 = vpop.permute.xlu0 %2153
  %2155 = vrot.lane.b32.xlu0 %v2091, 127
  %v2156 = vpop.permute.xlu0 %2155
  %2157 = vrot.lane.b32.xlu0 %v2093, 127
  %v2158 = vpop.permute.xlu0 %2157
  %2159 = vrot.lane.b32.xlu0 %v2095, 127
  %v2160 = vpop.permute.xlu0 %2159
  %2161 = vrot.lane.b32.xlu0 %v2097, 127
  %v2162 = vpop.permute.xlu0 %2161
  %2163 = vrot.lane.b32.xlu0 %v2099, 127
  %v2164 = vpop.permute.xlu0 %2163
  %2165 = vrot.lane.b32.xlu0 %v2101, 127
  %v2166 = vpop.permute.xlu0 %2165
  %2167 = vrot.lane.b32.xlu0 %v2103, 127
  %v2168 = vpop.permute.xlu0 %2167
  %2169 = vrot.lane.b32.xlu0 %v2105, 127
  %v2170 = vpop.permute.xlu0 %2169
  %2171 = vrot.lane.b32.xlu0 %v2107, 127
  %v2172 = vpop.permute.xlu0 %2171
  %2173 = vrot.lane.b32.xlu0 %v2109, 127
  %v2174 = vpop.permute.xlu0 %2173
  %2175 = vrot.lane.b32.xlu0 %v2111, 127
  %v2176 = vpop.permute.xlu0 %2175
  %2177 = vrot.lane.b32.xlu0 %v2050, 127
  %v2178 = vpop.permute.xlu0 %2177
  %2179 = vrot.lane.b32.xlu0 %v2052, 127
  %v2180 = vpop.permute.xlu0 %2179
  %2181 = vrot.lane.b32.xlu0 %v2054, 127
  %v2182 = vpop.permute.xlu0 %2181
  %2183 = vrot.lane.b32.xlu0 %v2056, 127
  %v2184 = vpop.permute.xlu0 %2183
  %2185 = vrot.lane.b32.xlu0 %v2058, 127
  %v2186 = vpop.permute.xlu0 %2185
  %2187 = vrot.lane.b32.xlu0 %v2060, 127
  %v2188 = vpop.permute.xlu0 %2187
  %2189 = vrot.lane.b32.xlu0 %v2062, 127
  %v2190 = vpop.permute.xlu0 %2189
  %2191 = vrot.lane.b32.xlu0 %v2064, 127
  %v2192 = vpop.permute.xlu0 %2191
  %2193 = vrot.lane.b32.xlu0 %v2066, 127
  %v2194 = vpop.permute.xlu0 %2193
  %2195 = vrot.lane.b32.xlu0 %v2068, 127
  %v2196 = vpop.permute.xlu0 %2195
  %2197 = vrot.lane.b32.xlu0 %v2070, 127
  %v2198 = vpop.permute.xlu0 %2197
  %2199 = vrot.lane.b32.xlu0 %v2072, 127
  %v2200 = vpop.permute.xlu0 %2199
  %2201 = vrot.lane.b32.xlu0 %v2074, 127
  %v2202 = vpop.permute.xlu0 %2201
  %2203 = vrot.lane.b32.xlu0 %v2076, 127
  %v2204 = vpop.permute.xlu0 %2203
  %2205 = vrot.lane.b32.xlu0 %v2078, 127
  %v2206 = vpop.permute.xlu0 %2205
  %2207 = vrot.lane.b32.xlu0 %v2080, 127
  %v2208 = vpop.permute.xlu0 %2207
  %2209 = vrot.lane.b32.xlu0 %v2082, 127
  %v2210 = vpop.permute.xlu0 %2209
  %2211 = vrot.lane.b32.xlu0 %v2084, 127
  %v2212 = vpop.permute.xlu0 %2211
  %2213 = vrot.lane.b32.xlu0 %v2086, 127
  %v2214 = vpop.permute.xlu0 %2213
  %2215 = vrot.lane.b32.xlu0 %v2088, 127
  %v2216 = vpop.permute.xlu0 %2215
  %2217 = vrot.lane.b32.xlu0 %v2090, 127
  %v2218 = vpop.permute.xlu0 %2217
  %2219 = vrot.lane.b32.xlu0 %v2092, 127
  %v2220 = vpop.permute.xlu0 %2219
  %2221 = vrot.lane.b32.xlu0 %v2094, 127
  %v2222 = vpop.permute.xlu0 %2221
  %2223 = vrot.lane.b32.xlu0 %v2096, 127
  %v2224 = vpop.permute.xlu0 %2223
  %2225 = vrot.lane.b32.xlu0 %v2098, 127
  %v2226 = vpop.permute.xlu0 %2225
  %2227 = vrot.lane.b32.xlu0 %v2100, 127
  %v2228 = vpop.permute.xlu0 %2227
  %2229 = vrot.lane.b32.xlu0 %v2102, 127
  %v2230 = vpop.permute.xlu0 %2229
  %2231 = vrot.lane.b32.xlu0 %v2104, 127
  %v2232 = vpop.permute.xlu0 %2231
  %2233 = vrot.lane.b32.xlu0 %v2106, 127
  %v2234 = vpop.permute.xlu0 %2233
  %2235 = vrot.lane.b32.xlu0 %v2108, 127
  %v2236 = vpop.permute.xlu0 %2235
  %2237 = vrot.lane.b32.xlu0 %v2110, 127
  %v2238 = vpop.permute.xlu0 %2237
  %2239 = vrot.lane.b32.xlu0 %v2112, 127
  %v2240 = vpop.permute.xlu0 %2239
  %v2241 = vlaneseq
  %v2242 = vand.u32 %v2241, 127
  %vm2243 = vcmp.lt.s32.totalorder %v2242, 127
  %v2244 = vsel %vm2243, %v2114, %v2178
  %v2245 = vsel %vm2243, %v2116, %v2180
  %v2246 = vsel %vm2243, %v2118, %v2182
  %v2247 = vsel %vm2243, %v2120, %v2184
  %v2248 = vsel %vm2243, %v2122, %v2186
  %v2249 = vsel %vm2243, %v2124, %v2188
  %v2250 = vsel %vm2243, %v2126, %v2190
  %v2251 = vsel %vm2243, %v2128, %v2192
  %v2252 = vsel %vm2243, %v2130, %v2194
  %v2253 = vsel %vm2243, %v2132, %v2196
  %v2254 = vsel %vm2243, %v2134, %v2198
  %v2255 = vsel %vm2243, %v2136, %v2200
  %v2256 = vsel %vm2243, %v2138, %v2202
  %v2257 = vsel %vm2243, %v2140, %v2204
  %v2258 = vsel %vm2243, %v2142, %v2206
  %v2259 = vsel %vm2243, %v2144, %v2208
  %v2260 = vsel %vm2243, %v2146, %v2210
  %v2261 = vsel %vm2243, %v2148, %v2212
  %v2262 = vsel %vm2243, %v2150, %v2214
  %v2263 = vsel %vm2243, %v2152, %v2216
  %v2264 = vsel %vm2243, %v2154, %v2218
  %v2265 = vsel %vm2243, %v2156, %v2220
  %v2266 = vsel %vm2243, %v2158, %v2222
  %v2267 = vsel %vm2243, %v2160, %v2224
  %v2268 = vsel %vm2243, %v2162, %v2226
  %v2269 = vsel %vm2243, %v2164, %v2228
  %v2270 = vsel %vm2243, %v2166, %v2230
  %v2271 = vsel %vm2243, %v2168, %v2232
  %v2272 = vsel %vm2243, %v2170, %v2234
  %v2273 = vsel %vm2243, %v2172, %v2236
  %v2274 = vsel %vm2243, %v2174, %v2238
  %v2275 = vsel %vm2243, %v2176, %v2240
  %v2276 = vsel %vm2243, %v2178, %v2114
  %v2277 = vsel %vm2243, %v2180, %v2116
  %v2278 = vsel %vm2243, %v2182, %v2118
  %v2279 = vsel %vm2243, %v2184, %v2120
  %v2280 = vsel %vm2243, %v2186, %v2122
  %v2281 = vsel %vm2243, %v2188, %v2124
  %v2282 = vsel %vm2243, %v2190, %v2126
  %v2283 = vsel %vm2243, %v2192, %v2128
  %v2284 = vsel %vm2243, %v2194, %v2130
  %v2285 = vsel %vm2243, %v2196, %v2132
  %v2286 = vsel %vm2243, %v2198, %v2134
  %v2287 = vsel %vm2243, %v2200, %v2136
  %v2288 = vsel %vm2243, %v2202, %v2138
  %v2289 = vsel %vm2243, %v2204, %v2140
  %v2290 = vsel %vm2243, %v2206, %v2142
  %v2291 = vsel %vm2243, %v2208, %v2144
  %v2292 = vsel %vm2243, %v2210, %v2146
  %v2293 = vsel %vm2243, %v2212, %v2148
  %v2294 = vsel %vm2243, %v2214, %v2150
  %v2295 = vsel %vm2243, %v2216, %v2152
  %v2296 = vsel %vm2243, %v2218, %v2154
  %v2297 = vsel %vm2243, %v2220, %v2156
  %v2298 = vsel %vm2243, %v2222, %v2158
  %v2299 = vsel %vm2243, %v2224, %v2160
  %v2300 = vsel %vm2243, %v2226, %v2162
  %v2301 = vsel %vm2243, %v2228, %v2164
  %v2302 = vsel %vm2243, %v2230, %v2166
  %v2303 = vsel %vm2243, %v2232, %v2168
  %v2304 = vsel %vm2243, %v2234, %v2170
  %v2305 = vsel %vm2243, %v2236, %v2172
  %v2306 = vsel %vm2243, %v2238, %v2174
  %v2307 = vsel %vm2243, %v2240, %v2176
  %v2308 = vmax.f32 %v2049, %v2244
  %v2309 = vmax.f32 %v2050, %v2276
  %v2310 = vmax.f32 %v2051, %v2245
  %v2311 = vmax.f32 %v2052, %v2277
  %v2312 = vmax.f32 %v2053, %v2246
  %v2313 = vmax.f32 %v2054, %v2278
  %v2314 = vmax.f32 %v2055, %v2247
  %v2315 = vmax.f32 %v2056, %v2279
  %v2316 = vmax.f32 %v2057, %v2248
  %v2317 = vmax.f32 %v2058, %v2280
  %v2318 = vmax.f32 %v2059, %v2249
  %v2319 = vmax.f32 %v2060, %v2281
  %v2320 = vmax.f32 %v2061, %v2250
  %v2321 = vmax.f32 %v2062, %v2282
  %v2322 = vmax.f32 %v2063, %v2251
  %v2323 = vmax.f32 %v2064, %v2283
  %v2324 = vmax.f32 %v2065, %v2252
  %v2325 = vmax.f32 %v2066, %v2284
  %v2326 = vmax.f32 %v2067, %v2253
  %v2327 = vmax.f32 %v2068, %v2285
  %v2328 = vmax.f32 %v2069, %v2254
  %v2329 = vmax.f32 %v2070, %v2286
  %v2330 = vmax.f32 %v2071, %v2255
  %v2331 = vmax.f32 %v2072, %v2287
  %v2332 = vmax.f32 %v2073, %v2256
  %v2333 = vmax.f32 %v2074, %v2288
  %v2334 = vmax.f32 %v2075, %v2257
  %v2335 = vmax.f32 %v2076, %v2289
  %v2336 = vmax.f32 %v2077, %v2258
  %v2337 = vmax.f32 %v2078, %v2290
  %v2338 = vmax.f32 %v2079, %v2259
  %v2339 = vmax.f32 %v2080, %v2291
  %v2340 = vmax.f32 %v2081, %v2260
  %v2341 = vmax.f32 %v2082, %v2292
  %v2342 = vmax.f32 %v2083, %v2261
  %v2343 = vmax.f32 %v2084, %v2293
  %v2344 = vmax.f32 %v2085, %v2262
  %v2345 = vmax.f32 %v2086, %v2294
  %v2346 = vmax.f32 %v2087, %v2263
  %v2347 = vmax.f32 %v2088, %v2295
  %v2348 = vmax.f32 %v2089, %v2264
  %v2349 = vmax.f32 %v2090, %v2296
  %v2350 = vmax.f32 %v2091, %v2265
  %v2351 = vmax.f32 %v2092, %v2297
  %v2352 = vmax.f32 %v2093, %v2266
  %v2353 = vmax.f32 %v2094, %v2298
  %v2354 = vmax.f32 %v2095, %v2267
  %v2355 = vmax.f32 %v2096, %v2299
  %v2356 = vmax.f32 %v2097, %v2268
  %v2357 = vmax.f32 %v2098, %v2300
  %v2358 = vmax.f32 %v2099, %v2269
  %v2359 = vmax.f32 %v2100, %v2301
  %v2360 = vmax.f32 %v2101, %v2270
  %v2361 = vmax.f32 %v2102, %v2302
  %v2362 = vmax.f32 %v2103, %v2271
  %v2363 = vmax.f32 %v2104, %v2303
  %v2364 = vmax.f32 %v2105, %v2272
  %v2365 = vmax.f32 %v2106, %v2304
  %v2366 = vmax.f32 %v2107, %v2273
  %v2367 = vmax.f32 %v2108, %v2305
  %v2368 = vmax.f32 %v2109, %v2274
  %v2369 = vmax.f32 %v2110, %v2306
  %v2370 = vmax.f32 %v2111, %v2275
  %v2371 = vmax.f32 %v2112, %v2307
  %v2372 = vrot.slane %v2308, 1
  %v2373 = vrot.slane %v2309, 1
  %v2374 = vrot.slane %v2310, 1
  %v2375 = vrot.slane %v2311, 1
  %v2376 = vrot.slane %v2312, 1
  %v2377 = vrot.slane %v2313, 1
  %v2378 = vrot.slane %v2314, 1
  %v2379 = vrot.slane %v2315, 1
  %v2380 = vrot.slane %v2316, 1
  %v2381 = vrot.slane %v2317, 1
  %v2382 = vrot.slane %v2318, 1
  %v2383 = vrot.slane %v2319, 1
  %v2384 = vrot.slane %v2320, 1
  %v2385 = vrot.slane %v2321, 1
  %v2386 = vrot.slane %v2322, 1
  %v2387 = vrot.slane %v2323, 1
  %v2388 = vrot.slane %v2324, 1
  %v2389 = vrot.slane %v2325, 1
  %v2390 = vrot.slane %v2326, 1
  %v2391 = vrot.slane %v2327, 1
  %v2392 = vrot.slane %v2328, 1
  %v2393 = vrot.slane %v2329, 1
  %v2394 = vrot.slane %v2330, 1
  %v2395 = vrot.slane %v2331, 1
  %v2396 = vrot.slane %v2332, 1
  %v2397 = vrot.slane %v2333, 1
  %v2398 = vrot.slane %v2334, 1
  %v2399 = vrot.slane %v2335, 1
  %v2400 = vrot.slane %v2336, 1
  %v2401 = vrot.slane %v2337, 1
  %v2402 = vrot.slane %v2338, 1
  %v2403 = vrot.slane %v2339, 1
  %v2404 = vrot.slane %v2340, 1
  %v2405 = vrot.slane %v2341, 1
  %v2406 = vrot.slane %v2342, 1
  %v2407 = vrot.slane %v2343, 1
  %v2408 = vrot.slane %v2344, 1
  %v2409 = vrot.slane %v2345, 1
  %v2410 = vrot.slane %v2346, 1
  %v2411 = vrot.slane %v2347, 1
  %v2412 = vrot.slane %v2348, 1
  %v2413 = vrot.slane %v2349, 1
  %v2414 = vrot.slane %v2350, 1
  %v2415 = vrot.slane %v2351, 1
  %v2416 = vrot.slane %v2352, 1
  %v2417 = vrot.slane %v2353, 1
  %v2418 = vrot.slane %v2354, 1
  %v2419 = vrot.slane %v2355, 1
  %v2420 = vrot.slane %v2356, 1
  %v2421 = vrot.slane %v2357, 1
  %v2422 = vrot.slane %v2358, 1
  %v2423 = vrot.slane %v2359, 1
  %v2424 = vrot.slane %v2360, 1
  %v2425 = vrot.slane %v2361, 1
  %v2426 = vrot.slane %v2362, 1
  %v2427 = vrot.slane %v2363, 1
  %v2428 = vrot.slane %v2364, 1
  %v2429 = vrot.slane %v2365, 1
  %v2430 = vrot.slane %v2366, 1
  %v2431 = vrot.slane %v2367, 1
  %v2432 = vrot.slane %v2368, 1
  %v2433 = vrot.slane %v2369, 1
  %v2434 = vrot.slane %v2370, 1
  %v2435 = vrot.slane %v2371, 1
  %v2436 = vsel %vm136, %v2432, %v2434
  %v2437 = vsel %vm136, %v2433, %v2435
  %v2438 = vsel %vm136, %v2430, %v2432
  %v2439 = vsel %vm136, %v2431, %v2433
  %v2440 = vsel %vm136, %v2428, %v2430
  %v2441 = vsel %vm136, %v2429, %v2431
  %v2442 = vsel %vm136, %v2426, %v2428
  %v2443 = vsel %vm136, %v2427, %v2429
  %v2444 = vsel %vm136, %v2424, %v2426
  %v2445 = vsel %vm136, %v2425, %v2427
  %v2446 = vsel %vm136, %v2422, %v2424
  %v2447 = vsel %vm136, %v2423, %v2425
  %v2448 = vsel %vm136, %v2420, %v2422
  %v2449 = vsel %vm136, %v2421, %v2423
  %v2450 = vsel %vm136, %v2418, %v2420
  %v2451 = vsel %vm136, %v2419, %v2421
  %v2452 = vsel %vm136, %v2416, %v2418
  %v2453 = vsel %vm136, %v2417, %v2419
  %v2454 = vsel %vm136, %v2414, %v2416
  %v2455 = vsel %vm136, %v2415, %v2417
  %v2456 = vsel %vm136, %v2412, %v2414
  %v2457 = vsel %vm136, %v2413, %v2415
  %v2458 = vsel %vm136, %v2410, %v2412
  %v2459 = vsel %vm136, %v2411, %v2413
  %v2460 = vsel %vm136, %v2408, %v2410
  %v2461 = vsel %vm136, %v2409, %v2411
  %v2462 = vsel %vm136, %v2406, %v2408
  %v2463 = vsel %vm136, %v2407, %v2409
  %v2464 = vsel %vm136, %v2404, %v2406
  %v2465 = vsel %vm136, %v2405, %v2407
  %v2466 = vsel %vm136, %v2402, %v2404
  %v2467 = vsel %vm136, %v2403, %v2405
  %v2468 = vsel %vm136, %v2400, %v2402
  %v2469 = vsel %vm136, %v2401, %v2403
  %v2470 = vsel %vm136, %v2398, %v2400
  %v2471 = vsel %vm136, %v2399, %v2401
  %v2472 = vsel %vm136, %v2396, %v2398
  %v2473 = vsel %vm136, %v2397, %v2399
  %v2474 = vsel %vm136, %v2394, %v2396
  %v2475 = vsel %vm136, %v2395, %v2397
  %v2476 = vsel %vm136, %v2392, %v2394
  %v2477 = vsel %vm136, %v2393, %v2395
  %v2478 = vsel %vm136, %v2390, %v2392
  %v2479 = vsel %vm136, %v2391, %v2393
  %v2480 = vsel %vm136, %v2388, %v2390
  %v2481 = vsel %vm136, %v2389, %v2391
  %v2482 = vsel %vm136, %v2386, %v2388
  %v2483 = vsel %vm136, %v2387, %v2389
  %v2484 = vsel %vm136, %v2384, %v2386
  %v2485 = vsel %vm136, %v2385, %v2387
  %v2486 = vsel %vm136, %v2382, %v2384
  %v2487 = vsel %vm136, %v2383, %v2385
  %v2488 = vsel %vm136, %v2380, %v2382
  %v2489 = vsel %vm136, %v2381, %v2383
  %v2490 = vsel %vm136, %v2378, %v2380
  %v2491 = vsel %vm136, %v2379, %v2381
  %v2492 = vsel %vm136, %v2376, %v2378
  %v2493 = vsel %vm136, %v2377, %v2379
  %v2494 = vsel %vm136, %v2374, %v2376
  %v2495 = vsel %vm136, %v2375, %v2377
  %v2496 = vsel %vm136, %v2372, %v2374
  %v2497 = vsel %vm136, %v2373, %v2375
  %v2498 = vsel %vm136, %v2434, %v2372
  %v2499 = vsel %vm136, %v2435, %v2373
  %v2500 = vmax.f32 %v2308, %v2496
  %v2501 = vmax.f32 %v2309, %v2497
  %v2502 = vmax.f32 %v2310, %v2494
  %v2503 = vmax.f32 %v2311, %v2495
  %v2504 = vmax.f32 %v2312, %v2492
  %v2505 = vmax.f32 %v2313, %v2493
  %v2506 = vmax.f32 %v2314, %v2490
  %v2507 = vmax.f32 %v2315, %v2491
  %v2508 = vmax.f32 %v2316, %v2488
  %v2509 = vmax.f32 %v2317, %v2489
  %v2510 = vmax.f32 %v2318, %v2486
  %v2511 = vmax.f32 %v2319, %v2487
  %v2512 = vmax.f32 %v2320, %v2484
  %v2513 = vmax.f32 %v2321, %v2485
  %v2514 = vmax.f32 %v2322, %v2482
  %v2515 = vmax.f32 %v2323, %v2483
  %v2516 = vmax.f32 %v2324, %v2480
  %v2517 = vmax.f32 %v2325, %v2481
  %v2518 = vmax.f32 %v2326, %v2478
  %v2519 = vmax.f32 %v2327, %v2479
  %v2520 = vmax.f32 %v2328, %v2476
  %v2521 = vmax.f32 %v2329, %v2477
  %v2522 = vmax.f32 %v2330, %v2474
  %v2523 = vmax.f32 %v2331, %v2475
  %v2524 = vmax.f32 %v2332, %v2472
  %v2525 = vmax.f32 %v2333, %v2473
  %v2526 = vmax.f32 %v2334, %v2470
  %v2527 = vmax.f32 %v2335, %v2471
  %v2528 = vmax.f32 %v2336, %v2468
  %v2529 = vmax.f32 %v2337, %v2469
  %v2530 = vmax.f32 %v2338, %v2466
  %v2531 = vmax.f32 %v2339, %v2467
  %v2532 = vmax.f32 %v2340, %v2464
  %v2533 = vmax.f32 %v2341, %v2465
  %v2534 = vmax.f32 %v2342, %v2462
  %v2535 = vmax.f32 %v2343, %v2463
  %v2536 = vmax.f32 %v2344, %v2460
  %v2537 = vmax.f32 %v2345, %v2461
  %v2538 = vmax.f32 %v2346, %v2458
  %v2539 = vmax.f32 %v2347, %v2459
  %v2540 = vmax.f32 %v2348, %v2456
  %v2541 = vmax.f32 %v2349, %v2457
  %v2542 = vmax.f32 %v2350, %v2454
  %v2543 = vmax.f32 %v2351, %v2455
  %v2544 = vmax.f32 %v2352, %v2452
  %v2545 = vmax.f32 %v2353, %v2453
  %v2546 = vmax.f32 %v2354, %v2450
  %v2547 = vmax.f32 %v2355, %v2451
  %v2548 = vmax.f32 %v2356, %v2448
  %v2549 = vmax.f32 %v2357, %v2449
  %v2550 = vmax.f32 %v2358, %v2446
  %v2551 = vmax.f32 %v2359, %v2447
  %v2552 = vmax.f32 %v2360, %v2444
  %v2553 = vmax.f32 %v2361, %v2445
  %v2554 = vmax.f32 %v2362, %v2442
  %v2555 = vmax.f32 %v2363, %v2443
  %v2556 = vmax.f32 %v2364, %v2440
  %v2557 = vmax.f32 %v2365, %v2441
  %v2558 = vmax.f32 %v2366, %v2438
  %v2559 = vmax.f32 %v2367, %v2439
  %v2560 = vmax.f32 %v2368, %v2436
  %v2561 = vmax.f32 %v2369, %v2437
  %v2562 = vmax.f32 %v2370, %v2498
  %v2563 = vmax.f32 %v2371, %v2499
  %v2564 = vld [vmem:[%s3] sm:$0xff]
  %v2565 = vld [vmem:[%s3 + $0x8] sm:$0xff]
  %v2566 = vld [vmem:[%s3 + $0x10] sm:$0xff]
  %v2567 = vld [vmem:[%s3 + $0x18] sm:$0xff]
  %v2568 = vld [vmem:[%s3 + $0x20] sm:$0xff]
  %v2569 = vld [vmem:[%s3 + $0x28] sm:$0xff]
  %v2570 = vld [vmem:[%s3 + $0x30] sm:$0xff]
  %v2571 = vld [vmem:[%s3 + $0x38] sm:$0xff]
  %v2572 = vld [vmem:[%s3 + $0x40] sm:$0xff]
  %v2573 = vld [vmem:[%s3 + $0x48] sm:$0xff]
  %v2574 = vld [vmem:[%s3 + $0x50] sm:$0xff]
  %v2575 = vld [vmem:[%s3 + $0x58] sm:$0xff]
  %v2576 = vld [vmem:[%s3 + $0x60] sm:$0xff]
  %v2577 = vld [vmem:[%s3 + $0x68] sm:$0xff]
  %v2578 = vld [vmem:[%s3 + $0x70] sm:$0xff]
  %v2579 = vld [vmem:[%s3 + $0x78] sm:$0xff]
  %v2580 = vld [vmem:[%s3 + $0x80] sm:$0xff]
  %v2581 = vld [vmem:[%s3 + $0x88] sm:$0xff]
  %v2582 = vld [vmem:[%s3 + $0x90] sm:$0xff]
  %v2583 = vld [vmem:[%s3 + $0x98] sm:$0xff]
  %v2584 = vld [vmem:[%s3 + $0xa0] sm:$0xff]
  %v2585 = vld [vmem:[%s3 + $0xa8] sm:$0xff]
  %v2586 = vld [vmem:[%s3 + $0xb0] sm:$0xff]
  %v2587 = vld [vmem:[%s3 + $0xb8] sm:$0xff]
  %v2588 = vld [vmem:[%s3 + $0xc0] sm:$0xff]
  %v2589 = vld [vmem:[%s3 + $0xc8] sm:$0xff]
  %v2590 = vld [vmem:[%s3 + $0xd0] sm:$0xff]
  %v2591 = vld [vmem:[%s3 + $0xd8] sm:$0xff]
  %v2592 = vld [vmem:[%s3 + $0xe0] sm:$0xff]
  %v2593 = vld [vmem:[%s3 + $0xe8] sm:$0xff]
  %v2594 = vld [vmem:[%s3 + $0xf0] sm:$0xff]
  %v2595 = vld [vmem:[%s3 + $0xf8] sm:$0xff]
  %v2596 = vld [vmem:[%s3 + $0x100] sm:$0xff]
  %v2597 = vld [vmem:[%s3 + $0x108] sm:$0xff]
  %v2598 = vld [vmem:[%s3 + $0x110] sm:$0xff]
  %v2599 = vld [vmem:[%s3 + $0x118] sm:$0xff]
  %v2600 = vld [vmem:[%s3 + $0x120] sm:$0xff]
  %v2601 = vld [vmem:[%s3 + $0x128] sm:$0xff]
  %v2602 = vld [vmem:[%s3 + $0x130] sm:$0xff]
  %v2603 = vld [vmem:[%s3 + $0x138] sm:$0xff]
  %v2604 = vld [vmem:[%s3 + $0x140] sm:$0xff]
  %v2605 = vld [vmem:[%s3 + $0x148] sm:$0xff]
  %v2606 = vld [vmem:[%s3 + $0x150] sm:$0xff]
  %v2607 = vld [vmem:[%s3 + $0x158] sm:$0xff]
  %v2608 = vld [vmem:[%s3 + $0x160] sm:$0xff]
  %v2609 = vld [vmem:[%s3 + $0x168] sm:$0xff]
  %v2610 = vld [vmem:[%s3 + $0x170] sm:$0xff]
  %v2611 = vld [vmem:[%s3 + $0x178] sm:$0xff]
  %v2612 = vld [vmem:[%s3 + $0x180] sm:$0xff]
  %v2613 = vld [vmem:[%s3 + $0x188] sm:$0xff]
  %v2614 = vld [vmem:[%s3 + $0x190] sm:$0xff]
  %v2615 = vld [vmem:[%s3 + $0x198] sm:$0xff]
  %v2616 = vld [vmem:[%s3 + $0x1a0] sm:$0xff]
  %v2617 = vld [vmem:[%s3 + $0x1a8] sm:$0xff]
  %v2618 = vld [vmem:[%s3 + $0x1b0] sm:$0xff]
  %v2619 = vld [vmem:[%s3 + $0x1b8] sm:$0xff]
  %v2620 = vld [vmem:[%s3 + $0x1c0] sm:$0xff]
  %v2621 = vld [vmem:[%s3 + $0x1c8] sm:$0xff]
  %v2622 = vld [vmem:[%s3 + $0x1d0] sm:$0xff]
  %v2623 = vld [vmem:[%s3 + $0x1d8] sm:$0xff]
  %v2624 = vld [vmem:[%s3 + $0x1e0] sm:$0xff]
  %v2625 = vld [vmem:[%s3 + $0x1e8] sm:$0xff]
  %v2626 = vld [vmem:[%s3 + $0x1f0] sm:$0xff]
  %v2627 = vld [vmem:[%s3 + $0x1f8] sm:$0xff]
  %v2628 = vrot.slane %v2500, 2
  %v2629 = vrot.slane %v2501, 2
  %v2630 = vrot.slane %v2502, 2
  %v2631 = vrot.slane %v2503, 2
  %v2632 = vrot.slane %v2504, 2
  %v2633 = vrot.slane %v2505, 2
  %v2634 = vrot.slane %v2506, 2
  %v2635 = vrot.slane %v2507, 2
  %v2636 = vrot.slane %v2508, 2
  %v2637 = vrot.slane %v2509, 2
  %v2638 = vrot.slane %v2510, 2
  %v2639 = vrot.slane %v2511, 2
  %v2640 = vrot.slane %v2512, 2
  %v2641 = vrot.slane %v2513, 2
  %v2642 = vrot.slane %v2514, 2
  %v2643 = vrot.slane %v2515, 2
  %v2644 = vrot.slane %v2516, 2
  %v2645 = vrot.slane %v2517, 2
  %v2646 = vrot.slane %v2518, 2
  %v2647 = vrot.slane %v2519, 2
  %v2648 = vrot.slane %v2520, 2
  %v2649 = vrot.slane %v2521, 2
  %v2650 = vrot.slane %v2522, 2
  %v2651 = vrot.slane %v2523, 2
  %v2652 = vrot.slane %v2524, 2
  %v2653 = vrot.slane %v2525, 2
  %v2654 = vrot.slane %v2526, 2
  %v2655 = vrot.slane %v2527, 2
  %v2656 = vrot.slane %v2528, 2
  %v2657 = vrot.slane %v2529, 2
  %v2658 = vrot.slane %v2530, 2
  %v2659 = vrot.slane %v2531, 2
  %v2660 = vrot.slane %v2532, 2
  %v2661 = vrot.slane %v2533, 2
  %v2662 = vrot.slane %v2534, 2
  %v2663 = vrot.slane %v2535, 2
  %v2664 = vrot.slane %v2536, 2
  %v2665 = vrot.slane %v2537, 2
  %v2666 = vrot.slane %v2538, 2
  %v2667 = vrot.slane %v2539, 2
  %v2668 = vrot.slane %v2540, 2
  %v2669 = vrot.slane %v2541, 2
  %v2670 = vrot.slane %v2542, 2
  %v2671 = vrot.slane %v2543, 2
  %v2672 = vrot.slane %v2544, 2
  %v2673 = vrot.slane %v2545, 2
  %v2674 = vrot.slane %v2546, 2
  %v2675 = vrot.slane %v2547, 2
  %v2676 = vrot.slane %v2548, 2
  %v2677 = vrot.slane %v2549, 2
  %v2678 = vrot.slane %v2550, 2
  %v2679 = vrot.slane %v2551, 2
  %v2680 = vrot.slane %v2552, 2
  %v2681 = vrot.slane %v2553, 2
  %v2682 = vrot.slane %v2554, 2
  %v2683 = vrot.slane %v2555, 2
  %v2684 = vrot.slane %v2556, 2
  %v2685 = vrot.slane %v2557, 2
  %v2686 = vrot.slane %v2558, 2
  %v2687 = vrot.slane %v2559, 2
  %v2688 = vrot.slane %v2560, 2
  %v2689 = vrot.slane %v2561, 2
  %v2690 = vrot.slane %v2562, 2
  %v2691 = vrot.slane %v2563, 2
  %v2692 = vsel %vm748, %v2688, %v2690
  %v2693 = vsel %vm748, %v2689, %v2691
  %v2694 = vsel %vm748, %v2686, %v2688
  %v2695 = vsel %vm748, %v2687, %v2689
  %v2696 = vsel %vm748, %v2684, %v2686
  %v2697 = vsel %vm748, %v2685, %v2687
  %v2698 = vsel %vm748, %v2682, %v2684
  %v2699 = vsel %vm748, %v2683, %v2685
  %v2700 = vsel %vm748, %v2680, %v2682
  %v2701 = vsel %vm748, %v2681, %v2683
  %v2702 = vsel %vm748, %v2678, %v2680
  %v2703 = vsel %vm748, %v2679, %v2681
  %v2704 = vsel %vm748, %v2676, %v2678
  %v2705 = vsel %vm748, %v2677, %v2679
  %v2706 = vsel %vm748, %v2674, %v2676
  %v2707 = vsel %vm748, %v2675, %v2677
  %v2708 = vsel %vm748, %v2672, %v2674
  %v2709 = vsel %vm748, %v2673, %v2675
  %v2710 = vsel %vm748, %v2670, %v2672
  %v2711 = vsel %vm748, %v2671, %v2673
  %v2712 = vsel %vm748, %v2668, %v2670
  %v2713 = vsel %vm748, %v2669, %v2671
  %v2714 = vsel %vm748, %v2666, %v2668
  %v2715 = vsel %vm748, %v2667, %v2669
  %v2716 = vsel %vm748, %v2664, %v2666
  %v2717 = vsel %vm748, %v2665, %v2667
  %v2718 = vsel %vm748, %v2662, %v2664
  %v2719 = vsel %vm748, %v2663, %v2665
  %v2720 = vsel %vm748, %v2660, %v2662
  %v2721 = vsel %vm748, %v2661, %v2663
  %v2722 = vsel %vm748, %v2658, %v2660
  %v2723 = vsel %vm748, %v2659, %v2661
  %v2724 = vsel %vm748, %v2656, %v2658
  %v2725 = vsel %vm748, %v2657, %v2659
  %v2726 = vsel %vm748, %v2654, %v2656
  %v2727 = vsel %vm748, %v2655, %v2657
  %v2728 = vsel %vm748, %v2652, %v2654
  %v2729 = vsel %vm748, %v2653, %v2655
  %v2730 = vsel %vm748, %v2650, %v2652
  %v2731 = vsel %vm748, %v2651, %v2653
  %v2732 = vsel %vm748, %v2648, %v2650
  %v2733 = vsel %vm748, %v2649, %v2651
  %v2734 = vsel %vm748, %v2646, %v2648
  %v2735 = vsel %vm748, %v2647, %v2649
  %v2736 = vsel %vm748, %v2644, %v2646
  %v2737 = vsel %vm748, %v2645, %v2647
  %v2738 = vsel %vm748, %v2642, %v2644
  %v2739 = vsel %vm748, %v2643, %v2645
  %v2740 = vsel %vm748, %v2640, %v2642
  %v2741 = vsel %vm748, %v2641, %v2643
  %v2742 = vsel %vm748, %v2638, %v2640
  %v2743 = vsel %vm748, %v2639, %v2641
  %v2744 = vsel %vm748, %v2636, %v2638
  %v2745 = vsel %vm748, %v2637, %v2639
  %v2746 = vsel %vm748, %v2634, %v2636
  %v2747 = vsel %vm748, %v2635, %v2637
  %v2748 = vsel %vm748, %v2632, %v2634
  %v2749 = vsel %vm748, %v2633, %v2635
  %v2750 = vsel %vm748, %v2630, %v2632
  %v2751 = vsel %vm748, %v2631, %v2633
  %v2752 = vsel %vm748, %v2628, %v2630
  %v2753 = vsel %vm748, %v2629, %v2631
  %v2754 = vsel %vm748, %v2690, %v2628
  %v2755 = vsel %vm748, %v2691, %v2629
  %s2756 = scalar_lea.vmem %s3, 512
  %v2757 = vld [vmem:[%s2756] sm:$0xff]
  %v2758 = vld [vmem:[%s2756 + $0x8] sm:$0xff]
  %v2759 = vld [vmem:[%s2756 + $0x10] sm:$0xff]
  %v2760 = vld [vmem:[%s2756 + $0x18] sm:$0xff]
  %v2761 = vld [vmem:[%s2756 + $0x20] sm:$0xff]
  %v2762 = vld [vmem:[%s2756 + $0x28] sm:$0xff]
  %v2763 = vld [vmem:[%s2756 + $0x30] sm:$0xff]
  %v2764 = vld [vmem:[%s2756 + $0x38] sm:$0xff]
  %v2765 = vld [vmem:[%s2756 + $0x40] sm:$0xff]
  %v2766 = vld [vmem:[%s2756 + $0x48] sm:$0xff]
  %v2767 = vld [vmem:[%s2756 + $0x50] sm:$0xff]
  %v2768 = vld [vmem:[%s2756 + $0x58] sm:$0xff]
  %v2769 = vld [vmem:[%s2756 + $0x60] sm:$0xff]
  %v2770 = vld [vmem:[%s2756 + $0x68] sm:$0xff]
  %v2771 = vld [vmem:[%s2756 + $0x70] sm:$0xff]
  %v2772 = vld [vmem:[%s2756 + $0x78] sm:$0xff]
  %v2773 = vld [vmem:[%s2756 + $0x80] sm:$0xff]
  %v2774 = vld [vmem:[%s2756 + $0x88] sm:$0xff]
  %v2775 = vld [vmem:[%s2756 + $0x90] sm:$0xff]
  %v2776 = vld [vmem:[%s2756 + $0x98] sm:$0xff]
  %v2777 = vld [vmem:[%s2756 + $0xa0] sm:$0xff]
  %v2778 = vld [vmem:[%s2756 + $0xa8] sm:$0xff]
  %v2779 = vld [vmem:[%s2756 + $0xb0] sm:$0xff]
  %v2780 = vld [vmem:[%s2756 + $0xb8] sm:$0xff]
  %v2781 = vld [vmem:[%s2756 + $0xc0] sm:$0xff]
  %v2782 = vld [vmem:[%s2756 + $0xc8] sm:$0xff]
  %v2783 = vld [vmem:[%s2756 + $0xd0] sm:$0xff]
  %v2784 = vld [vmem:[%s2756 + $0xd8] sm:$0xff]
  %v2785 = vld [vmem:[%s2756 + $0xe0] sm:$0xff]
  %v2786 = vld [vmem:[%s2756 + $0xe8] sm:$0xff]
  %v2787 = vld [vmem:[%s2756 + $0xf0] sm:$0xff]
  %v2788 = vld [vmem:[%s2756 + $0xf8] sm:$0xff]
  %v2789 = vld [vmem:[%s2756 + $0x100] sm:$0xff]
  %v2790 = vld [vmem:[%s2756 + $0x108] sm:$0xff]
  %v2791 = vld [vmem:[%s2756 + $0x110] sm:$0xff]
  %v2792 = vld [vmem:[%s2756 + $0x118] sm:$0xff]
  %v2793 = vld [vmem:[%s2756 + $0x120] sm:$0xff]
  %v2794 = vld [vmem:[%s2756 + $0x128] sm:$0xff]
  %v2795 = vld [vmem:[%s2756 + $0x130] sm:$0xff]
  %v2796 = vld [vmem:[%s2756 + $0x138] sm:$0xff]
  %v2797 = vld [vmem:[%s2756 + $0x140] sm:$0xff]
  %v2798 = vld [vmem:[%s2756 + $0x148] sm:$0xff]
  %v2799 = vld [vmem:[%s2756 + $0x150] sm:$0xff]
  %v2800 = vld [vmem:[%s2756 + $0x158] sm:$0xff]
  %v2801 = vld [vmem:[%s2756 + $0x160] sm:$0xff]
  %v2802 = vld [vmem:[%s2756 + $0x168] sm:$0xff]
  %v2803 = vld [vmem:[%s2756 + $0x170] sm:$0xff]
  %v2804 = vld [vmem:[%s2756 + $0x178] sm:$0xff]
  %v2805 = vld [vmem:[%s2756 + $0x180] sm:$0xff]
  %v2806 = vld [vmem:[%s2756 + $0x188] sm:$0xff]
  %v2807 = vld [vmem:[%s2756 + $0x190] sm:$0xff]
  %v2808 = vld [vmem:[%s2756 + $0x198] sm:$0xff]
  %v2809 = vld [vmem:[%s2756 + $0x1a0] sm:$0xff]
  %v2810 = vld [vmem:[%s2756 + $0x1a8] sm:$0xff]
  %v2811 = vld [vmem:[%s2756 + $0x1b0] sm:$0xff]
  %v2812 = vld [vmem:[%s2756 + $0x1b8] sm:$0xff]
  %v2813 = vld [vmem:[%s2756 + $0x1c0] sm:$0xff]
  %v2814 = vld [vmem:[%s2756 + $0x1c8] sm:$0xff]
  %v2815 = vld [vmem:[%s2756 + $0x1d0] sm:$0xff]
  %v2816 = vld [vmem:[%s2756 + $0x1d8] sm:$0xff]
  %v2817 = vld [vmem:[%s2756 + $0x1e0] sm:$0xff]
  %v2818 = vld [vmem:[%s2756 + $0x1e8] sm:$0xff]
  %v2819 = vld [vmem:[%s2756 + $0x1f0] sm:$0xff]
  %v2820 = vld [vmem:[%s2756 + $0x1f8] sm:$0xff]
  %2821 = vmatprep.subr.mxu0 %v2758
  %2822 = vmatpush1.msra.mxu0 %v2757
  %2823 = vmatprep.subr.mxu0 %v2760
  %2824 = vmatpush1.msra.mxu0 %v2759
  %2825 = vmatprep.subr.mxu0 %v2762
  %2826 = vmatpush1.msra.mxu0 %v2761
  %2827 = vmatprep.subr.mxu0 %v2764
  %2828 = vmatpush1.msra.mxu0 %v2763
  %2829 = vmatprep.subr.mxu0 %v2766
  %2830 = vmatpush1.msra.mxu0 %v2765
  %2831 = vmatprep.subr.mxu0 %v2768
  %2832 = vmatpush1.msra.mxu0 %v2767
  %2833 = vmatprep.subr.mxu0 %v2770
  %2834 = vmatpush1.msra.mxu0 %v2769
  %2835 = vmatprep.subr.mxu0 %v2772
  %2836 = vmatpush1.msra.mxu0 %v2771
  %2837 = vmatprep.subr.mxu0 %v2774
  %2838 = vmatpush1.msra.mxu0 %v2773
  %2839 = vmatprep.subr.mxu0 %v2776
  %2840 = vmatpush1.msra.mxu0 %v2775
  %2841 = vmatprep.subr.mxu0 %v2778
  %2842 = vmatpush1.msra.mxu0 %v2777
  %2843 = vmatprep.subr.mxu0 %v2780
  %2844 = vmatpush1.msra.mxu0 %v2779
  %2845 = vmatprep.subr.mxu0 %v2782
  %2846 = vmatpush1.msra.mxu0 %v2781
  %2847 = vmatprep.subr.mxu0 %v2784
  %2848 = vmatpush1.msra.mxu0 %v2783
  %2849 = vmatprep.subr.mxu0 %v2786
  %2850 = vmatpush1.msra.mxu0 %v2785
  %2851 = vmatprep.subr.mxu0 %v2788
  %2852 = vmatpush1.msra.mxu0 %v2787
  %2853 = vmatprep.subr.mxu0 %v2790
  %2854 = vmatpush1.msra.mxu0 %v2789
  %2855 = vmatprep.subr.mxu0 %v2792
  %2856 = vmatpush1.msra.mxu0 %v2791
  %2857 = vmatprep.subr.mxu0 %v2794
  %2858 = vmatpush1.msra.mxu0 %v2793
  %2859 = vmatprep.subr.mxu0 %v2796
  %2860 = vmatpush1.msra.mxu0 %v2795
  %2861 = vmatprep.subr.mxu0 %v2798
  %2862 = vmatpush1.msra.mxu0 %v2797
  %2863 = vmatprep.subr.mxu0 %v2800
  %2864 = vmatpush1.msra.mxu0 %v2799
  %2865 = vmatprep.subr.mxu0 %v2802
  %2866 = vmatpush1.msra.mxu0 %v2801
  %2867 = vmatprep.subr.mxu0 %v2804
  %2868 = vmatpush1.msra.mxu0 %v2803
  %2869 = vmatprep.subr.mxu0 %v2806
  %2870 = vmatpush1.msra.mxu0 %v2805
  %2871 = vmatprep.subr.mxu0 %v2808
  %2872 = vmatpush1.msra.mxu0 %v2807
  %2873 = vmatprep.subr.mxu0 %v2810
  %2874 = vmatpush1.msra.mxu0 %v2809
  %2875 = vmatprep.subr.mxu0 %v2812
  %2876 = vmatpush1.msra.mxu0 %v2811
  %2877 = vmatprep.subr.mxu0 %v2814
  %2878 = vmatpush1.msra.mxu0 %v2813
  %2879 = vmatprep.subr.mxu0 %v2816
  %2880 = vmatpush1.msra.mxu0 %v2815
  %2881 = vmatprep.subr.mxu0 %v2818
  %2882 = vmatpush1.msra.mxu0 %v2817
  %2883 = vmatprep.subr.mxu0 %v2820
  %2884 = vmatpush1.msra.mxu0 %v2819
  %2885 = vmatprep.mubr.f32.mxu0 %v2753
  %2886 = vmatmul.mubr.f32.gmra.mrb[0].mxu0 %v2752
  %v2887 = vpop.f32.mrb[0].mxu0
  %v2888 = vadd.f32 0.0, %v2887
  %v2889 = vpop.f32.mrb[0].mxu0
  %v2890 = vadd.f32 0.0, %v2889
  %2891 = vmatprep.mubr.f32.mxu0 %v2751
  %2892 = vmatmul.mubr.f32.gmra.mrb[0].mxu0 %v2750
  %v2893 = vpop.f32.mrb[0].mxu0
  %v2894 = vadd.f32 0.0, %v2893
  %v2895 = vpop.f32.mrb[0].mxu0
  %v2896 = vadd.f32 0.0, %v2895
  %2897 = vmatprep.mubr.f32.mxu0 %v2749
  %2898 = vmatmul.mubr.f32.gmra.mrb[0].mxu0 %v2748
  %v2899 = vpop.f32.mrb[0].mxu0
  %v2900 = vadd.f32 0.0, %v2899
  %v2901 = vpop.f32.mrb[0].mxu0
  %v2902 = vadd.f32 0.0, %v2901
  %2903 = vmatprep.mubr.f32.mxu0 %v2747
  %2904 = vmatmul.mubr.f32.gmra.mrb[0].mxu0 %v2746
  %v2905 = vpop.f32.mrb[0].mxu0
  %v2906 = vadd.f32 0.0, %v2905
  %v2907 = vpop.f32.mrb[0].mxu0
  %v2908 = vadd.f32 0.0, %v2907
  %2909 = vmatprep.mubr.f32.mxu0 %v2745
  %2910 = vmatmul.mubr.f32.gmra.mrb[0].mxu0 %v2744
  %v2911 = vpop.f32.mrb[0].mxu0
  %v2912 = vadd.f32 0.0, %v2911
  %v2913 = vpop.f32.mrb[0].mxu0
  %v2914 = vadd.f32 0.0, %v2913
  %2915 = vmatprep.mubr.f32.mxu0 %v2743
  %2916 = vmatmul.mubr.f32.gmra.mrb[0].mxu0 %v2742
  %v2917 = vpop.f32.mrb[0].mxu0
  %v2918 = vadd.f32 0.0, %v2917
  %v2919 = vpop.f32.mrb[0].mxu0
  %v2920 = vadd.f32 0.0, %v2919
  %2921 = vmatprep.mubr.f32.mxu0 %v2741
  %2922 = vmatmul.mubr.f32.gmra.mrb[0].mxu0 %v2740
  %v2923 = vpop.f32.mrb[0].mxu0
  %v2924 = vadd.f32 0.0, %v2923
  %v2925 = vpop.f32.mrb[0].mxu0
  %v2926 = vadd.f32 0.0, %v2925
  %2927 = vmatprep.mubr.f32.mxu0 %v2739
  %2928 = vmatmul.mubr.f32.gmra.mrb[0].mxu0 %v2738
  %v2929 = vpop.f32.mrb[0].mxu0
  %v2930 = vadd.f32 0.0, %v2929
  %v2931 = vpop.f32.mrb[0].mxu0
  %v2932 = vadd.f32 0.0, %v2931
  %2933 = vmatprep.mubr.f32.mxu0 %v2737
  %2934 = vmatmul.mubr.f32.gmra.mrb[0].mxu0 %v2736
  %v2935 = vpop.f32.mrb[0].mxu0
  %v2936 = vadd.f32 0.0, %v2935
  %v2937 = vpop.f32.mrb[0].mxu0
  %v2938 = vadd.f32 0.0, %v2937
  %2939 = vmatprep.mubr.f32.mxu0 %v2735
  %2940 = vmatmul.mubr.f32.gmra.mrb[0].mxu0 %v2734
  %v2941 = vpop.f32.mrb[0].mxu0
  %v2942 = vadd.f32 0.0, %v2941
  %v2943 = vpop.f32.mrb[0].mxu0
  %v2944 = vadd.f32 0.0, %v2943
  %2945 = vmatprep.mubr.f32.mxu0 %v2733
  %2946 = vmatmul.mubr.f32.gmra.mrb[0].mxu0 %v2732
  %v2947 = vpop.f32.mrb[0].mxu0
  %v2948 = vadd.f32 0.0, %v2947
  %v2949 = vpop.f32.mrb[0].mxu0
  %v2950 = vadd.f32 0.0, %v2949
  %2951 = vmatprep.mubr.f32.mxu0 %v2731
  %2952 = vmatmul.mubr.f32.gmra.mrb[0].mxu0 %v2730
  %v2953 = vpop.f32.mrb[0].mxu0
  %v2954 = vadd.f32 0.0, %v2953
  %v2955 = vpop.f32.mrb[0].mxu0
  %v2956 = vadd.f32 0.0, %v2955
  %2957 = vmatprep.mubr.f32.mxu0 %v2729
  %2958 = vmatmul.mubr.f32.gmra.mrb[0].mxu0 %v2728
  %v2959 = vpop.f32.mrb[0].mxu0
  %v2960 = vadd.f32 0.0, %v2959
  %v2961 = vpop.f32.mrb[0].mxu0
  %v2962 = vadd.f32 0.0, %v2961
  %2963 = vmatprep.mubr.f32.mxu0 %v2727
  %2964 = vmatmul.mubr.f32.gmra.mrb[0].mxu0 %v2726
  %v2965 = vpop.f32.mrb[0].mxu0
  %v2966 = vadd.f32 0.0, %v2965
  %v2967 = vpop.f32.mrb[0].mxu0
  %v2968 = vadd.f32 0.0, %v2967
  %2969 = vmatprep.mubr.f32.mxu0 %v2725
  %2970 = vmatmul.mubr.f32.gmra.mrb[0].mxu0 %v2724
  %v2971 = vpop.f32.mrb[0].mxu0
  %v2972 = vadd.f32 0.0, %v2971
  %v2973 = vpop.f32.mrb[0].mxu0
  %v2974 = vadd.f32 0.0, %v2973
  %2975 = vmatprep.mubr.f32.mxu0 %v2723
  %2976 = vmatmul.mubr.f32.gmra.mrb[0].mxu0 %v2722
  %v2977 = vpop.f32.mrb[0].mxu0
  %v2978 = vadd.f32 0.0, %v2977
  %v2979 = vpop.f32.mrb[0].mxu0
  %v2980 = vadd.f32 0.0, %v2979
  %2981 = vmatprep.mubr.f32.mxu0 %v2721
  %2982 = vmatmul.mubr.f32.gmra.mrb[0].mxu0 %v2720
  %v2983 = vpop.f32.mrb[0].mxu0
  %v2984 = vadd.f32 0.0, %v2983
  %v2985 = vpop.f32.mrb[0].mxu0
  %v2986 = vadd.f32 0.0, %v2985
  %2987 = vmatprep.mubr.f32.mxu0 %v2719
  %2988 = vmatmul.mubr.f32.gmra.mrb[0].mxu0 %v2718
  %v2989 = vpop.f32.mrb[0].mxu0
  %v2990 = vadd.f32 0.0, %v2989
  %v2991 = vpop.f32.mrb[0].mxu0
  %v2992 = vadd.f32 0.0, %v2991
  %2993 = vmatprep.mubr.f32.mxu0 %v2717
  %2994 = vmatmul.mubr.f32.gmra.mrb[0].mxu0 %v2716
  %v2995 = vpop.f32.mrb[0].mxu0
  %v2996 = vadd.f32 0.0, %v2995
  %v2997 = vpop.f32.mrb[0].mxu0
  %v2998 = vadd.f32 0.0, %v2997
  %2999 = vmatprep.mubr.f32.mxu0 %v2715
  %3000 = vmatmul.mubr.f32.gmra.mrb[0].mxu0 %v2714
  %v3001 = vpop.f32.mrb[0].mxu0
  %v3002 = vadd.f32 0.0, %v3001
  %v3003 = vpop.f32.mrb[0].mxu0
  %v3004 = vadd.f32 0.0, %v3003
  %3005 = vmatprep.mubr.f32.mxu0 %v2713
  %3006 = vmatmul.mubr.f32.gmra.mrb[0].mxu0 %v2712
  %v3007 = vpop.f32.mrb[0].mxu0
  %v3008 = vadd.f32 0.0, %v3007
  %v3009 = vpop.f32.mrb[0].mxu0
  %v3010 = vadd.f32 0.0, %v3009
  %3011 = vmatprep.mubr.f32.mxu0 %v2711
  %3012 = vmatmul.mubr.f32.gmra.mrb[0].mxu0 %v2710
  %v3013 = vpop.f32.mrb[0].mxu0
  %v3014 = vadd.f32 0.0, %v3013
  %v3015 = vpop.f32.mrb[0].mxu0
  %v3016 = vadd.f32 0.0, %v3015
  %3017 = vmatprep.mubr.f32.mxu0 %v2709
  %3018 = vmatmul.mubr.f32.gmra.mrb[0].mxu0 %v2708
  %v3019 = vpop.f32.mrb[0].mxu0
  %v3020 = vadd.f32 0.0, %v3019
  %v3021 = vpop.f32.mrb[0].mxu0
  %v3022 = vadd.f32 0.0, %v3021
  %3023 = vmatprep.mubr.f32.mxu0 %v2707
  %3024 = vmatmul.mubr.f32.gmra.mrb[0].mxu0 %v2706
  %v3025 = vpop.f32.mrb[0].mxu0
  %v3026 = vadd.f32 0.0, %v3025
  %v3027 = vpop.f32.mrb[0].mxu0
  %v3028 = vadd.f32 0.0, %v3027
  %3029 = vmatprep.mubr.f32.mxu0 %v2705
  %3030 = vmatmul.mubr.f32.gmra.mrb[0].mxu0 %v2704
  %v3031 = vpop.f32.mrb[0].mxu0
  %v3032 = vadd.f32 0.0, %v3031
  %v3033 = vpop.f32.mrb[0].mxu0
  %v3034 = vadd.f32 0.0, %v3033
  %3035 = vmatprep.mubr.f32.mxu0 %v2703
  %3036 = vmatmul.mubr.f32.gmra.mrb[0].mxu0 %v2702
  %v3037 = vpop.f32.mrb[0].mxu0
  %v3038 = vadd.f32 0.0, %v3037
  %v3039 = vpop.f32.mrb[0].mxu0
  %v3040 = vadd.f32 0.0, %v3039
  %3041 = vmatprep.mubr.f32.mxu0 %v2701
  %3042 = vmatmul.mubr.f32.gmra.mrb[0].mxu0 %v2700
  %v3043 = vpop.f32.mrb[0].mxu0
  %v3044 = vadd.f32 0.0, %v3043
  %v3045 = vpop.f32.mrb[0].mxu0
  %v3046 = vadd.f32 0.0, %v3045
  %3047 = vmatprep.mubr.f32.mxu0 %v2699
  %3048 = vmatmul.mubr.f32.gmra.mrb[0].mxu0 %v2698
  %v3049 = vpop.f32.mrb[0].mxu0
  %v3050 = vadd.f32 0.0, %v3049
  %v3051 = vpop.f32.mrb[0].mxu0
  %v3052 = vadd.f32 0.0, %v3051
  %3053 = vmatprep.mubr.f32.mxu0 %v2697
  %3054 = vmatmul.mubr.f32.gmra.mrb[0].mxu0 %v2696
  %v3055 = vpop.f32.mrb[0].mxu0
  %v3056 = vadd.f32 0.0, %v3055
  %v3057 = vpop.f32.mrb[0].mxu0
  %v3058 = vadd.f32 0.0, %v3057
  %3059 = vmatprep.mubr.f32.mxu0 %v2695
  %3060 = vmatmul.mubr.f32.gmra.mrb[0].mxu0 %v2694
  %v3061 = vpop.f32.mrb[0].mxu0
  %v3062 = vadd.f32 0.0, %v3061
  %v3063 = vpop.f32.mrb[0].mxu0
  %v3064 = vadd.f32 0.0, %v3063
  %3065 = vmatprep.mubr.f32.mxu0 %v2693
  %3066 = vmatmul.mubr.f32.gmra.mrb[0].mxu0 %v2692
  %v3067 = vpop.f32.mrb[0].mxu0
  %v3068 = vadd.f32 0.0, %v3067
  %v3069 = vpop.f32.mrb[0].mxu0
  %v3070 = vadd.f32 0.0, %v3069
  %3071 = vmatprep.mubr.f32.mxu0 %v2755
  %3072 = vmatmul.mubr.f32.gmra.mrb[0].mxu0 %v2754
  %v3073 = vpop.f32.mrb[0].mxu0
  %v3074 = vadd.f32 0.0, %v3073
  %v3075 = vpop.f32.mrb[0].mxu0
  %v3076 = vadd.f32 0.0, %v3075
  %3077 = vdwg.mxu0
  %3078 = vmatprep.subr.mxu0 %v2565
  %3079 = vmatpush1.msra.mxu0 %v2564
  %3080 = vmatprep.subr.mxu0 %v2567
  %3081 = vmatpush1.msra.mxu0 %v2566
  %3082 = vmatprep.subr.mxu0 %v2569
  %3083 = vmatpush1.msra.mxu0 %v2568
  %3084 = vmatprep.subr.mxu0 %v2571
  %3085 = vmatpush1.msra.mxu0 %v2570
  %3086 = vmatprep.subr.mxu0 %v2573
  %3087 = vmatpush1.msra.mxu0 %v2572
  %3088 = vmatprep.subr.mxu0 %v2575
  %3089 = vmatpush1.msra.mxu0 %v2574
  %3090 = vmatprep.subr.mxu0 %v2577
  %3091 = vmatpush1.msra.mxu0 %v2576
  %3092 = vmatprep.subr.mxu0 %v2579
  %3093 = vmatpush1.msra.mxu0 %v2578
  %3094 = vmatprep.subr.mxu0 %v2581
  %3095 = vmatpush1.msra.mxu0 %v2580
  %3096 = vmatprep.subr.mxu0 %v2583
  %3097 = vmatpush1.msra.mxu0 %v2582
  %3098 = vmatprep.subr.mxu0 %v2585
  %3099 = vmatpush1.msra.mxu0 %v2584
  %3100 = vmatprep.subr.mxu0 %v2587
  %3101 = vmatpush1.msra.mxu0 %v2586
  %3102 = vmatprep.subr.mxu0 %v2589
  %3103 = vmatpush1.msra.mxu0 %v2588
  %3104 = vmatprep.subr.mxu0 %v2591
  %3105 = vmatpush1.msra.mxu0 %v2590
  %3106 = vmatprep.subr.mxu0 %v2593
  %3107 = vmatpush1.msra.mxu0 %v2592
  %3108 = vmatprep.subr.mxu0 %v2595
  %3109 = vmatpush1.msra.mxu0 %v2594
  %3110 = vmatprep.subr.mxu0 %v2597
  %3111 = vmatpush1.msra.mxu0 %v2596
  %3112 = vmatprep.subr.mxu0 %v2599
  %3113 = vmatpush1.msra.mxu0 %v2598
  %3114 = vmatprep.subr.mxu0 %v2601
  %3115 = vmatpush1.msra.mxu0 %v2600
  %3116 = vmatprep.subr.mxu0 %v2603
  %3117 = vmatpush1.msra.mxu0 %v2602
  %3118 = vmatprep.subr.mxu0 %v2605
  %3119 = vmatpush1.msra.mxu0 %v2604
  %3120 = vmatprep.subr.mxu0 %v2607
  %3121 = vmatpush1.msra.mxu0 %v2606
  %3122 = vmatprep.subr.mxu0 %v2609
  %3123 = vmatpush1.msra.mxu0 %v2608
  %3124 = vmatprep.subr.mxu0 %v2611
  %3125 = vmatpush1.msra.mxu0 %v2610
  %3126 = vmatprep.subr.mxu0 %v2613
  %3127 = vmatpush1.msra.mxu0 %v2612
  %3128 = vmatprep.subr.mxu0 %v2615
  %3129 = vmatpush1.msra.mxu0 %v2614
  %3130 = vmatprep.subr.mxu0 %v2617
  %3131 = vmatpush1.msra.mxu0 %v2616
  %3132 = vmatprep.subr.mxu0 %v2619
  %3133 = vmatpush1.msra.mxu0 %v2618
  %3134 = vmatprep.subr.mxu0 %v2621
  %3135 = vmatpush1.msra.mxu0 %v2620
  %3136 = vmatprep.subr.mxu0 %v2623
  %3137 = vmatpush1.msra.mxu0 %v2622
  %3138 = vmatprep.subr.mxu0 %v2625
  %3139 = vmatpush1.msra.mxu0 %v2624
  %3140 = vmatprep.subr.mxu0 %v2627
  %3141 = vmatpush1.msra.mxu0 %v2626
  %3142 = vmatprep.mubr.f32.mxu0 %v2501
  %3143 = vmatmul.mubr.f32.gmra.mrb[0].mxu0 %v2500
  %v3144 = vpop.f32.mrb[0].mxu0
  %v3145 = vadd.f32 %v2888, %v3144
  %v3146 = vpop.f32.mrb[0].mxu0
  %v3147 = vadd.f32 %v2890, %v3146
  %3148 = vmatprep.mubr.f32.mxu0 %v2503
  %3149 = vmatmul.mubr.f32.gmra.mrb[0].mxu0 %v2502
  %v3150 = vpop.f32.mrb[0].mxu0
  %v3151 = vadd.f32 %v2894, %v3150
  %v3152 = vpop.f32.mrb[0].mxu0
  %v3153 = vadd.f32 %v2896, %v3152
  %3154 = vmatprep.mubr.f32.mxu0 %v2505
  %3155 = vmatmul.mubr.f32.gmra.mrb[0].mxu0 %v2504
  %v3156 = vpop.f32.mrb[0].mxu0
  %v3157 = vadd.f32 %v2900, %v3156
  %v3158 = vpop.f32.mrb[0].mxu0
  %v3159 = vadd.f32 %v2902, %v3158
  %3160 = vmatprep.mubr.f32.mxu0 %v2507
  %3161 = vmatmul.mubr.f32.gmra.mrb[0].mxu0 %v2506
  %v3162 = vpop.f32.mrb[0].mxu0
  %v3163 = vadd.f32 %v2906, %v3162
  %v3164 = vpop.f32.mrb[0].mxu0
  %v3165 = vadd.f32 %v2908, %v3164
  %3166 = vmatprep.mubr.f32.mxu0 %v2509
  %3167 = vmatmul.mubr.f32.gmra.mrb[0].mxu0 %v2508
  %v3168 = vpop.f32.mrb[0].mxu0
  %v3169 = vadd.f32 %v2912, %v3168
  %v3170 = vpop.f32.mrb[0].mxu0
  %v3171 = vadd.f32 %v2914, %v3170
  %3172 = vmatprep.mubr.f32.mxu0 %v2511
  %3173 = vmatmul.mubr.f32.gmra.mrb[0].mxu0 %v2510
  %v3174 = vpop.f32.mrb[0].mxu0
  %v3175 = vadd.f32 %v2918, %v3174
  %v3176 = vpop.f32.mrb[0].mxu0
  %v3177 = vadd.f32 %v2920, %v3176
  %3178 = vmatprep.mubr.f32.mxu0 %v2513
  %3179 = vmatmul.mubr.f32.gmra.mrb[0].mxu0 %v2512
  %v3180 = vpop.f32.mrb[0].mxu0
  %v3181 = vadd.f32 %v2924, %v3180
  %v3182 = vpop.f32.mrb[0].mxu0
  %v3183 = vadd.f32 %v2926, %v3182
  %3184 = vmatprep.mubr.f32.mxu0 %v2515
  %3185 = vmatmul.mubr.f32.gmra.mrb[0].mxu0 %v2514
  %v3186 = vpop.f32.mrb[0].mxu0
  %v3187 = vadd.f32 %v2930, %v3186
  %v3188 = vpop.f32.mrb[0].mxu0
  %v3189 = vadd.f32 %v2932, %v3188
  %3190 = vmatprep.mubr.f32.mxu0 %v2517
  %3191 = vmatmul.mubr.f32.gmra.mrb[0].mxu0 %v2516
  %v3192 = vpop.f32.mrb[0].mxu0
  %v3193 = vadd.f32 %v2936, %v3192
  %v3194 = vpop.f32.mrb[0].mxu0
  %v3195 = vadd.f32 %v2938, %v3194
  %3196 = vmatprep.mubr.f32.mxu0 %v2519
  %3197 = vmatmul.mubr.f32.gmra.mrb[0].mxu0 %v2518
  %v3198 = vpop.f32.mrb[0].mxu0
  %v3199 = vadd.f32 %v2942, %v3198
  %v3200 = vpop.f32.mrb[0].mxu0
  %v3201 = vadd.f32 %v2944, %v3200
  %3202 = vmatprep.mubr.f32.mxu0 %v2521
  %3203 = vmatmul.mubr.f32.gmra.mrb[0].mxu0 %v2520
  %v3204 = vpop.f32.mrb[0].mxu0
  %v3205 = vadd.f32 %v2948, %v3204
  %v3206 = vpop.f32.mrb[0].mxu0
  %v3207 = vadd.f32 %v2950, %v3206
  %3208 = vmatprep.mubr.f32.mxu0 %v2523
  %3209 = vmatmul.mubr.f32.gmra.mrb[0].mxu0 %v2522
  %v3210 = vpop.f32.mrb[0].mxu0
  %v3211 = vadd.f32 %v2954, %v3210
  %v3212 = vpop.f32.mrb[0].mxu0
  %v3213 = vadd.f32 %v2956, %v3212
  %3214 = vmatprep.mubr.f32.mxu0 %v2525
  %3215 = vmatmul.mubr.f32.gmra.mrb[0].mxu0 %v2524
  %v3216 = vpop.f32.mrb[0].mxu0
  %v3217 = vadd.f32 %v2960, %v3216
  %v3218 = vpop.f32.mrb[0].mxu0
  %v3219 = vadd.f32 %v2962, %v3218
  %3220 = vmatprep.mubr.f32.mxu0 %v2527
  %3221 = vmatmul.mubr.f32.gmra.mrb[0].mxu0 %v2526
  %v3222 = vpop.f32.mrb[0].mxu0
  %v3223 = vadd.f32 %v2966, %v3222
  %v3224 = vpop.f32.mrb[0].mxu0
  %v3225 = vadd.f32 %v2968, %v3224
  %3226 = vmatprep.mubr.f32.mxu0 %v2529
  %3227 = vmatmul.mubr.f32.gmra.mrb[0].mxu0 %v2528
  %v3228 = vpop.f32.mrb[0].mxu0
  %v3229 = vadd.f32 %v2972, %v3228
  %v3230 = vpop.f32.mrb[0].mxu0
  %v3231 = vadd.f32 %v2974, %v3230
  %3232 = vmatprep.mubr.f32.mxu0 %v2531
  %3233 = vmatmul.mubr.f32.gmra.mrb[0].mxu0 %v2530
  %v3234 = vpop.f32.mrb[0].mxu0
  %v3235 = vadd.f32 %v2978, %v3234
  %v3236 = vpop.f32.mrb[0].mxu0
  %v3237 = vadd.f32 %v2980, %v3236
  %3238 = vmatprep.mubr.f32.mxu0 %v2533
  %3239 = vmatmul.mubr.f32.gmra.mrb[0].mxu0 %v2532
  %v3240 = vpop.f32.mrb[0].mxu0
  %v3241 = vadd.f32 %v2984, %v3240
  %v3242 = vpop.f32.mrb[0].mxu0
  %v3243 = vadd.f32 %v2986, %v3242
  %3244 = vmatprep.mubr.f32.mxu0 %v2535
  %3245 = vmatmul.mubr.f32.gmra.mrb[0].mxu0 %v2534
  %v3246 = vpop.f32.mrb[0].mxu0
  %v3247 = vadd.f32 %v2990, %v3246
  %v3248 = vpop.f32.mrb[0].mxu0
  %v3249 = vadd.f32 %v2992, %v3248
  %3250 = vmatprep.mubr.f32.mxu0 %v2537
  %3251 = vmatmul.mubr.f32.gmra.mrb[0].mxu0 %v2536
  %v3252 = vpop.f32.mrb[0].mxu0
  %v3253 = vadd.f32 %v2996, %v3252
  %v3254 = vpop.f32.mrb[0].mxu0
  %v3255 = vadd.f32 %v2998, %v3254
  %3256 = vmatprep.mubr.f32.mxu0 %v2539
  %3257 = vmatmul.mubr.f32.gmra.mrb[0].mxu0 %v2538
  %v3258 = vpop.f32.mrb[0].mxu0
  %v3259 = vadd.f32 %v3002, %v3258
  %v3260 = vpop.f32.mrb[0].mxu0
  %v3261 = vadd.f32 %v3004, %v3260
  %3262 = vmatprep.mubr.f32.mxu0 %v2541
  %3263 = vmatmul.mubr.f32.gmra.mrb[0].mxu0 %v2540
  %v3264 = vpop.f32.mrb[0].mxu0
  %v3265 = vadd.f32 %v3008, %v3264
  %v3266 = vpop.f32.mrb[0].mxu0
  %v3267 = vadd.f32 %v3010, %v3266
  %3268 = vmatprep.mubr.f32.mxu0 %v2543
  %3269 = vmatmul.mubr.f32.gmra.mrb[0].mxu0 %v2542
  %v3270 = vpop.f32.mrb[0].mxu0
  %v3271 = vadd.f32 %v3014, %v3270
  %v3272 = vpop.f32.mrb[0].mxu0
  %v3273 = vadd.f32 %v3016, %v3272
  %3274 = vmatprep.mubr.f32.mxu0 %v2545
  %3275 = vmatmul.mubr.f32.gmra.mrb[0].mxu0 %v2544
  %v3276 = vpop.f32.mrb[0].mxu0
  %v3277 = vadd.f32 %v3020, %v3276
  %v3278 = vpop.f32.mrb[0].mxu0
  %v3279 = vadd.f32 %v3022, %v3278
  %3280 = vmatprep.mubr.f32.mxu0 %v2547
  %3281 = vmatmul.mubr.f32.gmra.mrb[0].mxu0 %v2546
  %v3282 = vpop.f32.mrb[0].mxu0
  %v3283 = vadd.f32 %v3026, %v3282
  %v3284 = vpop.f32.mrb[0].mxu0
  %v3285 = vadd.f32 %v3028, %v3284
  %3286 = vmatprep.mubr.f32.mxu0 %v2549
  %3287 = vmatmul.mubr.f32.gmra.mrb[0].mxu0 %v2548
  %v3288 = vpop.f32.mrb[0].mxu0
  %v3289 = vadd.f32 %v3032, %v3288
  %v3290 = vpop.f32.mrb[0].mxu0
  %v3291 = vadd.f32 %v3034, %v3290
  %3292 = vmatprep.mubr.f32.mxu0 %v2551
  %3293 = vmatmul.mubr.f32.gmra.mrb[0].mxu0 %v2550
  %v3294 = vpop.f32.mrb[0].mxu0
  %v3295 = vadd.f32 %v3038, %v3294
  %v3296 = vpop.f32.mrb[0].mxu0
  %v3297 = vadd.f32 %v3040, %v3296
  %3298 = vmatprep.mubr.f32.mxu0 %v2553
  %3299 = vmatmul.mubr.f32.gmra.mrb[0].mxu0 %v2552
  %v3300 = vpop.f32.mrb[0].mxu0
  %v3301 = vadd.f32 %v3044, %v3300
  %v3302 = vpop.f32.mrb[0].mxu0
  %v3303 = vadd.f32 %v3046, %v3302
  %3304 = vmatprep.mubr.f32.mxu0 %v2555
  %3305 = vmatmul.mubr.f32.gmra.mrb[0].mxu0 %v2554
  %v3306 = vpop.f32.mrb[0].mxu0
  %v3307 = vadd.f32 %v3050, %v3306
  %v3308 = vpop.f32.mrb[0].mxu0
  %v3309 = vadd.f32 %v3052, %v3308
  %3310 = vmatprep.mubr.f32.mxu0 %v2557
  %3311 = vmatmul.mubr.f32.gmra.mrb[0].mxu0 %v2556
  %v3312 = vpop.f32.mrb[0].mxu0
  %v3313 = vadd.f32 %v3056, %v3312
  %v3314 = vpop.f32.mrb[0].mxu0
  %v3315 = vadd.f32 %v3058, %v3314
  %3316 = vmatprep.mubr.f32.mxu0 %v2559
  %3317 = vmatmul.mubr.f32.gmra.mrb[0].mxu0 %v2558
  %v3318 = vpop.f32.mrb[0].mxu0
  %v3319 = vadd.f32 %v3062, %v3318
  %v3320 = vpop.f32.mrb[0].mxu0
  %v3321 = vadd.f32 %v3064, %v3320
  %3322 = vmatprep.mubr.f32.mxu0 %v2561
  %3323 = vmatmul.mubr.f32.gmra.mrb[0].mxu0 %v2560
  %v3324 = vpop.f32.mrb[0].mxu0
  %v3325 = vadd.f32 %v3068, %v3324
  %v3326 = vpop.f32.mrb[0].mxu0
  %v3327 = vadd.f32 %v3070, %v3326
  %3328 = vmatprep.mubr.f32.mxu0 %v2563
  %3329 = vmatmul.mubr.f32.gmra.mrb[0].mxu0 %v2562
  %v3330 = vpop.f32.mrb[0].mxu0
  %v3331 = vadd.f32 %v3074, %v3330
  %v3332 = vpop.f32.mrb[0].mxu0
  %v3333 = vadd.f32 %v3076, %v3332
  %3334 = vdwg.mxu0
  %v3335 = vrot.slane %v2500, 4
  %v3336 = vrot.slane %v2501, 4
  %v3337 = vrot.slane %v2502, 4
  %v3338 = vrot.slane %v2503, 4
  %v3339 = vrot.slane %v2504, 4
  %v3340 = vrot.slane %v2505, 4
  %v3341 = vrot.slane %v2506, 4
  %v3342 = vrot.slane %v2507, 4
  %v3343 = vrot.slane %v2508, 4
  %v3344 = vrot.slane %v2509, 4
  %v3345 = vrot.slane %v2510, 4
  %v3346 = vrot.slane %v2511, 4
  %v3347 = vrot.slane %v2512, 4
  %v3348 = vrot.slane %v2513, 4
  %v3349 = vrot.slane %v2514, 4
  %v3350 = vrot.slane %v2515, 4
  %v3351 = vrot.slane %v2516, 4
  %v3352 = vrot.slane %v2517, 4
  %v3353 = vrot.slane %v2518, 4
  %v3354 = vrot.slane %v2519, 4
  %v3355 = vrot.slane %v2520, 4
  %v3356 = vrot.slane %v2521, 4
  %v3357 = vrot.slane %v2522, 4
  %v3358 = vrot.slane %v2523, 4
  %v3359 = vrot.slane %v2524, 4
  %v3360 = vrot.slane %v2525, 4
  %v3361 = vrot.slane %v2526, 4
  %v3362 = vrot.slane %v2527, 4
  %v3363 = vrot.slane %v2528, 4
  %v3364 = vrot.slane %v2529, 4
  %v3365 = vrot.slane %v2530, 4
  %v3366 = vrot.slane %v2531, 4
  %v3367 = vrot.slane %v2532, 4
  %v3368 = vrot.slane %v2533, 4
  %v3369 = vrot.slane %v2534, 4
  %v3370 = vrot.slane %v2535, 4
  %v3371 = vrot.slane %v2536, 4
  %v3372 = vrot.slane %v2537, 4
  %v3373 = vrot.slane %v2538, 4
  %v3374 = vrot.slane %v2539, 4
  %v3375 = vrot.slane %v2540, 4
  %v3376 = vrot.slane %v2541, 4
  %v3377 = vrot.slane %v2542, 4
  %v3378 = vrot.slane %v2543, 4
  %v3379 = vrot.slane %v2544, 4
  %v3380 = vrot.slane %v2545, 4
  %v3381 = vrot.slane %v2546, 4
  %v3382 = vrot.slane %v2547, 4
  %v3383 = vrot.slane %v2548, 4
  %v3384 = vrot.slane %v2549, 4
  %v3385 = vrot.slane %v2550, 4
  %v3386 = vrot.slane %v2551, 4
  %v3387 = vrot.slane %v2552, 4
  %v3388 = vrot.slane %v2553, 4
  %v3389 = vrot.slane %v2554, 4
  %v3390 = vrot.slane %v2555, 4
  %v3391 = vrot.slane %v2556, 4
  %v3392 = vrot.slane %v2557, 4
  %v3393 = vrot.slane %v2558, 4
  %v3394 = vrot.slane %v2559, 4
  %v3395 = vrot.slane %v2560, 4
  %v3396 = vrot.slane %v2561, 4
  %v3397 = vrot.slane %v2562, 4
  %v3398 = vrot.slane %v2563, 4
  %v3399 = vsel %vm1586, %v3395, %v3397
  %v3400 = vsel %vm1586, %v3396, %v3398
  %v3401 = vsel %vm1586, %v3393, %v3395
  %v3402 = vsel %vm1586, %v3394, %v3396
  %v3403 = vsel %vm1586, %v3391, %v3393
  %v3404 = vsel %vm1586, %v3392, %v3394
  %v3405 = vsel %vm1586, %v3389, %v3391
  %v3406 = vsel %vm1586, %v3390, %v3392
  %v3407 = vsel %vm1586, %v3387, %v3389
  %v3408 = vsel %vm1586, %v3388, %v3390
  %v3409 = vsel %vm1586, %v3385, %v3387
  %v3410 = vsel %vm1586, %v3386, %v3388
  %v3411 = vsel %vm1586, %v3383, %v3385
  %v3412 = vsel %vm1586, %v3384, %v3386
  %v3413 = vsel %vm1586, %v3381, %v3383
  %v3414 = vsel %vm1586, %v3382, %v3384
  %v3415 = vsel %vm1586, %v3379, %v3381
  %v3416 = vsel %vm1586, %v3380, %v3382
  %v3417 = vsel %vm1586, %v3377, %v3379
  %v3418 = vsel %vm1586, %v3378, %v3380
  %v3419 = vsel %vm1586, %v3375, %v3377
  %v3420 = vsel %vm1586, %v3376, %v3378
  %v3421 = vsel %vm1586, %v3373, %v3375
  %v3422 = vsel %vm1586, %v3374, %v3376
  %v3423 = vsel %vm1586, %v3371, %v3373
  %v3424 = vsel %vm1586, %v3372, %v3374
  %v3425 = vsel %vm1586, %v3369, %v3371
  %v3426 = vsel %vm1586, %v3370, %v3372
  %v3427 = vsel %vm1586, %v3367, %v3369
  %v3428 = vsel %vm1586, %v3368, %v3370
  %v3429 = vsel %vm1586, %v3365, %v3367
  %v3430 = vsel %vm1586, %v3366, %v3368
  %v3431 = vsel %vm1586, %v3363, %v3365
  %v3432 = vsel %vm1586, %v3364, %v3366
  %v3433 = vsel %vm1586, %v3361, %v3363
  %v3434 = vsel %vm1586, %v3362, %v3364
  %v3435 = vsel %vm1586, %v3359, %v3361
  %v3436 = vsel %vm1586, %v3360, %v3362
  %v3437 = vsel %vm1586, %v3357, %v3359
  %v3438 = vsel %vm1586, %v3358, %v3360
  %v3439 = vsel %vm1586, %v3355, %v3357
  %v3440 = vsel %vm1586, %v3356, %v3358
  %v3441 = vsel %vm1586, %v3353, %v3355
  %v3442 = vsel %vm1586, %v3354, %v3356
  %v3443 = vsel %vm1586, %v3351, %v3353
  %v3444 = vsel %vm1586, %v3352, %v3354
  %v3445 = vsel %vm1586, %v3349, %v3351
  %v3446 = vsel %vm1586, %v3350, %v3352
  %v3447 = vsel %vm1586, %v3347, %v3349
  %v3448 = vsel %vm1586, %v3348, %v3350
  %v3449 = vsel %vm1586, %v3345, %v3347
  %v3450 = vsel %vm1586, %v3346, %v3348
  %v3451 = vsel %vm1586, %v3343, %v3345
  %v3452 = vsel %vm1586, %v3344, %v3346
  %v3453 = vsel %vm1586, %v3341, %v3343
  %v3454 = vsel %vm1586, %v3342, %v3344
  %v3455 = vsel %vm1586, %v3339, %v3341
  %v3456 = vsel %vm1586, %v3340, %v3342
  %v3457 = vsel %vm1586, %v3337, %v3339
  %v3458 = vsel %vm1586, %v3338, %v3340
  %v3459 = vsel %vm1586, %v3335, %v3337
  %v3460 = vsel %vm1586, %v3336, %v3338
  %v3461 = vsel %vm1586, %v3397, %v3335
  %v3462 = vsel %vm1586, %v3398, %v3336
  %s3463 = scalar_lea.vmem %s3, 1024
  %v3464 = vld [vmem:[%s3463] sm:$0xff]
  %v3465 = vld [vmem:[%s3463 + $0x8] sm:$0xff]
  %v3466 = vld [vmem:[%s3463 + $0x10] sm:$0xff]
  %v3467 = vld [vmem:[%s3463 + $0x18] sm:$0xff]
  %v3468 = vld [vmem:[%s3463 + $0x20] sm:$0xff]
  %v3469 = vld [vmem:[%s3463 + $0x28] sm:$0xff]
  %v3470 = vld [vmem:[%s3463 + $0x30] sm:$0xff]
  %v3471 = vld [vmem:[%s3463 + $0x38] sm:$0xff]
  %v3472 = vld [vmem:[%s3463 + $0x40] sm:$0xff]
  %v3473 = vld [vmem:[%s3463 + $0x48] sm:$0xff]
  %v3474 = vld [vmem:[%s3463 + $0x50] sm:$0xff]
  %v3475 = vld [vmem:[%s3463 + $0x58] sm:$0xff]
  %v3476 = vld [vmem:[%s3463 + $0x60] sm:$0xff]
  %v3477 = vld [vmem:[%s3463 + $0x68] sm:$0xff]
  %v3478 = vld [vmem:[%s3463 + $0x70] sm:$0xff]
  %v3479 = vld [vmem:[%s3463 + $0x78] sm:$0xff]
  %v3480 = vld [vmem:[%s3463 + $0x80] sm:$0xff]
  %v3481 = vld [vmem:[%s3463 + $0x88] sm:$0xff]
  %v3482 = vld [vmem:[%s3463 + $0x90] sm:$0xff]
  %v3483 = vld [vmem:[%s3463 + $0x98] sm:$0xff]
  %v3484 = vld [vmem:[%s3463 + $0xa0] sm:$0xff]
  %v3485 = vld [vmem:[%s3463 + $0xa8] sm:$0xff]
  %v3486 = vld [vmem:[%s3463 + $0xb0] sm:$0xff]
  %v3487 = vld [vmem:[%s3463 + $0xb8] sm:$0xff]
  %v3488 = vld [vmem:[%s3463 + $0xc0] sm:$0xff]
  %v3489 = vld [vmem:[%s3463 + $0xc8] sm:$0xff]
  %v3490 = vld [vmem:[%s3463 + $0xd0] sm:$0xff]
  %v3491 = vld [vmem:[%s3463 + $0xd8] sm:$0xff]
  %v3492 = vld [vmem:[%s3463 + $0xe0] sm:$0xff]
  %v3493 = vld [vmem:[%s3463 + $0xe8] sm:$0xff]
  %v3494 = vld [vmem:[%s3463 + $0xf0] sm:$0xff]
  %v3495 = vld [vmem:[%s3463 + $0xf8] sm:$0xff]
  %v3496 = vld [vmem:[%s3463 + $0x100] sm:$0xff]
  %v3497 = vld [vmem:[%s3463 + $0x108] sm:$0xff]
  %v3498 = vld [vmem:[%s3463 + $0x110] sm:$0xff]
  %v3499 = vld [vmem:[%s3463 + $0x118] sm:$0xff]
  %v3500 = vld [vmem:[%s3463 + $0x120] sm:$0xff]
  %v3501 = vld [vmem:[%s3463 + $0x128] sm:$0xff]
  %v3502 = vld [vmem:[%s3463 + $0x130] sm:$0xff]
  %v3503 = vld [vmem:[%s3463 + $0x138] sm:$0xff]
  %v3504 = vld [vmem:[%s3463 + $0x140] sm:$0xff]
  %v3505 = vld [vmem:[%s3463 + $0x148] sm:$0xff]
  %v3506 = vld [vmem:[%s3463 + $0x150] sm:$0xff]
  %v3507 = vld [vmem:[%s3463 + $0x158] sm:$0xff]
  %v3508 = vld [vmem:[%s3463 + $0x160] sm:$0xff]
  %v3509 = vld [vmem:[%s3463 + $0x168] sm:$0xff]
  %v3510 = vld [vmem:[%s3463 + $0x170] sm:$0xff]
  %v3511 = vld [vmem:[%s3463 + $0x178] sm:$0xff]
  %v3512 = vld [vmem:[%s3463 + $0x180] sm:$0xff]
  %v3513 = vld [vmem:[%s3463 + $0x188] sm:$0xff]
  %v3514 = vld [vmem:[%s3463 + $0x190] sm:$0xff]
  %v3515 = vld [vmem:[%s3463 + $0x198] sm:$0xff]
  %v3516 = vld [vmem:[%s3463 + $0x1a0] sm:$0xff]
  %v3517 = vld [vmem:[%s3463 + $0x1a8] sm:$0xff]
  %v3518 = vld [vmem:[%s3463 + $0x1b0] sm:$0xff]
  %v3519 = vld [vmem:[%s3463 + $0x1b8] sm:$0xff]
  %v3520 = vld [vmem:[%s3463 + $0x1c0] sm:$0xff]
  %v3521 = vld [vmem:[%s3463 + $0x1c8] sm:$0xff]
  %v3522 = vld [vmem:[%s3463 + $0x1d0] sm:$0xff]
  %v3523 = vld [vmem:[%s3463 + $0x1d8] sm:$0xff]
  %v3524 = vld [vmem:[%s3463 + $0x1e0] sm:$0xff]
  %v3525 = vld [vmem:[%s3463 + $0x1e8] sm:$0xff]
  %v3526 = vld [vmem:[%s3463 + $0x1f0] sm:$0xff]
  %v3527 = vld [vmem:[%s3463 + $0x1f8] sm:$0xff]
  %3528 = vmatprep.subr.mxu0 %v3465
  %3529 = vmatpush1.msra.mxu0 %v3464
  %3530 = vmatprep.subr.mxu0 %v3467
  %3531 = vmatpush1.msra.mxu0 %v3466
  %3532 = vmatprep.subr.mxu0 %v3469
  %3533 = vmatpush1.msra.mxu0 %v3468
  %3534 = vmatprep.subr.mxu0 %v3471
  %3535 = vmatpush1.msra.mxu0 %v3470
  %3536 = vmatprep.subr.mxu0 %v3473
  %3537 = vmatpush1.msra.mxu0 %v3472
  %3538 = vmatprep.subr.mxu0 %v3475
  %3539 = vmatpush1.msra.mxu0 %v3474
  %3540 = vmatprep.subr.mxu0 %v3477
  %3541 = vmatpush1.msra.mxu0 %v3476
  %3542 = vmatprep.subr.mxu0 %v3479
  %3543 = vmatpush1.msra.mxu0 %v3478
  %3544 = vmatprep.subr.mxu0 %v3481
  %3545 = vmatpush1.msra.mxu0 %v3480
  %3546 = vmatprep.subr.mxu0 %v3483
  %3547 = vmatpush1.msra.mxu0 %v3482
  %3548 = vmatprep.subr.mxu0 %v3485
  %3549 = vmatpush1.msra.mxu0 %v3484
  %3550 = vmatprep.subr.mxu0 %v3487
  %3551 = vmatpush1.msra.mxu0 %v3486
  %3552 = vmatprep.subr.mxu0 %v3489
  %3553 = vmatpush1.msra.mxu0 %v3488
  %3554 = vmatprep.subr.mxu0 %v3491
  %3555 = vmatpush1.msra.mxu0 %v3490
  %3556 = vmatprep.subr.mxu0 %v3493
  %3557 = vmatpush1.msra.mxu0 %v3492
  %3558 = vmatprep.subr.mxu0 %v3495
  %3559 = vmatpush1.msra.mxu0 %v3494
  %3560 = vmatprep.subr.mxu0 %v3497
  %3561 = vmatpush1.msra.mxu0 %v3496
  %3562 = vmatprep.subr.mxu0 %v3499
  %3563 = vmatpush1.msra.mxu0 %v3498
  %3564 = vmatprep.subr.mxu0 %v3501
  %3565 = vmatpush1.msra.mxu0 %v3500
  %3566 = vmatprep.subr.mxu0 %v3503
  %3567 = vmatpush1.msra.mxu0 %v3502
  %3568 = vmatprep.subr.mxu0 %v3505
  %3569 = vmatpush1.msra.mxu0 %v3504
  %3570 = vmatprep.subr.mxu0 %v3507
  %3571 = vmatpush1.msra.mxu0 %v3506
  %3572 = vmatprep.subr.mxu0 %v3509
  %3573 = vmatpush1.msra.mxu0 %v3508
  %3574 = vmatprep.subr.mxu0 %v3511
  %3575 = vmatpush1.msra.mxu0 %v3510
  %3576 = vmatprep.subr.mxu0 %v3513
  %3577 = vmatpush1.msra.mxu0 %v3512
  %3578 = vmatprep.subr.mxu0 %v3515
  %3579 = vmatpush1.msra.mxu0 %v3514
  %3580 = vmatprep.subr.mxu0 %v3517
  %3581 = vmatpush1.msra.mxu0 %v3516
  %3582 = vmatprep.subr.mxu0 %v3519
  %3583 = vmatpush1.msra.mxu0 %v3518
  %3584 = vmatprep.subr.mxu0 %v3521
  %3585 = vmatpush1.msra.mxu0 %v3520
  %3586 = vmatprep.subr.mxu0 %v3523
  %3587 = vmatpush1.msra.mxu0 %v3522
  %3588 = vmatprep.subr.mxu0 %v3525
  %3589 = vmatpush1.msra.mxu0 %v3524
  %3590 = vmatprep.subr.mxu0 %v3527
  %3591 = vmatpush1.msra.mxu0 %v3526
  %3592 = vmatprep.mubr.f32.mxu0 %v3460
  %3593 = vmatmul.mubr.f32.gmra.mrb[0].mxu0 %v3459
  %v3594 = vpop.f32.mrb[0].mxu0
  %v3595 = vadd.f32 0.0, %v3594
  %v3596 = vpop.f32.mrb[0].mxu0
  %v3597 = vadd.f32 0.0, %v3596
  %3598 = vmatprep.mubr.f32.mxu0 %v3458
  %3599 = vmatmul.mubr.f32.gmra.mrb[0].mxu0 %v3457
  %v3600 = vpop.f32.mrb[0].mxu0
  %v3601 = vadd.f32 0.0, %v3600
  %v3602 = vpop.f32.mrb[0].mxu0
  %v3603 = vadd.f32 0.0, %v3602
  %3604 = vmatprep.mubr.f32.mxu0 %v3456
  %3605 = vmatmul.mubr.f32.gmra.mrb[0].mxu0 %v3455
  %v3606 = vpop.f32.mrb[0].mxu0
  %v3607 = vadd.f32 0.0, %v3606
  %v3608 = vpop.f32.mrb[0].mxu0
  %v3609 = vadd.f32 0.0, %v3608
  %3610 = vmatprep.mubr.f32.mxu0 %v3454
  %3611 = vmatmul.mubr.f32.gmra.mrb[0].mxu0 %v3453
  %v3612 = vpop.f32.mrb[0].mxu0
  %v3613 = vadd.f32 0.0, %v3612
  %v3614 = vpop.f32.mrb[0].mxu0
  %v3615 = vadd.f32 0.0, %v3614
  %3616 = vmatprep.mubr.f32.mxu0 %v3452
  %3617 = vmatmul.mubr.f32.gmra.mrb[0].mxu0 %v3451
  %v3618 = vpop.f32.mrb[0].mxu0
  %v3619 = vadd.f32 0.0, %v3618
  %v3620 = vpop.f32.mrb[0].mxu0
  %v3621 = vadd.f32 0.0, %v3620
  %3622 = vmatprep.mubr.f32.mxu0 %v3450
  %3623 = vmatmul.mubr.f32.gmra.mrb[0].mxu0 %v3449
  %v3624 = vpop.f32.mrb[0].mxu0
  %v3625 = vadd.f32 0.0, %v3624
  %v3626 = vpop.f32.mrb[0].mxu0
  %v3627 = vadd.f32 0.0, %v3626
  %3628 = vmatprep.mubr.f32.mxu0 %v3448
  %3629 = vmatmul.mubr.f32.gmra.mrb[0].mxu0 %v3447
  %v3630 = vpop.f32.mrb[0].mxu0
  %v3631 = vadd.f32 0.0, %v3630
  %v3632 = vpop.f32.mrb[0].mxu0
  %v3633 = vadd.f32 0.0, %v3632
  %3634 = vmatprep.mubr.f32.mxu0 %v3446
  %3635 = vmatmul.mubr.f32.gmra.mrb[0].mxu0 %v3445
  %v3636 = vpop.f32.mrb[0].mxu0
  %v3637 = vadd.f32 0.0, %v3636
  %v3638 = vpop.f32.mrb[0].mxu0
  %v3639 = vadd.f32 0.0, %v3638
  %3640 = vmatprep.mubr.f32.mxu0 %v3444
  %3641 = vmatmul.mubr.f32.gmra.mrb[0].mxu0 %v3443
  %v3642 = vpop.f32.mrb[0].mxu0
  %v3643 = vadd.f32 0.0, %v3642
  %v3644 = vpop.f32.mrb[0].mxu0
  %v3645 = vadd.f32 0.0, %v3644
  %3646 = vmatprep.mubr.f32.mxu0 %v3442
  %3647 = vmatmul.mubr.f32.gmra.mrb[0].mxu0 %v3441
  %v3648 = vpop.f32.mrb[0].mxu0
  %v3649 = vadd.f32 0.0, %v3648
  %v3650 = vpop.f32.mrb[0].mxu0
  %v3651 = vadd.f32 0.0, %v3650
  %3652 = vmatprep.mubr.f32.mxu0 %v3440
  %3653 = vmatmul.mubr.f32.gmra.mrb[0].mxu0 %v3439
  %v3654 = vpop.f32.mrb[0].mxu0
  %v3655 = vadd.f32 0.0, %v3654
  %v3656 = vpop.f32.mrb[0].mxu0
  %v3657 = vadd.f32 0.0, %v3656
  %3658 = vmatprep.mubr.f32.mxu0 %v3438
  %3659 = vmatmul.mubr.f32.gmra.mrb[0].mxu0 %v3437
  %v3660 = vpop.f32.mrb[0].mxu0
  %v3661 = vadd.f32 0.0, %v3660
  %v3662 = vpop.f32.mrb[0].mxu0
  %v3663 = vadd.f32 0.0, %v3662
  %3664 = vmatprep.mubr.f32.mxu0 %v3436
  %3665 = vmatmul.mubr.f32.gmra.mrb[0].mxu0 %v3435
  %v3666 = vpop.f32.mrb[0].mxu0
  %v3667 = vadd.f32 0.0, %v3666
  %v3668 = vpop.f32.mrb[0].mxu0
  %v3669 = vadd.f32 0.0, %v3668
  %3670 = vmatprep.mubr.f32.mxu0 %v3434
  %3671 = vmatmul.mubr.f32.gmra.mrb[0].mxu0 %v3433
  %v3672 = vpop.f32.mrb[0].mxu0
  %v3673 = vadd.f32 0.0, %v3672
  %v3674 = vpop.f32.mrb[0].mxu0
  %v3675 = vadd.f32 0.0, %v3674
  %3676 = vmatprep.mubr.f32.mxu0 %v3432
  %3677 = vmatmul.mubr.f32.gmra.mrb[0].mxu0 %v3431
  %v3678 = vpop.f32.mrb[0].mxu0
  %v3679 = vadd.f32 0.0, %v3678
  %v3680 = vpop.f32.mrb[0].mxu0
  %v3681 = vadd.f32 0.0, %v3680
  %3682 = vmatprep.mubr.f32.mxu0 %v3430
  %3683 = vmatmul.mubr.f32.gmra.mrb[0].mxu0 %v3429
  %v3684 = vpop.f32.mrb[0].mxu0
  %v3685 = vadd.f32 0.0, %v3684
  %v3686 = vpop.f32.mrb[0].mxu0
  %v3687 = vadd.f32 0.0, %v3686
  %3688 = vmatprep.mubr.f32.mxu0 %v3428
  %3689 = vmatmul.mubr.f32.gmra.mrb[0].mxu0 %v3427
  %v3690 = vpop.f32.mrb[0].mxu0
  %v3691 = vadd.f32 0.0, %v3690
  %v3692 = vpop.f32.mrb[0].mxu0
  %v3693 = vadd.f32 0.0, %v3692
  %3694 = vmatprep.mubr.f32.mxu0 %v3426
  %3695 = vmatmul.mubr.f32.gmra.mrb[0].mxu0 %v3425
  %v3696 = vpop.f32.mrb[0].mxu0
  %v3697 = vadd.f32 0.0, %v3696
  %v3698 = vpop.f32.mrb[0].mxu0
  %v3699 = vadd.f32 0.0, %v3698
  %3700 = vmatprep.mubr.f32.mxu0 %v3424
  %3701 = vmatmul.mubr.f32.gmra.mrb[0].mxu0 %v3423
  %v3702 = vpop.f32.mrb[0].mxu0
  %v3703 = vadd.f32 0.0, %v3702
  %v3704 = vpop.f32.mrb[0].mxu0
  %v3705 = vadd.f32 0.0, %v3704
  %3706 = vmatprep.mubr.f32.mxu0 %v3422
  %3707 = vmatmul.mubr.f32.gmra.mrb[0].mxu0 %v3421
  %v3708 = vpop.f32.mrb[0].mxu0
  %v3709 = vadd.f32 0.0, %v3708
  %v3710 = vpop.f32.mrb[0].mxu0
  %v3711 = vadd.f32 0.0, %v3710
  %3712 = vmatprep.mubr.f32.mxu0 %v3420
  %3713 = vmatmul.mubr.f32.gmra.mrb[0].mxu0 %v3419
  %v3714 = vpop.f32.mrb[0].mxu0
  %v3715 = vadd.f32 0.0, %v3714
  %v3716 = vpop.f32.mrb[0].mxu0
  %v3717 = vadd.f32 0.0, %v3716
  %3718 = vmatprep.mubr.f32.mxu0 %v3418
  %3719 = vmatmul.mubr.f32.gmra.mrb[0].mxu0 %v3417
  %v3720 = vpop.f32.mrb[0].mxu0
  %v3721 = vadd.f32 0.0, %v3720
  %v3722 = vpop.f32.mrb[0].mxu0
  %v3723 = vadd.f32 0.0, %v3722
  %3724 = vmatprep.mubr.f32.mxu0 %v3416
  %3725 = vmatmul.mubr.f32.gmra.mrb[0].mxu0 %v3415
  %v3726 = vpop.f32.mrb[0].mxu0
  %v3727 = vadd.f32 0.0, %v3726
  %v3728 = vpop.f32.mrb[0].mxu0
  %v3729 = vadd.f32 0.0, %v3728
  %3730 = vmatprep.mubr.f32.mxu0 %v3414
  %3731 = vmatmul.mubr.f32.gmra.mrb[0].mxu0 %v3413
  %v3732 = vpop.f32.mrb[0].mxu0
  %v3733 = vadd.f32 0.0, %v3732
  %v3734 = vpop.f32.mrb[0].mxu0
  %v3735 = vadd.f32 0.0, %v3734
  %3736 = vmatprep.mubr.f32.mxu0 %v3412
  %3737 = vmatmul.mubr.f32.gmra.mrb[0].mxu0 %v3411
  %v3738 = vpop.f32.mrb[0].mxu0
  %v3739 = vadd.f32 0.0, %v3738
  %v3740 = vpop.f32.mrb[0].mxu0
  %v3741 = vadd.f32 0.0, %v3740
  %3742 = vmatprep.mubr.f32.mxu0 %v3410
  %3743 = vmatmul.mubr.f32.gmra.mrb[0].mxu0 %v3409
  %v3744 = vpop.f32.mrb[0].mxu0
  %v3745 = vadd.f32 0.0, %v3744
  %v3746 = vpop.f32.mrb[0].mxu0
  %v3747 = vadd.f32 0.0, %v3746
  %3748 = vmatprep.mubr.f32.mxu0 %v3408
  %3749 = vmatmul.mubr.f32.gmra.mrb[0].mxu0 %v3407
  %v3750 = vpop.f32.mrb[0].mxu0
  %v3751 = vadd.f32 0.0, %v3750
  %v3752 = vpop.f32.mrb[0].mxu0
  %v3753 = vadd.f32 0.0, %v3752
  %3754 = vmatprep.mubr.f32.mxu0 %v3406
  %3755 = vmatmul.mubr.f32.gmra.mrb[0].mxu0 %v3405
  %v3756 = vpop.f32.mrb[0].mxu0
  %v3757 = vadd.f32 0.0, %v3756
  %v3758 = vpop.f32.mrb[0].mxu0
  %v3759 = vadd.f32 0.0, %v3758
  %3760 = vmatprep.mubr.f32.mxu0 %v3404
  %3761 = vmatmul.mubr.f32.gmra.mrb[0].mxu0 %v3403
  %v3762 = vpop.f32.mrb[0].mxu0
  %v3763 = vadd.f32 0.0, %v3762
  %v3764 = vpop.f32.mrb[0].mxu0
  %v3765 = vadd.f32 0.0, %v3764
  %3766 = vmatprep.mubr.f32.mxu0 %v3402
  %3767 = vmatmul.mubr.f32.gmra.mrb[0].mxu0 %v3401
  %v3768 = vpop.f32.mrb[0].mxu0
  %v3769 = vadd.f32 0.0, %v3768
  %v3770 = vpop.f32.mrb[0].mxu0
  %v3771 = vadd.f32 0.0, %v3770
  %3772 = vmatprep.mubr.f32.mxu0 %v3400
  %3773 = vmatmul.mubr.f32.gmra.mrb[0].mxu0 %v3399
  %v3774 = vpop.f32.mrb[0].mxu0
  %v3775 = vadd.f32 0.0, %v3774
  %v3776 = vpop.f32.mrb[0].mxu0
  %v3777 = vadd.f32 0.0, %v3776
  %3778 = vmatprep.mubr.f32.mxu0 %v3462
  %3779 = vmatmul.mubr.f32.gmra.mrb[0].mxu0 %v3461
  %v3780 = vpop.f32.mrb[0].mxu0
  %v3781 = vadd.f32 0.0, %v3780
  %v3782 = vpop.f32.mrb[0].mxu0
  %v3783 = vadd.f32 0.0, %v3782
  %3784 = vdwg.mxu0
  %v3785 = vadd.f32 %v3145, %v3595
  %v3786 = vadd.f32 %v3147, %v3597
  %v3787 = vadd.f32 %v3151, %v3601
  %v3788 = vadd.f32 %v3153, %v3603
  %v3789 = vadd.f32 %v3157, %v3607
  %v3790 = vadd.f32 %v3159, %v3609
  %v3791 = vadd.f32 %v3163, %v3613
  %v3792 = vadd.f32 %v3165, %v3615
  %v3793 = vadd.f32 %v3169, %v3619
  %v3794 = vadd.f32 %v3171, %v3621
  %v3795 = vadd.f32 %v3175, %v3625
  %v3796 = vadd.f32 %v3177, %v3627
  %v3797 = vadd.f32 %v3181, %v3631
  %v3798 = vadd.f32 %v3183, %v3633
  %v3799 = vadd.f32 %v3187, %v3637
  %v3800 = vadd.f32 %v3189, %v3639
  %v3801 = vadd.f32 %v3193, %v3643
  %v3802 = vadd.f32 %v3195, %v3645
  %v3803 = vadd.f32 %v3199, %v3649
  %v3804 = vadd.f32 %v3201, %v3651
  %v3805 = vadd.f32 %v3205, %v3655
  %v3806 = vadd.f32 %v3207, %v3657
  %v3807 = vadd.f32 %v3211, %v3661
  %v3808 = vadd.f32 %v3213, %v3663
  %v3809 = vadd.f32 %v3217, %v3667
  %v3810 = vadd.f32 %v3219, %v3669
  %v3811 = vadd.f32 %v3223, %v3673
  %v3812 = vadd.f32 %v3225, %v3675
  %v3813 = vadd.f32 %v3229, %v3679
  %v3814 = vadd.f32 %v3231, %v3681
  %v3815 = vadd.f32 %v3235, %v3685
  %v3816 = vadd.f32 %v3237, %v3687
  %v3817 = vadd.f32 %v3241, %v3691
  %v3818 = vadd.f32 %v3243, %v3693
  %v3819 = vadd.f32 %v3247, %v3697
  %v3820 = vadd.f32 %v3249, %v3699
  %v3821 = vadd.f32 %v3253, %v3703
  %v3822 = vadd.f32 %v3255, %v3705
  %v3823 = vadd.f32 %v3259, %v3709
  %v3824 = vadd.f32 %v3261, %v3711
  %v3825 = vadd.f32 %v3265, %v3715
  %v3826 = vadd.f32 %v3267, %v3717
  %v3827 = vadd.f32 %v3271, %v3721
  %v3828 = vadd.f32 %v3273, %v3723
  %v3829 = vadd.f32 %v3277, %v3727
  %v3830 = vadd.f32 %v3279, %v3729
  %v3831 = vadd.f32 %v3283, %v3733
  %v3832 = vadd.f32 %v3285, %v3735
  %v3833 = vadd.f32 %v3289, %v3739
  %v3834 = vadd.f32 %v3291, %v3741
  %v3835 = vadd.f32 %v3295, %v3745
  %v3836 = vadd.f32 %v3297, %v3747
  %v3837 = vadd.f32 %v3301, %v3751
  %v3838 = vadd.f32 %v3303, %v3753
  %v3839 = vadd.f32 %v3307, %v3757
  %v3840 = vadd.f32 %v3309, %v3759
  %v3841 = vadd.f32 %v3313, %v3763
  %v3842 = vadd.f32 %v3315, %v3765
  %v3843 = vadd.f32 %v3319, %v3769
  %v3844 = vadd.f32 %v3321, %v3771
  %v3845 = vadd.f32 %v3325, %v3775
  %v3846 = vadd.f32 %v3327, %v3777
  %v3847 = vadd.f32 %v3331, %v3781
  %v3848 = vadd.f32 %v3333, %v3783
  %v3849 = vrot.slane %v2500, 6
  %v3850 = vrot.slane %v2501, 6
  %v3851 = vrot.slane %v2502, 6
  %v3852 = vrot.slane %v2503, 6
  %v3853 = vrot.slane %v2504, 6
  %v3854 = vrot.slane %v2505, 6
  %v3855 = vrot.slane %v2506, 6
  %v3856 = vrot.slane %v2507, 6
  %v3857 = vrot.slane %v2508, 6
  %v3858 = vrot.slane %v2509, 6
  %v3859 = vrot.slane %v2510, 6
  %v3860 = vrot.slane %v2511, 6
  %v3861 = vrot.slane %v2512, 6
  %v3862 = vrot.slane %v2513, 6
  %v3863 = vrot.slane %v2514, 6
  %v3864 = vrot.slane %v2515, 6
  %v3865 = vrot.slane %v2516, 6
  %v3866 = vrot.slane %v2517, 6
  %v3867 = vrot.slane %v2518, 6
  %v3868 = vrot.slane %v2519, 6
  %v3869 = vrot.slane %v2520, 6
  %v3870 = vrot.slane %v2521, 6
  %v3871 = vrot.slane %v2522, 6
  %v3872 = vrot.slane %v2523, 6
  %v3873 = vrot.slane %v2524, 6
  %v3874 = vrot.slane %v2525, 6
  %v3875 = vrot.slane %v2526, 6
  %v3876 = vrot.slane %v2527, 6
  %v3877 = vrot.slane %v2528, 6
  %v3878 = vrot.slane %v2529, 6
  %v3879 = vrot.slane %v2530, 6
  %v3880 = vrot.slane %v2531, 6
  %v3881 = vrot.slane %v2532, 6
  %v3882 = vrot.slane %v2533, 6
  %v3883 = vrot.slane %v2534, 6
  %v3884 = vrot.slane %v2535, 6
  %v3885 = vrot.slane %v2536, 6
  %v3886 = vrot.slane %v2537, 6
  %v3887 = vrot.slane %v2538, 6
  %v3888 = vrot.slane %v2539, 6
  %v3889 = vrot.slane %v2540, 6
  %v3890 = vrot.slane %v2541, 6
  %v3891 = vrot.slane %v2542, 6
  %v3892 = vrot.slane %v2543, 6
  %v3893 = vrot.slane %v2544, 6
  %v3894 = vrot.slane %v2545, 6
  %v3895 = vrot.slane %v2546, 6
  %v3896 = vrot.slane %v2547, 6
  %v3897 = vrot.slane %v2548, 6
  %v3898 = vrot.slane %v2549, 6
  %v3899 = vrot.slane %v2550, 6
  %v3900 = vrot.slane %v2551, 6
  %v3901 = vrot.slane %v2552, 6
  %v3902 = vrot.slane %v2553, 6
  %v3903 = vrot.slane %v2554, 6
  %v3904 = vrot.slane %v2555, 6
  %v3905 = vrot.slane %v2556, 6
  %v3906 = vrot.slane %v2557, 6
  %v3907 = vrot.slane %v2558, 6
  %v3908 = vrot.slane %v2559, 6
  %v3909 = vrot.slane %v2560, 6
  %v3910 = vrot.slane %v2561, 6
  %v3911 = vrot.slane %v2562, 6
  %v3912 = vrot.slane %v2563, 6
  %vm3913 = vcmp.lt.s32.totalorder %v135, 2
  %v3914 = vsel %vm3913, %v3909, %v3911
  %v3915 = vsel %vm3913, %v3910, %v3912
  %v3916 = vsel %vm3913, %v3907, %v3909
  %v3917 = vsel %vm3913, %v3908, %v3910
  %v3918 = vsel %vm3913, %v3905, %v3907
  %v3919 = vsel %vm3913, %v3906, %v3908
  %v3920 = vsel %vm3913, %v3903, %v3905
  %v3921 = vsel %vm3913, %v3904, %v3906
  %v3922 = vsel %vm3913, %v3901, %v3903
  %v3923 = vsel %vm3913, %v3902, %v3904
  %v3924 = vsel %vm3913, %v3899, %v3901
  %v3925 = vsel %vm3913, %v3900, %v3902
  %v3926 = vsel %vm3913, %v3897, %v3899
  %v3927 = vsel %vm3913, %v3898, %v3900
  %v3928 = vsel %vm3913, %v3895, %v3897
  %v3929 = vsel %vm3913, %v3896, %v3898
  %v3930 = vsel %vm3913, %v3893, %v3895
  %v3931 = vsel %vm3913, %v3894, %v3896
  %v3932 = vsel %vm3913, %v3891, %v3893
  %v3933 = vsel %vm3913, %v3892, %v3894
  %v3934 = vsel %vm3913, %v3889, %v3891
  %v3935 = vsel %vm3913, %v3890, %v3892
  %v3936 = vsel %vm3913, %v3887, %v3889
  %v3937 = vsel %vm3913, %v3888, %v3890
  %v3938 = vsel %vm3913, %v3885, %v3887
  %v3939 = vsel %vm3913, %v3886, %v3888
  %v3940 = vsel %vm3913, %v3883, %v3885
  %v3941 = vsel %vm3913, %v3884, %v3886
  %v3942 = vsel %vm3913, %v3881, %v3883
  %v3943 = vsel %vm3913, %v3882, %v3884
  %v3944 = vsel %vm3913, %v3879, %v3881
  %v3945 = vsel %vm3913, %v3880, %v3882
  %v3946 = vsel %vm3913, %v3877, %v3879
  %v3947 = vsel %vm3913, %v3878, %v3880
  %v3948 = vsel %vm3913, %v3875, %v3877
  %v3949 = vsel %vm3913, %v3876, %v3878
  %v3950 = vsel %vm3913, %v3873, %v3875
  %v3951 = vsel %vm3913, %v3874, %v3876
  %v3952 = vsel %vm3913, %v3871, %v3873
  %v3953 = vsel %vm3913, %v3872, %v3874
  %v3954 = vsel %vm3913, %v3869, %v3871
  %v3955 = vsel %vm3913, %v3870, %v3872
  %v3956 = vsel %vm3913, %v3867, %v3869
  %v3957 = vsel %vm3913, %v3868, %v3870
  %v3958 = vsel %vm3913, %v3865, %v3867
  %v3959 = vsel %vm3913, %v3866, %v3868
  %v3960 = vsel %vm3913, %v3863, %v3865
  %v3961 = vsel %vm3913, %v3864, %v3866
  %v3962 = vsel %vm3913, %v3861, %v3863
  %v3963 = vsel %vm3913, %v3862, %v3864
  %v3964 = vsel %vm3913, %v3859, %v3861
  %v3965 = vsel %vm3913, %v3860, %v3862
  %v3966 = vsel %vm3913, %v3857, %v3859
  %v3967 = vsel %vm3913, %v3858, %v3860
  %v3968 = vsel %vm3913, %v3855, %v3857
  %v3969 = vsel %vm3913, %v3856, %v3858
  %v3970 = vsel %vm3913, %v3853, %v3855
  %v3971 = vsel %vm3913, %v3854, %v3856
  %v3972 = vsel %vm3913, %v3851, %v3853
  %v3973 = vsel %vm3913, %v3852, %v3854
  %v3974 = vsel %vm3913, %v3849, %v3851
  %v3975 = vsel %vm3913, %v3850, %v3852
  %v3976 = vsel %vm3913, %v3911, %v3849
  %v3977 = vsel %vm3913, %v3912, %v3850
  %s3978 = scalar_lea.vmem %s3, 1536
  %v3979 = vld [vmem:[%s3978] sm:$0xff]
  %v3980 = vld [vmem:[%s3978 + $0x8] sm:$0xff]
  %v3981 = vld [vmem:[%s3978 + $0x10] sm:$0xff]
  %v3982 = vld [vmem:[%s3978 + $0x18] sm:$0xff]
  %v3983 = vld [vmem:[%s3978 + $0x20] sm:$0xff]
  %v3984 = vld [vmem:[%s3978 + $0x28] sm:$0xff]
  %v3985 = vld [vmem:[%s3978 + $0x30] sm:$0xff]
  %v3986 = vld [vmem:[%s3978 + $0x38] sm:$0xff]
  %v3987 = vld [vmem:[%s3978 + $0x40] sm:$0xff]
  %v3988 = vld [vmem:[%s3978 + $0x48] sm:$0xff]
  %v3989 = vld [vmem:[%s3978 + $0x50] sm:$0xff]
  %v3990 = vld [vmem:[%s3978 + $0x58] sm:$0xff]
  %v3991 = vld [vmem:[%s3978 + $0x60] sm:$0xff]
  %v3992 = vld [vmem:[%s3978 + $0x68] sm:$0xff]
  %v3993 = vld [vmem:[%s3978 + $0x70] sm:$0xff]
  %v3994 = vld [vmem:[%s3978 + $0x78] sm:$0xff]
  %v3995 = vld [vmem:[%s3978 + $0x80] sm:$0xff]
  %v3996 = vld [vmem:[%s3978 + $0x88] sm:$0xff]
  %v3997 = vld [vmem:[%s3978 + $0x90] sm:$0xff]
  %v3998 = vld [vmem:[%s3978 + $0x98] sm:$0xff]
  %v3999 = vld [vmem:[%s3978 + $0xa0] sm:$0xff]
  %v4000 = vld [vmem:[%s3978 + $0xa8] sm:$0xff]
  %v4001 = vld [vmem:[%s3978 + $0xb0] sm:$0xff]
  %v4002 = vld [vmem:[%s3978 + $0xb8] sm:$0xff]
  %v4003 = vld [vmem:[%s3978 + $0xc0] sm:$0xff]
  %v4004 = vld [vmem:[%s3978 + $0xc8] sm:$0xff]
  %v4005 = vld [vmem:[%s3978 + $0xd0] sm:$0xff]
  %v4006 = vld [vmem:[%s3978 + $0xd8] sm:$0xff]
  %v4007 = vld [vmem:[%s3978 + $0xe0] sm:$0xff]
  %v4008 = vld [vmem:[%s3978 + $0xe8] sm:$0xff]
  %v4009 = vld [vmem:[%s3978 + $0xf0] sm:$0xff]
  %v4010 = vld [vmem:[%s3978 + $0xf8] sm:$0xff]
  %v4011 = vld [vmem:[%s3978 + $0x100] sm:$0xff]
  %v4012 = vld [vmem:[%s3978 + $0x108] sm:$0xff]
  %v4013 = vld [vmem:[%s3978 + $0x110] sm:$0xff]
  %v4014 = vld [vmem:[%s3978 + $0x118] sm:$0xff]
  %v4015 = vld [vmem:[%s3978 + $0x120] sm:$0xff]
  %v4016 = vld [vmem:[%s3978 + $0x128] sm:$0xff]
  %v4017 = vld [vmem:[%s3978 + $0x130] sm:$0xff]
  %v4018 = vld [vmem:[%s3978 + $0x138] sm:$0xff]
  %v4019 = vld [vmem:[%s3978 + $0x140] sm:$0xff]
  %v4020 = vld [vmem:[%s3978 + $0x148] sm:$0xff]
  %v4021 = vld [vmem:[%s3978 + $0x150] sm:$0xff]
  %v4022 = vld [vmem:[%s3978 + $0x158] sm:$0xff]
  %v4023 = vld [vmem:[%s3978 + $0x160] sm:$0xff]
  %v4024 = vld [vmem:[%s3978 + $0x168] sm:$0xff]
  %v4025 = vld [vmem:[%s3978 + $0x170] sm:$0xff]
  %v4026 = vld [vmem:[%s3978 + $0x178] sm:$0xff]
  %v4027 = vld [vmem:[%s3978 + $0x180] sm:$0xff]
  %v4028 = vld [vmem:[%s3978 + $0x188] sm:$0xff]
  %v4029 = vld [vmem:[%s3978 + $0x190] sm:$0xff]
  %v4030 = vld [vmem:[%s3978 + $0x198] sm:$0xff]
  %v4031 = vld [vmem:[%s3978 + $0x1a0] sm:$0xff]
  %v4032 = vld [vmem:[%s3978 + $0x1a8] sm:$0xff]
  %v4033 = vld [vmem:[%s3978 + $0x1b0] sm:$0xff]
  %v4034 = vld [vmem:[%s3978 + $0x1b8] sm:$0xff]
  %v4035 = vld [vmem:[%s3978 + $0x1c0] sm:$0xff]
  %v4036 = vld [vmem:[%s3978 + $0x1c8] sm:$0xff]
  %v4037 = vld [vmem:[%s3978 + $0x1d0] sm:$0xff]
  %v4038 = vld [vmem:[%s3978 + $0x1d8] sm:$0xff]
  %v4039 = vld [vmem:[%s3978 + $0x1e0] sm:$0xff]
  %v4040 = vld [vmem:[%s3978 + $0x1e8] sm:$0xff]
  %v4041 = vld [vmem:[%s3978 + $0x1f0] sm:$0xff]
  %v4042 = vld [vmem:[%s3978 + $0x1f8] sm:$0xff]
  %4043 = vmatprep.subr.mxu0 %v3980
  %4044 = vmatpush1.msra.mxu0 %v3979
  %4045 = vmatprep.subr.mxu0 %v3982
  %4046 = vmatpush1.msra.mxu0 %v3981
  %4047 = vmatprep.subr.mxu0 %v3984
  %4048 = vmatpush1.msra.mxu0 %v3983
  %4049 = vmatprep.subr.mxu0 %v3986
  %4050 = vmatpush1.msra.mxu0 %v3985
  %4051 = vmatprep.subr.mxu0 %v3988
  %4052 = vmatpush1.msra.mxu0 %v3987
  %4053 = vmatprep.subr.mxu0 %v3990
  %4054 = vmatpush1.msra.mxu0 %v3989
  %4055 = vmatprep.subr.mxu0 %v3992
  %4056 = vmatpush1.msra.mxu0 %v3991
  %4057 = vmatprep.subr.mxu0 %v3994
  %4058 = vmatpush1.msra.mxu0 %v3993
  %4059 = vmatprep.subr.mxu0 %v3996
  %4060 = vmatpush1.msra.mxu0 %v3995
  %4061 = vmatprep.subr.mxu0 %v3998
  %4062 = vmatpush1.msra.mxu0 %v3997
  %4063 = vmatprep.subr.mxu0 %v4000
  %4064 = vmatpush1.msra.mxu0 %v3999
  %4065 = vmatprep.subr.mxu0 %v4002
  %4066 = vmatpush1.msra.mxu0 %v4001
  %4067 = vmatprep.subr.mxu0 %v4004
  %4068 = vmatpush1.msra.mxu0 %v4003
  %4069 = vmatprep.subr.mxu0 %v4006
  %4070 = vmatpush1.msra.mxu0 %v4005
  %4071 = vmatprep.subr.mxu0 %v4008
  %4072 = vmatpush1.msra.mxu0 %v4007
  %4073 = vmatprep.subr.mxu0 %v4010
  %4074 = vmatpush1.msra.mxu0 %v4009
  %4075 = vmatprep.subr.mxu0 %v4012
  %4076 = vmatpush1.msra.mxu0 %v4011
  %4077 = vmatprep.subr.mxu0 %v4014
  %4078 = vmatpush1.msra.mxu0 %v4013
  %4079 = vmatprep.subr.mxu0 %v4016
  %4080 = vmatpush1.msra.mxu0 %v4015
  %4081 = vmatprep.subr.mxu0 %v4018
  %4082 = vmatpush1.msra.mxu0 %v4017
  %4083 = vmatprep.subr.mxu0 %v4020
  %4084 = vmatpush1.msra.mxu0 %v4019
  %4085 = vmatprep.subr.mxu0 %v4022
  %4086 = vmatpush1.msra.mxu0 %v4021
  %4087 = vmatprep.subr.mxu0 %v4024
  %4088 = vmatpush1.msra.mxu0 %v4023
  %4089 = vmatprep.subr.mxu0 %v4026
  %4090 = vmatpush1.msra.mxu0 %v4025
  %4091 = vmatprep.subr.mxu0 %v4028
  %4092 = vmatpush1.msra.mxu0 %v4027
  %4093 = vmatprep.subr.mxu0 %v4030
  %4094 = vmatpush1.msra.mxu0 %v4029
  %4095 = vmatprep.subr.mxu0 %v4032
  %4096 = vmatpush1.msra.mxu0 %v4031
  %4097 = vmatprep.subr.mxu0 %v4034
  %4098 = vmatpush1.msra.mxu0 %v4033
  %4099 = vmatprep.subr.mxu0 %v4036
  %4100 = vmatpush1.msra.mxu0 %v4035
  %4101 = vmatprep.subr.mxu0 %v4038
  %4102 = vmatpush1.msra.mxu0 %v4037
  %4103 = vmatprep.subr.mxu0 %v4040
  %4104 = vmatpush1.msra.mxu0 %v4039
  %4105 = vmatprep.subr.mxu0 %v4042
  %4106 = vmatpush1.msra.mxu0 %v4041
  %4107 = vmatprep.mubr.f32.mxu0 %v3975
  %4108 = vmatmul.mubr.f32.gmra.mrb[0].mxu0 %v3974
  %v4109 = vpop.f32.mrb[0].mxu0
  %v4110 = vadd.f32 0.0, %v4109
  %v4111 = vpop.f32.mrb[0].mxu0
  %v4112 = vadd.f32 0.0, %v4111
  %4113 = vmatprep.mubr.f32.mxu0 %v3973
  %4114 = vmatmul.mubr.f32.gmra.mrb[0].mxu0 %v3972
  %v4115 = vpop.f32.mrb[0].mxu0
  %v4116 = vadd.f32 0.0, %v4115
  %v4117 = vpop.f32.mrb[0].mxu0
  %v4118 = vadd.f32 0.0, %v4117
  %4119 = vmatprep.mubr.f32.mxu0 %v3971
  %4120 = vmatmul.mubr.f32.gmra.mrb[0].mxu0 %v3970
  %v4121 = vpop.f32.mrb[0].mxu0
  %v4122 = vadd.f32 0.0, %v4121
  %v4123 = vpop.f32.mrb[0].mxu0
  %v4124 = vadd.f32 0.0, %v4123
  %4125 = vmatprep.mubr.f32.mxu0 %v3969
  %4126 = vmatmul.mubr.f32.gmra.mrb[0].mxu0 %v3968
  %v4127 = vpop.f32.mrb[0].mxu0
  %v4128 = vadd.f32 0.0, %v4127
  %v4129 = vpop.f32.mrb[0].mxu0
  %v4130 = vadd.f32 0.0, %v4129
  %4131 = vmatprep.mubr.f32.mxu0 %v3967
  %4132 = vmatmul.mubr.f32.gmra.mrb[0].mxu0 %v3966
  %v4133 = vpop.f32.mrb[0].mxu0
  %v4134 = vadd.f32 0.0, %v4133
  %v4135 = vpop.f32.mrb[0].mxu0
  %v4136 = vadd.f32 0.0, %v4135
  %4137 = vmatprep.mubr.f32.mxu0 %v3965
  %4138 = vmatmul.mubr.f32.gmra.mrb[0].mxu0 %v3964
  %v4139 = vpop.f32.mrb[0].mxu0
  %v4140 = vadd.f32 0.0, %v4139
  %v4141 = vpop.f32.mrb[0].mxu0
  %v4142 = vadd.f32 0.0, %v4141
  %4143 = vmatprep.mubr.f32.mxu0 %v3963
  %4144 = vmatmul.mubr.f32.gmra.mrb[0].mxu0 %v3962
  %v4145 = vpop.f32.mrb[0].mxu0
  %v4146 = vadd.f32 0.0, %v4145
  %v4147 = vpop.f32.mrb[0].mxu0
  %v4148 = vadd.f32 0.0, %v4147
  %4149 = vmatprep.mubr.f32.mxu0 %v3961
  %4150 = vmatmul.mubr.f32.gmra.mrb[0].mxu0 %v3960
  %v4151 = vpop.f32.mrb[0].mxu0
  %v4152 = vadd.f32 0.0, %v4151
  %v4153 = vpop.f32.mrb[0].mxu0
  %v4154 = vadd.f32 0.0, %v4153
  %4155 = vmatprep.mubr.f32.mxu0 %v3959
  %4156 = vmatmul.mubr.f32.gmra.mrb[0].mxu0 %v3958
  %v4157 = vpop.f32.mrb[0].mxu0
  %v4158 = vadd.f32 0.0, %v4157
  %v4159 = vpop.f32.mrb[0].mxu0
  %v4160 = vadd.f32 0.0, %v4159
  %4161 = vmatprep.mubr.f32.mxu0 %v3957
  %4162 = vmatmul.mubr.f32.gmra.mrb[0].mxu0 %v3956
  %v4163 = vpop.f32.mrb[0].mxu0
  %v4164 = vadd.f32 0.0, %v4163
  %v4165 = vpop.f32.mrb[0].mxu0
  %v4166 = vadd.f32 0.0, %v4165
  %4167 = vmatprep.mubr.f32.mxu0 %v3955
  %4168 = vmatmul.mubr.f32.gmra.mrb[0].mxu0 %v3954
  %v4169 = vpop.f32.mrb[0].mxu0
  %v4170 = vadd.f32 0.0, %v4169
  %v4171 = vpop.f32.mrb[0].mxu0
  %v4172 = vadd.f32 0.0, %v4171
  %4173 = vmatprep.mubr.f32.mxu0 %v3953
  %4174 = vmatmul.mubr.f32.gmra.mrb[0].mxu0 %v3952
  %v4175 = vpop.f32.mrb[0].mxu0
  %v4176 = vadd.f32 0.0, %v4175
  %v4177 = vpop.f32.mrb[0].mxu0
  %v4178 = vadd.f32 0.0, %v4177
  %4179 = vmatprep.mubr.f32.mxu0 %v3951
  %4180 = vmatmul.mubr.f32.gmra.mrb[0].mxu0 %v3950
  %v4181 = vpop.f32.mrb[0].mxu0
  %v4182 = vadd.f32 0.0, %v4181
  %v4183 = vpop.f32.mrb[0].mxu0
  %v4184 = vadd.f32 0.0, %v4183
  %4185 = vmatprep.mubr.f32.mxu0 %v3949
  %4186 = vmatmul.mubr.f32.gmra.mrb[0].mxu0 %v3948
  %v4187 = vpop.f32.mrb[0].mxu0
  %v4188 = vadd.f32 0.0, %v4187
  %v4189 = vpop.f32.mrb[0].mxu0
  %v4190 = vadd.f32 0.0, %v4189
  %4191 = vmatprep.mubr.f32.mxu0 %v3947
  %4192 = vmatmul.mubr.f32.gmra.mrb[0].mxu0 %v3946
  %v4193 = vpop.f32.mrb[0].mxu0
  %v4194 = vadd.f32 0.0, %v4193
  %v4195 = vpop.f32.mrb[0].mxu0
  %v4196 = vadd.f32 0.0, %v4195
  %4197 = vmatprep.mubr.f32.mxu0 %v3945
  %4198 = vmatmul.mubr.f32.gmra.mrb[0].mxu0 %v3944
  %v4199 = vpop.f32.mrb[0].mxu0
  %v4200 = vadd.f32 0.0, %v4199
  %v4201 = vpop.f32.mrb[0].mxu0
  %v4202 = vadd.f32 0.0, %v4201
  %4203 = vmatprep.mubr.f32.mxu0 %v3943
  %4204 = vmatmul.mubr.f32.gmra.mrb[0].mxu0 %v3942
  %v4205 = vpop.f32.mrb[0].mxu0
  %v4206 = vadd.f32 0.0, %v4205
  %v4207 = vpop.f32.mrb[0].mxu0
  %v4208 = vadd.f32 0.0, %v4207
  %4209 = vmatprep.mubr.f32.mxu0 %v3941
  %4210 = vmatmul.mubr.f32.gmra.mrb[0].mxu0 %v3940
  %v4211 = vpop.f32.mrb[0].mxu0
  %v4212 = vadd.f32 0.0, %v4211
  %v4213 = vpop.f32.mrb[0].mxu0
  %v4214 = vadd.f32 0.0, %v4213
  %4215 = vmatprep.mubr.f32.mxu0 %v3939
  %4216 = vmatmul.mubr.f32.gmra.mrb[0].mxu0 %v3938
  %v4217 = vpop.f32.mrb[0].mxu0
  %v4218 = vadd.f32 0.0, %v4217
  %v4219 = vpop.f32.mrb[0].mxu0
  %v4220 = vadd.f32 0.0, %v4219
  %4221 = vmatprep.mubr.f32.mxu0 %v3937
  %4222 = vmatmul.mubr.f32.gmra.mrb[0].mxu0 %v3936
  %v4223 = vpop.f32.mrb[0].mxu0
  %v4224 = vadd.f32 0.0, %v4223
  %v4225 = vpop.f32.mrb[0].mxu0
  %v4226 = vadd.f32 0.0, %v4225
  %4227 = vmatprep.mubr.f32.mxu0 %v3935
  %4228 = vmatmul.mubr.f32.gmra.mrb[0].mxu0 %v3934
  %v4229 = vpop.f32.mrb[0].mxu0
  %v4230 = vadd.f32 0.0, %v4229
  %v4231 = vpop.f32.mrb[0].mxu0
  %v4232 = vadd.f32 0.0, %v4231
  %4233 = vmatprep.mubr.f32.mxu0 %v3933
  %4234 = vmatmul.mubr.f32.gmra.mrb[0].mxu0 %v3932
  %v4235 = vpop.f32.mrb[0].mxu0
  %v4236 = vadd.f32 0.0, %v4235
  %v4237 = vpop.f32.mrb[0].mxu0
  %v4238 = vadd.f32 0.0, %v4237
  %4239 = vmatprep.mubr.f32.mxu0 %v3931
  %4240 = vmatmul.mubr.f32.gmra.mrb[0].mxu0 %v3930
  %v4241 = vpop.f32.mrb[0].mxu0
  %v4242 = vadd.f32 0.0, %v4241
  %v4243 = vpop.f32.mrb[0].mxu0
  %v4244 = vadd.f32 0.0, %v4243
  %4245 = vmatprep.mubr.f32.mxu0 %v3929
  %4246 = vmatmul.mubr.f32.gmra.mrb[0].mxu0 %v3928
  %v4247 = vpop.f32.mrb[0].mxu0
  %v4248 = vadd.f32 0.0, %v4247
  %v4249 = vpop.f32.mrb[0].mxu0
  %v4250 = vadd.f32 0.0, %v4249
  %4251 = vmatprep.mubr.f32.mxu0 %v3927
  %4252 = vmatmul.mubr.f32.gmra.mrb[0].mxu0 %v3926
  %v4253 = vpop.f32.mrb[0].mxu0
  %v4254 = vadd.f32 0.0, %v4253
  %v4255 = vpop.f32.mrb[0].mxu0
  %v4256 = vadd.f32 0.0, %v4255
  %4257 = vmatprep.mubr.f32.mxu0 %v3925
  %4258 = vmatmul.mubr.f32.gmra.mrb[0].mxu0 %v3924
  %v4259 = vpop.f32.mrb[0].mxu0
  %v4260 = vadd.f32 0.0, %v4259
  %v4261 = vpop.f32.mrb[0].mxu0
  %v4262 = vadd.f32 0.0, %v4261
  %4263 = vmatprep.mubr.f32.mxu0 %v3923
  %4264 = vmatmul.mubr.f32.gmra.mrb[0].mxu0 %v3922
  %v4265 = vpop.f32.mrb[0].mxu0
  %v4266 = vadd.f32 0.0, %v4265
  %v4267 = vpop.f32.mrb[0].mxu0
  %v4268 = vadd.f32 0.0, %v4267
  %4269 = vmatprep.mubr.f32.mxu0 %v3921
  %4270 = vmatmul.mubr.f32.gmra.mrb[0].mxu0 %v3920
  %v4271 = vpop.f32.mrb[0].mxu0
  %v4272 = vadd.f32 0.0, %v4271
  %v4273 = vpop.f32.mrb[0].mxu0
  %v4274 = vadd.f32 0.0, %v4273
  %4275 = vmatprep.mubr.f32.mxu0 %v3919
  %4276 = vmatmul.mubr.f32.gmra.mrb[0].mxu0 %v3918
  %v4277 = vpop.f32.mrb[0].mxu0
  %v4278 = vadd.f32 0.0, %v4277
  %v4279 = vpop.f32.mrb[0].mxu0
  %v4280 = vadd.f32 0.0, %v4279
  %4281 = vmatprep.mubr.f32.mxu0 %v3917
  %4282 = vmatmul.mubr.f32.gmra.mrb[0].mxu0 %v3916
  %v4283 = vpop.f32.mrb[0].mxu0
  %v4284 = vadd.f32 0.0, %v4283
  %v4285 = vpop.f32.mrb[0].mxu0
  %v4286 = vadd.f32 0.0, %v4285
  %4287 = vmatprep.mubr.f32.mxu0 %v3915
  %4288 = vmatmul.mubr.f32.gmra.mrb[0].mxu0 %v3914
  %v4289 = vpop.f32.mrb[0].mxu0
  %v4290 = vadd.f32 0.0, %v4289
  %v4291 = vpop.f32.mrb[0].mxu0
  %v4292 = vadd.f32 0.0, %v4291
  %4293 = vmatprep.mubr.f32.mxu0 %v3977
  %4294 = vmatmul.mubr.f32.gmra.mrb[0].mxu0 %v3976
  %v4295 = vpop.f32.mrb[0].mxu0
  %v4296 = vadd.f32 0.0, %v4295
  %v4297 = vpop.f32.mrb[0].mxu0
  %v4298 = vadd.f32 0.0, %v4297
  %4299 = vdwg.mxu0
  %v4300 = vadd.f32 %v3785, %v4110
  %v4301 = vadd.f32 %v3786, %v4112
  %v4302 = vadd.f32 %v3787, %v4116
  %v4303 = vadd.f32 %v3788, %v4118
  %v4304 = vadd.f32 %v3789, %v4122
  %v4305 = vadd.f32 %v3790, %v4124
  %v4306 = vadd.f32 %v3791, %v4128
  %v4307 = vadd.f32 %v3792, %v4130
  %v4308 = vadd.f32 %v3793, %v4134
  %v4309 = vadd.f32 %v3794, %v4136
  %v4310 = vadd.f32 %v3795, %v4140
  %v4311 = vadd.f32 %v3796, %v4142
  %v4312 = vadd.f32 %v3797, %v4146
  %v4313 = vadd.f32 %v3798, %v4148
  %v4314 = vadd.f32 %v3799, %v4152
  %v4315 = vadd.f32 %v3800, %v4154
  %v4316 = vadd.f32 %v3801, %v4158
  %v4317 = vadd.f32 %v3802, %v4160
  %v4318 = vadd.f32 %v3803, %v4164
  %v4319 = vadd.f32 %v3804, %v4166
  %v4320 = vadd.f32 %v3805, %v4170
  %v4321 = vadd.f32 %v3806, %v4172
  %v4322 = vadd.f32 %v3807, %v4176
  %v4323 = vadd.f32 %v3808, %v4178
  %v4324 = vadd.f32 %v3809, %v4182
  %v4325 = vadd.f32 %v3810, %v4184
  %v4326 = vadd.f32 %v3811, %v4188
  %v4327 = vadd.f32 %v3812, %v4190
  %v4328 = vadd.f32 %v3813, %v4194
  %v4329 = vadd.f32 %v3814, %v4196
  %v4330 = vadd.f32 %v3815, %v4200
  %v4331 = vadd.f32 %v3816, %v4202
  %v4332 = vadd.f32 %v3817, %v4206
  %v4333 = vadd.f32 %v3818, %v4208
  %v4334 = vadd.f32 %v3819, %v4212
  %v4335 = vadd.f32 %v3820, %v4214
  %v4336 = vadd.f32 %v3821, %v4218
  %v4337 = vadd.f32 %v3822, %v4220
  %v4338 = vadd.f32 %v3823, %v4224
  %v4339 = vadd.f32 %v3824, %v4226
  %v4340 = vadd.f32 %v3825, %v4230
  %v4341 = vadd.f32 %v3826, %v4232
  %v4342 = vadd.f32 %v3827, %v4236
  %v4343 = vadd.f32 %v3828, %v4238
  %v4344 = vadd.f32 %v3829, %v4242
  %v4345 = vadd.f32 %v3830, %v4244
  %v4346 = vadd.f32 %v3831, %v4248
  %v4347 = vadd.f32 %v3832, %v4250
  %v4348 = vadd.f32 %v3833, %v4254
  %v4349 = vadd.f32 %v3834, %v4256
  %v4350 = vadd.f32 %v3835, %v4260
  %v4351 = vadd.f32 %v3836, %v4262
  %v4352 = vadd.f32 %v3837, %v4266
  %v4353 = vadd.f32 %v3838, %v4268
  %v4354 = vadd.f32 %v3839, %v4272
  %v4355 = vadd.f32 %v3840, %v4274
  %v4356 = vadd.f32 %v3841, %v4278
  %v4357 = vadd.f32 %v3842, %v4280
  %v4358 = vadd.f32 %v3843, %v4284
  %v4359 = vadd.f32 %v3844, %v4286
  %v4360 = vadd.f32 %v3845, %v4290
  %v4361 = vadd.f32 %v3846, %v4292
  %v4362 = vadd.f32 %v3847, %v4296
  %v4363 = vadd.f32 %v3848, %v4298
  %s4364 = scalar_lea.vmem %s3, 2048
  %v4365 = vld [vmem:[%s4364] sm:$0xff]
  %v4366 = vld [vmem:[%s4364 + $0x8] sm:$0xff]
  %v4367 = vld [vmem:[%s4364 + $0x10] sm:$0xff]
  %v4368 = vld [vmem:[%s4364 + $0x18] sm:$0xff]
  %v4369 = vld [vmem:[%s4364 + $0x20] sm:$0xff]
  %v4370 = vld [vmem:[%s4364 + $0x28] sm:$0xff]
  %v4371 = vld [vmem:[%s4364 + $0x30] sm:$0xff]
  %v4372 = vld [vmem:[%s4364 + $0x38] sm:$0xff]
  %v4373 = vld [vmem:[%s4364 + $0x40] sm:$0xff]
  %v4374 = vld [vmem:[%s4364 + $0x48] sm:$0xff]
  %v4375 = vld [vmem:[%s4364 + $0x50] sm:$0xff]
  %v4376 = vld [vmem:[%s4364 + $0x58] sm:$0xff]
  %v4377 = vld [vmem:[%s4364 + $0x60] sm:$0xff]
  %v4378 = vld [vmem:[%s4364 + $0x68] sm:$0xff]
  %v4379 = vld [vmem:[%s4364 + $0x70] sm:$0xff]
  %v4380 = vld [vmem:[%s4364 + $0x78] sm:$0xff]
  %v4381 = vld [vmem:[%s4364 + $0x80] sm:$0xff]
  %v4382 = vld [vmem:[%s4364 + $0x88] sm:$0xff]
  %v4383 = vld [vmem:[%s4364 + $0x90] sm:$0xff]
  %v4384 = vld [vmem:[%s4364 + $0x98] sm:$0xff]
  %v4385 = vld [vmem:[%s4364 + $0xa0] sm:$0xff]
  %v4386 = vld [vmem:[%s4364 + $0xa8] sm:$0xff]
  %v4387 = vld [vmem:[%s4364 + $0xb0] sm:$0xff]
  %v4388 = vld [vmem:[%s4364 + $0xb8] sm:$0xff]
  %v4389 = vld [vmem:[%s4364 + $0xc0] sm:$0xff]
  %v4390 = vld [vmem:[%s4364 + $0xc8] sm:$0xff]
  %v4391 = vld [vmem:[%s4364 + $0xd0] sm:$0xff]
  %v4392 = vld [vmem:[%s4364 + $0xd8] sm:$0xff]
  %v4393 = vld [vmem:[%s4364 + $0xe0] sm:$0xff]
  %v4394 = vld [vmem:[%s4364 + $0xe8] sm:$0xff]
  %v4395 = vld [vmem:[%s4364 + $0xf0] sm:$0xff]
  %v4396 = vld [vmem:[%s4364 + $0xf8] sm:$0xff]
  %v4397 = vld [vmem:[%s4364 + $0x100] sm:$0xff]
  %v4398 = vld [vmem:[%s4364 + $0x108] sm:$0xff]
  %v4399 = vld [vmem:[%s4364 + $0x110] sm:$0xff]
  %v4400 = vld [vmem:[%s4364 + $0x118] sm:$0xff]
  %v4401 = vld [vmem:[%s4364 + $0x120] sm:$0xff]
  %v4402 = vld [vmem:[%s4364 + $0x128] sm:$0xff]
  %v4403 = vld [vmem:[%s4364 + $0x130] sm:$0xff]
  %v4404 = vld [vmem:[%s4364 + $0x138] sm:$0xff]
  %v4405 = vld [vmem:[%s4364 + $0x140] sm:$0xff]
  %v4406 = vld [vmem:[%s4364 + $0x148] sm:$0xff]
  %v4407 = vld [vmem:[%s4364 + $0x150] sm:$0xff]
  %v4408 = vld [vmem:[%s4364 + $0x158] sm:$0xff]
  %v4409 = vld [vmem:[%s4364 + $0x160] sm:$0xff]
  %v4410 = vld [vmem:[%s4364 + $0x168] sm:$0xff]
  %v4411 = vld [vmem:[%s4364 + $0x170] sm:$0xff]
  %v4412 = vld [vmem:[%s4364 + $0x178] sm:$0xff]
  %v4413 = vld [vmem:[%s4364 + $0x180] sm:$0xff]
  %v4414 = vld [vmem:[%s4364 + $0x188] sm:$0xff]
  %v4415 = vld [vmem:[%s4364 + $0x190] sm:$0xff]
  %v4416 = vld [vmem:[%s4364 + $0x198] sm:$0xff]
  %v4417 = vld [vmem:[%s4364 + $0x1a0] sm:$0xff]
  %v4418 = vld [vmem:[%s4364 + $0x1a8] sm:$0xff]
  %v4419 = vld [vmem:[%s4364 + $0x1b0] sm:$0xff]
  %v4420 = vld [vmem:[%s4364 + $0x1b8] sm:$0xff]
  %v4421 = vld [vmem:[%s4364 + $0x1c0] sm:$0xff]
  %v4422 = vld [vmem:[%s4364 + $0x1c8] sm:$0xff]
  %v4423 = vld [vmem:[%s4364 + $0x1d0] sm:$0xff]
  %v4424 = vld [vmem:[%s4364 + $0x1d8] sm:$0xff]
  %v4425 = vld [vmem:[%s4364 + $0x1e0] sm:$0xff]
  %v4426 = vld [vmem:[%s4364 + $0x1e8] sm:$0xff]
  %v4427 = vld [vmem:[%s4364 + $0x1f0] sm:$0xff]
  %v4428 = vld [vmem:[%s4364 + $0x1f8] sm:$0xff]
  %4429 = vmatprep.subr.mxu0 %v4366
  %4430 = vmatpush1.msra.mxu0 %v4365
  %4431 = vmatprep.subr.mxu0 %v4368
  %4432 = vmatpush1.msra.mxu0 %v4367
  %4433 = vmatprep.subr.mxu0 %v4370
  %4434 = vmatpush1.msra.mxu0 %v4369
  %4435 = vmatprep.subr.mxu0 %v4372
  %4436 = vmatpush1.msra.mxu0 %v4371
  %4437 = vmatprep.subr.mxu0 %v4374
  %4438 = vmatpush1.msra.mxu0 %v4373
  %4439 = vmatprep.subr.mxu0 %v4376
  %4440 = vmatpush1.msra.mxu0 %v4375
  %4441 = vmatprep.subr.mxu0 %v4378
  %4442 = vmatpush1.msra.mxu0 %v4377
  %4443 = vmatprep.subr.mxu0 %v4380
  %4444 = vmatpush1.msra.mxu0 %v4379
  %4445 = vmatprep.subr.mxu0 %v4382
  %4446 = vmatpush1.msra.mxu0 %v4381
  %4447 = vmatprep.subr.mxu0 %v4384
  %4448 = vmatpush1.msra.mxu0 %v4383
  %4449 = vmatprep.subr.mxu0 %v4386
  %4450 = vmatpush1.msra.mxu0 %v4385
  %4451 = vmatprep.subr.mxu0 %v4388
  %4452 = vmatpush1.msra.mxu0 %v4387
  %4453 = vmatprep.subr.mxu0 %v4390
  %4454 = vmatpush1.msra.mxu0 %v4389
  %4455 = vmatprep.subr.mxu0 %v4392
  %4456 = vmatpush1.msra.mxu0 %v4391
  %4457 = vmatprep.subr.mxu0 %v4394
  %4458 = vmatpush1.msra.mxu0 %v4393
  %4459 = vmatprep.subr.mxu0 %v4396
  %4460 = vmatpush1.msra.mxu0 %v4395
  %4461 = vmatprep.subr.mxu0 %v4398
  %4462 = vmatpush1.msra.mxu0 %v4397
  %4463 = vmatprep.subr.mxu0 %v4400
  %4464 = vmatpush1.msra.mxu0 %v4399
  %4465 = vmatprep.subr.mxu0 %v4402
  %4466 = vmatpush1.msra.mxu0 %v4401
  %4467 = vmatprep.subr.mxu0 %v4404
  %4468 = vmatpush1.msra.mxu0 %v4403
  %4469 = vmatprep.subr.mxu0 %v4406
  %4470 = vmatpush1.msra.mxu0 %v4405
  %4471 = vmatprep.subr.mxu0 %v4408
  %4472 = vmatpush1.msra.mxu0 %v4407
  %4473 = vmatprep.subr.mxu0 %v4410
  %4474 = vmatpush1.msra.mxu0 %v4409
  %4475 = vmatprep.subr.mxu0 %v4412
  %4476 = vmatpush1.msra.mxu0 %v4411
  %4477 = vmatprep.subr.mxu0 %v4414
  %4478 = vmatpush1.msra.mxu0 %v4413
  %4479 = vmatprep.subr.mxu0 %v4416
  %4480 = vmatpush1.msra.mxu0 %v4415
  %4481 = vmatprep.subr.mxu0 %v4418
  %4482 = vmatpush1.msra.mxu0 %v4417
  %4483 = vmatprep.subr.mxu0 %v4420
  %4484 = vmatpush1.msra.mxu0 %v4419
  %4485 = vmatprep.subr.mxu0 %v4422
  %4486 = vmatpush1.msra.mxu0 %v4421
  %4487 = vmatprep.subr.mxu0 %v4424
  %4488 = vmatpush1.msra.mxu0 %v4423
  %4489 = vmatprep.subr.mxu0 %v4426
  %4490 = vmatpush1.msra.mxu0 %v4425
  %4491 = vmatprep.subr.mxu0 %v4428
  %4492 = vmatpush1.msra.mxu0 %v4427
  %4493 = vmatprep.mubr.f32.mxu0 %v2503
  %4494 = vmatmul.mubr.f32.gmra.mrb[0].mxu0 %v2502
  %v4495 = vpop.f32.mrb[0].mxu0
  %v4496 = vadd.f32 0.0, %v4495
  %v4497 = vpop.f32.mrb[0].mxu0
  %v4498 = vadd.f32 0.0, %v4497
  %4499 = vmatprep.mubr.f32.mxu0 %v2505
  %4500 = vmatmul.mubr.f32.gmra.mrb[0].mxu0 %v2504
  %v4501 = vpop.f32.mrb[0].mxu0
  %v4502 = vadd.f32 0.0, %v4501
  %v4503 = vpop.f32.mrb[0].mxu0
  %v4504 = vadd.f32 0.0, %v4503
  %4505 = vmatprep.mubr.f32.mxu0 %v2507
  %4506 = vmatmul.mubr.f32.gmra.mrb[0].mxu0 %v2506
  %v4507 = vpop.f32.mrb[0].mxu0
  %v4508 = vadd.f32 0.0, %v4507
  %v4509 = vpop.f32.mrb[0].mxu0
  %v4510 = vadd.f32 0.0, %v4509
  %4511 = vmatprep.mubr.f32.mxu0 %v2509
  %4512 = vmatmul.mubr.f32.gmra.mrb[0].mxu0 %v2508
  %v4513 = vpop.f32.mrb[0].mxu0
  %v4514 = vadd.f32 0.0, %v4513
  %v4515 = vpop.f32.mrb[0].mxu0
  %v4516 = vadd.f32 0.0, %v4515
  %4517 = vmatprep.mubr.f32.mxu0 %v2511
  %4518 = vmatmul.mubr.f32.gmra.mrb[0].mxu0 %v2510
  %v4519 = vpop.f32.mrb[0].mxu0
  %v4520 = vadd.f32 0.0, %v4519
  %v4521 = vpop.f32.mrb[0].mxu0
  %v4522 = vadd.f32 0.0, %v4521
  %4523 = vmatprep.mubr.f32.mxu0 %v2513
  %4524 = vmatmul.mubr.f32.gmra.mrb[0].mxu0 %v2512
  %v4525 = vpop.f32.mrb[0].mxu0
  %v4526 = vadd.f32 0.0, %v4525
  %v4527 = vpop.f32.mrb[0].mxu0
  %v4528 = vadd.f32 0.0, %v4527
  %4529 = vmatprep.mubr.f32.mxu0 %v2515
  %4530 = vmatmul.mubr.f32.gmra.mrb[0].mxu0 %v2514
  %v4531 = vpop.f32.mrb[0].mxu0
  %v4532 = vadd.f32 0.0, %v4531
  %v4533 = vpop.f32.mrb[0].mxu0
  %v4534 = vadd.f32 0.0, %v4533
  %4535 = vmatprep.mubr.f32.mxu0 %v2517
  %4536 = vmatmul.mubr.f32.gmra.mrb[0].mxu0 %v2516
  %v4537 = vpop.f32.mrb[0].mxu0
  %v4538 = vadd.f32 0.0, %v4537
  %v4539 = vpop.f32.mrb[0].mxu0
  %v4540 = vadd.f32 0.0, %v4539
  %4541 = vmatprep.mubr.f32.mxu0 %v2519
  %4542 = vmatmul.mubr.f32.gmra.mrb[0].mxu0 %v2518
  %v4543 = vpop.f32.mrb[0].mxu0
  %v4544 = vadd.f32 0.0, %v4543
  %v4545 = vpop.f32.mrb[0].mxu0
  %v4546 = vadd.f32 0.0, %v4545
  %4547 = vmatprep.mubr.f32.mxu0 %v2521
  %4548 = vmatmul.mubr.f32.gmra.mrb[0].mxu0 %v2520
  %v4549 = vpop.f32.mrb[0].mxu0
  %v4550 = vadd.f32 0.0, %v4549
  %v4551 = vpop.f32.mrb[0].mxu0
  %v4552 = vadd.f32 0.0, %v4551
  %4553 = vmatprep.mubr.f32.mxu0 %v2523
  %4554 = vmatmul.mubr.f32.gmra.mrb[0].mxu0 %v2522
  %v4555 = vpop.f32.mrb[0].mxu0
  %v4556 = vadd.f32 0.0, %v4555
  %v4557 = vpop.f32.mrb[0].mxu0
  %v4558 = vadd.f32 0.0, %v4557
  %4559 = vmatprep.mubr.f32.mxu0 %v2525
  %4560 = vmatmul.mubr.f32.gmra.mrb[0].mxu0 %v2524
  %v4561 = vpop.f32.mrb[0].mxu0
  %v4562 = vadd.f32 0.0, %v4561
  %v4563 = vpop.f32.mrb[0].mxu0
  %v4564 = vadd.f32 0.0, %v4563
  %4565 = vmatprep.mubr.f32.mxu0 %v2527
  %4566 = vmatmul.mubr.f32.gmra.mrb[0].mxu0 %v2526
  %v4567 = vpop.f32.mrb[0].mxu0
  %v4568 = vadd.f32 0.0, %v4567
  %v4569 = vpop.f32.mrb[0].mxu0
  %v4570 = vadd.f32 0.0, %v4569
  %4571 = vmatprep.mubr.f32.mxu0 %v2529
  %4572 = vmatmul.mubr.f32.gmra.mrb[0].mxu0 %v2528
  %v4573 = vpop.f32.mrb[0].mxu0
  %v4574 = vadd.f32 0.0, %v4573
  %v4575 = vpop.f32.mrb[0].mxu0
  %v4576 = vadd.f32 0.0, %v4575
  %4577 = vmatprep.mubr.f32.mxu0 %v2531
  %4578 = vmatmul.mubr.f32.gmra.mrb[0].mxu0 %v2530
  %v4579 = vpop.f32.mrb[0].mxu0
  %v4580 = vadd.f32 0.0, %v4579
  %v4581 = vpop.f32.mrb[0].mxu0
  %v4582 = vadd.f32 0.0, %v4581
  %4583 = vmatprep.mubr.f32.mxu0 %v2533
  %4584 = vmatmul.mubr.f32.gmra.mrb[0].mxu0 %v2532
  %v4585 = vpop.f32.mrb[0].mxu0
  %v4586 = vadd.f32 0.0, %v4585
  %v4587 = vpop.f32.mrb[0].mxu0
  %v4588 = vadd.f32 0.0, %v4587
  %4589 = vmatprep.mubr.f32.mxu0 %v2535
  %4590 = vmatmul.mubr.f32.gmra.mrb[0].mxu0 %v2534
  %v4591 = vpop.f32.mrb[0].mxu0
  %v4592 = vadd.f32 0.0, %v4591
  %v4593 = vpop.f32.mrb[0].mxu0
  %v4594 = vadd.f32 0.0, %v4593
  %4595 = vmatprep.mubr.f32.mxu0 %v2537
  %4596 = vmatmul.mubr.f32.gmra.mrb[0].mxu0 %v2536
  %v4597 = vpop.f32.mrb[0].mxu0
  %v4598 = vadd.f32 0.0, %v4597
  %v4599 = vpop.f32.mrb[0].mxu0
  %v4600 = vadd.f32 0.0, %v4599
  %4601 = vmatprep.mubr.f32.mxu0 %v2539
  %4602 = vmatmul.mubr.f32.gmra.mrb[0].mxu0 %v2538
  %v4603 = vpop.f32.mrb[0].mxu0
  %v4604 = vadd.f32 0.0, %v4603
  %v4605 = vpop.f32.mrb[0].mxu0
  %v4606 = vadd.f32 0.0, %v4605
  %4607 = vmatprep.mubr.f32.mxu0 %v2541
  %4608 = vmatmul.mubr.f32.gmra.mrb[0].mxu0 %v2540
  %v4609 = vpop.f32.mrb[0].mxu0
  %v4610 = vadd.f32 0.0, %v4609
  %v4611 = vpop.f32.mrb[0].mxu0
  %v4612 = vadd.f32 0.0, %v4611
  %4613 = vmatprep.mubr.f32.mxu0 %v2543
  %4614 = vmatmul.mubr.f32.gmra.mrb[0].mxu0 %v2542
  %v4615 = vpop.f32.mrb[0].mxu0
  %v4616 = vadd.f32 0.0, %v4615
  %v4617 = vpop.f32.mrb[0].mxu0
  %v4618 = vadd.f32 0.0, %v4617
  %4619 = vmatprep.mubr.f32.mxu0 %v2545
  %4620 = vmatmul.mubr.f32.gmra.mrb[0].mxu0 %v2544
  %v4621 = vpop.f32.mrb[0].mxu0
  %v4622 = vadd.f32 0.0, %v4621
  %v4623 = vpop.f32.mrb[0].mxu0
  %v4624 = vadd.f32 0.0, %v4623
  %4625 = vmatprep.mubr.f32.mxu0 %v2547
  %4626 = vmatmul.mubr.f32.gmra.mrb[0].mxu0 %v2546
  %v4627 = vpop.f32.mrb[0].mxu0
  %v4628 = vadd.f32 0.0, %v4627
  %v4629 = vpop.f32.mrb[0].mxu0
  %v4630 = vadd.f32 0.0, %v4629
  %4631 = vmatprep.mubr.f32.mxu0 %v2549
  %4632 = vmatmul.mubr.f32.gmra.mrb[0].mxu0 %v2548
  %v4633 = vpop.f32.mrb[0].mxu0
  %v4634 = vadd.f32 0.0, %v4633
  %v4635 = vpop.f32.mrb[0].mxu0
  %v4636 = vadd.f32 0.0, %v4635
  %4637 = vmatprep.mubr.f32.mxu0 %v2551
  %4638 = vmatmul.mubr.f32.gmra.mrb[0].mxu0 %v2550
  %v4639 = vpop.f32.mrb[0].mxu0
  %v4640 = vadd.f32 0.0, %v4639
  %v4641 = vpop.f32.mrb[0].mxu0
  %v4642 = vadd.f32 0.0, %v4641
  %4643 = vmatprep.mubr.f32.mxu0 %v2553
  %4644 = vmatmul.mubr.f32.gmra.mrb[0].mxu0 %v2552
  %v4645 = vpop.f32.mrb[0].mxu0
  %v4646 = vadd.f32 0.0, %v4645
  %v4647 = vpop.f32.mrb[0].mxu0
  %v4648 = vadd.f32 0.0, %v4647
  %4649 = vmatprep.mubr.f32.mxu0 %v2555
  %4650 = vmatmul.mubr.f32.gmra.mrb[0].mxu0 %v2554
  %v4651 = vpop.f32.mrb[0].mxu0
  %v4652 = vadd.f32 0.0, %v4651
  %v4653 = vpop.f32.mrb[0].mxu0
  %v4654 = vadd.f32 0.0, %v4653
  %4655 = vmatprep.mubr.f32.mxu0 %v2557
  %4656 = vmatmul.mubr.f32.gmra.mrb[0].mxu0 %v2556
  %v4657 = vpop.f32.mrb[0].mxu0
  %v4658 = vadd.f32 0.0, %v4657
  %v4659 = vpop.f32.mrb[0].mxu0
  %v4660 = vadd.f32 0.0, %v4659
  %4661 = vmatprep.mubr.f32.mxu0 %v2559
  %4662 = vmatmul.mubr.f32.gmra.mrb[0].mxu0 %v2558
  %v4663 = vpop.f32.mrb[0].mxu0
  %v4664 = vadd.f32 0.0, %v4663
  %v4665 = vpop.f32.mrb[0].mxu0
  %v4666 = vadd.f32 0.0, %v4665
  %4667 = vmatprep.mubr.f32.mxu0 %v2561
  %4668 = vmatmul.mubr.f32.gmra.mrb[0].mxu0 %v2560
  %v4669 = vpop.f32.mrb[0].mxu0
  %v4670 = vadd.f32 0.0, %v4669
  %v4671 = vpop.f32.mrb[0].mxu0
  %v4672 = vadd.f32 0.0, %v4671
  %4673 = vmatprep.mubr.f32.mxu0 %v2563
  %4674 = vmatmul.mubr.f32.gmra.mrb[0].mxu0 %v2562
  %v4675 = vpop.f32.mrb[0].mxu0
  %v4676 = vadd.f32 0.0, %v4675
  %v4677 = vpop.f32.mrb[0].mxu0
  %v4678 = vadd.f32 0.0, %v4677
  %4679 = vmatprep.mubr.f32.mxu0 %v2501
  %4680 = vmatmul.mubr.f32.gmra.mrb[0].mxu0 %v2500
  %v4681 = vpop.f32.mrb[0].mxu0
  %v4682 = vadd.f32 0.0, %v4681
  %v4683 = vpop.f32.mrb[0].mxu0
  %v4684 = vadd.f32 0.0, %v4683
  %4685 = vdwg.mxu0
  %v4686 = vadd.f32 %v4300, %v4496
  %v4687 = vadd.f32 %v4301, %v4498
  %v4688 = vadd.f32 %v4302, %v4502
  %v4689 = vadd.f32 %v4303, %v4504
  %v4690 = vadd.f32 %v4304, %v4508
  %v4691 = vadd.f32 %v4305, %v4510
  %v4692 = vadd.f32 %v4306, %v4514
  %v4693 = vadd.f32 %v4307, %v4516
  %v4694 = vadd.f32 %v4308, %v4520
  %v4695 = vadd.f32 %v4309, %v4522
  %v4696 = vadd.f32 %v4310, %v4526
  %v4697 = vadd.f32 %v4311, %v4528
  %v4698 = vadd.f32 %v4312, %v4532
  %v4699 = vadd.f32 %v4313, %v4534
  %v4700 = vadd.f32 %v4314, %v4538
  %v4701 = vadd.f32 %v4315, %v4540
  %v4702 = vadd.f32 %v4316, %v4544
  %v4703 = vadd.f32 %v4317, %v4546
  %v4704 = vadd.f32 %v4318, %v4550
  %v4705 = vadd.f32 %v4319, %v4552
  %v4706 = vadd.f32 %v4320, %v4556
  %v4707 = vadd.f32 %v4321, %v4558
  %v4708 = vadd.f32 %v4322, %v4562
  %v4709 = vadd.f32 %v4323, %v4564
  %v4710 = vadd.f32 %v4324, %v4568
  %v4711 = vadd.f32 %v4325, %v4570
  %v4712 = vadd.f32 %v4326, %v4574
  %v4713 = vadd.f32 %v4327, %v4576
  %v4714 = vadd.f32 %v4328, %v4580
  %v4715 = vadd.f32 %v4329, %v4582
  %v4716 = vadd.f32 %v4330, %v4586
  %v4717 = vadd.f32 %v4331, %v4588
  %v4718 = vadd.f32 %v4332, %v4592
  %v4719 = vadd.f32 %v4333, %v4594
  %v4720 = vadd.f32 %v4334, %v4598
  %v4721 = vadd.f32 %v4335, %v4600
  %v4722 = vadd.f32 %v4336, %v4604
  %v4723 = vadd.f32 %v4337, %v4606
  %v4724 = vadd.f32 %v4338, %v4610
  %v4725 = vadd.f32 %v4339, %v4612
  %v4726 = vadd.f32 %v4340, %v4616
  %v4727 = vadd.f32 %v4341, %v4618
  %v4728 = vadd.f32 %v4342, %v4622
  %v4729 = vadd.f32 %v4343, %v4624
  %v4730 = vadd.f32 %v4344, %v4628
  %v4731 = vadd.f32 %v4345, %v4630
  %v4732 = vadd.f32 %v4346, %v4634
  %v4733 = vadd.f32 %v4347, %v4636
  %v4734 = vadd.f32 %v4348, %v4640
  %v4735 = vadd.f32 %v4349, %v4642
  %v4736 = vadd.f32 %v4350, %v4646
  %v4737 = vadd.f32 %v4351, %v4648
  %v4738 = vadd.f32 %v4352, %v4652
  %v4739 = vadd.f32 %v4353, %v4654
  %v4740 = vadd.f32 %v4354, %v4658
  %v4741 = vadd.f32 %v4355, %v4660
  %v4742 = vadd.f32 %v4356, %v4664
  %v4743 = vadd.f32 %v4357, %v4666
  %v4744 = vadd.f32 %v4358, %v4670
  %v4745 = vadd.f32 %v4359, %v4672
  %v4746 = vadd.f32 %v4360, %v4676
  %v4747 = vadd.f32 %v4361, %v4678
  %v4748 = vadd.f32 %v4362, %v4682
  %v4749 = vadd.f32 %v4363, %v4684
  %v4750 = vld [vmem:[%s4] sm:$0x3]
  %v4752 = vlaneseq
  %v4753 = vshrl.u32 %v4752, 7
  %v4754 = vsub.s32 0, %v4753
  %v4755 = vrot.slane %v4750, %v4754
  %v4756 = vlaneseq
  %v4757 = vshrl.u32 %v4756, 7
  %v4758 = vsub.s32 1, %v4757
  %v4759 = vrot.slane %v4750, %v4758
  %v4762 = vadd.f32 %v4686, %v4755
  %v4763 = vadd.f32 %v4687, %v4759
  %v4764 = vadd.f32 %v4688, %v4755
  %v4765 = vadd.f32 %v4689, %v4759
  %v4766 = vadd.f32 %v4690, %v4755
  %v4767 = vadd.f32 %v4691, %v4759
  %v4768 = vadd.f32 %v4692, %v4755
  %v4769 = vadd.f32 %v4693, %v4759
  %v4770 = vadd.f32 %v4694, %v4755
  %v4771 = vadd.f32 %v4695, %v4759
  %v4772 = vadd.f32 %v4696, %v4755
  %v4773 = vadd.f32 %v4697, %v4759
  %v4774 = vadd.f32 %v4698, %v4755
  %v4775 = vadd.f32 %v4699, %v4759
  %v4776 = vadd.f32 %v4700, %v4755
  %v4777 = vadd.f32 %v4701, %v4759
  %v4778 = vadd.f32 %v4702, %v4755
  %v4779 = vadd.f32 %v4703, %v4759
  %v4780 = vadd.f32 %v4704, %v4755
  %v4781 = vadd.f32 %v4705, %v4759
  %v4782 = vadd.f32 %v4706, %v4755
  %v4783 = vadd.f32 %v4707, %v4759
  %v4784 = vadd.f32 %v4708, %v4755
  %v4785 = vadd.f32 %v4709, %v4759
  %v4786 = vadd.f32 %v4710, %v4755
  %v4787 = vadd.f32 %v4711, %v4759
  %v4788 = vadd.f32 %v4712, %v4755
  %v4789 = vadd.f32 %v4713, %v4759
  %v4790 = vadd.f32 %v4714, %v4755
  %v4791 = vadd.f32 %v4715, %v4759
  %v4792 = vadd.f32 %v4716, %v4755
  %v4793 = vadd.f32 %v4717, %v4759
  %v4794 = vadd.f32 %v4718, %v4755
  %v4795 = vadd.f32 %v4719, %v4759
  %v4796 = vadd.f32 %v4720, %v4755
  %v4797 = vadd.f32 %v4721, %v4759
  %v4798 = vadd.f32 %v4722, %v4755
  %v4799 = vadd.f32 %v4723, %v4759
  %v4800 = vadd.f32 %v4724, %v4755
  %v4801 = vadd.f32 %v4725, %v4759
  %v4802 = vadd.f32 %v4726, %v4755
  %v4803 = vadd.f32 %v4727, %v4759
  %v4804 = vadd.f32 %v4728, %v4755
  %v4805 = vadd.f32 %v4729, %v4759
  %v4806 = vadd.f32 %v4730, %v4755
  %v4807 = vadd.f32 %v4731, %v4759
  %v4808 = vadd.f32 %v4732, %v4755
  %v4809 = vadd.f32 %v4733, %v4759
  %v4810 = vadd.f32 %v4734, %v4755
  %v4811 = vadd.f32 %v4735, %v4759
  %v4812 = vadd.f32 %v4736, %v4755
  %v4813 = vadd.f32 %v4737, %v4759
  %v4814 = vadd.f32 %v4738, %v4755
  %v4815 = vadd.f32 %v4739, %v4759
  %v4816 = vadd.f32 %v4740, %v4755
  %v4817 = vadd.f32 %v4741, %v4759
  %v4818 = vadd.f32 %v4742, %v4755
  %v4819 = vadd.f32 %v4743, %v4759
  %v4820 = vadd.f32 %v4744, %v4755
  %v4821 = vadd.f32 %v4745, %v4759
  %v4822 = vadd.f32 %v4746, %v4755
  %v4823 = vadd.f32 %v4747, %v4759
  %v4824 = vadd.f32 %v4748, %v4755
  %v4825 = vadd.f32 %v4749, %v4759
  %v4826 = vmax.f32 %v4762, 0.0
  %v4827 = vmax.f32 %v4763, 0.0
  %v4828 = vmax.f32 %v4764, 0.0
  %v4829 = vmax.f32 %v4765, 0.0
  %v4830 = vmax.f32 %v4766, 0.0
  %v4831 = vmax.f32 %v4767, 0.0
  %v4832 = vmax.f32 %v4768, 0.0
  %v4833 = vmax.f32 %v4769, 0.0
  %v4834 = vmax.f32 %v4770, 0.0
  %v4835 = vmax.f32 %v4771, 0.0
  %v4836 = vmax.f32 %v4772, 0.0
  %v4837 = vmax.f32 %v4773, 0.0
  %v4838 = vmax.f32 %v4774, 0.0
  %v4839 = vmax.f32 %v4775, 0.0
  %v4840 = vmax.f32 %v4776, 0.0
  %v4841 = vmax.f32 %v4777, 0.0
  %v4842 = vmax.f32 %v4778, 0.0
  %v4843 = vmax.f32 %v4779, 0.0
  %v4844 = vmax.f32 %v4780, 0.0
  %v4845 = vmax.f32 %v4781, 0.0
  %v4846 = vmax.f32 %v4782, 0.0
  %v4847 = vmax.f32 %v4783, 0.0
  %v4848 = vmax.f32 %v4784, 0.0
  %v4849 = vmax.f32 %v4785, 0.0
  %v4850 = vmax.f32 %v4786, 0.0
  %v4851 = vmax.f32 %v4787, 0.0
  %v4852 = vmax.f32 %v4788, 0.0
  %v4853 = vmax.f32 %v4789, 0.0
  %v4854 = vmax.f32 %v4790, 0.0
  %v4855 = vmax.f32 %v4791, 0.0
  %v4856 = vmax.f32 %v4792, 0.0
  %v4857 = vmax.f32 %v4793, 0.0
  %v4858 = vmax.f32 %v4794, 0.0
  %v4859 = vmax.f32 %v4795, 0.0
  %v4860 = vmax.f32 %v4796, 0.0
  %v4861 = vmax.f32 %v4797, 0.0
  %v4862 = vmax.f32 %v4798, 0.0
  %v4863 = vmax.f32 %v4799, 0.0
  %v4864 = vmax.f32 %v4800, 0.0
  %v4865 = vmax.f32 %v4801, 0.0
  %v4866 = vmax.f32 %v4802, 0.0
  %v4867 = vmax.f32 %v4803, 0.0
  %v4868 = vmax.f32 %v4804, 0.0
  %v4869 = vmax.f32 %v4805, 0.0
  %v4870 = vmax.f32 %v4806, 0.0
  %v4871 = vmax.f32 %v4807, 0.0
  %v4872 = vmax.f32 %v4808, 0.0
  %v4873 = vmax.f32 %v4809, 0.0
  %v4874 = vmax.f32 %v4810, 0.0
  %v4875 = vmax.f32 %v4811, 0.0
  %v4876 = vmax.f32 %v4812, 0.0
  %v4877 = vmax.f32 %v4813, 0.0
  %v4878 = vmax.f32 %v4814, 0.0
  %v4879 = vmax.f32 %v4815, 0.0
  %v4880 = vmax.f32 %v4816, 0.0
  %v4881 = vmax.f32 %v4817, 0.0
  %v4882 = vmax.f32 %v4818, 0.0
  %v4883 = vmax.f32 %v4819, 0.0
  %v4884 = vmax.f32 %v4820, 0.0
  %v4885 = vmax.f32 %v4821, 0.0
  %v4886 = vmax.f32 %v4822, 0.0
  %v4887 = vmax.f32 %v4823, 0.0
  %v4888 = vmax.f32 %v4824, 0.0
  %v4889 = vmax.f32 %v4825, 0.0
  %4890 = vrot.lane.b32.xlu0 %v4826, 127
  %v4891 = vpop.permute.xlu0 %4890
  %4892 = vrot.lane.b32.xlu0 %v4828, 127
  %v4893 = vpop.permute.xlu0 %4892
  %4894 = vrot.lane.b32.xlu0 %v4830, 127
  %v4895 = vpop.permute.xlu0 %4894
  %4896 = vrot.lane.b32.xlu0 %v4832, 127
  %v4897 = vpop.permute.xlu0 %4896
  %4898 = vrot.lane.b32.xlu0 %v4834, 127
  %v4899 = vpop.permute.xlu0 %4898
  %4900 = vrot.lane.b32.xlu0 %v4836, 127
  %v4901 = vpop.permute.xlu0 %4900
  %4902 = vrot.lane.b32.xlu0 %v4838, 127
  %v4903 = vpop.permute.xlu0 %4902
  %4904 = vrot.lane.b32.xlu0 %v4840, 127
  %v4905 = vpop.permute.xlu0 %4904
  %4906 = vrot.lane.b32.xlu0 %v4842, 127
  %v4907 = vpop.permute.xlu0 %4906
  %4908 = vrot.lane.b32.xlu0 %v4844, 127
  %v4909 = vpop.permute.xlu0 %4908
  %4910 = vrot.lane.b32.xlu0 %v4846, 127
  %v4911 = vpop.permute.xlu0 %4910
  %4912 = vrot.lane.b32.xlu0 %v4848, 127
  %v4913 = vpop.permute.xlu0 %4912
  %4914 = vrot.lane.b32.xlu0 %v4850, 127
  %v4915 = vpop.permute.xlu0 %4914
  %4916 = vrot.lane.b32.xlu0 %v4852, 127
  %v4917 = vpop.permute.xlu0 %4916
  %4918 = vrot.lane.b32.xlu0 %v4854, 127
  %v4919 = vpop.permute.xlu0 %4918
  %4920 = vrot.lane.b32.xlu0 %v4856, 127
  %v4921 = vpop.permute.xlu0 %4920
  %4922 = vrot.lane.b32.xlu0 %v4858, 127
  %v4923 = vpop.permute.xlu0 %4922
  %4924 = vrot.lane.b32.xlu0 %v4860, 127
  %v4925 = vpop.permute.xlu0 %4924
  %4926 = vrot.lane.b32.xlu0 %v4862, 127
  %v4927 = vpop.permute.xlu0 %4926
  %4928 = vrot.lane.b32.xlu0 %v4864, 127
  %v4929 = vpop.permute.xlu0 %4928
  %4930 = vrot.lane.b32.xlu0 %v4866, 127
  %v4931 = vpop.permute.xlu0 %4930
  %4932 = vrot.lane.b32.xlu0 %v4868, 127
  %v4933 = vpop.permute.xlu0 %4932
  %4934 = vrot.lane.b32.xlu0 %v4870, 127
  %v4935 = vpop.permute.xlu0 %4934
  %4936 = vrot.lane.b32.xlu0 %v4872, 127
  %v4937 = vpop.permute.xlu0 %4936
  %4938 = vrot.lane.b32.xlu0 %v4874, 127
  %v4939 = vpop.permute.xlu0 %4938
  %4940 = vrot.lane.b32.xlu0 %v4876, 127
  %v4941 = vpop.permute.xlu0 %4940
  %4942 = vrot.lane.b32.xlu0 %v4878, 127
  %v4943 = vpop.permute.xlu0 %4942
  %4944 = vrot.lane.b32.xlu0 %v4880, 127
  %v4945 = vpop.permute.xlu0 %4944
  %4946 = vrot.lane.b32.xlu0 %v4882, 127
  %v4947 = vpop.permute.xlu0 %4946
  %4948 = vrot.lane.b32.xlu0 %v4884, 127
  %v4949 = vpop.permute.xlu0 %4948
  %4950 = vrot.lane.b32.xlu0 %v4886, 127
  %v4951 = vpop.permute.xlu0 %4950
  %4952 = vrot.lane.b32.xlu0 %v4888, 127
  %v4953 = vpop.permute.xlu0 %4952
  %4954 = vrot.lane.b32.xlu0 %v4827, 127
  %v4955 = vpop.permute.xlu0 %4954
  %4956 = vrot.lane.b32.xlu0 %v4829, 127
  %v4957 = vpop.permute.xlu0 %4956
  %4958 = vrot.lane.b32.xlu0 %v4831, 127
  %v4959 = vpop.permute.xlu0 %4958
  %4960 = vrot.lane.b32.xlu0 %v4833, 127
  %v4961 = vpop.permute.xlu0 %4960
  %4962 = vrot.lane.b32.xlu0 %v4835, 127
  %v4963 = vpop.permute.xlu0 %4962
  %4964 = vrot.lane.b32.xlu0 %v4837, 127
  %v4965 = vpop.permute.xlu0 %4964
  %4966 = vrot.lane.b32.xlu0 %v4839, 127
  %v4967 = vpop.permute.xlu0 %4966
  %4968 = vrot.lane.b32.xlu0 %v4841, 127
  %v4969 = vpop.permute.xlu0 %4968
  %4970 = vrot.lane.b32.xlu0 %v4843, 127
  %v4971 = vpop.permute.xlu0 %4970
  %4972 = vrot.lane.b32.xlu0 %v4845, 127
  %v4973 = vpop.permute.xlu0 %4972
  %4974 = vrot.lane.b32.xlu0 %v4847, 127
  %v4975 = vpop.permute.xlu0 %4974
  %4976 = vrot.lane.b32.xlu0 %v4849, 127
  %v4977 = vpop.permute.xlu0 %4976
  %4978 = vrot.lane.b32.xlu0 %v4851, 127
  %v4979 = vpop.permute.xlu0 %4978
  %4980 = vrot.lane.b32.xlu0 %v4853, 127
  %v4981 = vpop.permute.xlu0 %4980
  %4982 = vrot.lane.b32.xlu0 %v4855, 127
  %v4983 = vpop.permute.xlu0 %4982
  %4984 = vrot.lane.b32.xlu0 %v4857, 127
  %v4985 = vpop.permute.xlu0 %4984
  %4986 = vrot.lane.b32.xlu0 %v4859, 127
  %v4987 = vpop.permute.xlu0 %4986
  %4988 = vrot.lane.b32.xlu0 %v4861, 127
  %v4989 = vpop.permute.xlu0 %4988
  %4990 = vrot.lane.b32.xlu0 %v4863, 127
  %v4991 = vpop.permute.xlu0 %4990
  %4992 = vrot.lane.b32.xlu0 %v4865, 127
  %v4993 = vpop.permute.xlu0 %4992
  %4994 = vrot.lane.b32.xlu0 %v4867, 127
  %v4995 = vpop.permute.xlu0 %4994
  %4996 = vrot.lane.b32.xlu0 %v4869, 127
  %v4997 = vpop.permute.xlu0 %4996
  %4998 = vrot.lane.b32.xlu0 %v4871, 127
  %v4999 = vpop.permute.xlu0 %4998
  %5000 = vrot.lane.b32.xlu0 %v4873, 127
  %v5001 = vpop.permute.xlu0 %5000
  %5002 = vrot.lane.b32.xlu0 %v4875, 127
  %v5003 = vpop.permute.xlu0 %5002
  %5004 = vrot.lane.b32.xlu0 %v4877, 127
  %v5005 = vpop.permute.xlu0 %5004
  %5006 = vrot.lane.b32.xlu0 %v4879, 127
  %v5007 = vpop.permute.xlu0 %5006
  %5008 = vrot.lane.b32.xlu0 %v4881, 127
  %v5009 = vpop.permute.xlu0 %5008
  %5010 = vrot.lane.b32.xlu0 %v4883, 127
  %v5011 = vpop.permute.xlu0 %5010
  %5012 = vrot.lane.b32.xlu0 %v4885, 127
  %v5013 = vpop.permute.xlu0 %5012
  %5014 = vrot.lane.b32.xlu0 %v4887, 127
  %v5015 = vpop.permute.xlu0 %5014
  %5016 = vrot.lane.b32.xlu0 %v4889, 127
  %v5017 = vpop.permute.xlu0 %5016
  %v5018 = vsel %vm2243, %v4891, %v4955
  %v5019 = vsel %vm2243, %v4893, %v4957
  %v5020 = vsel %vm2243, %v4895, %v4959
  %v5021 = vsel %vm2243, %v4897, %v4961
  %v5022 = vsel %vm2243, %v4899, %v4963
  %v5023 = vsel %vm2243, %v4901, %v4965
  %v5024 = vsel %vm2243, %v4903, %v4967
  %v5025 = vsel %vm2243, %v4905, %v4969
  %v5026 = vsel %vm2243, %v4907, %v4971
  %v5027 = vsel %vm2243, %v4909, %v4973
  %v5028 = vsel %vm2243, %v4911, %v4975
  %v5029 = vsel %vm2243, %v4913, %v4977
  %v5030 = vsel %vm2243, %v4915, %v4979
  %v5031 = vsel %vm2243, %v4917, %v4981
  %v5032 = vsel %vm2243, %v4919, %v4983
  %v5033 = vsel %vm2243, %v4921, %v4985
  %v5034 = vsel %vm2243, %v4923, %v4987
  %v5035 = vsel %vm2243, %v4925, %v4989
  %v5036 = vsel %vm2243, %v4927, %v4991
  %v5037 = vsel %vm2243, %v4929, %v4993
  %v5038 = vsel %vm2243, %v4931, %v4995
  %v5039 = vsel %vm2243, %v4933, %v4997
  %v5040 = vsel %vm2243, %v4935, %v4999
  %v5041 = vsel %vm2243, %v4937, %v5001
  %v5042 = vsel %vm2243, %v4939, %v5003
  %v5043 = vsel %vm2243, %v4941, %v5005
  %v5044 = vsel %vm2243, %v4943, %v5007
  %v5045 = vsel %vm2243, %v4945, %v5009
  %v5046 = vsel %vm2243, %v4947, %v5011
  %v5047 = vsel %vm2243, %v4949, %v5013
  %v5048 = vsel %vm2243, %v4951, %v5015
  %v5049 = vsel %vm2243, %v4953, %v5017
  %v5050 = vsel %vm2243, %v4955, %v4891
  %v5051 = vsel %vm2243, %v4957, %v4893
  %v5052 = vsel %vm2243, %v4959, %v4895
  %v5053 = vsel %vm2243, %v4961, %v4897
  %v5054 = vsel %vm2243, %v4963, %v4899
  %v5055 = vsel %vm2243, %v4965, %v4901
  %v5056 = vsel %vm2243, %v4967, %v4903
  %v5057 = vsel %vm2243, %v4969, %v4905
  %v5058 = vsel %vm2243, %v4971, %v4907
  %v5059 = vsel %vm2243, %v4973, %v4909
  %v5060 = vsel %vm2243, %v4975, %v4911
  %v5061 = vsel %vm2243, %v4977, %v4913
  %v5062 = vsel %vm2243, %v4979, %v4915
  %v5063 = vsel %vm2243, %v4981, %v4917
  %v5064 = vsel %vm2243, %v4983, %v4919
  %v5065 = vsel %vm2243, %v4985, %v4921
  %v5066 = vsel %vm2243, %v4987, %v4923
  %v5067 = vsel %vm2243, %v4989, %v4925
  %v5068 = vsel %vm2243, %v4991, %v4927
  %v5069 = vsel %vm2243, %v4993, %v4929
  %v5070 = vsel %vm2243, %v4995, %v4931
  %v5071 = vsel %vm2243, %v4997, %v4933
  %v5072 = vsel %vm2243, %v4999, %v4935
  %v5073 = vsel %vm2243, %v5001, %v4937
  %v5074 = vsel %vm2243, %v5003, %v4939
  %v5075 = vsel %vm2243, %v5005, %v4941
  %v5076 = vsel %vm2243, %v5007, %v4943
  %v5077 = vsel %vm2243, %v5009, %v4945
  %v5078 = vsel %vm2243, %v5011, %v4947
  %v5079 = vsel %vm2243, %v5013, %v4949
  %v5080 = vsel %vm2243, %v5015, %v4951
  %v5081 = vsel %vm2243, %v5017, %v4953
  %v5082 = vmax.f32 %v4826, %v5018
  %v5083 = vmax.f32 %v4827, %v5050
  %v5084 = vmax.f32 %v4828, %v5019
  %v5085 = vmax.f32 %v4829, %v5051
  %v5086 = vmax.f32 %v4830, %v5020
  %v5087 = vmax.f32 %v4831, %v5052
  %v5088 = vmax.f32 %v4832, %v5021
  %v5089 = vmax.f32 %v4833, %v5053
  %v5090 = vmax.f32 %v4834, %v5022
  %v5091 = vmax.f32 %v4835, %v5054
  %v5092 = vmax.f32 %v4836, %v5023
  %v5093 = vmax.f32 %v4837, %v5055
  %v5094 = vmax.f32 %v4838, %v5024
  %v5095 = vmax.f32 %v4839, %v5056
  %v5096 = vmax.f32 %v4840, %v5025
  %v5097 = vmax.f32 %v4841, %v5057
  %v5098 = vmax.f32 %v4842, %v5026
  %v5099 = vmax.f32 %v4843, %v5058
  %v5100 = vmax.f32 %v4844, %v5027
  %v5101 = vmax.f32 %v4845, %v5059
  %v5102 = vmax.f32 %v4846, %v5028
  %v5103 = vmax.f32 %v4847, %v5060
  %v5104 = vmax.f32 %v4848, %v5029
  %v5105 = vmax.f32 %v4849, %v5061
  %v5106 = vmax.f32 %v4850, %v5030
  %v5107 = vmax.f32 %v4851, %v5062
  %v5108 = vmax.f32 %v4852, %v5031
  %v5109 = vmax.f32 %v4853, %v5063
  %v5110 = vmax.f32 %v4854, %v5032
  %v5111 = vmax.f32 %v4855, %v5064
  %v5112 = vmax.f32 %v4856, %v5033
  %v5113 = vmax.f32 %v4857, %v5065
  %v5114 = vmax.f32 %v4858, %v5034
  %v5115 = vmax.f32 %v4859, %v5066
  %v5116 = vmax.f32 %v4860, %v5035
  %v5117 = vmax.f32 %v4861, %v5067
  %v5118 = vmax.f32 %v4862, %v5036
  %v5119 = vmax.f32 %v4863, %v5068
  %v5120 = vmax.f32 %v4864, %v5037
  %v5121 = vmax.f32 %v4865, %v5069
  %v5122 = vmax.f32 %v4866, %v5038
  %v5123 = vmax.f32 %v4867, %v5070
  %v5124 = vmax.f32 %v4868, %v5039
  %v5125 = vmax.f32 %v4869, %v5071
  %v5126 = vmax.f32 %v4870, %v5040
  %v5127 = vmax.f32 %v4871, %v5072
  %v5128 = vmax.f32 %v4872, %v5041
  %v5129 = vmax.f32 %v4873, %v5073
  %v5130 = vmax.f32 %v4874, %v5042
  %v5131 = vmax.f32 %v4875, %v5074
  %v5132 = vmax.f32 %v4876, %v5043
  %v5133 = vmax.f32 %v4877, %v5075
  %v5134 = vmax.f32 %v4878, %v5044
  %v5135 = vmax.f32 %v4879, %v5076
  %v5136 = vmax.f32 %v4880, %v5045
  %v5137 = vmax.f32 %v4881, %v5077
  %v5138 = vmax.f32 %v4882, %v5046
  %v5139 = vmax.f32 %v4883, %v5078
  %v5140 = vmax.f32 %v4884, %v5047
  %v5141 = vmax.f32 %v4885, %v5079
  %v5142 = vmax.f32 %v4886, %v5048
  %v5143 = vmax.f32 %v4887, %v5080
  %v5144 = vmax.f32 %v4888, %v5049
  %v5145 = vmax.f32 %v4889, %v5081
  %v5146 = vrot.slane %v5082, 2
  %v5147 = vrot.slane %v5083, 2
  %v5148 = vrot.slane %v5084, 2
  %v5149 = vrot.slane %v5085, 2
  %v5150 = vrot.slane %v5086, 2
  %v5151 = vrot.slane %v5087, 2
  %v5152 = vrot.slane %v5088, 2
  %v5153 = vrot.slane %v5089, 2
  %v5154 = vrot.slane %v5090, 2
  %v5155 = vrot.slane %v5091, 2
  %v5156 = vrot.slane %v5092, 2
  %v5157 = vrot.slane %v5093, 2
  %v5158 = vrot.slane %v5094, 2
  %v5159 = vrot.slane %v5095, 2
  %v5160 = vrot.slane %v5096, 2
  %v5161 = vrot.slane %v5097, 2
  %v5162 = vrot.slane %v5098, 2
  %v5163 = vrot.slane %v5099, 2
  %v5164 = vrot.slane %v5100, 2
  %v5165 = vrot.slane %v5101, 2
  %v5166 = vrot.slane %v5102, 2
  %v5167 = vrot.slane %v5103, 2
  %v5168 = vrot.slane %v5104, 2
  %v5169 = vrot.slane %v5105, 2
  %v5170 = vrot.slane %v5106, 2
  %v5171 = vrot.slane %v5107, 2
  %v5172 = vrot.slane %v5108, 2
  %v5173 = vrot.slane %v5109, 2
  %v5174 = vrot.slane %v5110, 2
  %v5175 = vrot.slane %v5111, 2
  %v5176 = vrot.slane %v5112, 2
  %v5177 = vrot.slane %v5113, 2
  %v5178 = vrot.slane %v5114, 2
  %v5179 = vrot.slane %v5115, 2
  %v5180 = vrot.slane %v5116, 2
  %v5181 = vrot.slane %v5117, 2
  %v5182 = vrot.slane %v5118, 2
  %v5183 = vrot.slane %v5119, 2
  %v5184 = vrot.slane %v5120, 2
  %v5185 = vrot.slane %v5121, 2
  %v5186 = vrot.slane %v5122, 2
  %v5187 = vrot.slane %v5123, 2
  %v5188 = vrot.slane %v5124, 2
  %v5189 = vrot.slane %v5125, 2
  %v5190 = vrot.slane %v5126, 2
  %v5191 = vrot.slane %v5127, 2
  %v5192 = vrot.slane %v5128, 2
  %v5193 = vrot.slane %v5129, 2
  %v5194 = vrot.slane %v5130, 2
  %v5195 = vrot.slane %v5131, 2
  %v5196 = vrot.slane %v5132, 2
  %v5197 = vrot.slane %v5133, 2
  %v5198 = vrot.slane %v5134, 2
  %v5199 = vrot.slane %v5135, 2
  %v5200 = vrot.slane %v5136, 2
  %v5201 = vrot.slane %v5137, 2
  %v5202 = vrot.slane %v5138, 2
  %v5203 = vrot.slane %v5139, 2
  %v5204 = vrot.slane %v5140, 2
  %v5205 = vrot.slane %v5141, 2
  %v5206 = vrot.slane %v5142, 2
  %v5207 = vrot.slane %v5143, 2
  %v5208 = vrot.slane %v5144, 2
  %v5209 = vrot.slane %v5145, 2
  %v5210 = vsel %vm748, %v5206, %v5208
  %v5211 = vsel %vm748, %v5207, %v5209
  %v5212 = vsel %vm748, %v5204, %v5206
  %v5213 = vsel %vm748, %v5205, %v5207
  %v5214 = vsel %vm748, %v5202, %v5204
  %v5215 = vsel %vm748, %v5203, %v5205
  %v5216 = vsel %vm748, %v5200, %v5202
  %v5217 = vsel %vm748, %v5201, %v5203
  %v5218 = vsel %vm748, %v5198, %v5200
  %v5219 = vsel %vm748, %v5199, %v5201
  %v5220 = vsel %vm748, %v5196, %v5198
  %v5221 = vsel %vm748, %v5197, %v5199
  %v5222 = vsel %vm748, %v5194, %v5196
  %v5223 = vsel %vm748, %v5195, %v5197
  %v5224 = vsel %vm748, %v5192, %v5194
  %v5225 = vsel %vm748, %v5193, %v5195
  %v5226 = vsel %vm748, %v5190, %v5192
  %v5227 = vsel %vm748, %v5191, %v5193
  %v5228 = vsel %vm748, %v5188, %v5190
  %v5229 = vsel %vm748, %v5189, %v5191
  %v5230 = vsel %vm748, %v5186, %v5188
  %v5231 = vsel %vm748, %v5187, %v5189
  %v5232 = vsel %vm748, %v5184, %v5186
  %v5233 = vsel %vm748, %v5185, %v5187
  %v5234 = vsel %vm748, %v5182, %v5184
  %v5235 = vsel %vm748, %v5183, %v5185
  %v5236 = vsel %vm748, %v5180, %v5182
  %v5237 = vsel %vm748, %v5181, %v5183
  %v5238 = vsel %vm748, %v5178, %v5180
  %v5239 = vsel %vm748, %v5179, %v5181
  %v5240 = vsel %vm748, %v5176, %v5178
  %v5241 = vsel %vm748, %v5177, %v5179
  %v5242 = vsel %vm748, %v5174, %v5176
  %v5243 = vsel %vm748, %v5175, %v5177
  %v5244 = vsel %vm748, %v5172, %v5174
  %v5245 = vsel %vm748, %v5173, %v5175
  %v5246 = vsel %vm748, %v5170, %v5172
  %v5247 = vsel %vm748, %v5171, %v5173
  %v5248 = vsel %vm748, %v5168, %v5170
  %v5249 = vsel %vm748, %v5169, %v5171
  %v5250 = vsel %vm748, %v5166, %v5168
  %v5251 = vsel %vm748, %v5167, %v5169
  %v5252 = vsel %vm748, %v5164, %v5166
  %v5253 = vsel %vm748, %v5165, %v5167
  %v5254 = vsel %vm748, %v5162, %v5164
  %v5255 = vsel %vm748, %v5163, %v5165
  %v5256 = vsel %vm748, %v5160, %v5162
  %v5257 = vsel %vm748, %v5161, %v5163
  %v5258 = vsel %vm748, %v5158, %v5160
  %v5259 = vsel %vm748, %v5159, %v5161
  %v5260 = vsel %vm748, %v5156, %v5158
  %v5261 = vsel %vm748, %v5157, %v5159
  %v5262 = vsel %vm748, %v5154, %v5156
  %v5263 = vsel %vm748, %v5155, %v5157
  %v5264 = vsel %vm748, %v5152, %v5154
  %v5265 = vsel %vm748, %v5153, %v5155
  %v5266 = vsel %vm748, %v5150, %v5152
  %v5267 = vsel %vm748, %v5151, %v5153
  %v5268 = vsel %vm748, %v5148, %v5150
  %v5269 = vsel %vm748, %v5149, %v5151
  %v5270 = vsel %vm748, %v5146, %v5148
  %v5271 = vsel %vm748, %v5147, %v5149
  %v5272 = vsel %vm748, %v5208, %v5146
  %v5273 = vsel %vm748, %v5209, %v5147
  %v5274 = vmax.f32 %v5082, %v5270
  %v5275 = vmax.f32 %v5083, %v5271
  %v5276 = vmax.f32 %v5084, %v5268
  %v5277 = vmax.f32 %v5085, %v5269
  %v5278 = vmax.f32 %v5086, %v5266
  %v5279 = vmax.f32 %v5087, %v5267
  %v5280 = vmax.f32 %v5088, %v5264
  %v5281 = vmax.f32 %v5089, %v5265
  %v5282 = vmax.f32 %v5090, %v5262
  %v5283 = vmax.f32 %v5091, %v5263
  %v5284 = vmax.f32 %v5092, %v5260
  %v5285 = vmax.f32 %v5093, %v5261
  %v5286 = vmax.f32 %v5094, %v5258
  %v5287 = vmax.f32 %v5095, %v5259
  %v5288 = vmax.f32 %v5096, %v5256
  %v5289 = vmax.f32 %v5097, %v5257
  %v5290 = vmax.f32 %v5098, %v5254
  %v5291 = vmax.f32 %v5099, %v5255
  %v5292 = vmax.f32 %v5100, %v5252
  %v5293 = vmax.f32 %v5101, %v5253
  %v5294 = vmax.f32 %v5102, %v5250
  %v5295 = vmax.f32 %v5103, %v5251
  %v5296 = vmax.f32 %v5104, %v5248
  %v5297 = vmax.f32 %v5105, %v5249
  %v5298 = vmax.f32 %v5106, %v5246
  %v5299 = vmax.f32 %v5107, %v5247
  %v5300 = vmax.f32 %v5108, %v5244
  %v5301 = vmax.f32 %v5109, %v5245
  %v5302 = vmax.f32 %v5110, %v5242
  %v5303 = vmax.f32 %v5111, %v5243
  %v5304 = vmax.f32 %v5112, %v5240
  %v5305 = vmax.f32 %v5113, %v5241
  %v5306 = vmax.f32 %v5114, %v5238
  %v5307 = vmax.f32 %v5115, %v5239
  %v5308 = vmax.f32 %v5116, %v5236
  %v5309 = vmax.f32 %v5117, %v5237
  %v5310 = vmax.f32 %v5118, %v5234
  %v5311 = vmax.f32 %v5119, %v5235
  %v5312 = vmax.f32 %v5120, %v5232
  %v5313 = vmax.f32 %v5121, %v5233
  %v5314 = vmax.f32 %v5122, %v5230
  %v5315 = vmax.f32 %v5123, %v5231
  %v5316 = vmax.f32 %v5124, %v5228
  %v5317 = vmax.f32 %v5125, %v5229
  %v5318 = vmax.f32 %v5126, %v5226
  %v5319 = vmax.f32 %v5127, %v5227
  %v5320 = vmax.f32 %v5128, %v5224
  %v5321 = vmax.f32 %v5129, %v5225
  %v5322 = vmax.f32 %v5130, %v5222
  %v5323 = vmax.f32 %v5131, %v5223
  %v5324 = vmax.f32 %v5132, %v5220
  %v5325 = vmax.f32 %v5133, %v5221
  %v5326 = vmax.f32 %v5134, %v5218
  %v5327 = vmax.f32 %v5135, %v5219
  %v5328 = vmax.f32 %v5136, %v5216
  %v5329 = vmax.f32 %v5137, %v5217
  %v5330 = vmax.f32 %v5138, %v5214
  %v5331 = vmax.f32 %v5139, %v5215
  %v5332 = vmax.f32 %v5140, %v5212
  %v5333 = vmax.f32 %v5141, %v5213
  %v5334 = vmax.f32 %v5142, %v5210
  %v5335 = vmax.f32 %v5143, %v5211
  %v5336 = vmax.f32 %v5144, %v5272
  %v5337 = vmax.f32 %v5145, %v5273
  %v5338 = vld [vmem:[%s5] sm:$0xff]
  %v5339 = vld [vmem:[%s5 + $0x8] sm:$0xff]
  %v5340 = vld [vmem:[%s5 + $0x10] sm:$0xff]
  %v5341 = vld [vmem:[%s5 + $0x18] sm:$0xff]
  %v5342 = vld [vmem:[%s5 + $0x20] sm:$0xff]
  %v5343 = vld [vmem:[%s5 + $0x28] sm:$0xff]
  %v5344 = vld [vmem:[%s5 + $0x30] sm:$0xff]
  %v5345 = vld [vmem:[%s5 + $0x38] sm:$0xff]
  %v5346 = vld [vmem:[%s5 + $0x40] sm:$0xff]
  %v5347 = vld [vmem:[%s5 + $0x48] sm:$0xff]
  %v5348 = vld [vmem:[%s5 + $0x50] sm:$0xff]
  %v5349 = vld [vmem:[%s5 + $0x58] sm:$0xff]
  %v5350 = vld [vmem:[%s5 + $0x60] sm:$0xff]
  %v5351 = vld [vmem:[%s5 + $0x68] sm:$0xff]
  %v5352 = vld [vmem:[%s5 + $0x70] sm:$0xff]
  %v5353 = vld [vmem:[%s5 + $0x78] sm:$0xff]
  %v5354 = vld [vmem:[%s5 + $0x80] sm:$0xff]
  %v5355 = vld [vmem:[%s5 + $0x88] sm:$0xff]
  %v5356 = vld [vmem:[%s5 + $0x90] sm:$0xff]
  %v5357 = vld [vmem:[%s5 + $0x98] sm:$0xff]
  %v5358 = vld [vmem:[%s5 + $0xa0] sm:$0xff]
  %v5359 = vld [vmem:[%s5 + $0xa8] sm:$0xff]
  %v5360 = vld [vmem:[%s5 + $0xb0] sm:$0xff]
  %v5361 = vld [vmem:[%s5 + $0xb8] sm:$0xff]
  %v5362 = vld [vmem:[%s5 + $0xc0] sm:$0xff]
  %v5363 = vld [vmem:[%s5 + $0xc8] sm:$0xff]
  %v5364 = vld [vmem:[%s5 + $0xd0] sm:$0xff]
  %v5365 = vld [vmem:[%s5 + $0xd8] sm:$0xff]
  %v5366 = vld [vmem:[%s5 + $0xe0] sm:$0xff]
  %v5367 = vld [vmem:[%s5 + $0xe8] sm:$0xff]
  %v5368 = vld [vmem:[%s5 + $0xf0] sm:$0xff]
  %v5369 = vld [vmem:[%s5 + $0xf8] sm:$0xff]
  %v5370 = vrot.slane %v5274, 4
  %v5371 = vrot.slane %v5275, 4
  %v5372 = vrot.slane %v5276, 4
  %v5373 = vrot.slane %v5277, 4
  %v5374 = vrot.slane %v5278, 4
  %v5375 = vrot.slane %v5279, 4
  %v5376 = vrot.slane %v5280, 4
  %v5377 = vrot.slane %v5281, 4
  %v5378 = vrot.slane %v5282, 4
  %v5379 = vrot.slane %v5283, 4
  %v5380 = vrot.slane %v5284, 4
  %v5381 = vrot.slane %v5285, 4
  %v5382 = vrot.slane %v5286, 4
  %v5383 = vrot.slane %v5287, 4
  %v5384 = vrot.slane %v5288, 4
  %v5385 = vrot.slane %v5289, 4
  %v5386 = vrot.slane %v5290, 4
  %v5387 = vrot.slane %v5291, 4
  %v5388 = vrot.slane %v5292, 4
  %v5389 = vrot.slane %v5293, 4
  %v5390 = vrot.slane %v5294, 4
  %v5391 = vrot.slane %v5295, 4
  %v5392 = vrot.slane %v5296, 4
  %v5393 = vrot.slane %v5297, 4
  %v5394 = vrot.slane %v5298, 4
  %v5395 = vrot.slane %v5299, 4
  %v5396 = vrot.slane %v5300, 4
  %v5397 = vrot.slane %v5301, 4
  %v5398 = vrot.slane %v5302, 4
  %v5399 = vrot.slane %v5303, 4
  %v5400 = vrot.slane %v5304, 4
  %v5401 = vrot.slane %v5305, 4
  %v5402 = vrot.slane %v5306, 4
  %v5403 = vrot.slane %v5307, 4
  %v5404 = vrot.slane %v5308, 4
  %v5405 = vrot.slane %v5309, 4
  %v5406 = vrot.slane %v5310, 4
  %v5407 = vrot.slane %v5311, 4
  %v5408 = vrot.slane %v5312, 4
  %v5409 = vrot.slane %v5313, 4
  %v5410 = vrot.slane %v5314, 4
  %v5411 = vrot.slane %v5315, 4
  %v5412 = vrot.slane %v5316, 4
  %v5413 = vrot.slane %v5317, 4
  %v5414 = vrot.slane %v5318, 4
  %v5415 = vrot.slane %v5319, 4
  %v5416 = vrot.slane %v5320, 4
  %v5417 = vrot.slane %v5321, 4
  %v5418 = vrot.slane %v5322, 4
  %v5419 = vrot.slane %v5323, 4
  %v5420 = vrot.slane %v5324, 4
  %v5421 = vrot.slane %v5325, 4
  %v5422 = vrot.slane %v5326, 4
  %v5423 = vrot.slane %v5327, 4
  %v5424 = vrot.slane %v5328, 4
  %v5425 = vrot.slane %v5329, 4
  %v5426 = vrot.slane %v5330, 4
  %v5427 = vrot.slane %v5331, 4
  %v5428 = vrot.slane %v5332, 4
  %v5429 = vrot.slane %v5333, 4
  %v5430 = vrot.slane %v5334, 4
  %v5431 = vrot.slane %v5335, 4
  %v5432 = vrot.slane %v5336, 4
  %v5433 = vrot.slane %v5337, 4
  %v5434 = vsel %vm1586, %v5430, %v5432
  %v5435 = vsel %vm1586, %v5431, %v5433
  %v5436 = vsel %vm1586, %v5428, %v5430
  %v5437 = vsel %vm1586, %v5429, %v5431
  %v5438 = vsel %vm1586, %v5426, %v5428
  %v5439 = vsel %vm1586, %v5427, %v5429
  %v5440 = vsel %vm1586, %v5424, %v5426
  %v5441 = vsel %vm1586, %v5425, %v5427
  %v5442 = vsel %vm1586, %v5422, %v5424
  %v5443 = vsel %vm1586, %v5423, %v5425
  %v5444 = vsel %vm1586, %v5420, %v5422
  %v5445 = vsel %vm1586, %v5421, %v5423
  %v5446 = vsel %vm1586, %v5418, %v5420
  %v5447 = vsel %vm1586, %v5419, %v5421
  %v5448 = vsel %vm1586, %v5416, %v5418
  %v5449 = vsel %vm1586, %v5417, %v5419
  %v5450 = vsel %vm1586, %v5414, %v5416
  %v5451 = vsel %vm1586, %v5415, %v5417
  %v5452 = vsel %vm1586, %v5412, %v5414
  %v5453 = vsel %vm1586, %v5413, %v5415
  %v5454 = vsel %vm1586, %v5410, %v5412
  %v5455 = vsel %vm1586, %v5411, %v5413
  %v5456 = vsel %vm1586, %v5408, %v5410
  %v5457 = vsel %vm1586, %v5409, %v5411
  %v5458 = vsel %vm1586, %v5406, %v5408
  %v5459 = vsel %vm1586, %v5407, %v5409
  %v5460 = vsel %vm1586, %v5404, %v5406
  %v5461 = vsel %vm1586, %v5405, %v5407
  %v5462 = vsel %vm1586, %v5402, %v5404
  %v5463 = vsel %vm1586, %v5403, %v5405
  %v5464 = vsel %vm1586, %v5400, %v5402
  %v5465 = vsel %vm1586, %v5401, %v5403
  %v5466 = vsel %vm1586, %v5398, %v5400
  %v5467 = vsel %vm1586, %v5399, %v5401
  %v5468 = vsel %vm1586, %v5396, %v5398
  %v5469 = vsel %vm1586, %v5397, %v5399
  %v5470 = vsel %vm1586, %v5394, %v5396
  %v5471 = vsel %vm1586, %v5395, %v5397
  %v5472 = vsel %vm1586, %v5392, %v5394
  %v5473 = vsel %vm1586, %v5393, %v5395
  %v5474 = vsel %vm1586, %v5390, %v5392
  %v5475 = vsel %vm1586, %v5391, %v5393
  %v5476 = vsel %vm1586, %v5388, %v5390
  %v5477 = vsel %vm1586, %v5389, %v5391
  %v5478 = vsel %vm1586, %v5386, %v5388
  %v5479 = vsel %vm1586, %v5387, %v5389
  %v5480 = vsel %vm1586, %v5384, %v5386
  %v5481 = vsel %vm1586, %v5385, %v5387
  %v5482 = vsel %vm1586, %v5382, %v5384
  %v5483 = vsel %vm1586, %v5383, %v5385
  %v5484 = vsel %vm1586, %v5380, %v5382
  %v5485 = vsel %vm1586, %v5381, %v5383
  %v5486 = vsel %vm1586, %v5378, %v5380
  %v5487 = vsel %vm1586, %v5379, %v5381
  %v5488 = vsel %vm1586, %v5376, %v5378
  %v5489 = vsel %vm1586, %v5377, %v5379
  %v5490 = vsel %vm1586, %v5374, %v5376
  %v5491 = vsel %vm1586, %v5375, %v5377
  %v5492 = vsel %vm1586, %v5372, %v5374
  %v5493 = vsel %vm1586, %v5373, %v5375
  %v5494 = vsel %vm1586, %v5370, %v5372
  %v5495 = vsel %vm1586, %v5371, %v5373
  %v5496 = vsel %vm1586, %v5432, %v5370
  %v5497 = vsel %vm1586, %v5433, %v5371
  %s5498 = scalar_lea.vmem %s5, 256
  %v5499 = vld [vmem:[%s5498] sm:$0xff]
  %v5500 = vld [vmem:[%s5498 + $0x8] sm:$0xff]
  %v5501 = vld [vmem:[%s5498 + $0x10] sm:$0xff]
  %v5502 = vld [vmem:[%s5498 + $0x18] sm:$0xff]
  %v5503 = vld [vmem:[%s5498 + $0x20] sm:$0xff]
  %v5504 = vld [vmem:[%s5498 + $0x28] sm:$0xff]
  %v5505 = vld [vmem:[%s5498 + $0x30] sm:$0xff]
  %v5506 = vld [vmem:[%s5498 + $0x38] sm:$0xff]
  %v5507 = vld [vmem:[%s5498 + $0x40] sm:$0xff]
  %v5508 = vld [vmem:[%s5498 + $0x48] sm:$0xff]
  %v5509 = vld [vmem:[%s5498 + $0x50] sm:$0xff]
  %v5510 = vld [vmem:[%s5498 + $0x58] sm:$0xff]
  %v5511 = vld [vmem:[%s5498 + $0x60] sm:$0xff]
  %v5512 = vld [vmem:[%s5498 + $0x68] sm:$0xff]
  %v5513 = vld [vmem:[%s5498 + $0x70] sm:$0xff]
  %v5514 = vld [vmem:[%s5498 + $0x78] sm:$0xff]
  %v5515 = vld [vmem:[%s5498 + $0x80] sm:$0xff]
  %v5516 = vld [vmem:[%s5498 + $0x88] sm:$0xff]
  %v5517 = vld [vmem:[%s5498 + $0x90] sm:$0xff]
  %v5518 = vld [vmem:[%s5498 + $0x98] sm:$0xff]
  %v5519 = vld [vmem:[%s5498 + $0xa0] sm:$0xff]
  %v5520 = vld [vmem:[%s5498 + $0xa8] sm:$0xff]
  %v5521 = vld [vmem:[%s5498 + $0xb0] sm:$0xff]
  %v5522 = vld [vmem:[%s5498 + $0xb8] sm:$0xff]
  %v5523 = vld [vmem:[%s5498 + $0xc0] sm:$0xff]
  %v5524 = vld [vmem:[%s5498 + $0xc8] sm:$0xff]
  %v5525 = vld [vmem:[%s5498 + $0xd0] sm:$0xff]
  %v5526 = vld [vmem:[%s5498 + $0xd8] sm:$0xff]
  %v5527 = vld [vmem:[%s5498 + $0xe0] sm:$0xff]
  %v5528 = vld [vmem:[%s5498 + $0xe8] sm:$0xff]
  %v5529 = vld [vmem:[%s5498 + $0xf0] sm:$0xff]
  %v5530 = vld [vmem:[%s5498 + $0xf8] sm:$0xff]
  %5531 = vmatprep.subr.mxu0 0.0
  %5532 = vmatpush1.msra.mxu0 %v5499
  %5533 = vmatprep.subr.mxu0 0.0
  %5534 = vmatpush1.msra.mxu0 %v5500
  %5535 = vmatprep.subr.mxu0 0.0
  %5536 = vmatpush1.msra.mxu0 %v5501
  %5537 = vmatprep.subr.mxu0 0.0
  %5538 = vmatpush1.msra.mxu0 %v5502
  %5539 = vmatprep.subr.mxu0 0.0
  %5540 = vmatpush1.msra.mxu0 %v5503
  %5541 = vmatprep.subr.mxu0 0.0
  %5542 = vmatpush1.msra.mxu0 %v5504
  %5543 = vmatprep.subr.mxu0 0.0
  %5544 = vmatpush1.msra.mxu0 %v5505
  %5545 = vmatprep.subr.mxu0 0.0
  %5546 = vmatpush1.msra.mxu0 %v5506
  %5547 = vmatprep.subr.mxu0 0.0
  %5548 = vmatpush1.msra.mxu0 %v5507
  %5549 = vmatprep.subr.mxu0 0.0
  %5550 = vmatpush1.msra.mxu0 %v5508
  %5551 = vmatprep.subr.mxu0 0.0
  %5552 = vmatpush1.msra.mxu0 %v5509
  %5553 = vmatprep.subr.mxu0 0.0
  %5554 = vmatpush1.msra.mxu0 %v5510
  %5555 = vmatprep.subr.mxu0 0.0
  %5556 = vmatpush1.msra.mxu0 %v5511
  %5557 = vmatprep.subr.mxu0 0.0
  %5558 = vmatpush1.msra.mxu0 %v5512
  %5559 = vmatprep.subr.mxu0 0.0
  %5560 = vmatpush1.msra.mxu0 %v5513
  %5561 = vmatprep.subr.mxu0 0.0
  %5562 = vmatpush1.msra.mxu0 %v5514
  %5563 = vmatprep.subr.mxu0 0.0
  %5564 = vmatpush1.msra.mxu0 %v5515
  %5565 = vmatprep.subr.mxu0 0.0
  %5566 = vmatpush1.msra.mxu0 %v5516
  %5567 = vmatprep.subr.mxu0 0.0
  %5568 = vmatpush1.msra.mxu0 %v5517
  %5569 = vmatprep.subr.mxu0 0.0
  %5570 = vmatpush1.msra.mxu0 %v5518
  %5571 = vmatprep.subr.mxu0 0.0
  %5572 = vmatpush1.msra.mxu0 %v5519
  %5573 = vmatprep.subr.mxu0 0.0
  %5574 = vmatpush1.msra.mxu0 %v5520
  %5575 = vmatprep.subr.mxu0 0.0
  %5576 = vmatpush1.msra.mxu0 %v5521
  %5577 = vmatprep.subr.mxu0 0.0
  %5578 = vmatpush1.msra.mxu0 %v5522
  %5579 = vmatprep.subr.mxu0 0.0
  %5580 = vmatpush1.msra.mxu0 %v5523
  %5581 = vmatprep.subr.mxu0 0.0
  %5582 = vmatpush1.msra.mxu0 %v5524
  %5583 = vmatprep.subr.mxu0 0.0
  %5584 = vmatpush1.msra.mxu0 %v5525
  %5585 = vmatprep.subr.mxu0 0.0
  %5586 = vmatpush1.msra.mxu0 %v5526
  %5587 = vmatprep.subr.mxu0 0.0
  %5588 = vmatpush1.msra.mxu0 %v5527
  %5589 = vmatprep.subr.mxu0 0.0
  %5590 = vmatpush1.msra.mxu0 %v5528
  %5591 = vmatprep.subr.mxu0 0.0
  %5592 = vmatpush1.msra.mxu0 %v5529
  %5593 = vmatprep.subr.mxu0 0.0
  %5594 = vmatpush1.msra.mxu0 %v5530
  %5595 = vmatprep.mubr.f32.mxu0 %v5495
  %5596 = vmatmul.mubr.f32.gmra.mrb[0].mxu0 %v5494
  %v5597 = vpop.f32.mrb[0].mxu0
  %v5598 = vadd.f32 0.0, %v5597
  %v5599 = vpop.f32.mrb[0].mxu0
  %5600 = vmatprep.mubr.f32.mxu0 %v5493
  %5601 = vmatmul.mubr.f32.gmra.mrb[0].mxu0 %v5492
  %v5602 = vpop.f32.mrb[0].mxu0
  %v5603 = vadd.f32 0.0, %v5602
  %v5604 = vpop.f32.mrb[0].mxu0
  %5605 = vmatprep.mubr.f32.mxu0 %v5491
  %5606 = vmatmul.mubr.f32.gmra.mrb[0].mxu0 %v5490
  %v5607 = vpop.f32.mrb[0].mxu0
  %v5608 = vadd.f32 0.0, %v5607
  %v5609 = vpop.f32.mrb[0].mxu0
  %5610 = vmatprep.mubr.f32.mxu0 %v5489
  %5611 = vmatmul.mubr.f32.gmra.mrb[0].mxu0 %v5488
  %v5612 = vpop.f32.mrb[0].mxu0
  %v5613 = vadd.f32 0.0, %v5612
  %v5614 = vpop.f32.mrb[0].mxu0
  %5615 = vmatprep.mubr.f32.mxu0 %v5487
  %5616 = vmatmul.mubr.f32.gmra.mrb[0].mxu0 %v5486
  %v5617 = vpop.f32.mrb[0].mxu0
  %v5618 = vadd.f32 0.0, %v5617
  %v5619 = vpop.f32.mrb[0].mxu0
  %5620 = vmatprep.mubr.f32.mxu0 %v5485
  %5621 = vmatmul.mubr.f32.gmra.mrb[0].mxu0 %v5484
  %v5622 = vpop.f32.mrb[0].mxu0
  %v5623 = vadd.f32 0.0, %v5622
  %v5624 = vpop.f32.mrb[0].mxu0
  %5625 = vmatprep.mubr.f32.mxu0 %v5483
  %5626 = vmatmul.mubr.f32.gmra.mrb[0].mxu0 %v5482
  %v5627 = vpop.f32.mrb[0].mxu0
  %v5628 = vadd.f32 0.0, %v5627
  %v5629 = vpop.f32.mrb[0].mxu0
  %5630 = vmatprep.mubr.f32.mxu0 %v5481
  %5631 = vmatmul.mubr.f32.gmra.mrb[0].mxu0 %v5480
  %v5632 = vpop.f32.mrb[0].mxu0
  %v5633 = vadd.f32 0.0, %v5632
  %v5634 = vpop.f32.mrb[0].mxu0
  %5635 = vmatprep.mubr.f32.mxu0 %v5479
  %5636 = vmatmul.mubr.f32.gmra.mrb[0].mxu0 %v5478
  %v5637 = vpop.f32.mrb[0].mxu0
  %v5638 = vadd.f32 0.0, %v5637
  %v5639 = vpop.f32.mrb[0].mxu0
  %5640 = vmatprep.mubr.f32.mxu0 %v5477
  %5641 = vmatmul.mubr.f32.gmra.mrb[0].mxu0 %v5476
  %v5642 = vpop.f32.mrb[0].mxu0
  %v5643 = vadd.f32 0.0, %v5642
  %v5644 = vpop.f32.mrb[0].mxu0
  %5645 = vmatprep.mubr.f32.mxu0 %v5475
  %5646 = vmatmul.mubr.f32.gmra.mrb[0].mxu0 %v5474
  %v5647 = vpop.f32.mrb[0].mxu0
  %v5648 = vadd.f32 0.0, %v5647
  %v5649 = vpop.f32.mrb[0].mxu0
  %5650 = vmatprep.mubr.f32.mxu0 %v5473
  %5651 = vmatmul.mubr.f32.gmra.mrb[0].mxu0 %v5472
  %v5652 = vpop.f32.mrb[0].mxu0
  %v5653 = vadd.f32 0.0, %v5652
  %v5654 = vpop.f32.mrb[0].mxu0
  %5655 = vmatprep.mubr.f32.mxu0 %v5471
  %5656 = vmatmul.mubr.f32.gmra.mrb[0].mxu0 %v5470
  %v5657 = vpop.f32.mrb[0].mxu0
  %v5658 = vadd.f32 0.0, %v5657
  %v5659 = vpop.f32.mrb[0].mxu0
  %5660 = vmatprep.mubr.f32.mxu0 %v5469
  %5661 = vmatmul.mubr.f32.gmra.mrb[0].mxu0 %v5468
  %v5662 = vpop.f32.mrb[0].mxu0
  %v5663 = vadd.f32 0.0, %v5662
  %v5664 = vpop.f32.mrb[0].mxu0
  %5665 = vmatprep.mubr.f32.mxu0 %v5467
  %5666 = vmatmul.mubr.f32.gmra.mrb[0].mxu0 %v5466
  %v5667 = vpop.f32.mrb[0].mxu0
  %v5668 = vadd.f32 0.0, %v5667
  %v5669 = vpop.f32.mrb[0].mxu0
  %5670 = vmatprep.mubr.f32.mxu0 %v5465
  %5671 = vmatmul.mubr.f32.gmra.mrb[0].mxu0 %v5464
  %v5672 = vpop.f32.mrb[0].mxu0
  %v5673 = vadd.f32 0.0, %v5672
  %v5674 = vpop.f32.mrb[0].mxu0
  %5675 = vmatprep.mubr.f32.mxu0 %v5463
  %5676 = vmatmul.mubr.f32.gmra.mrb[0].mxu0 %v5462
  %v5677 = vpop.f32.mrb[0].mxu0
  %v5678 = vadd.f32 0.0, %v5677
  %v5679 = vpop.f32.mrb[0].mxu0
  %5680 = vmatprep.mubr.f32.mxu0 %v5461
  %5681 = vmatmul.mubr.f32.gmra.mrb[0].mxu0 %v5460
  %v5682 = vpop.f32.mrb[0].mxu0
  %v5683 = vadd.f32 0.0, %v5682
  %v5684 = vpop.f32.mrb[0].mxu0
  %5685 = vmatprep.mubr.f32.mxu0 %v5459
  %5686 = vmatmul.mubr.f32.gmra.mrb[0].mxu0 %v5458
  %v5687 = vpop.f32.mrb[0].mxu0
  %v5688 = vadd.f32 0.0, %v5687
  %v5689 = vpop.f32.mrb[0].mxu0
  %5690 = vmatprep.mubr.f32.mxu0 %v5457
  %5691 = vmatmul.mubr.f32.gmra.mrb[0].mxu0 %v5456
  %v5692 = vpop.f32.mrb[0].mxu0
  %v5693 = vadd.f32 0.0, %v5692
  %v5694 = vpop.f32.mrb[0].mxu0
  %5695 = vmatprep.mubr.f32.mxu0 %v5455
  %5696 = vmatmul.mubr.f32.gmra.mrb[0].mxu0 %v5454
  %v5697 = vpop.f32.mrb[0].mxu0
  %v5698 = vadd.f32 0.0, %v5697
  %v5699 = vpop.f32.mrb[0].mxu0
  %5700 = vmatprep.mubr.f32.mxu0 %v5453
  %5701 = vmatmul.mubr.f32.gmra.mrb[0].mxu0 %v5452
  %v5702 = vpop.f32.mrb[0].mxu0
  %v5703 = vadd.f32 0.0, %v5702
  %v5704 = vpop.f32.mrb[0].mxu0
  %5705 = vmatprep.mubr.f32.mxu0 %v5451
  %5706 = vmatmul.mubr.f32.gmra.mrb[0].mxu0 %v5450
  %v5707 = vpop.f32.mrb[0].mxu0
  %v5708 = vadd.f32 0.0, %v5707
  %v5709 = vpop.f32.mrb[0].mxu0
  %5710 = vmatprep.mubr.f32.mxu0 %v5449
  %5711 = vmatmul.mubr.f32.gmra.mrb[0].mxu0 %v5448
  %v5712 = vpop.f32.mrb[0].mxu0
  %v5713 = vadd.f32 0.0, %v5712
  %v5714 = vpop.f32.mrb[0].mxu0
  %5715 = vmatprep.mubr.f32.mxu0 %v5447
  %5716 = vmatmul.mubr.f32.gmra.mrb[0].mxu0 %v5446
  %v5717 = vpop.f32.mrb[0].mxu0
  %v5718 = vadd.f32 0.0, %v5717
  %v5719 = vpop.f32.mrb[0].mxu0
  %5720 = vmatprep.mubr.f32.mxu0 %v5445
  %5721 = vmatmul.mubr.f32.gmra.mrb[0].mxu0 %v5444
  %v5722 = vpop.f32.mrb[0].mxu0
  %v5723 = vadd.f32 0.0, %v5722
  %v5724 = vpop.f32.mrb[0].mxu0
  %5725 = vmatprep.mubr.f32.mxu0 %v5443
  %5726 = vmatmul.mubr.f32.gmra.mrb[0].mxu0 %v5442
  %v5727 = vpop.f32.mrb[0].mxu0
  %v5728 = vadd.f32 0.0, %v5727
  %v5729 = vpop.f32.mrb[0].mxu0
  %5730 = vmatprep.mubr.f32.mxu0 %v5441
  %5731 = vmatmul.mubr.f32.gmra.mrb[0].mxu0 %v5440
  %v5732 = vpop.f32.mrb[0].mxu0
  %v5733 = vadd.f32 0.0, %v5732
  %v5734 = vpop.f32.mrb[0].mxu0
  %5735 = vmatprep.mubr.f32.mxu0 %v5439
  %5736 = vmatmul.mubr.f32.gmra.mrb[0].mxu0 %v5438
  %v5737 = vpop.f32.mrb[0].mxu0
  %v5738 = vadd.f32 0.0, %v5737
  %v5739 = vpop.f32.mrb[0].mxu0
  %5740 = vmatprep.mubr.f32.mxu0 %v5437
  %5741 = vmatmul.mubr.f32.gmra.mrb[0].mxu0 %v5436
  %v5742 = vpop.f32.mrb[0].mxu0
  %v5743 = vadd.f32 0.0, %v5742
  %v5744 = vpop.f32.mrb[0].mxu0
  %5745 = vmatprep.mubr.f32.mxu0 %v5435
  %5746 = vmatmul.mubr.f32.gmra.mrb[0].mxu0 %v5434
  %v5747 = vpop.f32.mrb[0].mxu0
  %v5748 = vadd.f32 0.0, %v5747
  %v5749 = vpop.f32.mrb[0].mxu0
  %5750 = vmatprep.mubr.f32.mxu0 %v5497
  %5751 = vmatmul.mubr.f32.gmra.mrb[0].mxu0 %v5496
  %v5752 = vpop.f32.mrb[0].mxu0
  %v5753 = vadd.f32 0.0, %v5752
  %v5754 = vpop.f32.mrb[0].mxu0
  %5755 = vdwg.mxu0
  %5756 = vmatprep.subr.mxu0 0.0
  %5757 = vmatpush1.msra.mxu0 %v5338
  %5758 = vmatprep.subr.mxu0 0.0
  %5759 = vmatpush1.msra.mxu0 %v5339
  %5760 = vmatprep.subr.mxu0 0.0
  %5761 = vmatpush1.msra.mxu0 %v5340
  %5762 = vmatprep.subr.mxu0 0.0
  %5763 = vmatpush1.msra.mxu0 %v5341
  %5764 = vmatprep.subr.mxu0 0.0
  %5765 = vmatpush1.msra.mxu0 %v5342
  %5766 = vmatprep.subr.mxu0 0.0
  %5767 = vmatpush1.msra.mxu0 %v5343
  %5768 = vmatprep.subr.mxu0 0.0
  %5769 = vmatpush1.msra.mxu0 %v5344
  %5770 = vmatprep.subr.mxu0 0.0
  %5771 = vmatpush1.msra.mxu0 %v5345
  %5772 = vmatprep.subr.mxu0 0.0
  %5773 = vmatpush1.msra.mxu0 %v5346
  %5774 = vmatprep.subr.mxu0 0.0
  %5775 = vmatpush1.msra.mxu0 %v5347
  %5776 = vmatprep.subr.mxu0 0.0
  %5777 = vmatpush1.msra.mxu0 %v5348
  %5778 = vmatprep.subr.mxu0 0.0
  %5779 = vmatpush1.msra.mxu0 %v5349
  %5780 = vmatprep.subr.mxu0 0.0
  %5781 = vmatpush1.msra.mxu0 %v5350
  %5782 = vmatprep.subr.mxu0 0.0
  %5783 = vmatpush1.msra.mxu0 %v5351
  %5784 = vmatprep.subr.mxu0 0.0
  %5785 = vmatpush1.msra.mxu0 %v5352
  %5786 = vmatprep.subr.mxu0 0.0
  %5787 = vmatpush1.msra.mxu0 %v5353
  %5788 = vmatprep.subr.mxu0 0.0
  %5789 = vmatpush1.msra.mxu0 %v5354
  %5790 = vmatprep.subr.mxu0 0.0
  %5791 = vmatpush1.msra.mxu0 %v5355
  %5792 = vmatprep.subr.mxu0 0.0
  %5793 = vmatpush1.msra.mxu0 %v5356
  %5794 = vmatprep.subr.mxu0 0.0
  %5795 = vmatpush1.msra.mxu0 %v5357
  %5796 = vmatprep.subr.mxu0 0.0
  %5797 = vmatpush1.msra.mxu0 %v5358
  %5798 = vmatprep.subr.mxu0 0.0
  %5799 = vmatpush1.msra.mxu0 %v5359
  %5800 = vmatprep.subr.mxu0 0.0
  %5801 = vmatpush1.msra.mxu0 %v5360
  %5802 = vmatprep.subr.mxu0 0.0
  %5803 = vmatpush1.msra.mxu0 %v5361
  %5804 = vmatprep.subr.mxu0 0.0
  %5805 = vmatpush1.msra.mxu0 %v5362
  %5806 = vmatprep.subr.mxu0 0.0
  %5807 = vmatpush1.msra.mxu0 %v5363
  %5808 = vmatprep.subr.mxu0 0.0
  %5809 = vmatpush1.msra.mxu0 %v5364
  %5810 = vmatprep.subr.mxu0 0.0
  %5811 = vmatpush1.msra.mxu0 %v5365
  %5812 = vmatprep.subr.mxu0 0.0
  %5813 = vmatpush1.msra.mxu0 %v5366
  %5814 = vmatprep.subr.mxu0 0.0
  %5815 = vmatpush1.msra.mxu0 %v5367
  %5816 = vmatprep.subr.mxu0 0.0
  %5817 = vmatpush1.msra.mxu0 %v5368
  %5818 = vmatprep.subr.mxu0 0.0
  %5819 = vmatpush1.msra.mxu0 %v5369
  %5820 = vmatprep.mubr.f32.mxu0 %v5275
  %5821 = vmatmul.mubr.f32.gmra.mrb[0].mxu0 %v5274
  %v5822 = vpop.f32.mrb[0].mxu0
  %v5823 = vadd.f32 %v5598, %v5822
  %v5824 = vpop.f32.mrb[0].mxu0
  %5825 = vmatprep.mubr.f32.mxu0 %v5277
  %5826 = vmatmul.mubr.f32.gmra.mrb[0].mxu0 %v5276
  %v5827 = vpop.f32.mrb[0].mxu0
  %v5828 = vadd.f32 %v5603, %v5827
  %v5829 = vpop.f32.mrb[0].mxu0
  %5830 = vmatprep.mubr.f32.mxu0 %v5279
  %5831 = vmatmul.mubr.f32.gmra.mrb[0].mxu0 %v5278
  %v5832 = vpop.f32.mrb[0].mxu0
  %v5833 = vadd.f32 %v5608, %v5832
  %v5834 = vpop.f32.mrb[0].mxu0
  %5835 = vmatprep.mubr.f32.mxu0 %v5281
  %5836 = vmatmul.mubr.f32.gmra.mrb[0].mxu0 %v5280
  %v5837 = vpop.f32.mrb[0].mxu0
  %v5838 = vadd.f32 %v5613, %v5837
  %v5839 = vpop.f32.mrb[0].mxu0
  %5840 = vmatprep.mubr.f32.mxu0 %v5283
  %5841 = vmatmul.mubr.f32.gmra.mrb[0].mxu0 %v5282
  %v5842 = vpop.f32.mrb[0].mxu0
  %v5843 = vadd.f32 %v5618, %v5842
  %v5844 = vpop.f32.mrb[0].mxu0
  %5845 = vmatprep.mubr.f32.mxu0 %v5285
  %5846 = vmatmul.mubr.f32.gmra.mrb[0].mxu0 %v5284
  %v5847 = vpop.f32.mrb[0].mxu0
  %v5848 = vadd.f32 %v5623, %v5847
  %v5849 = vpop.f32.mrb[0].mxu0
  %5850 = vmatprep.mubr.f32.mxu0 %v5287
  %5851 = vmatmul.mubr.f32.gmra.mrb[0].mxu0 %v5286
  %v5852 = vpop.f32.mrb[0].mxu0
  %v5853 = vadd.f32 %v5628, %v5852
  %v5854 = vpop.f32.mrb[0].mxu0
  %5855 = vmatprep.mubr.f32.mxu0 %v5289
  %5856 = vmatmul.mubr.f32.gmra.mrb[0].mxu0 %v5288
  %v5857 = vpop.f32.mrb[0].mxu0
  %v5858 = vadd.f32 %v5633, %v5857
  %v5859 = vpop.f32.mrb[0].mxu0
  %5860 = vmatprep.mubr.f32.mxu0 %v5291
  %5861 = vmatmul.mubr.f32.gmra.mrb[0].mxu0 %v5290
  %v5862 = vpop.f32.mrb[0].mxu0
  %v5863 = vadd.f32 %v5638, %v5862
  %v5864 = vpop.f32.mrb[0].mxu0
  %5865 = vmatprep.mubr.f32.mxu0 %v5293
  %5866 = vmatmul.mubr.f32.gmra.mrb[0].mxu0 %v5292
  %v5867 = vpop.f32.mrb[0].mxu0
  %v5868 = vadd.f32 %v5643, %v5867
  %v5869 = vpop.f32.mrb[0].mxu0
  %5870 = vmatprep.mubr.f32.mxu0 %v5295
  %5871 = vmatmul.mubr.f32.gmra.mrb[0].mxu0 %v5294
  %v5872 = vpop.f32.mrb[0].mxu0
  %v5873 = vadd.f32 %v5648, %v5872
  %v5874 = vpop.f32.mrb[0].mxu0
  %5875 = vmatprep.mubr.f32.mxu0 %v5297
  %5876 = vmatmul.mubr.f32.gmra.mrb[0].mxu0 %v5296
  %v5877 = vpop.f32.mrb[0].mxu0
  %v5878 = vadd.f32 %v5653, %v5877
  %v5879 = vpop.f32.mrb[0].mxu0
  %5880 = vmatprep.mubr.f32.mxu0 %v5299
  %5881 = vmatmul.mubr.f32.gmra.mrb[0].mxu0 %v5298
  %v5882 = vpop.f32.mrb[0].mxu0
  %v5883 = vadd.f32 %v5658, %v5882
  %v5884 = vpop.f32.mrb[0].mxu0
  %5885 = vmatprep.mubr.f32.mxu0 %v5301
  %5886 = vmatmul.mubr.f32.gmra.mrb[0].mxu0 %v5300
  %v5887 = vpop.f32.mrb[0].mxu0
  %v5888 = vadd.f32 %v5663, %v5887
  %v5889 = vpop.f32.mrb[0].mxu0
  %5890 = vmatprep.mubr.f32.mxu0 %v5303
  %5891 = vmatmul.mubr.f32.gmra.mrb[0].mxu0 %v5302
  %v5892 = vpop.f32.mrb[0].mxu0
  %v5893 = vadd.f32 %v5668, %v5892
  %v5894 = vpop.f32.mrb[0].mxu0
  %5895 = vmatprep.mubr.f32.mxu0 %v5305
  %5896 = vmatmul.mubr.f32.gmra.mrb[0].mxu0 %v5304
  %v5897 = vpop.f32.mrb[0].mxu0
  %v5898 = vadd.f32 %v5673, %v5897
  %v5899 = vpop.f32.mrb[0].mxu0
  %5900 = vmatprep.mubr.f32.mxu0 %v5307
  %5901 = vmatmul.mubr.f32.gmra.mrb[0].mxu0 %v5306
  %v5902 = vpop.f32.mrb[0].mxu0
  %v5903 = vadd.f32 %v5678, %v5902
  %v5904 = vpop.f32.mrb[0].mxu0
  %5905 = vmatprep.mubr.f32.mxu0 %v5309
  %5906 = vmatmul.mubr.f32.gmra.mrb[0].mxu0 %v5308
  %v5907 = vpop.f32.mrb[0].mxu0
  %v5908 = vadd.f32 %v5683, %v5907
  %v5909 = vpop.f32.mrb[0].mxu0
  %5910 = vmatprep.mubr.f32.mxu0 %v5311
  %5911 = vmatmul.mubr.f32.gmra.mrb[0].mxu0 %v5310
  %v5912 = vpop.f32.mrb[0].mxu0
  %v5913 = vadd.f32 %v5688, %v5912
  %v5914 = vpop.f32.mrb[0].mxu0
  %5915 = vmatprep.mubr.f32.mxu0 %v5313
  %5916 = vmatmul.mubr.f32.gmra.mrb[0].mxu0 %v5312
  %v5917 = vpop.f32.mrb[0].mxu0
  %v5918 = vadd.f32 %v5693, %v5917
  %v5919 = vpop.f32.mrb[0].mxu0
  %5920 = vmatprep.mubr.f32.mxu0 %v5315
  %5921 = vmatmul.mubr.f32.gmra.mrb[0].mxu0 %v5314
  %v5922 = vpop.f32.mrb[0].mxu0
  %v5923 = vadd.f32 %v5698, %v5922
  %v5924 = vpop.f32.mrb[0].mxu0
  %5925 = vmatprep.mubr.f32.mxu0 %v5317
  %5926 = vmatmul.mubr.f32.gmra.mrb[0].mxu0 %v5316
  %v5927 = vpop.f32.mrb[0].mxu0
  %v5928 = vadd.f32 %v5703, %v5927
  %v5929 = vpop.f32.mrb[0].mxu0
  %5930 = vmatprep.mubr.f32.mxu0 %v5319
  %5931 = vmatmul.mubr.f32.gmra.mrb[0].mxu0 %v5318
  %v5932 = vpop.f32.mrb[0].mxu0
  %v5933 = vadd.f32 %v5708, %v5932
  %v5934 = vpop.f32.mrb[0].mxu0
  %5935 = vmatprep.mubr.f32.mxu0 %v5321
  %5936 = vmatmul.mubr.f32.gmra.mrb[0].mxu0 %v5320
  %v5937 = vpop.f32.mrb[0].mxu0
  %v5938 = vadd.f32 %v5713, %v5937
  %v5939 = vpop.f32.mrb[0].mxu0
  %5940 = vmatprep.mubr.f32.mxu0 %v5323
  %5941 = vmatmul.mubr.f32.gmra.mrb[0].mxu0 %v5322
  %v5942 = vpop.f32.mrb[0].mxu0
  %v5943 = vadd.f32 %v5718, %v5942
  %v5944 = vpop.f32.mrb[0].mxu0
  %5945 = vmatprep.mubr.f32.mxu0 %v5325
  %5946 = vmatmul.mubr.f32.gmra.mrb[0].mxu0 %v5324
  %v5947 = vpop.f32.mrb[0].mxu0
  %v5948 = vadd.f32 %v5723, %v5947
  %v5949 = vpop.f32.mrb[0].mxu0
  %5950 = vmatprep.mubr.f32.mxu0 %v5327
  %5951 = vmatmul.mubr.f32.gmra.mrb[0].mxu0 %v5326
  %v5952 = vpop.f32.mrb[0].mxu0
  %v5953 = vadd.f32 %v5728, %v5952
  %v5954 = vpop.f32.mrb[0].mxu0
  %5955 = vmatprep.mubr.f32.mxu0 %v5329
  %5956 = vmatmul.mubr.f32.gmra.mrb[0].mxu0 %v5328
  %v5957 = vpop.f32.mrb[0].mxu0
  %v5958 = vadd.f32 %v5733, %v5957
  %v5959 = vpop.f32.mrb[0].mxu0
  %5960 = vmatprep.mubr.f32.mxu0 %v5331
  %5961 = vmatmul.mubr.f32.gmra.mrb[0].mxu0 %v5330
  %v5962 = vpop.f32.mrb[0].mxu0
  %v5963 = vadd.f32 %v5738, %v5962
  %v5964 = vpop.f32.mrb[0].mxu0
  %5965 = vmatprep.mubr.f32.mxu0 %v5333
  %5966 = vmatmul.mubr.f32.gmra.mrb[0].mxu0 %v5332
  %v5967 = vpop.f32.mrb[0].mxu0
  %v5968 = vadd.f32 %v5743, %v5967
  %v5969 = vpop.f32.mrb[0].mxu0
  %5970 = vmatprep.mubr.f32.mxu0 %v5335
  %5971 = vmatmul.mubr.f32.gmra.mrb[0].mxu0 %v5334
  %v5972 = vpop.f32.mrb[0].mxu0
  %v5973 = vadd.f32 %v5748, %v5972
  %v5974 = vpop.f32.mrb[0].mxu0
  %5975 = vmatprep.mubr.f32.mxu0 %v5337
  %5976 = vmatmul.mubr.f32.gmra.mrb[0].mxu0 %v5336
  %v5977 = vpop.f32.mrb[0].mxu0
  %v5978 = vadd.f32 %v5753, %v5977
  %v5979 = vpop.f32.mrb[0].mxu0
  %5980 = vdwg.mxu0
  %s5981 = scalar_lea.vmem %s5, 512
  %v5982 = vld [vmem:[%s5981] sm:$0xff]
  %v5983 = vld [vmem:[%s5981 + $0x8] sm:$0xff]
  %v5984 = vld [vmem:[%s5981 + $0x10] sm:$0xff]
  %v5985 = vld [vmem:[%s5981 + $0x18] sm:$0xff]
  %v5986 = vld [vmem:[%s5981 + $0x20] sm:$0xff]
  %v5987 = vld [vmem:[%s5981 + $0x28] sm:$0xff]
  %v5988 = vld [vmem:[%s5981 + $0x30] sm:$0xff]
  %v5989 = vld [vmem:[%s5981 + $0x38] sm:$0xff]
  %v5990 = vld [vmem:[%s5981 + $0x40] sm:$0xff]
  %v5991 = vld [vmem:[%s5981 + $0x48] sm:$0xff]
  %v5992 = vld [vmem:[%s5981 + $0x50] sm:$0xff]
  %v5993 = vld [vmem:[%s5981 + $0x58] sm:$0xff]
  %v5994 = vld [vmem:[%s5981 + $0x60] sm:$0xff]
  %v5995 = vld [vmem:[%s5981 + $0x68] sm:$0xff]
  %v5996 = vld [vmem:[%s5981 + $0x70] sm:$0xff]
  %v5997 = vld [vmem:[%s5981 + $0x78] sm:$0xff]
  %v5998 = vld [vmem:[%s5981 + $0x80] sm:$0xff]
  %v5999 = vld [vmem:[%s5981 + $0x88] sm:$0xff]
  %v6000 = vld [vmem:[%s5981 + $0x90] sm:$0xff]
  %v6001 = vld [vmem:[%s5981 + $0x98] sm:$0xff]
  %v6002 = vld [vmem:[%s5981 + $0xa0] sm:$0xff]
  %v6003 = vld [vmem:[%s5981 + $0xa8] sm:$0xff]
  %v6004 = vld [vmem:[%s5981 + $0xb0] sm:$0xff]
  %v6005 = vld [vmem:[%s5981 + $0xb8] sm:$0xff]
  %v6006 = vld [vmem:[%s5981 + $0xc0] sm:$0xff]
  %v6007 = vld [vmem:[%s5981 + $0xc8] sm:$0xff]
  %v6008 = vld [vmem:[%s5981 + $0xd0] sm:$0xff]
  %v6009 = vld [vmem:[%s5981 + $0xd8] sm:$0xff]
  %v6010 = vld [vmem:[%s5981 + $0xe0] sm:$0xff]
  %v6011 = vld [vmem:[%s5981 + $0xe8] sm:$0xff]
  %v6012 = vld [vmem:[%s5981 + $0xf0] sm:$0xff]
  %v6013 = vld [vmem:[%s5981 + $0xf8] sm:$0xff]
  %6014 = vmatprep.subr.mxu0 0.0
  %6015 = vmatpush1.msra.mxu0 %v5982
  %6016 = vmatprep.subr.mxu0 0.0
  %6017 = vmatpush1.msra.mxu0 %v5983
  %6018 = vmatprep.subr.mxu0 0.0
  %6019 = vmatpush1.msra.mxu0 %v5984
  %6020 = vmatprep.subr.mxu0 0.0
  %6021 = vmatpush1.msra.mxu0 %v5985
  %6022 = vmatprep.subr.mxu0 0.0
  %6023 = vmatpush1.msra.mxu0 %v5986
  %6024 = vmatprep.subr.mxu0 0.0
  %6025 = vmatpush1.msra.mxu0 %v5987
  %6026 = vmatprep.subr.mxu0 0.0
  %6027 = vmatpush1.msra.mxu0 %v5988
  %6028 = vmatprep.subr.mxu0 0.0
  %6029 = vmatpush1.msra.mxu0 %v5989
  %6030 = vmatprep.subr.mxu0 0.0
  %6031 = vmatpush1.msra.mxu0 %v5990
  %6032 = vmatprep.subr.mxu0 0.0
  %6033 = vmatpush1.msra.mxu0 %v5991
  %6034 = vmatprep.subr.mxu0 0.0
  %6035 = vmatpush1.msra.mxu0 %v5992
  %6036 = vmatprep.subr.mxu0 0.0
  %6037 = vmatpush1.msra.mxu0 %v5993
  %6038 = vmatprep.subr.mxu0 0.0
  %6039 = vmatpush1.msra.mxu0 %v5994
  %6040 = vmatprep.subr.mxu0 0.0
  %6041 = vmatpush1.msra.mxu0 %v5995
  %6042 = vmatprep.subr.mxu0 0.0
  %6043 = vmatpush1.msra.mxu0 %v5996
  %6044 = vmatprep.subr.mxu0 0.0
  %6045 = vmatpush1.msra.mxu0 %v5997
  %6046 = vmatprep.subr.mxu0 0.0
  %6047 = vmatpush1.msra.mxu0 %v5998
  %6048 = vmatprep.subr.mxu0 0.0
  %6049 = vmatpush1.msra.mxu0 %v5999
  %6050 = vmatprep.subr.mxu0 0.0
  %6051 = vmatpush1.msra.mxu0 %v6000
  %6052 = vmatprep.subr.mxu0 0.0
  %6053 = vmatpush1.msra.mxu0 %v6001
  %6054 = vmatprep.subr.mxu0 0.0
  %6055 = vmatpush1.msra.mxu0 %v6002
  %6056 = vmatprep.subr.mxu0 0.0
  %6057 = vmatpush1.msra.mxu0 %v6003
  %6058 = vmatprep.subr.mxu0 0.0
  %6059 = vmatpush1.msra.mxu0 %v6004
  %6060 = vmatprep.subr.mxu0 0.0
  %6061 = vmatpush1.msra.mxu0 %v6005
  %6062 = vmatprep.subr.mxu0 0.0
  %6063 = vmatpush1.msra.mxu0 %v6006
  %6064 = vmatprep.subr.mxu0 0.0
  %6065 = vmatpush1.msra.mxu0 %v6007
  %6066 = vmatprep.subr.mxu0 0.0
  %6067 = vmatpush1.msra.mxu0 %v6008
  %6068 = vmatprep.subr.mxu0 0.0
  %6069 = vmatpush1.msra.mxu0 %v6009
  %6070 = vmatprep.subr.mxu0 0.0
  %6071 = vmatpush1.msra.mxu0 %v6010
  %6072 = vmatprep.subr.mxu0 0.0
  %6073 = vmatpush1.msra.mxu0 %v6011
  %6074 = vmatprep.subr.mxu0 0.0
  %6075 = vmatpush1.msra.mxu0 %v6012
  %6076 = vmatprep.subr.mxu0 0.0
  %6077 = vmatpush1.msra.mxu0 %v6013
  %6078 = vmatprep.mubr.f32.mxu0 %v5277
  %6079 = vmatmul.mubr.f32.gmra.mrb[0].mxu0 %v5276
  %v6080 = vpop.f32.mrb[0].mxu0
  %v6081 = vadd.f32 0.0, %v6080
  %v6082 = vpop.f32.mrb[0].mxu0
  %6083 = vmatprep.mubr.f32.mxu0 %v5279
  %6084 = vmatmul.mubr.f32.gmra.mrb[0].mxu0 %v5278
  %v6085 = vpop.f32.mrb[0].mxu0
  %v6086 = vadd.f32 0.0, %v6085
  %v6087 = vpop.f32.mrb[0].mxu0
  %6088 = vmatprep.mubr.f32.mxu0 %v5281
  %6089 = vmatmul.mubr.f32.gmra.mrb[0].mxu0 %v5280
  %v6090 = vpop.f32.mrb[0].mxu0
  %v6091 = vadd.f32 0.0, %v6090
  %v6092 = vpop.f32.mrb[0].mxu0
  %6093 = vmatprep.mubr.f32.mxu0 %v5283
  %6094 = vmatmul.mubr.f32.gmra.mrb[0].mxu0 %v5282
  %v6095 = vpop.f32.mrb[0].mxu0
  %v6096 = vadd.f32 0.0, %v6095
  %v6097 = vpop.f32.mrb[0].mxu0
  %6098 = vmatprep.mubr.f32.mxu0 %v5285
  %6099 = vmatmul.mubr.f32.gmra.mrb[0].mxu0 %v5284
  %v6100 = vpop.f32.mrb[0].mxu0
  %v6101 = vadd.f32 0.0, %v6100
  %v6102 = vpop.f32.mrb[0].mxu0
  %6103 = vmatprep.mubr.f32.mxu0 %v5287
  %6104 = vmatmul.mubr.f32.gmra.mrb[0].mxu0 %v5286
  %v6105 = vpop.f32.mrb[0].mxu0
  %v6106 = vadd.f32 0.0, %v6105
  %v6107 = vpop.f32.mrb[0].mxu0
  %6108 = vmatprep.mubr.f32.mxu0 %v5289
  %6109 = vmatmul.mubr.f32.gmra.mrb[0].mxu0 %v5288
  %v6110 = vpop.f32.mrb[0].mxu0
  %v6111 = vadd.f32 0.0, %v6110
  %v6112 = vpop.f32.mrb[0].mxu0
  %6113 = vmatprep.mubr.f32.mxu0 %v5291
  %6114 = vmatmul.mubr.f32.gmra.mrb[0].mxu0 %v5290
  %v6115 = vpop.f32.mrb[0].mxu0
  %v6116 = vadd.f32 0.0, %v6115
  %v6117 = vpop.f32.mrb[0].mxu0
  %6118 = vmatprep.mubr.f32.mxu0 %v5293
  %6119 = vmatmul.mubr.f32.gmra.mrb[0].mxu0 %v5292
  %v6120 = vpop.f32.mrb[0].mxu0
  %v6121 = vadd.f32 0.0, %v6120
  %v6122 = vpop.f32.mrb[0].mxu0
  %6123 = vmatprep.mubr.f32.mxu0 %v5295
  %6124 = vmatmul.mubr.f32.gmra.mrb[0].mxu0 %v5294
  %v6125 = vpop.f32.mrb[0].mxu0
  %v6126 = vadd.f32 0.0, %v6125
  %v6127 = vpop.f32.mrb[0].mxu0
  %6128 = vmatprep.mubr.f32.mxu0 %v5297
  %6129 = vmatmul.mubr.f32.gmra.mrb[0].mxu0 %v5296
  %v6130 = vpop.f32.mrb[0].mxu0
  %v6131 = vadd.f32 0.0, %v6130
  %v6132 = vpop.f32.mrb[0].mxu0
  %6133 = vmatprep.mubr.f32.mxu0 %v5299
  %6134 = vmatmul.mubr.f32.gmra.mrb[0].mxu0 %v5298
  %v6135 = vpop.f32.mrb[0].mxu0
  %v6136 = vadd.f32 0.0, %v6135
  %v6137 = vpop.f32.mrb[0].mxu0
  %6138 = vmatprep.mubr.f32.mxu0 %v5301
  %6139 = vmatmul.mubr.f32.gmra.mrb[0].mxu0 %v5300
  %v6140 = vpop.f32.mrb[0].mxu0
  %v6141 = vadd.f32 0.0, %v6140
  %v6142 = vpop.f32.mrb[0].mxu0
  %6143 = vmatprep.mubr.f32.mxu0 %v5303
  %6144 = vmatmul.mubr.f32.gmra.mrb[0].mxu0 %v5302
  %v6145 = vpop.f32.mrb[0].mxu0
  %v6146 = vadd.f32 0.0, %v6145
  %v6147 = vpop.f32.mrb[0].mxu0
  %6148 = vmatprep.mubr.f32.mxu0 %v5305
  %6149 = vmatmul.mubr.f32.gmra.mrb[0].mxu0 %v5304
  %v6150 = vpop.f32.mrb[0].mxu0
  %v6151 = vadd.f32 0.0, %v6150
  %v6152 = vpop.f32.mrb[0].mxu0
  %6153 = vmatprep.mubr.f32.mxu0 %v5307
  %6154 = vmatmul.mubr.f32.gmra.mrb[0].mxu0 %v5306
  %v6155 = vpop.f32.mrb[0].mxu0
  %v6156 = vadd.f32 0.0, %v6155
  %v6157 = vpop.f32.mrb[0].mxu0
  %6158 = vmatprep.mubr.f32.mxu0 %v5309
  %6159 = vmatmul.mubr.f32.gmra.mrb[0].mxu0 %v5308
  %v6160 = vpop.f32.mrb[0].mxu0
  %v6161 = vadd.f32 0.0, %v6160
  %v6162 = vpop.f32.mrb[0].mxu0
  %6163 = vmatprep.mubr.f32.mxu0 %v5311
  %6164 = vmatmul.mubr.f32.gmra.mrb[0].mxu0 %v5310
  %v6165 = vpop.f32.mrb[0].mxu0
  %v6166 = vadd.f32 0.0, %v6165
  %v6167 = vpop.f32.mrb[0].mxu0
  %6168 = vmatprep.mubr.f32.mxu0 %v5313
  %6169 = vmatmul.mubr.f32.gmra.mrb[0].mxu0 %v5312
  %v6170 = vpop.f32.mrb[0].mxu0
  %v6171 = vadd.f32 0.0, %v6170
  %v6172 = vpop.f32.mrb[0].mxu0
  %6173 = vmatprep.mubr.f32.mxu0 %v5315
  %6174 = vmatmul.mubr.f32.gmra.mrb[0].mxu0 %v5314
  %v6175 = vpop.f32.mrb[0].mxu0
  %v6176 = vadd.f32 0.0, %v6175
  %v6177 = vpop.f32.mrb[0].mxu0
  %6178 = vmatprep.mubr.f32.mxu0 %v5317
  %6179 = vmatmul.mubr.f32.gmra.mrb[0].mxu0 %v5316
  %v6180 = vpop.f32.mrb[0].mxu0
  %v6181 = vadd.f32 0.0, %v6180
  %v6182 = vpop.f32.mrb[0].mxu0
  %6183 = vmatprep.mubr.f32.mxu0 %v5319
  %6184 = vmatmul.mubr.f32.gmra.mrb[0].mxu0 %v5318
  %v6185 = vpop.f32.mrb[0].mxu0
  %v6186 = vadd.f32 0.0, %v6185
  %v6187 = vpop.f32.mrb[0].mxu0
  %6188 = vmatprep.mubr.f32.mxu0 %v5321
  %6189 = vmatmul.mubr.f32.gmra.mrb[0].mxu0 %v5320
  %v6190 = vpop.f32.mrb[0].mxu0
  %v6191 = vadd.f32 0.0, %v6190
  %v6192 = vpop.f32.mrb[0].mxu0
  %6193 = vmatprep.mubr.f32.mxu0 %v5323
  %6194 = vmatmul.mubr.f32.gmra.mrb[0].mxu0 %v5322
  %v6195 = vpop.f32.mrb[0].mxu0
  %v6196 = vadd.f32 0.0, %v6195
  %v6197 = vpop.f32.mrb[0].mxu0
  %6198 = vmatprep.mubr.f32.mxu0 %v5325
  %6199 = vmatmul.mubr.f32.gmra.mrb[0].mxu0 %v5324
  %v6200 = vpop.f32.mrb[0].mxu0
  %v6201 = vadd.f32 0.0, %v6200
  %v6202 = vpop.f32.mrb[0].mxu0
  %6203 = vmatprep.mubr.f32.mxu0 %v5327
  %6204 = vmatmul.mubr.f32.gmra.mrb[0].mxu0 %v5326
  %v6205 = vpop.f32.mrb[0].mxu0
  %v6206 = vadd.f32 0.0, %v6205
  %v6207 = vpop.f32.mrb[0].mxu0
  %6208 = vmatprep.mubr.f32.mxu0 %v5329
  %6209 = vmatmul.mubr.f32.gmra.mrb[0].mxu0 %v5328
  %v6210 = vpop.f32.mrb[0].mxu0
  %v6211 = vadd.f32 0.0, %v6210
  %v6212 = vpop.f32.mrb[0].mxu0
  %6213 = vmatprep.mubr.f32.mxu0 %v5331
  %6214 = vmatmul.mubr.f32.gmra.mrb[0].mxu0 %v5330
  %v6215 = vpop.f32.mrb[0].mxu0
  %v6216 = vadd.f32 0.0, %v6215
  %v6217 = vpop.f32.mrb[0].mxu0
  %6218 = vmatprep.mubr.f32.mxu0 %v5333
  %6219 = vmatmul.mubr.f32.gmra.mrb[0].mxu0 %v5332
  %v6220 = vpop.f32.mrb[0].mxu0
  %v6221 = vadd.f32 0.0, %v6220
  %v6222 = vpop.f32.mrb[0].mxu0
  %6223 = vmatprep.mubr.f32.mxu0 %v5335
  %6224 = vmatmul.mubr.f32.gmra.mrb[0].mxu0 %v5334
  %v6225 = vpop.f32.mrb[0].mxu0
  %v6226 = vadd.f32 0.0, %v6225
  %v6227 = vpop.f32.mrb[0].mxu0
  %6228 = vmatprep.mubr.f32.mxu0 %v5337
  %6229 = vmatmul.mubr.f32.gmra.mrb[0].mxu0 %v5336
  %v6230 = vpop.f32.mrb[0].mxu0
  %v6231 = vadd.f32 0.0, %v6230
  %v6232 = vpop.f32.mrb[0].mxu0
  %6233 = vmatprep.mubr.f32.mxu0 %v5275
  %6234 = vmatmul.mubr.f32.gmra.mrb[0].mxu0 %v5274
  %v6235 = vpop.f32.mrb[0].mxu0
  %v6236 = vadd.f32 0.0, %v6235
  %v6237 = vpop.f32.mrb[0].mxu0
  %6238 = vdwg.mxu0
  %v6239 = vadd.f32 %v5823, %v6081
  %v6240 = vadd.f32 %v5828, %v6086
  %v6241 = vadd.f32 %v5833, %v6091
  %v6242 = vadd.f32 %v5838, %v6096
  %v6243 = vadd.f32 %v5843, %v6101
  %v6244 = vadd.f32 %v5848, %v6106
  %v6245 = vadd.f32 %v5853, %v6111
  %v6246 = vadd.f32 %v5858, %v6116
  %v6247 = vadd.f32 %v5863, %v6121
  %v6248 = vadd.f32 %v5868, %v6126
  %v6249 = vadd.f32 %v5873, %v6131
  %v6250 = vadd.f32 %v5878, %v6136
  %v6251 = vadd.f32 %v5883, %v6141
  %v6252 = vadd.f32 %v5888, %v6146
  %v6253 = vadd.f32 %v5893, %v6151
  %v6254 = vadd.f32 %v5898, %v6156
  %v6255 = vadd.f32 %v5903, %v6161
  %v6256 = vadd.f32 %v5908, %v6166
  %v6257 = vadd.f32 %v5913, %v6171
  %v6258 = vadd.f32 %v5918, %v6176
  %v6259 = vadd.f32 %v5923, %v6181
  %v6260 = vadd.f32 %v5928, %v6186
  %v6261 = vadd.f32 %v5933, %v6191
  %v6262 = vadd.f32 %v5938, %v6196
  %v6263 = vadd.f32 %v5943, %v6201
  %v6264 = vadd.f32 %v5948, %v6206
  %v6265 = vadd.f32 %v5953, %v6211
  %v6266 = vadd.f32 %v5958, %v6216
  %v6267 = vadd.f32 %v5963, %v6221
  %v6268 = vadd.f32 %v5968, %v6226
  %v6269 = vadd.f32 %v5973, %v6231
  %v6270 = vadd.f32 %v5978, %v6236
  %s6271 = scalar_lea.vmem %s5, 768
  %v6272 = vld [vmem:[%s6271] sm:$0xff]
  %v6273 = vld [vmem:[%s6271 + $0x8] sm:$0xff]
  %v6274 = vld [vmem:[%s6271 + $0x10] sm:$0xff]
  %v6275 = vld [vmem:[%s6271 + $0x18] sm:$0xff]
  %v6276 = vld [vmem:[%s6271 + $0x20] sm:$0xff]
  %v6277 = vld [vmem:[%s6271 + $0x28] sm:$0xff]
  %v6278 = vld [vmem:[%s6271 + $0x30] sm:$0xff]
  %v6279 = vld [vmem:[%s6271 + $0x38] sm:$0xff]
  %v6280 = vld [vmem:[%s6271 + $0x40] sm:$0xff]
  %v6281 = vld [vmem:[%s6271 + $0x48] sm:$0xff]
  %v6282 = vld [vmem:[%s6271 + $0x50] sm:$0xff]
  %v6283 = vld [vmem:[%s6271 + $0x58] sm:$0xff]
  %v6284 = vld [vmem:[%s6271 + $0x60] sm:$0xff]
  %v6285 = vld [vmem:[%s6271 + $0x68] sm:$0xff]
  %v6286 = vld [vmem:[%s6271 + $0x70] sm:$0xff]
  %v6287 = vld [vmem:[%s6271 + $0x78] sm:$0xff]
  %v6288 = vld [vmem:[%s6271 + $0x80] sm:$0xff]
  %v6289 = vld [vmem:[%s6271 + $0x88] sm:$0xff]
  %v6290 = vld [vmem:[%s6271 + $0x90] sm:$0xff]
  %v6291 = vld [vmem:[%s6271 + $0x98] sm:$0xff]
  %v6292 = vld [vmem:[%s6271 + $0xa0] sm:$0xff]
  %v6293 = vld [vmem:[%s6271 + $0xa8] sm:$0xff]
  %v6294 = vld [vmem:[%s6271 + $0xb0] sm:$0xff]
  %v6295 = vld [vmem:[%s6271 + $0xb8] sm:$0xff]
  %v6296 = vld [vmem:[%s6271 + $0xc0] sm:$0xff]
  %v6297 = vld [vmem:[%s6271 + $0xc8] sm:$0xff]
  %v6298 = vld [vmem:[%s6271 + $0xd0] sm:$0xff]
  %v6299 = vld [vmem:[%s6271 + $0xd8] sm:$0xff]
  %v6300 = vld [vmem:[%s6271 + $0xe0] sm:$0xff]
  %v6301 = vld [vmem:[%s6271 + $0xe8] sm:$0xff]
  %v6302 = vld [vmem:[%s6271 + $0xf0] sm:$0xff]
  %v6303 = vld [vmem:[%s6271 + $0xf8] sm:$0xff]
  %6304 = vmatprep.subr.mxu0 0.0
  %6305 = vmatpush1.msra.mxu0 %v6272
  %6306 = vmatprep.subr.mxu0 0.0
  %6307 = vmatpush1.msra.mxu0 %v6273
  %6308 = vmatprep.subr.mxu0 0.0
  %6309 = vmatpush1.msra.mxu0 %v6274
  %6310 = vmatprep.subr.mxu0 0.0
  %6311 = vmatpush1.msra.mxu0 %v6275
  %6312 = vmatprep.subr.mxu0 0.0
  %6313 = vmatpush1.msra.mxu0 %v6276
  %6314 = vmatprep.subr.mxu0 0.0
  %6315 = vmatpush1.msra.mxu0 %v6277
  %6316 = vmatprep.subr.mxu0 0.0
  %6317 = vmatpush1.msra.mxu0 %v6278
  %6318 = vmatprep.subr.mxu0 0.0
  %6319 = vmatpush1.msra.mxu0 %v6279
  %6320 = vmatprep.subr.mxu0 0.0
  %6321 = vmatpush1.msra.mxu0 %v6280
  %6322 = vmatprep.subr.mxu0 0.0
  %6323 = vmatpush1.msra.mxu0 %v6281
  %6324 = vmatprep.subr.mxu0 0.0
  %6325 = vmatpush1.msra.mxu0 %v6282
  %6326 = vmatprep.subr.mxu0 0.0
  %6327 = vmatpush1.msra.mxu0 %v6283
  %6328 = vmatprep.subr.mxu0 0.0
  %6329 = vmatpush1.msra.mxu0 %v6284
  %6330 = vmatprep.subr.mxu0 0.0
  %6331 = vmatpush1.msra.mxu0 %v6285
  %6332 = vmatprep.subr.mxu0 0.0
  %6333 = vmatpush1.msra.mxu0 %v6286
  %6334 = vmatprep.subr.mxu0 0.0
  %6335 = vmatpush1.msra.mxu0 %v6287
  %6336 = vmatprep.subr.mxu0 0.0
  %6337 = vmatpush1.msra.mxu0 %v6288
  %6338 = vmatprep.subr.mxu0 0.0
  %6339 = vmatpush1.msra.mxu0 %v6289
  %6340 = vmatprep.subr.mxu0 0.0
  %6341 = vmatpush1.msra.mxu0 %v6290
  %6342 = vmatprep.subr.mxu0 0.0
  %6343 = vmatpush1.msra.mxu0 %v6291
  %6344 = vmatprep.subr.mxu0 0.0
  %6345 = vmatpush1.msra.mxu0 %v6292
  %6346 = vmatprep.subr.mxu0 0.0
  %6347 = vmatpush1.msra.mxu0 %v6293
  %6348 = vmatprep.subr.mxu0 0.0
  %6349 = vmatpush1.msra.mxu0 %v6294
  %6350 = vmatprep.subr.mxu0 0.0
  %6351 = vmatpush1.msra.mxu0 %v6295
  %6352 = vmatprep.subr.mxu0 0.0
  %6353 = vmatpush1.msra.mxu0 %v6296
  %6354 = vmatprep.subr.mxu0 0.0
  %6355 = vmatpush1.msra.mxu0 %v6297
  %6356 = vmatprep.subr.mxu0 0.0
  %6357 = vmatpush1.msra.mxu0 %v6298
  %6358 = vmatprep.subr.mxu0 0.0
  %6359 = vmatpush1.msra.mxu0 %v6299
  %6360 = vmatprep.subr.mxu0 0.0
  %6361 = vmatpush1.msra.mxu0 %v6300
  %6362 = vmatprep.subr.mxu0 0.0
  %6363 = vmatpush1.msra.mxu0 %v6301
  %6364 = vmatprep.subr.mxu0 0.0
  %6365 = vmatpush1.msra.mxu0 %v6302
  %6366 = vmatprep.subr.mxu0 0.0
  %6367 = vmatpush1.msra.mxu0 %v6303
  %6368 = vmatprep.mubr.f32.mxu0 %v5493
  %6369 = vmatmul.mubr.f32.gmra.mrb[0].mxu0 %v5492
  %v6370 = vpop.f32.mrb[0].mxu0
  %v6371 = vadd.f32 0.0, %v6370
  %v6372 = vpop.f32.mrb[0].mxu0
  %6373 = vmatprep.mubr.f32.mxu0 %v5491
  %6374 = vmatmul.mubr.f32.gmra.mrb[0].mxu0 %v5490
  %v6375 = vpop.f32.mrb[0].mxu0
  %v6376 = vadd.f32 0.0, %v6375
  %v6377 = vpop.f32.mrb[0].mxu0
  %6378 = vmatprep.mubr.f32.mxu0 %v5489
  %6379 = vmatmul.mubr.f32.gmra.mrb[0].mxu0 %v5488
  %v6380 = vpop.f32.mrb[0].mxu0
  %v6381 = vadd.f32 0.0, %v6380
  %v6382 = vpop.f32.mrb[0].mxu0
  %6383 = vmatprep.mubr.f32.mxu0 %v5487
  %6384 = vmatmul.mubr.f32.gmra.mrb[0].mxu0 %v5486
  %v6385 = vpop.f32.mrb[0].mxu0
  %v6386 = vadd.f32 0.0, %v6385
  %v6387 = vpop.f32.mrb[0].mxu0
  %6388 = vmatprep.mubr.f32.mxu0 %v5485
  %6389 = vmatmul.mubr.f32.gmra.mrb[0].mxu0 %v5484
  %v6390 = vpop.f32.mrb[0].mxu0
  %v6391 = vadd.f32 0.0, %v6390
  %v6392 = vpop.f32.mrb[0].mxu0
  %6393 = vmatprep.mubr.f32.mxu0 %v5483
  %6394 = vmatmul.mubr.f32.gmra.mrb[0].mxu0 %v5482
  %v6395 = vpop.f32.mrb[0].mxu0
  %v6396 = vadd.f32 0.0, %v6395
  %v6397 = vpop.f32.mrb[0].mxu0
  %6398 = vmatprep.mubr.f32.mxu0 %v5481
  %6399 = vmatmul.mubr.f32.gmra.mrb[0].mxu0 %v5480
  %v6400 = vpop.f32.mrb[0].mxu0
  %v6401 = vadd.f32 0.0, %v6400
  %v6402 = vpop.f32.mrb[0].mxu0
  %6403 = vmatprep.mubr.f32.mxu0 %v5479
  %6404 = vmatmul.mubr.f32.gmra.mrb[0].mxu0 %v5478
  %v6405 = vpop.f32.mrb[0].mxu0
  %v6406 = vadd.f32 0.0, %v6405
  %v6407 = vpop.f32.mrb[0].mxu0
  %6408 = vmatprep.mubr.f32.mxu0 %v5477
  %6409 = vmatmul.mubr.f32.gmra.mrb[0].mxu0 %v5476
  %v6410 = vpop.f32.mrb[0].mxu0
  %v6411 = vadd.f32 0.0, %v6410
  %v6412 = vpop.f32.mrb[0].mxu0
  %6413 = vmatprep.mubr.f32.mxu0 %v5475
  %6414 = vmatmul.mubr.f32.gmra.mrb[0].mxu0 %v5474
  %v6415 = vpop.f32.mrb[0].mxu0
  %v6416 = vadd.f32 0.0, %v6415
  %v6417 = vpop.f32.mrb[0].mxu0
  %6418 = vmatprep.mubr.f32.mxu0 %v5473
  %6419 = vmatmul.mubr.f32.gmra.mrb[0].mxu0 %v5472
  %v6420 = vpop.f32.mrb[0].mxu0
  %v6421 = vadd.f32 0.0, %v6420
  %v6422 = vpop.f32.mrb[0].mxu0
  %6423 = vmatprep.mubr.f32.mxu0 %v5471
  %6424 = vmatmul.mubr.f32.gmra.mrb[0].mxu0 %v5470
  %v6425 = vpop.f32.mrb[0].mxu0
  %v6426 = vadd.f32 0.0, %v6425
  %v6427 = vpop.f32.mrb[0].mxu0
  %6428 = vmatprep.mubr.f32.mxu0 %v5469
  %6429 = vmatmul.mubr.f32.gmra.mrb[0].mxu0 %v5468
  %v6430 = vpop.f32.mrb[0].mxu0
  %v6431 = vadd.f32 0.0, %v6430
  %v6432 = vpop.f32.mrb[0].mxu0
  %6433 = vmatprep.mubr.f32.mxu0 %v5467
  %6434 = vmatmul.mubr.f32.gmra.mrb[0].mxu0 %v5466
  %v6435 = vpop.f32.mrb[0].mxu0
  %v6436 = vadd.f32 0.0, %v6435
  %v6437 = vpop.f32.mrb[0].mxu0
  %6438 = vmatprep.mubr.f32.mxu0 %v5465
  %6439 = vmatmul.mubr.f32.gmra.mrb[0].mxu0 %v5464
  %v6440 = vpop.f32.mrb[0].mxu0
  %v6441 = vadd.f32 0.0, %v6440
  %v6442 = vpop.f32.mrb[0].mxu0
  %6443 = vmatprep.mubr.f32.mxu0 %v5463
  %6444 = vmatmul.mubr.f32.gmra.mrb[0].mxu0 %v5462
  %v6445 = vpop.f32.mrb[0].mxu0
  %v6446 = vadd.f32 0.0, %v6445
  %v6447 = vpop.f32.mrb[0].mxu0
  %6448 = vmatprep.mubr.f32.mxu0 %v5461
  %6449 = vmatmul.mubr.f32.gmra.mrb[0].mxu0 %v5460
  %v6450 = vpop.f32.mrb[0].mxu0
  %v6451 = vadd.f32 0.0, %v6450
  %v6452 = vpop.f32.mrb[0].mxu0
  %6453 = vmatprep.mubr.f32.mxu0 %v5459
  %6454 = vmatmul.mubr.f32.gmra.mrb[0].mxu0 %v5458
  %v6455 = vpop.f32.mrb[0].mxu0
  %v6456 = vadd.f32 0.0, %v6455
  %v6457 = vpop.f32.mrb[0].mxu0
  %6458 = vmatprep.mubr.f32.mxu0 %v5457
  %6459 = vmatmul.mubr.f32.gmra.mrb[0].mxu0 %v5456
  %v6460 = vpop.f32.mrb[0].mxu0
  %v6461 = vadd.f32 0.0, %v6460
  %v6462 = vpop.f32.mrb[0].mxu0
  %6463 = vmatprep.mubr.f32.mxu0 %v5455
  %6464 = vmatmul.mubr.f32.gmra.mrb[0].mxu0 %v5454
  %v6465 = vpop.f32.mrb[0].mxu0
  %v6466 = vadd.f32 0.0, %v6465
  %v6467 = vpop.f32.mrb[0].mxu0
  %6468 = vmatprep.mubr.f32.mxu0 %v5453
  %6469 = vmatmul.mubr.f32.gmra.mrb[0].mxu0 %v5452
  %v6470 = vpop.f32.mrb[0].mxu0
  %v6471 = vadd.f32 0.0, %v6470
  %v6472 = vpop.f32.mrb[0].mxu0
  %6473 = vmatprep.mubr.f32.mxu0 %v5451
  %6474 = vmatmul.mubr.f32.gmra.mrb[0].mxu0 %v5450
  %v6475 = vpop.f32.mrb[0].mxu0
  %v6476 = vadd.f32 0.0, %v6475
  %v6477 = vpop.f32.mrb[0].mxu0
  %6478 = vmatprep.mubr.f32.mxu0 %v5449
  %6479 = vmatmul.mubr.f32.gmra.mrb[0].mxu0 %v5448
  %v6480 = vpop.f32.mrb[0].mxu0
  %v6481 = vadd.f32 0.0, %v6480
  %v6482 = vpop.f32.mrb[0].mxu0
  %6483 = vmatprep.mubr.f32.mxu0 %v5447
  %6484 = vmatmul.mubr.f32.gmra.mrb[0].mxu0 %v5446
  %v6485 = vpop.f32.mrb[0].mxu0
  %v6486 = vadd.f32 0.0, %v6485
  %v6487 = vpop.f32.mrb[0].mxu0
  %6488 = vmatprep.mubr.f32.mxu0 %v5445
  %6489 = vmatmul.mubr.f32.gmra.mrb[0].mxu0 %v5444
  %v6490 = vpop.f32.mrb[0].mxu0
  %v6491 = vadd.f32 0.0, %v6490
  %v6492 = vpop.f32.mrb[0].mxu0
  %6493 = vmatprep.mubr.f32.mxu0 %v5443
  %6494 = vmatmul.mubr.f32.gmra.mrb[0].mxu0 %v5442
  %v6495 = vpop.f32.mrb[0].mxu0
  %v6496 = vadd.f32 0.0, %v6495
  %v6497 = vpop.f32.mrb[0].mxu0
  %6498 = vmatprep.mubr.f32.mxu0 %v5441
  %6499 = vmatmul.mubr.f32.gmra.mrb[0].mxu0 %v5440
  %v6500 = vpop.f32.mrb[0].mxu0
  %v6501 = vadd.f32 0.0, %v6500
  %v6502 = vpop.f32.mrb[0].mxu0
  %6503 = vmatprep.mubr.f32.mxu0 %v5439
  %6504 = vmatmul.mubr.f32.gmra.mrb[0].mxu0 %v5438
  %v6505 = vpop.f32.mrb[0].mxu0
  %v6506 = vadd.f32 0.0, %v6505
  %v6507 = vpop.f32.mrb[0].mxu0
  %6508 = vmatprep.mubr.f32.mxu0 %v5437
  %6509 = vmatmul.mubr.f32.gmra.mrb[0].mxu0 %v5436
  %v6510 = vpop.f32.mrb[0].mxu0
  %v6511 = vadd.f32 0.0, %v6510
  %v6512 = vpop.f32.mrb[0].mxu0
  %6513 = vmatprep.mubr.f32.mxu0 %v5435
  %6514 = vmatmul.mubr.f32.gmra.mrb[0].mxu0 %v5434
  %v6515 = vpop.f32.mrb[0].mxu0
  %v6516 = vadd.f32 0.0, %v6515
  %v6517 = vpop.f32.mrb[0].mxu0
  %6518 = vmatprep.mubr.f32.mxu0 %v5497
  %6519 = vmatmul.mubr.f32.gmra.mrb[0].mxu0 %v5496
  %v6520 = vpop.f32.mrb[0].mxu0
  %v6521 = vadd.f32 0.0, %v6520
  %v6522 = vpop.f32.mrb[0].mxu0
  %6523 = vmatprep.mubr.f32.mxu0 %v5495
  %6524 = vmatmul.mubr.f32.gmra.mrb[0].mxu0 %v5494
  %v6525 = vpop.f32.mrb[0].mxu0
  %v6526 = vadd.f32 0.0, %v6525
  %v6527 = vpop.f32.mrb[0].mxu0
  %6528 = vdwg.mxu0
  %v6529 = vadd.f32 %v6239, %v6371
  %v6530 = vadd.f32 %v6240, %v6376
  %v6531 = vadd.f32 %v6241, %v6381
  %v6532 = vadd.f32 %v6242, %v6386
  %v6533 = vadd.f32 %v6243, %v6391
  %v6534 = vadd.f32 %v6244, %v6396
  %v6535 = vadd.f32 %v6245, %v6401
  %v6536 = vadd.f32 %v6246, %v6406
  %v6537 = vadd.f32 %v6247, %v6411
  %v6538 = vadd.f32 %v6248, %v6416
  %v6539 = vadd.f32 %v6249, %v6421
  %v6540 = vadd.f32 %v6250, %v6426
  %v6541 = vadd.f32 %v6251, %v6431
  %v6542 = vadd.f32 %v6252, %v6436
  %v6543 = vadd.f32 %v6253, %v6441
  %v6544 = vadd.f32 %v6254, %v6446
  %v6545 = vadd.f32 %v6255, %v6451
  %v6546 = vadd.f32 %v6256, %v6456
  %v6547 = vadd.f32 %v6257, %v6461
  %v6548 = vadd.f32 %v6258, %v6466
  %v6549 = vadd.f32 %v6259, %v6471
  %v6550 = vadd.f32 %v6260, %v6476
  %v6551 = vadd.f32 %v6261, %v6481
  %v6552 = vadd.f32 %v6262, %v6486
  %v6553 = vadd.f32 %v6263, %v6491
  %v6554 = vadd.f32 %v6264, %v6496
  %v6555 = vadd.f32 %v6265, %v6501
  %v6556 = vadd.f32 %v6266, %v6506
  %v6557 = vadd.f32 %v6267, %v6511
  %v6558 = vadd.f32 %v6268, %v6516
  %v6559 = vadd.f32 %v6269, %v6521
  %v6560 = vadd.f32 %v6270, %v6526
  %s6561 = scalar_lea.vmem %s5, 1024
  %v6562 = vld [vmem:[%s6561] sm:$0xff]
  %v6563 = vld [vmem:[%s6561 + $0x8] sm:$0xff]
  %v6564 = vld [vmem:[%s6561 + $0x10] sm:$0xff]
  %v6565 = vld [vmem:[%s6561 + $0x18] sm:$0xff]
  %v6566 = vld [vmem:[%s6561 + $0x20] sm:$0xff]
  %v6567 = vld [vmem:[%s6561 + $0x28] sm:$0xff]
  %v6568 = vld [vmem:[%s6561 + $0x30] sm:$0xff]
  %v6569 = vld [vmem:[%s6561 + $0x38] sm:$0xff]
  %v6570 = vld [vmem:[%s6561 + $0x40] sm:$0xff]
  %v6571 = vld [vmem:[%s6561 + $0x48] sm:$0xff]
  %v6572 = vld [vmem:[%s6561 + $0x50] sm:$0xff]
  %v6573 = vld [vmem:[%s6561 + $0x58] sm:$0xff]
  %v6574 = vld [vmem:[%s6561 + $0x60] sm:$0xff]
  %v6575 = vld [vmem:[%s6561 + $0x68] sm:$0xff]
  %v6576 = vld [vmem:[%s6561 + $0x70] sm:$0xff]
  %v6577 = vld [vmem:[%s6561 + $0x78] sm:$0xff]
  %v6578 = vld [vmem:[%s6561 + $0x80] sm:$0xff]
  %v6579 = vld [vmem:[%s6561 + $0x88] sm:$0xff]
  %v6580 = vld [vmem:[%s6561 + $0x90] sm:$0xff]
  %v6581 = vld [vmem:[%s6561 + $0x98] sm:$0xff]
  %v6582 = vld [vmem:[%s6561 + $0xa0] sm:$0xff]
  %v6583 = vld [vmem:[%s6561 + $0xa8] sm:$0xff]
  %v6584 = vld [vmem:[%s6561 + $0xb0] sm:$0xff]
  %v6585 = vld [vmem:[%s6561 + $0xb8] sm:$0xff]
  %v6586 = vld [vmem:[%s6561 + $0xc0] sm:$0xff]
  %v6587 = vld [vmem:[%s6561 + $0xc8] sm:$0xff]
  %v6588 = vld [vmem:[%s6561 + $0xd0] sm:$0xff]
  %v6589 = vld [vmem:[%s6561 + $0xd8] sm:$0xff]
  %v6590 = vld [vmem:[%s6561 + $0xe0] sm:$0xff]
  %v6591 = vld [vmem:[%s6561 + $0xe8] sm:$0xff]
  %v6592 = vld [vmem:[%s6561 + $0xf0] sm:$0xff]
  %v6593 = vld [vmem:[%s6561 + $0xf8] sm:$0xff]
  %6594 = vmatprep.subr.mxu0 0.0
  %6595 = vmatpush1.msra.mxu0 %v6562
  %6596 = vmatprep.subr.mxu0 0.0
  %6597 = vmatpush1.msra.mxu0 %v6563
  %6598 = vmatprep.subr.mxu0 0.0
  %6599 = vmatpush1.msra.mxu0 %v6564
  %6600 = vmatprep.subr.mxu0 0.0
  %6601 = vmatpush1.msra.mxu0 %v6565
  %6602 = vmatprep.subr.mxu0 0.0
  %6603 = vmatpush1.msra.mxu0 %v6566
  %6604 = vmatprep.subr.mxu0 0.0
  %6605 = vmatpush1.msra.mxu0 %v6567
  %6606 = vmatprep.subr.mxu0 0.0
  %6607 = vmatpush1.msra.mxu0 %v6568
  %6608 = vmatprep.subr.mxu0 0.0
  %6609 = vmatpush1.msra.mxu0 %v6569
  %6610 = vmatprep.subr.mxu0 0.0
  %6611 = vmatpush1.msra.mxu0 %v6570
  %6612 = vmatprep.subr.mxu0 0.0
  %6613 = vmatpush1.msra.mxu0 %v6571
  %6614 = vmatprep.subr.mxu0 0.0
  %6615 = vmatpush1.msra.mxu0 %v6572
  %6616 = vmatprep.subr.mxu0 0.0
  %6617 = vmatpush1.msra.mxu0 %v6573
  %6618 = vmatprep.subr.mxu0 0.0
  %6619 = vmatpush1.msra.mxu0 %v6574
  %6620 = vmatprep.subr.mxu0 0.0
  %6621 = vmatpush1.msra.mxu0 %v6575
  %6622 = vmatprep.subr.mxu0 0.0
  %6623 = vmatpush1.msra.mxu0 %v6576
  %6624 = vmatprep.subr.mxu0 0.0
  %6625 = vmatpush1.msra.mxu0 %v6577
  %6626 = vmatprep.subr.mxu0 0.0
  %6627 = vmatpush1.msra.mxu0 %v6578
  %6628 = vmatprep.subr.mxu0 0.0
  %6629 = vmatpush1.msra.mxu0 %v6579
  %6630 = vmatprep.subr.mxu0 0.0
  %6631 = vmatpush1.msra.mxu0 %v6580
  %6632 = vmatprep.subr.mxu0 0.0
  %6633 = vmatpush1.msra.mxu0 %v6581
  %6634 = vmatprep.subr.mxu0 0.0
  %6635 = vmatpush1.msra.mxu0 %v6582
  %6636 = vmatprep.subr.mxu0 0.0
  %6637 = vmatpush1.msra.mxu0 %v6583
  %6638 = vmatprep.subr.mxu0 0.0
  %6639 = vmatpush1.msra.mxu0 %v6584
  %6640 = vmatprep.subr.mxu0 0.0
  %6641 = vmatpush1.msra.mxu0 %v6585
  %6642 = vmatprep.subr.mxu0 0.0
  %6643 = vmatpush1.msra.mxu0 %v6586
  %6644 = vmatprep.subr.mxu0 0.0
  %6645 = vmatpush1.msra.mxu0 %v6587
  %6646 = vmatprep.subr.mxu0 0.0
  %6647 = vmatpush1.msra.mxu0 %v6588
  %6648 = vmatprep.subr.mxu0 0.0
  %6649 = vmatpush1.msra.mxu0 %v6589
  %6650 = vmatprep.subr.mxu0 0.0
  %6651 = vmatpush1.msra.mxu0 %v6590
  %6652 = vmatprep.subr.mxu0 0.0
  %6653 = vmatpush1.msra.mxu0 %v6591
  %6654 = vmatprep.subr.mxu0 0.0
  %6655 = vmatpush1.msra.mxu0 %v6592
  %6656 = vmatprep.subr.mxu0 0.0
  %6657 = vmatpush1.msra.mxu0 %v6593
  %6658 = vmatprep.mubr.f32.mxu0 %v5279
  %6659 = vmatmul.mubr.f32.gmra.mrb[0].mxu0 %v5278
  %v6660 = vpop.f32.mrb[0].mxu0
  %v6661 = vadd.f32 0.0, %v6660
  %v6662 = vpop.f32.mrb[0].mxu0
  %6663 = vmatprep.mubr.f32.mxu0 %v5281
  %6664 = vmatmul.mubr.f32.gmra.mrb[0].mxu0 %v5280
  %v6665 = vpop.f32.mrb[0].mxu0
  %v6666 = vadd.f32 0.0, %v6665
  %v6667 = vpop.f32.mrb[0].mxu0
  %6668 = vmatprep.mubr.f32.mxu0 %v5283
  %6669 = vmatmul.mubr.f32.gmra.mrb[0].mxu0 %v5282
  %v6670 = vpop.f32.mrb[0].mxu0
  %v6671 = vadd.f32 0.0, %v6670
  %v6672 = vpop.f32.mrb[0].mxu0
  %6673 = vmatprep.mubr.f32.mxu0 %v5285
  %6674 = vmatmul.mubr.f32.gmra.mrb[0].mxu0 %v5284
  %v6675 = vpop.f32.mrb[0].mxu0
  %v6676 = vadd.f32 0.0, %v6675
  %v6677 = vpop.f32.mrb[0].mxu0
  %6678 = vmatprep.mubr.f32.mxu0 %v5287
  %6679 = vmatmul.mubr.f32.gmra.mrb[0].mxu0 %v5286
  %v6680 = vpop.f32.mrb[0].mxu0
  %v6681 = vadd.f32 0.0, %v6680
  %v6682 = vpop.f32.mrb[0].mxu0
  %6683 = vmatprep.mubr.f32.mxu0 %v5289
  %6684 = vmatmul.mubr.f32.gmra.mrb[0].mxu0 %v5288
  %v6685 = vpop.f32.mrb[0].mxu0
  %v6686 = vadd.f32 0.0, %v6685
  %v6687 = vpop.f32.mrb[0].mxu0
  %6688 = vmatprep.mubr.f32.mxu0 %v5291
  %6689 = vmatmul.mubr.f32.gmra.mrb[0].mxu0 %v5290
  %v6690 = vpop.f32.mrb[0].mxu0
  %v6691 = vadd.f32 0.0, %v6690
  %v6692 = vpop.f32.mrb[0].mxu0
  %6693 = vmatprep.mubr.f32.mxu0 %v5293
  %6694 = vmatmul.mubr.f32.gmra.mrb[0].mxu0 %v5292
  %v6695 = vpop.f32.mrb[0].mxu0
  %v6696 = vadd.f32 0.0, %v6695
  %v6697 = vpop.f32.mrb[0].mxu0
  %6698 = vmatprep.mubr.f32.mxu0 %v5295
  %6699 = vmatmul.mubr.f32.gmra.mrb[0].mxu0 %v5294
  %v6700 = vpop.f32.mrb[0].mxu0
  %v6701 = vadd.f32 0.0, %v6700
  %v6702 = vpop.f32.mrb[0].mxu0
  %6703 = vmatprep.mubr.f32.mxu0 %v5297
  %6704 = vmatmul.mubr.f32.gmra.mrb[0].mxu0 %v5296
  %v6705 = vpop.f32.mrb[0].mxu0
  %v6706 = vadd.f32 0.0, %v6705
  %v6707 = vpop.f32.mrb[0].mxu0
  %6708 = vmatprep.mubr.f32.mxu0 %v5299
  %6709 = vmatmul.mubr.f32.gmra.mrb[0].mxu0 %v5298
  %v6710 = vpop.f32.mrb[0].mxu0
  %v6711 = vadd.f32 0.0, %v6710
  %v6712 = vpop.f32.mrb[0].mxu0
  %6713 = vmatprep.mubr.f32.mxu0 %v5301
  %6714 = vmatmul.mubr.f32.gmra.mrb[0].mxu0 %v5300
  %v6715 = vpop.f32.mrb[0].mxu0
  %v6716 = vadd.f32 0.0, %v6715
  %v6717 = vpop.f32.mrb[0].mxu0
  %6718 = vmatprep.mubr.f32.mxu0 %v5303
  %6719 = vmatmul.mubr.f32.gmra.mrb[0].mxu0 %v5302
  %v6720 = vpop.f32.mrb[0].mxu0
  %v6721 = vadd.f32 0.0, %v6720
  %v6722 = vpop.f32.mrb[0].mxu0
  %6723 = vmatprep.mubr.f32.mxu0 %v5305
  %6724 = vmatmul.mubr.f32.gmra.mrb[0].mxu0 %v5304
  %v6725 = vpop.f32.mrb[0].mxu0
  %v6726 = vadd.f32 0.0, %v6725
  %v6727 = vpop.f32.mrb[0].mxu0
  %6728 = vmatprep.mubr.f32.mxu0 %v5307
  %6729 = vmatmul.mubr.f32.gmra.mrb[0].mxu0 %v5306
  %v6730 = vpop.f32.mrb[0].mxu0
  %v6731 = vadd.f32 0.0, %v6730
  %v6732 = vpop.f32.mrb[0].mxu0
  %6733 = vmatprep.mubr.f32.mxu0 %v5309
  %6734 = vmatmul.mubr.f32.gmra.mrb[0].mxu0 %v5308
  %v6735 = vpop.f32.mrb[0].mxu0
  %v6736 = vadd.f32 0.0, %v6735
  %v6737 = vpop.f32.mrb[0].mxu0
  %6738 = vmatprep.mubr.f32.mxu0 %v5311
  %6739 = vmatmul.mubr.f32.gmra.mrb[0].mxu0 %v5310
  %v6740 = vpop.f32.mrb[0].mxu0
  %v6741 = vadd.f32 0.0, %v6740
  %v6742 = vpop.f32.mrb[0].mxu0
  %6743 = vmatprep.mubr.f32.mxu0 %v5313
  %6744 = vmatmul.mubr.f32.gmra.mrb[0].mxu0 %v5312
  %v6745 = vpop.f32.mrb[0].mxu0
  %v6746 = vadd.f32 0.0, %v6745
  %v6747 = vpop.f32.mrb[0].mxu0
  %6748 = vmatprep.mubr.f32.mxu0 %v5315
  %6749 = vmatmul.mubr.f32.gmra.mrb[0].mxu0 %v5314
  %v6750 = vpop.f32.mrb[0].mxu0
  %v6751 = vadd.f32 0.0, %v6750
  %v6752 = vpop.f32.mrb[0].mxu0
  %6753 = vmatprep.mubr.f32.mxu0 %v5317
  %6754 = vmatmul.mubr.f32.gmra.mrb[0].mxu0 %v5316
  %v6755 = vpop.f32.mrb[0].mxu0
  %v6756 = vadd.f32 0.0, %v6755
  %v6757 = vpop.f32.mrb[0].mxu0
  %6758 = vmatprep.mubr.f32.mxu0 %v5319
  %6759 = vmatmul.mubr.f32.gmra.mrb[0].mxu0 %v5318
  %v6760 = vpop.f32.mrb[0].mxu0
  %v6761 = vadd.f32 0.0, %v6760
  %v6762 = vpop.f32.mrb[0].mxu0
  %6763 = vmatprep.mubr.f32.mxu0 %v5321
  %6764 = vmatmul.mubr.f32.gmra.mrb[0].mxu0 %v5320
  %v6765 = vpop.f32.mrb[0].mxu0
  %v6766 = vadd.f32 0.0, %v6765
  %v6767 = vpop.f32.mrb[0].mxu0
  %6768 = vmatprep.mubr.f32.mxu0 %v5323
  %6769 = vmatmul.mubr.f32.gmra.mrb[0].mxu0 %v5322
  %v6770 = vpop.f32.mrb[0].mxu0
  %v6771 = vadd.f32 0.0, %v6770
  %v6772 = vpop.f32.mrb[0].mxu0
  %6773 = vmatprep.mubr.f32.mxu0 %v5325
  %6774 = vmatmul.mubr.f32.gmra.mrb[0].mxu0 %v5324
  %v6775 = vpop.f32.mrb[0].mxu0
  %v6776 = vadd.f32 0.0, %v6775
  %v6777 = vpop.f32.mrb[0].mxu0
  %6778 = vmatprep.mubr.f32.mxu0 %v5327
  %6779 = vmatmul.mubr.f32.gmra.mrb[0].mxu0 %v5326
  %v6780 = vpop.f32.mrb[0].mxu0
  %v6781 = vadd.f32 0.0, %v6780
  %v6782 = vpop.f32.mrb[0].mxu0
  %6783 = vmatprep.mubr.f32.mxu0 %v5329
  %6784 = vmatmul.mubr.f32.gmra.mrb[0].mxu0 %v5328
  %v6785 = vpop.f32.mrb[0].mxu0
  %v6786 = vadd.f32 0.0, %v6785
  %v6787 = vpop.f32.mrb[0].mxu0
  %6788 = vmatprep.mubr.f32.mxu0 %v5331
  %6789 = vmatmul.mubr.f32.gmra.mrb[0].mxu0 %v5330
  %v6790 = vpop.f32.mrb[0].mxu0
  %v6791 = vadd.f32 0.0, %v6790
  %v6792 = vpop.f32.mrb[0].mxu0
  %6793 = vmatprep.mubr.f32.mxu0 %v5333
  %6794 = vmatmul.mubr.f32.gmra.mrb[0].mxu0 %v5332
  %v6795 = vpop.f32.mrb[0].mxu0
  %v6796 = vadd.f32 0.0, %v6795
  %v6797 = vpop.f32.mrb[0].mxu0
  %6798 = vmatprep.mubr.f32.mxu0 %v5335
  %6799 = vmatmul.mubr.f32.gmra.mrb[0].mxu0 %v5334
  %v6800 = vpop.f32.mrb[0].mxu0
  %v6801 = vadd.f32 0.0, %v6800
  %v6802 = vpop.f32.mrb[0].mxu0
  %6803 = vmatprep.mubr.f32.mxu0 %v5337
  %6804 = vmatmul.mubr.f32.gmra.mrb[0].mxu0 %v5336
  %v6805 = vpop.f32.mrb[0].mxu0
  %v6806 = vadd.f32 0.0, %v6805
  %v6807 = vpop.f32.mrb[0].mxu0
  %6808 = vmatprep.mubr.f32.mxu0 %v5275
  %6809 = vmatmul.mubr.f32.gmra.mrb[0].mxu0 %v5274
  %v6810 = vpop.f32.mrb[0].mxu0
  %v6811 = vadd.f32 0.0, %v6810
  %v6812 = vpop.f32.mrb[0].mxu0
  %6813 = vmatprep.mubr.f32.mxu0 %v5277
  %6814 = vmatmul.mubr.f32.gmra.mrb[0].mxu0 %v5276
  %v6815 = vpop.f32.mrb[0].mxu0
  %v6816 = vadd.f32 0.0, %v6815
  %v6817 = vpop.f32.mrb[0].mxu0
  %6818 = vdwg.mxu0
  %v6819 = vadd.f32 %v6529, %v6661
  %v6820 = vadd.f32 %v6530, %v6666
  %v6821 = vadd.f32 %v6531, %v6671
  %v6822 = vadd.f32 %v6532, %v6676
  %v6823 = vadd.f32 %v6533, %v6681
  %v6824 = vadd.f32 %v6534, %v6686
  %v6825 = vadd.f32 %v6535, %v6691
  %v6826 = vadd.f32 %v6536, %v6696
  %v6827 = vadd.f32 %v6537, %v6701
  %v6828 = vadd.f32 %v6538, %v6706
  %v6829 = vadd.f32 %v6539, %v6711
  %v6830 = vadd.f32 %v6540, %v6716
  %v6831 = vadd.f32 %v6541, %v6721
  %v6832 = vadd.f32 %v6542, %v6726
  %v6833 = vadd.f32 %v6543, %v6731
  %v6834 = vadd.f32 %v6544, %v6736
  %v6835 = vadd.f32 %v6545, %v6741
  %v6836 = vadd.f32 %v6546, %v6746
  %v6837 = vadd.f32 %v6547, %v6751
  %v6838 = vadd.f32 %v6548, %v6756
  %v6839 = vadd.f32 %v6549, %v6761
  %v6840 = vadd.f32 %v6550, %v6766
  %v6841 = vadd.f32 %v6551, %v6771
  %v6842 = vadd.f32 %v6552, %v6776
  %v6843 = vadd.f32 %v6553, %v6781
  %v6844 = vadd.f32 %v6554, %v6786
  %v6845 = vadd.f32 %v6555, %v6791
  %v6846 = vadd.f32 %v6556, %v6796
  %v6847 = vadd.f32 %v6557, %v6801
  %v6848 = vadd.f32 %v6558, %v6806
  %v6849 = vadd.f32 %v6559, %v6811
  %v6850 = vadd.f32 %v6560, %v6816
  %v6851 = vld [vmem:[%s6] sm:$0x1]
  %v6853 = vlaneseq
  %v6854 = vshrl.u32 %v6853, 7
  %v6855 = vsub.s32 0, %v6854
  %v6856 = vrot.slane %v6851, %v6855
  %v6858 = vadd.f32 %v6819, %v6856
  %v6859 = vadd.f32 %v6820, %v6856
  %v6860 = vadd.f32 %v6821, %v6856
  %v6861 = vadd.f32 %v6822, %v6856
  %v6862 = vadd.f32 %v6823, %v6856
  %v6863 = vadd.f32 %v6824, %v6856
  %v6864 = vadd.f32 %v6825, %v6856
  %v6865 = vadd.f32 %v6826, %v6856
  %v6866 = vadd.f32 %v6827, %v6856
  %v6867 = vadd.f32 %v6828, %v6856
  %v6868 = vadd.f32 %v6829, %v6856
  %v6869 = vadd.f32 %v6830, %v6856
  %v6870 = vadd.f32 %v6831, %v6856
  %v6871 = vadd.f32 %v6832, %v6856
  %v6872 = vadd.f32 %v6833, %v6856
  %v6873 = vadd.f32 %v6834, %v6856
  %v6874 = vadd.f32 %v6835, %v6856
  %v6875 = vadd.f32 %v6836, %v6856
  %v6876 = vadd.f32 %v6837, %v6856
  %v6877 = vadd.f32 %v6838, %v6856
  %v6878 = vadd.f32 %v6839, %v6856
  %v6879 = vadd.f32 %v6840, %v6856
  %v6880 = vadd.f32 %v6841, %v6856
  %v6881 = vadd.f32 %v6842, %v6856
  %v6882 = vadd.f32 %v6843, %v6856
  %v6883 = vadd.f32 %v6844, %v6856
  %v6884 = vadd.f32 %v6845, %v6856
  %v6885 = vadd.f32 %v6846, %v6856
  %v6886 = vadd.f32 %v6847, %v6856
  %v6887 = vadd.f32 %v6848, %v6856
  %v6888 = vadd.f32 %v6849, %v6856
  %v6889 = vadd.f32 %v6850, %v6856
  %v6890 = vmax.f32 %v6858, 0.0
  %v6891 = vmax.f32 %v6859, 0.0
  %v6892 = vmax.f32 %v6860, 0.0
  %v6893 = vmax.f32 %v6861, 0.0
  %v6894 = vmax.f32 %v6862, 0.0
  %v6895 = vmax.f32 %v6863, 0.0
  %v6896 = vmax.f32 %v6864, 0.0
  %v6897 = vmax.f32 %v6865, 0.0
  %v6898 = vmax.f32 %v6866, 0.0
  %v6899 = vmax.f32 %v6867, 0.0
  %v6900 = vmax.f32 %v6868, 0.0
  %v6901 = vmax.f32 %v6869, 0.0
  %v6902 = vmax.f32 %v6870, 0.0
  %v6903 = vmax.f32 %v6871, 0.0
  %v6904 = vmax.f32 %v6872, 0.0
  %v6905 = vmax.f32 %v6873, 0.0
  %v6906 = vmax.f32 %v6874, 0.0
  %v6907 = vmax.f32 %v6875, 0.0
  %v6908 = vmax.f32 %v6876, 0.0
  %v6909 = vmax.f32 %v6877, 0.0
  %v6910 = vmax.f32 %v6878, 0.0
  %v6911 = vmax.f32 %v6879, 0.0
  %v6912 = vmax.f32 %v6880, 0.0
  %v6913 = vmax.f32 %v6881, 0.0
  %v6914 = vmax.f32 %v6882, 0.0
  %v6915 = vmax.f32 %v6883, 0.0
  %v6916 = vmax.f32 %v6884, 0.0
  %v6917 = vmax.f32 %v6885, 0.0
  %v6918 = vmax.f32 %v6886, 0.0
  %v6919 = vmax.f32 %v6887, 0.0
  %v6920 = vmax.f32 %v6888, 0.0
  %v6921 = vmax.f32 %v6889, 0.0
  %v6922 = vadd.s32 %v2242, 128
  %v6923 = vmul.u32 %v135, 32
  %vm6924 = vcmp.eq.s32.totalorder %v2242, %v6923
  %vm6925 = vcmp.eq.s32.totalorder %v6922, %v6923
  %v6926 = vsel %vm6924, 1, 0
  %v6927 = vsel %vm6925, 1, 0
  %v6928 = vcvt.s32.f32 %v6926
  %v6929 = vcvt.s32.f32 %v6927
  %6930 = vmatprep.subr.mxu0 0.0
  %6931 = vmatpush1.msra.mxu0 %v6890
  %6932 = vmatprep.subr.mxu0 0.0
  %6933 = vmatpush1.msra.mxu0 %v6891
  %6934 = vmatprep.subr.mxu0 0.0
  %6935 = vmatpush1.msra.mxu0 %v6892
  %6936 = vmatprep.subr.mxu0 0.0
  %6937 = vmatpush1.msra.mxu0 %v6893
  %6938 = vmatprep.subr.mxu0 0.0
  %6939 = vmatpush1.msra.mxu0 %v6894
  %6940 = vmatprep.subr.mxu0 0.0
  %6941 = vmatpush1.msra.mxu0 %v6895
  %6942 = vmatprep.subr.mxu0 0.0
  %6943 = vmatpush1.msra.mxu0 %v6896
  %6944 = vmatprep.subr.mxu0 0.0
  %6945 = vmatpush1.msra.mxu0 %v6897
  %6946 = vmatprep.subr.mxu0 0.0
  %6947 = vmatpush1.msra.mxu0 %v6898
  %6948 = vmatprep.subr.mxu0 0.0
  %6949 = vmatpush1.msra.mxu0 %v6899
  %6950 = vmatprep.subr.mxu0 0.0
  %6951 = vmatpush1.msra.mxu0 %v6900
  %6952 = vmatprep.subr.mxu0 0.0
  %6953 = vmatpush1.msra.mxu0 %v6901
  %6954 = vmatprep.subr.mxu0 0.0
  %6955 = vmatpush1.msra.mxu0 %v6902
  %6956 = vmatprep.subr.mxu0 0.0
  %6957 = vmatpush1.msra.mxu0 %v6903
  %6958 = vmatprep.subr.mxu0 0.0
  %6959 = vmatpush1.msra.mxu0 %v6904
  %6960 = vmatprep.subr.mxu0 0.0
  %6961 = vmatpush1.msra.mxu0 %v6905
  %6962 = vmatprep.subr.mxu0 0.0
  %6963 = vmatpush1.msra.mxu0 %v6906
  %6964 = vmatprep.subr.mxu0 0.0
  %6965 = vmatpush1.msra.mxu0 %v6907
  %6966 = vmatprep.subr.mxu0 0.0
  %6967 = vmatpush1.msra.mxu0 %v6908
  %6968 = vmatprep.subr.mxu0 0.0
  %6969 = vmatpush1.msra.mxu0 %v6909
  %6970 = vmatprep.subr.mxu0 0.0
  %6971 = vmatpush1.msra.mxu0 %v6910
  %6972 = vmatprep.subr.mxu0 0.0
  %6973 = vmatpush1.msra.mxu0 %v6911
  %6974 = vmatprep.subr.mxu0 0.0
  %6975 = vmatpush1.msra.mxu0 %v6912
  %6976 = vmatprep.subr.mxu0 0.0
  %6977 = vmatpush1.msra.mxu0 %v6913
  %6978 = vmatprep.subr.mxu0 0.0
  %6979 = vmatpush1.msra.mxu0 %v6914
  %6980 = vmatprep.subr.mxu0 0.0
  %6981 = vmatpush1.msra.mxu0 %v6915
  %6982 = vmatprep.subr.mxu0 0.0
  %6983 = vmatpush1.msra.mxu0 %v6916
  %6984 = vmatprep.subr.mxu0 0.0
  %6985 = vmatpush1.msra.mxu0 %v6917
  %6986 = vmatprep.subr.mxu0 0.0
  %6987 = vmatpush1.msra.mxu0 %v6918
  %6988 = vmatprep.subr.mxu0 0.0
  %6989 = vmatpush1.msra.mxu0 %v6919
  %6990 = vmatprep.subr.mxu0 0.0
  %6991 = vmatpush1.msra.mxu0 %v6920
  %6992 = vmatprep.subr.mxu0 0.0
  %6993 = vmatpush1.msra.mxu0 %v6921
  %6994 = vmatprep.mubr.f32.mxu0 %v6929
  %6995 = vmatmul.mubr.f32.gmra.mrb[0].mxu0 %v6928
  %v6996 = vpop.f32.mrb[0].mxu0
  %v6997 = vadd.f32 0.0, %v6996
  %v6998 = vpop.f32.mrb[0].mxu0
  %6999 = vdwg.mxu0
  %v7000 = vld [vmem:[%s7] sm:$0xff]
  %v7001 = vld [vmem:[%s7 + $0x8] sm:$0xff]
  %v7002 = vld [vmem:[%s7 + $0x10] sm:$0xff]
  %v7003 = vld [vmem:[%s7 + $0x18] sm:$0xff]
  %v7004 = vld [vmem:[%s7 + $0x20] sm:$0xff]
  %v7005 = vld [vmem:[%s7 + $0x28] sm:$0xff]
  %v7006 = vld [vmem:[%s7 + $0x30] sm:$0xff]
  %v7007 = vld [vmem:[%s7 + $0x38] sm:$0xff]
  %v7008 = vld [vmem:[%s7 + $0x40] sm:$0xff]
  %v7009 = vld [vmem:[%s7 + $0x48] sm:$0xff]
  %v7010 = vld [vmem:[%s7 + $0x50] sm:$0xff]
  %v7011 = vld [vmem:[%s7 + $0x58] sm:$0xff]
  %v7012 = vld [vmem:[%s7 + $0x60] sm:$0xff]
  %v7013 = vld [vmem:[%s7 + $0x68] sm:$0xff]
  %v7014 = vld [vmem:[%s7 + $0x70] sm:$0xff]
  %v7015 = vld [vmem:[%s7 + $0x78] sm:$0xff]
  %v7016 = vld [vmem:[%s8] sm:$0x1]
  %v7018 = vlaneseq
  %v7019 = vshrl.u32 %v7018, 7
  %v7020 = vsub.s32 0, %v7019
  %v7021 = vrot.slane %v7016, %v7020
  %7023 = vmatprep.subr.mxu0 0.0
  %7024 = vmatpush1.msra.mxu0 %v7000
  %7025 = vmatprep.subr.mxu0 0.0
  %7026 = vmatpush1.msra.mxu0 %v7001
  %7027 = vmatprep.subr.mxu0 0.0
  %7028 = vmatpush1.msra.mxu0 %v7002
  %7029 = vmatprep.subr.mxu0 0.0
  %7030 = vmatpush1.msra.mxu0 %v7003
  %7031 = vmatprep.subr.mxu0 0.0
  %7032 = vmatpush1.msra.mxu0 %v7004
  %7033 = vmatprep.subr.mxu0 0.0
  %7034 = vmatpush1.msra.mxu0 %v7005
  %7035 = vmatprep.subr.mxu0 0.0
  %7036 = vmatpush1.msra.mxu0 %v7006
  %7037 = vmatprep.subr.mxu0 0.0
  %7038 = vmatpush1.msra.mxu0 %v7007
  %7039 = vmatprep.subr.mxu0 0.0
  %7040 = vmatpush1.msra.mxu0 %v7008
  %7041 = vmatprep.subr.mxu0 0.0
  %7042 = vmatpush1.msra.mxu0 %v7009
  %7043 = vmatprep.subr.mxu0 0.0
  %7044 = vmatpush1.msra.mxu0 %v7010
  %7045 = vmatprep.subr.mxu0 0.0
  %7046 = vmatpush1.msra.mxu0 %v7011
  %7047 = vmatprep.subr.mxu0 0.0
  %7048 = vmatpush1.msra.mxu0 %v7012
  %7049 = vmatprep.subr.mxu0 0.0
  %7050 = vmatpush1.msra.mxu0 %v7013
  %7051 = vmatprep.subr.mxu0 0.0
  %7052 = vmatpush1.msra.mxu0 %v7014
  %7053 = vmatprep.subr.mxu0 0.0
  %7054 = vmatpush1.msra.mxu0 %v7015
  %7055 = vmatprep.subr.mxu0 0.0
  %7056 = vmatpush1.msra.mxu0 0.0
  %7057 = vmatprep.subr.mxu0 0.0
  %7058 = vmatpush1.msra.mxu0 0.0
  %7059 = vmatprep.subr.mxu0 0.0
  %7060 = vmatpush1.msra.mxu0 0.0
  %7061 = vmatprep.subr.mxu0 0.0
  %7062 = vmatpush1.msra.mxu0 0.0
  %7063 = vmatprep.subr.mxu0 0.0
  %7064 = vmatpush1.msra.mxu0 0.0
  %7065 = vmatprep.subr.mxu0 0.0
  %7066 = vmatpush1.msra.mxu0 0.0
  %7067 = vmatprep.subr.mxu0 0.0
  %7068 = vmatpush1.msra.mxu0 0.0
  %7069 = vmatprep.subr.mxu0 0.0
  %7070 = vmatpush1.msra.mxu0 0.0
  %7071 = vmatprep.subr.mxu0 0.0
  %7072 = vmatpush1.msra.mxu0 0.0
  %7073 = vmatprep.subr.mxu0 0.0
  %7074 = vmatpush1.msra.mxu0 0.0
  %7075 = vmatprep.subr.mxu0 0.0
  %7076 = vmatpush1.msra.mxu0 0.0
  %7077 = vmatprep.subr.mxu0 0.0
  %7078 = vmatpush1.msra.mxu0 0.0
  %7079 = vmatprep.subr.mxu0 0.0
  %7080 = vmatpush1.msra.mxu0 0.0
  %7081 = vmatprep.subr.mxu0 0.0
  %7082 = vmatpush1.msra.mxu0 0.0
  %7083 = vmatprep.subr.mxu0 0.0
  %7084 = vmatpush1.msra.mxu0 0.0
  %7085 = vmatprep.subr.mxu0 0.0
  %7086 = vmatpush1.msra.mxu0 0.0
  %7087 = vmatprep.mubr.f32.mxu0 0.0
  %7088 = vmatmul.mubr.f32.gmra.mrb[0].mxu0 %v6997
  %v7089 = vpop.f32.mrb[0].mxu0
  %v7090 = vadd.f32 %v7021, %v7089
  %v7091 = vpop.f32.mrb[0].mxu0
  %7092 = vdwg.mxu0
  %v7093 = vmax.f32 %v7090, 0.0
  %v7094 = vld [vmem:[%s9] sm:$0xff]
  %v7095 = vld [vmem:[%s9 + $0x8] sm:$0xff]
  %v7096 = vld [vmem:[%s9 + $0x10] sm:$0xff]
  %v7097 = vld [vmem:[%s9 + $0x18] sm:$0xff]
  %v7098 = vld [vmem:[%s9 + $0x20] sm:$0xff]
  %v7099 = vld [vmem:[%s9 + $0x28] sm:$0xff]
  %v7100 = vld [vmem:[%s9 + $0x30] sm:$0xff]
  %v7101 = vld [vmem:[%s9 + $0x38] sm:$0xff]
  %v7102 = vld [vmem:[%s9 + $0x40] sm:$0xff]
  %v7103 = vld [vmem:[%s9 + $0x48] sm:$0xff]
  %v7104 = vld [vmem:[%s9 + $0x50] sm:$0xff]
  %v7105 = vld [vmem:[%s9 + $0x58] sm:$0xff]
  %v7106 = vld [vmem:[%s9 + $0x60] sm:$0xff]
  %v7107 = vld [vmem:[%s9 + $0x68] sm:$0xff]
  %v7108 = vld [vmem:[%s9 + $0x70] sm:$0xff]
  %v7109 = vld [vmem:[%s9 + $0x78] sm:$0xff]
  %v7110 = vld [vmem:[%s10] sm:$0x1]
  %v7112 = vlaneseq
  %v7113 = vshrl.u32 %v7112, 7
  %v7114 = vsub.s32 0, %v7113
  %v7115 = vrot.slane %v7110, %v7114
  %7117 = vmatprep.subr.mxu0 0.0
  %7118 = vmatpush1.msra.mxu0 %v7094
  %7119 = vmatprep.subr.mxu0 0.0
  %7120 = vmatpush1.msra.mxu0 %v7095
  %7121 = vmatprep.subr.mxu0 0.0
  %7122 = vmatpush1.msra.mxu0 %v7096
  %7123 = vmatprep.subr.mxu0 0.0
  %7124 = vmatpush1.msra.mxu0 %v7097
  %7125 = vmatprep.subr.mxu0 0.0
  %7126 = vmatpush1.msra.mxu0 %v7098
  %7127 = vmatprep.subr.mxu0 0.0
  %7128 = vmatpush1.msra.mxu0 %v7099
  %7129 = vmatprep.subr.mxu0 0.0
  %7130 = vmatpush1.msra.mxu0 %v7100
  %7131 = vmatprep.subr.mxu0 0.0
  %7132 = vmatpush1.msra.mxu0 %v7101
  %7133 = vmatprep.subr.mxu0 0.0
  %7134 = vmatpush1.msra.mxu0 %v7102
  %7135 = vmatprep.subr.mxu0 0.0
  %7136 = vmatpush1.msra.mxu0 %v7103
  %7137 = vmatprep.subr.mxu0 0.0
  %7138 = vmatpush1.msra.mxu0 %v7104
  %7139 = vmatprep.subr.mxu0 0.0
  %7140 = vmatpush1.msra.mxu0 %v7105
  %7141 = vmatprep.subr.mxu0 0.0
  %7142 = vmatpush1.msra.mxu0 %v7106
  %7143 = vmatprep.subr.mxu0 0.0
  %7144 = vmatpush1.msra.mxu0 %v7107
  %7145 = vmatprep.subr.mxu0 0.0
  %7146 = vmatpush1.msra.mxu0 %v7108
  %7147 = vmatprep.subr.mxu0 0.0
  %7148 = vmatpush1.msra.mxu0 %v7109
  %7149 = vmatprep.subr.mxu0 0.0
  %7150 = vmatpush1.msra.mxu0 0.0
  %7151 = vmatprep.subr.mxu0 0.0
  %7152 = vmatpush1.msra.mxu0 0.0
  %7153 = vmatprep.subr.mxu0 0.0
  %7154 = vmatpush1.msra.mxu0 0.0
  %7155 = vmatprep.subr.mxu0 0.0
  %7156 = vmatpush1.msra.mxu0 0.0
  %7157 = vmatprep.subr.mxu0 0.0
  %7158 = vmatpush1.msra.mxu0 0.0
  %7159 = vmatprep.subr.mxu0 0.0
  %7160 = vmatpush1.msra.mxu0 0.0
  %7161 = vmatprep.subr.mxu0 0.0
  %7162 = vmatpush1.msra.mxu0 0.0
  %7163 = vmatprep.subr.mxu0 0.0
  %7164 = vmatpush1.msra.mxu0 0.0
  %7165 = vmatprep.subr.mxu0 0.0
  %7166 = vmatpush1.msra.mxu0 0.0
  %7167 = vmatprep.subr.mxu0 0.0
  %7168 = vmatpush1.msra.mxu0 0.0
  %7169 = vmatprep.subr.mxu0 0.0
  %7170 = vmatpush1.msra.mxu0 0.0
  %7171 = vmatprep.subr.mxu0 0.0
  %7172 = vmatpush1.msra.mxu0 0.0
  %7173 = vmatprep.subr.mxu0 0.0
  %7174 = vmatpush1.msra.mxu0 0.0
  %7175 = vmatprep.subr.mxu0 0.0
  %7176 = vmatpush1.msra.mxu0 0.0
  %7177 = vmatprep.subr.mxu0 0.0
  %7178 = vmatpush1.msra.mxu0 0.0
  %7179 = vmatprep.subr.mxu0 0.0
  %7180 = vmatpush1.msra.mxu0 0.0
  %7181 = vmatprep.mubr.f32.mxu0 0.0
  %7182 = vmatmul.mubr.f32.gmra.mrb[0].mxu0 %v7093
  %v7183 = vpop.f32.mrb[0].mxu0
  %v7184 = vadd.f32 %v7115, %v7183
  %v7185 = vpop.f32.mrb[0].mxu0
  %7186 = vdwg.mxu0
  %7187 = vst [vmem:[%s11] sm:$0xff] %v7184
  // Predicated region
  $region46: #{net_forward.1} parent=0 // pred_check
    _
  $region47: #{net_forward.1} parent=0 // pred_check_branch
    %7189 = sbr.rel (0) target = $region49
  $region48: #{net_forward.1} parent=0 // pred_region
    _
  $region49: #{net_forward.1} parent=0 // pred_fallthru
    _
  // Predicated region
  $region50: #{net_forward.1} parent=0 // pred_check
    _
  $region51: #{net_forward.1} parent=0 // pred_check_branch
    %7191 = sbr.rel (0) target = $region53
  $region52: #{net_forward.1} parent=0 // pred_region
    _
  $region53: #{net_forward.1} parent=0 // pred_fallthru
    _

</llo_original>
